<compile_context>
chip_gen: v7x
topology: tpu7x:2x2x1
jax: 0.10.0
libtpu: 0.0.40
codegen_flags: <defaults>
</compile_context>

<pallas_src>
import functools
import math

import jax
import jax.numpy as jnp
from jax.experimental import pallas as pl
from jax.experimental.pallas import tpu as pltpu


# ----------------------------- model config ---------------------------------
BATCH = 8
SEQ_LEN = 16
INPUT_SIZE = 4
HIDDEN_SIZE = 64
NUM_LAYERS = 2
NUM_CLASSES = 6
N_AHEAD = None          # module default: return predictions for all time steps

LANE = 128              # padded per-gate width / padded input width / classes


# ------------------------------- kernel -------------------------------------
def gru_kernel(x_ref, wih0_ref, wihr_ref, whh_ref, bih_ref, bhhn_ref,
               wfc_ref, bfc_ref, out_ref, seq_scr, gx_scr,
               *, seq_len, batch, hp, num_layers):
    b = batch

    def run_layer(layer_in_ref, wih_l, whh_l, bih_l, bhhn_l):
        # Input-side gate projections for the WHOLE sequence: one MXU matmul.
        # bih_l already contains the folded r/z parts of b_hh.
        gx_scr[...] = (jnp.dot(layer_in_ref[...], wih_l,
                               preferred_element_type=jnp.float32) + bih_l)
        # Hoist the n-gate recurrent-bias broadcast out of the unrolled loop.
        bhhn_b = jnp.broadcast_to(bhhn_l, (b, hp))
        h = jnp.zeros((b, hp), jnp.float32)
        for t in range(seq_len):                     # static, fully unrolled
            gx_t = gx_scr[pl.ds(t * b, b), :]
            gh = jnp.dot(h, whh_l, preferred_element_type=jnp.float32)
            # One EUP activation over the contiguous, lane-aligned r|z slab.
            rz = 0.5 * jnp.tanh(0.5 * (gx_t[:, 0:2 * hp] + gh[:, 0:2 * hp])) + 0.5
            r = rz[:, 0:hp]
            z = rz[:, hp:2 * hp]
            n = jnp.tanh(gx_t[:, 2 * hp:3 * hp]
                         + r * (gh[:, 2 * hp:3 * hp] + bhhn_b))
            h = n + z * (h - n)                      # == (1-z)*n + z*h
            seq_scr[pl.ds(t * b, b), :] = h

    # Layer 0 consumes x; later layers consume the previous layer's hidden
    # sequence living in seq_scr (its input projections are snapshotted into
    # gx_scr before seq_scr is overwritten).
    run_layer(x_ref, wih0_ref[...], whh_ref[0], bih_ref[0], bhhn_ref[0])
    for layer in range(1, num_layers):
        run_layer(seq_scr, wihr_ref[layer - 1], whh_ref[layer],
                  bih_ref[layer], bhhn_ref[layer])

    # Final Linear over all time steps in one lane-dense matmul.
    out_ref[...] = (jnp.dot(seq_scr[...], wfc_ref[...],
                            preferred_element_type=jnp.float32)
                    + bfc_ref[...]).astype(out_ref.dtype)


# --------------------------- parameter packing --------------------------------
def _pad_gate_cols(w, h, hp):
    """(..., 3*h) -> (..., 3*hp): gate g columns moved to [g*hp, g*hp + h)."""
    parts = []
    for g in range(3):
        wg = w[..., g * h:(g + 1) * h]
        pad = [(0, 0)] * (w.ndim - 1) + [(0, hp - h)]
        parts.append(jnp.pad(wg, pad))
    return jnp.concatenate(parts, axis=-1)


def pack_params(params, input_size, hidden, num_layers, num_classes):
    """Natural-layout params -> lane-aligned, bias-folded kernel layout."""
    h, hp, inp, cp = hidden, LANE, LANE, LANE

    # Input-to-hidden weights.
    wih0 = jnp.pad(params["wih0"], ((0, inp - input_size), (0, 0)))
    wih0_p = _pad_gate_cols(wih0, h, hp)                       # (128, 384)
    if num_layers > 1:
        wihr = jnp.pad(params["wih"], ((0, 0), (0, hp - h), (0, 0)))
        wihr_p = _pad_gate_cols(wihr, h, hp)                   # (L-1, 128, 384)
    else:
        wihr_p = jnp.zeros((1, hp, 3 * hp), jnp.float32)       # dummy (unused)

    # Hidden-to-hidden weights.
    whh = jnp.pad(params["whh"], ((0, 0), (0, hp - h), (0, 0)))
    whh_p = _pad_gate_cols(whh, h, hp)                         # (L, 128, 384)

    # Fold r/z parts of b_hh into b_ih (exact); keep only the n part of b_hh.
    bih, bhh = params["bih"], params["bhh"]                    # (L, 3H)
    bih_fold = jnp.concatenate(
        [bih[:, :2 * h] + bhh[:, :2 * h], bih[:, 2 * h:]], axis=-1)
    bih_p = _pad_gate_cols(bih_fold, h, hp)[:, None, :]        # (L, 1, 384)
    bhhn_p = jnp.pad(bhh[:, 2 * h:], ((0, 0), (0, hp - h)))[:, None, :]  # (L,1,128)

    # Output Linear, lane-dense (classes padded to 128).
    wfc_p = jnp.pad(params["wfc"],
                    ((0, hp - h), (0, cp - num_classes)))      # (128, 128)
    bfc_p = jnp.pad(params["bfc"], (0, cp - num_classes))[None, :]  # (1, 128)

    return wih0_p, wihr_p, whh_p, bih_p, bhhn_p, wfc_p, bfc_p


# ------------------------------- wrapper -------------------------------------
def gru_forward(x, params, *, n_ahead=None):
    """x: (B, T, input_size) float32 (batch_first).

    Returns (B, T, num_classes), or (B, n_ahead, num_classes) if n_ahead set —
    exactly the PyTorch GRUModel.forward().
    """
    b, t, input_size = x.shape
    num_layers, hidden = params["whh"].shape[0], params["whh"].shape[1]
    num_classes = params["wfc"].shape[1]
    hp = LANE

    packed = pack_params(params, input_size, hidden, num_layers, num_classes)

    # (B, T, IN) -> (T, B, IN) -> (T*B, IN) -> pad lanes to 128: each time step
    # is a contiguous, sublane-aligned block of B rows inside the kernel.
    x_tb = jnp.transpose(x, (1, 0, 2)).reshape(t * b, input_size)
    x_p = jnp.pad(x_tb, ((0, 0), (0, LANE - input_size)))

    kernel = functools.partial(
        gru_kernel, seq_len=t, batch=b, hp=hp, num_layers=num_layers)

    vmem = pl.BlockSpec(memory_space=pltpu.MemorySpace.VMEM)
    out = pl.pallas_call(
        kernel,
        out_shape=jax.ShapeDtypeStruct((t * b, LANE), jnp.float32),
        in_specs=[vmem] * 8,
        out_specs=vmem,
        scratch_shapes=[
            pltpu.VMEM((t * b, hp), jnp.float32),      # hidden-state sequence
            pltpu.VMEM((t * b, 3 * hp), jnp.float32),  # input gate projections
        ],
    )(x_p, *packed)

    out = out.reshape(t, b, LANE).transpose(1, 0, 2)[:, :, :num_classes]
    if n_ahead is not None:
        out = out[:, -n_ahead:, :]
    return out


# --------------------------- parameter init ----------------------------------
def init_params(key):
    """PyTorch-style uniform(-1/sqrt(hidden), 1/sqrt(hidden)) init.

    Natural (unpadded) layout, gate order [r, z, n], weights pre-transposed:
      wih0: (IN, 3H)  == weight_ih_l0.T
      wih : (L-1, H, 3H) == weight_ih_l{k>0}.T stacked
      whh : (L, H, 3H)   == weight_hh_l{k}.T stacked
      bih, bhh: (L, 3H)
      wfc : (H, C), bfc: (C,)
    """
    ks = jax.random.split(key, 7)
    bound = 1.0 / math.sqrt(HIDDEN_SIZE)

    def uni(k, shape, bnd):
        return jax.random.uniform(k, shape, jnp.float32, -bnd, bnd)

    return {
        "wih0": uni(ks[0], (INPUT_SIZE, 3 * HIDDEN_SIZE), bound),
        "wih":  uni(ks[1], (max(NUM_LAYERS - 1, 1),
                            HIDDEN_SIZE, 3 * HIDDEN_SIZE), bound),
        "whh":  uni(ks[2], (NUM_LAYERS, HIDDEN_SIZE, 3 * HIDDEN_SIZE), bound),
        "bih":  uni(ks[3], (NUM_LAYERS, 3 * HIDDEN_SIZE), bound),
        "bhh":  uni(ks[4], (NUM_LAYERS, 3 * HIDDEN_SIZE), bound),
        "wfc":  uni(ks[5], (HIDDEN_SIZE, NUM_CLASSES), bound),
        "bfc":  uni(ks[6], (NUM_CLASSES,), bound),
    }


# ---------------------------- pure-JAX reference -----------------------------
def gru_reference(x, params, *, n_ahead=None):
    b, t, _ = x.shape
    hd = HIDDEN_SIZE
    seq = x.astype(jnp.float32)                       # (B, T, in_l)
    for layer in range(NUM_LAYERS):
        wih = params["wih0"] if layer == 0 else params["wih"][layer - 1]
        whh = params["whh"][layer]
        bih = params["bih"][layer]                    # (3H,)
        bhh = params["bhh"][layer]
        h = jnp.zeros((b, hd), jnp.float32)
        outs = []
        for step in range(t):
            gx = seq[:, step, :] @ wih + bih
            gh = h @ whh + bhh
            r = jax.nn.sigmoid(gx[:, :hd] + gh[:, :hd])
            z = jax.nn.sigmoid(gx[:, hd:2 * hd] + gh[:, hd:2 * hd])
            n = jnp.tanh(gx[:, 2 * hd:] + r * gh[:, 2 * hd:])
            h = (1.0 - z) * n + z * h
            outs.append(h)
        seq = jnp.stack(outs, axis=1)                 # (B, T, H)
    out = seq @ params["wfc"] + params["bfc"]         # (B, T, C)
    if n_ahead is not None:
        out = out[:, -n_ahead:, :]
    return out


# --------------------------------- main --------------------------------------
if __name__ == "__main__":
    key = jax.random.PRNGKey(0)
    kx, kp = jax.random.split(key)
    x = jax.random.normal(kx, (BATCH, SEQ_LEN, INPUT_SIZE), jnp.float32)
    params = init_params(kp)

    out = gru_forward(x, params, n_ahead=N_AHEAD)
    out = jax.block_until_ready(out)

    ref = gru_reference(x, params, n_ahead=N_AHEAD)
    expected_t = SEQ_LEN if N_AHEAD is None else N_AHEAD
    assert out.shape == (BATCH, expected_t, NUM_CLASSES), out.shape
    assert jnp.allclose(out, ref, atol=2e-4, rtol=2e-4), (
        float(jnp.max(jnp.abs(out - ref))))

    print("KERNEL_OK")
</pallas_src>

<mosaic_0001>
module attributes {stable_mosaic.version = 11 : i64} {
  func.func @gru_kernel(%arg0: memref<128x128xf32, #tpu.memory_space<vmem>>, %arg1: memref<128x384xf32, #tpu.memory_space<vmem>>, %arg2: memref<1x128x384xf32, #tpu.memory_space<vmem>>, %arg3: memref<2x128x384xf32, #tpu.memory_space<vmem>>, %arg4: memref<2x1x384xf32, #tpu.memory_space<vmem>>, %arg5: memref<2x1x128xf32, #tpu.memory_space<vmem>>, %arg6: memref<128x128xf32, #tpu.memory_space<vmem>>, %arg7: memref<1x128xf32, #tpu.memory_space<vmem>>, %arg8: memref<128x128xf32, #tpu.memory_space<vmem>>, %arg9: memref<128x128xf32, #tpu.memory_space<vmem>>, %arg10: memref<128x384xf32, #tpu.memory_space<vmem>>) attributes {dimension_semantics = [], scalar_prefetch = 0 : i64, scratch_operands = 2 : i64, tpu.core_type = #tpu.core_type<tc>} {
    %c0 = arith.constant 0 : index
    %c0_0 = arith.constant 0 : index
    %0 = vector.load %arg1[%c0, %c0_0] : memref<128x384xf32, #tpu.memory_space<vmem>>, vector<128x384xf32>
    %c0_1 = arith.constant 0 : index
    %c0_2 = arith.constant 0 : index
    %c0_3 = arith.constant 0 : index
    %1 = vector.load %arg3[%c0_1, %c0_2, %c0_3] : memref<2x128x384xf32, #tpu.memory_space<vmem>>, vector<1x128x384xf32>
    %2 = vector.shape_cast %1 : vector<1x128x384xf32> to vector<128x384xf32>
    %c0_4 = arith.constant 0 : index
    %c0_5 = arith.constant 0 : index
    %c0_6 = arith.constant 0 : index
    %3 = vector.load %arg4[%c0_4, %c0_5, %c0_6] : memref<2x1x384xf32, #tpu.memory_space<vmem>>, vector<1x1x384xf32>
    %4 = vector.shape_cast %3 : vector<1x1x384xf32> to vector<1x384xf32>
    %c0_7 = arith.constant 0 : index
    %c0_8 = arith.constant 0 : index
    %c0_9 = arith.constant 0 : index
    %5 = vector.load %arg5[%c0_7, %c0_8, %c0_9] : memref<2x1x128xf32, #tpu.memory_space<vmem>>, vector<1x1x128xf32>
    %6 = vector.shape_cast %5 : vector<1x1x128xf32> to vector<1x128xf32>
    %c0_10 = arith.constant 0 : index
    %c0_11 = arith.constant 0 : index
    %7 = vector.load %arg0[%c0_10, %c0_11] : memref<128x128xf32, #tpu.memory_space<vmem>>, vector<128x128xf32>
    %cst = arith.constant dense<0.000000e+00> : vector<128x384xf32>
    %8 = tpu.matmul %7, %0, %cst {dimension_numbers = #tpu.dot_dimension_numbers<[1], [0], [0], [1], [0, 0, 1, 1], [], []>} : vector<128x128xf32>, vector<128x384xf32>, vector<128x384xf32> -> vector<128x384xf32>
    %9 = vector.broadcast %4 : vector<1x384xf32> to vector<128x384xf32>
    %10 = arith.addf %8, %9 : vector<128x384xf32>
    %c0_12 = arith.constant 0 : index
    %c0_13 = arith.constant 0 : index
    %11 = vector.load %arg10[%c0_12, %c0_13] : memref<128x384xf32, #tpu.memory_space<vmem>>, vector<128x384xf32>
    tpu.vector_store %arg10[%c0_12, %c0_13], %10 {strides = array<i32>} : memref<128x384xf32, #tpu.memory_space<vmem>>, vector<128x384xf32>,
    %12 = vector.shape_cast %6 : vector<1x128xf32> to vector<1x128xf32>
    %13 = vector.broadcast %12 : vector<1x128xf32> to vector<8x128xf32>
    %cst_14 = arith.constant 0.000000e+00 : f32
    %14 = vector.broadcast %cst_14 : f32 to vector<8x128xf32>
    %c0_15 = arith.constant 0 : index
    %c0_16 = arith.constant 0 : index
    %15 = vector.load %arg10[%c0_15, %c0_16] : memref<128x384xf32, #tpu.memory_space<vmem>>, vector<8x384xf32>
    %cst_17 = arith.constant dense<0.000000e+00> : vector<8x384xf32>
    %16 = tpu.matmul %14, %2, %cst_17 {dimension_numbers = #tpu.dot_dimension_numbers<[1], [0], [0], [1], [0, 0, 1, 1], [], []>} : vector<8x128xf32>, vector<128x384xf32>, vector<8x384xf32> -> vector<8x384xf32>
    %17 = vector.extract_strided_slice %15 {offsets = [0, 0], sizes = [8, 256], strides = [1, 1]} : vector<8x384xf32> to vector<8x256xf32>
    %18 = vector.extract_strided_slice %16 {offsets = [0, 0], sizes = [8, 256], strides = [1, 1]} : vector<8x384xf32> to vector<8x256xf32>
    %19 = arith.addf %17, %18 : vector<8x256xf32>
    %cst_18 = arith.constant 5.000000e-01 : f32
    %20 = vector.broadcast %cst_18 : f32 to vector<8x256xf32>
    %21 = arith.mulf %20, %19 : vector<8x256xf32>
    %22 = math.tanh %21 : vector<8x256xf32>
    %cst_19 = arith.constant 5.000000e-01 : f32
    %23 = vector.broadcast %cst_19 : f32 to vector<8x256xf32>
    %24 = arith.mulf %23, %22 : vector<8x256xf32>
    %cst_20 = arith.constant 5.000000e-01 : f32
    %25 = vector.broadcast %cst_20 : f32 to vector<8x256xf32>
    %26 = arith.addf %24, %25 : vector<8x256xf32>
    %27 = vector.extract_strided_slice %26 {offsets = [0, 0], sizes = [8, 128], strides = [1, 1]} : vector<8x256xf32> to vector<8x128xf32>
    %28 = vector.extract_strided_slice %26 {offsets = [0, 128], sizes = [8, 128], strides = [1, 1]} : vector<8x256xf32> to vector<8x128xf32>
    %29 = vector.extract_strided_slice %15 {offsets = [0, 256], sizes = [8, 128], strides = [1, 1]} : vector<8x384xf32> to vector<8x128xf32>
    %30 = vector.extract_strided_slice %16 {offsets = [0, 256], sizes = [8, 128], strides = [1, 1]} : vector<8x384xf32> to vector<8x128xf32>
    %31 = arith.addf %30, %13 : vector<8x128xf32>
    %32 = arith.mulf %27, %31 : vector<8x128xf32>
    %33 = arith.addf %29, %32 : vector<8x128xf32>
    %34 = math.tanh %33 : vector<8x128xf32>
    %35 = arith.subf %14, %34 : vector<8x128xf32>
    %36 = arith.mulf %28, %35 : vector<8x128xf32>
    %37 = arith.addf %34, %36 : vector<8x128xf32>
    %c0_21 = arith.constant 0 : index
    %c0_22 = arith.constant 0 : index
    %38 = vector.load %arg9[%c0_21, %c0_22] : memref<128x128xf32, #tpu.memory_space<vmem>>, vector<8x128xf32>
    tpu.vector_store %arg9[%c0_21, %c0_22], %37 {strides = array<i32>} : memref<128x128xf32, #tpu.memory_space<vmem>>, vector<8x128xf32>,
    %c8 = arith.constant 8 : index
    %c0_23 = arith.constant 0 : index
    %39 = vector.load %arg10[%c8, %c0_23] : memref<128x384xf32, #tpu.memory_space<vmem>>, vector<8x384xf32>
    %cst_24 = arith.constant dense<0.000000e+00> : vector<8x384xf32>
    %40 = tpu.matmul %37, %2, %cst_24 {dimension_numbers = #tpu.dot_dimension_numbers<[1], [0], [0], [1], [0, 0, 1, 1], [], []>} : vector<8x128xf32>, vector<128x384xf32>, vector<8x384xf32> -> vector<8x384xf32>
    %41 = vector.extract_strided_slice %39 {offsets = [0, 0], sizes = [8, 256], strides = [1, 1]} : vector<8x384xf32> to vector<8x256xf32>
    %42 = vector.extract_strided_slice %40 {offsets = [0, 0], sizes = [8, 256], strides = [1, 1]} : vector<8x384xf32> to vector<8x256xf32>
    %43 = arith.addf %41, %42 : vector<8x256xf32>
    %cst_25 = arith.constant 5.000000e-01 : f32
    %44 = vector.broadcast %cst_25 : f32 to vector<8x256xf32>
    %45 = arith.mulf %44, %43 : vector<8x256xf32>
    %46 = math.tanh %45 : vector<8x256xf32>
    %cst_26 = arith.constant 5.000000e-01 : f32
    %47 = vector.broadcast %cst_26 : f32 to vector<8x256xf32>
    %48 = arith.mulf %47, %46 : vector<8x256xf32>
    %cst_27 = arith.constant 5.000000e-01 : f32
    %49 = vector.broadcast %cst_27 : f32 to vector<8x256xf32>
    %50 = arith.addf %48, %49 : vector<8x256xf32>
    %51 = vector.extract_strided_slice %50 {offsets = [0, 0], sizes = [8, 128], strides = [1, 1]} : vector<8x256xf32> to vector<8x128xf32>
    %52 = vector.extract_strided_slice %50 {offsets = [0, 128], sizes = [8, 128], strides = [1, 1]} : vector<8x256xf32> to vector<8x128xf32>
    %53 = vector.extract_strided_slice %39 {offsets = [0, 256], sizes = [8, 128], strides = [1, 1]} : vector<8x384xf32> to vector<8x128xf32>
    %54 = vector.extract_strided_slice %40 {offsets = [0, 256], sizes = [8, 128], strides = [1, 1]} : vector<8x384xf32> to vector<8x128xf32>
    %55 = arith.addf %54, %13 : vector<8x128xf32>
    %56 = arith.mulf %51, %55 : vector<8x128xf32>
    %57 = arith.addf %53, %56 : vector<8x128xf32>
    %58 = math.tanh %57 : vector<8x128xf32>
    %59 = arith.subf %37, %58 : vector<8x128xf32>
    %60 = arith.mulf %52, %59 : vector<8x128xf32>
    %61 = arith.addf %58, %60 : vector<8x128xf32>
    %c8_28 = arith.constant 8 : index
    %c0_29 = arith.constant 0 : index
    %62 = vector.load %arg9[%c8_28, %c0_29] : memref<128x128xf32, #tpu.memory_space<vmem>>, vector<8x128xf32>
    tpu.vector_store %arg9[%c8_28, %c0_29], %61 {strides = array<i32>} : memref<128x128xf32, #tpu.memory_space<vmem>>, vector<8x128xf32>,
    %c16 = arith.constant 16 : index
    %c0_30 = arith.constant 0 : index
    %63 = vector.load %arg10[%c16, %c0_30] : memref<128x384xf32, #tpu.memory_space<vmem>>, vector<8x384xf32>
    %cst_31 = arith.constant dense<0.000000e+00> : vector<8x384xf32>
    %64 = tpu.matmul %61, %2, %cst_31 {dimension_numbers = #tpu.dot_dimension_numbers<[1], [0], [0], [1], [0, 0, 1, 1], [], []>} : vector<8x128xf32>, vector<128x384xf32>, vector<8x384xf32> -> vector<8x384xf32>
    %65 = vector.extract_strided_slice %63 {offsets = [0, 0], sizes = [8, 256], strides = [1, 1]} : vector<8x384xf32> to vector<8x256xf32>
    %66 = vector.extract_strided_slice %64 {offsets = [0, 0], sizes = [8, 256], strides = [1, 1]} : vector<8x384xf32> to vector<8x256xf32>
    %67 = arith.addf %65, %66 : vector<8x256xf32>
    %cst_32 = arith.constant 5.000000e-01 : f32
    %68 = vector.broadcast %cst_32 : f32 to vector<8x256xf32>
    %69 = arith.mulf %68, %67 : vector<8x256xf32>
    %70 = math.tanh %69 : vector<8x256xf32>
    %cst_33 = arith.constant 5.000000e-01 : f32
    %71 = vector.broadcast %cst_33 : f32 to vector<8x256xf32>
    %72 = arith.mulf %71, %70 : vector<8x256xf32>
    %cst_34 = arith.constant 5.000000e-01 : f32
    %73 = vector.broadcast %cst_34 : f32 to vector<8x256xf32>
    %74 = arith.addf %72, %73 : vector<8x256xf32>
    %75 = vector.extract_strided_slice %74 {offsets = [0, 0], sizes = [8, 128], strides = [1, 1]} : vector<8x256xf32> to vector<8x128xf32>
    %76 = vector.extract_strided_slice %74 {offsets = [0, 128], sizes = [8, 128], strides = [1, 1]} : vector<8x256xf32> to vector<8x128xf32>
    %77 = vector.extract_strided_slice %63 {offsets = [0, 256], sizes = [8, 128], strides = [1, 1]} : vector<8x384xf32> to vector<8x128xf32>
    %78 = vector.extract_strided_slice %64 {offsets = [0, 256], sizes = [8, 128], strides = [1, 1]} : vector<8x384xf32> to vector<8x128xf32>
    %79 = arith.addf %78, %13 : vector<8x128xf32>
    %80 = arith.mulf %75, %79 : vector<8x128xf32>
    %81 = arith.addf %77, %80 : vector<8x128xf32>
    %82 = math.tanh %81 : vector<8x128xf32>
    %83 = arith.subf %61, %82 : vector<8x128xf32>
    %84 = arith.mulf %76, %83 : vector<8x128xf32>
    %85 = arith.addf %82, %84 : vector<8x128xf32>
    %c16_35 = arith.constant 16 : index
    %c0_36 = arith.constant 0 : index
    %86 = vector.load %arg9[%c16_35, %c0_36] : memref<128x128xf32, #tpu.memory_space<vmem>>, vector<8x128xf32>
    tpu.vector_store %arg9[%c16_35, %c0_36], %85 {strides = array<i32>} : memref<128x128xf32, #tpu.memory_space<vmem>>, vector<8x128xf32>,
    %c24 = arith.constant 24 : index
    %c0_37 = arith.constant 0 : index
    %87 = vector.load %arg10[%c24, %c0_37] : memref<128x384xf32, #tpu.memory_space<vmem>>, vector<8x384xf32>
    %cst_38 = arith.constant dense<0.000000e+00> : vector<8x384xf32>
    %88 = tpu.matmul %85, %2, %cst_38 {dimension_numbers = #tpu.dot_dimension_numbers<[1], [0], [0], [1], [0, 0, 1, 1], [], []>} : vector<8x128xf32>, vector<128x384xf32>, vector<8x384xf32> -> vector<8x384xf32>
    %89 = vector.extract_strided_slice %87 {offsets = [0, 0], sizes = [8, 256], strides = [1, 1]} : vector<8x384xf32> to vector<8x256xf32>
    %90 = vector.extract_strided_slice %88 {offsets = [0, 0], sizes = [8, 256], strides = [1, 1]} : vector<8x384xf32> to vector<8x256xf32>
    %91 = arith.addf %89, %90 : vector<8x256xf32>
    %cst_39 = arith.constant 5.000000e-01 : f32
    %92 = vector.broadcast %cst_39 : f32 to vector<8x256xf32>
    %93 = arith.mulf %92, %91 : vector<8x256xf32>
    %94 = math.tanh %93 : vector<8x256xf32>
    %cst_40 = arith.constant 5.000000e-01 : f32
    %95 = vector.broadcast %cst_40 : f32 to vector<8x256xf32>
    %96 = arith.mulf %95, %94 : vector<8x256xf32>
    %cst_41 = arith.constant 5.000000e-01 : f32
    %97 = vector.broadcast %cst_41 : f32 to vector<8x256xf32>
    %98 = arith.addf %96, %97 : vector<8x256xf32>
    %99 = vector.extract_strided_slice %98 {offsets = [0, 0], sizes = [8, 128], strides = [1, 1]} : vector<8x256xf32> to vector<8x128xf32>
    %100 = vector.extract_strided_slice %98 {offsets = [0, 128], sizes = [8, 128], strides = [1, 1]} : vector<8x256xf32> to vector<8x128xf32>
    %101 = vector.extract_strided_slice %87 {offsets = [0, 256], sizes = [8, 128], strides = [1, 1]} : vector<8x384xf32> to vector<8x128xf32>
    %102 = vector.extract_strided_slice %88 {offsets = [0, 256], sizes = [8, 128], strides = [1, 1]} : vector<8x384xf32> to vector<8x128xf32>
    %103 = arith.addf %102, %13 : vector<8x128xf32>
    %104 = arith.mulf %99, %103 : vector<8x128xf32>
    %105 = arith.addf %101, %104 : vector<8x128xf32>
    %106 = math.tanh %105 : vector<8x128xf32>
    %107 = arith.subf %85, %106 : vector<8x128xf32>
    %108 = arith.mulf %100, %107 : vector<8x128xf32>
    %109 = arith.addf %106, %108 : vector<8x128xf32>
    %c24_42 = arith.constant 24 : index
    %c0_43 = arith.constant 0 : index
    %110 = vector.load %arg9[%c24_42, %c0_43] : memref<128x128xf32, #tpu.memory_space<vmem>>, vector<8x128xf32>
    tpu.vector_store %arg9[%c24_42, %c0_43], %109 {strides = array<i32>} : memref<128x128xf32, #tpu.memory_space<vmem>>, vector<8x128xf32>,
    %c32 = arith.constant 32 : index
    %c0_44 = arith.constant 0 : index
    %111 = vector.load %arg10[%c32, %c0_44] : memref<128x384xf32, #tpu.memory_space<vmem>>, vector<8x384xf32>
    %cst_45 = arith.constant dense<0.000000e+00> : vector<8x384xf32>
    %112 = tpu.matmul %109, %2, %cst_45 {dimension_numbers = #tpu.dot_dimension_numbers<[1], [0], [0], [1], [0, 0, 1, 1], [], []>} : vector<8x128xf32>, vector<128x384xf32>, vector<8x384xf32> -> vector<8x384xf32>
    %113 = vector.extract_strided_slice %111 {offsets = [0, 0], sizes = [8, 256], strides = [1, 1]} : vector<8x384xf32> to vector<8x256xf32>
    %114 = vector.extract_strided_slice %112 {offsets = [0, 0], sizes = [8, 256], strides = [1, 1]} : vector<8x384xf32> to vector<8x256xf32>
    %115 = arith.addf %113, %114 : vector<8x256xf32>
    %cst_46 = arith.constant 5.000000e-01 : f32
    %116 = vector.broadcast %cst_46 : f32 to vector<8x256xf32>
    %117 = arith.mulf %116, %115 : vector<8x256xf32>
    %118 = math.tanh %117 : vector<8x256xf32>
    %cst_47 = arith.constant 5.000000e-01 : f32
    %119 = vector.broadcast %cst_47 : f32 to vector<8x256xf32>
    %120 = arith.mulf %119, %118 : vector<8x256xf32>
    %cst_48 = arith.constant 5.000000e-01 : f32
    %121 = vector.broadcast %cst_48 : f32 to vector<8x256xf32>
    %122 = arith.addf %120, %121 : vector<8x256xf32>
    %123 = vector.extract_strided_slice %122 {offsets = [0, 0], sizes = [8, 128], strides = [1, 1]} : vector<8x256xf32> to vector<8x128xf32>
    %124 = vector.extract_strided_slice %122 {offsets = [0, 128], sizes = [8, 128], strides = [1, 1]} : vector<8x256xf32> to vector<8x128xf32>
    %125 = vector.extract_strided_slice %111 {offsets = [0, 256], sizes = [8, 128], strides = [1, 1]} : vector<8x384xf32> to vector<8x128xf32>
    %126 = vector.extract_strided_slice %112 {offsets = [0, 256], sizes = [8, 128], strides = [1, 1]} : vector<8x384xf32> to vector<8x128xf32>
    %127 = arith.addf %126, %13 : vector<8x128xf32>
    %128 = arith.mulf %123, %127 : vector<8x128xf32>
    %129 = arith.addf %125, %128 : vector<8x128xf32>
    %130 = math.tanh %129 : vector<8x128xf32>
    %131 = arith.subf %109, %130 : vector<8x128xf32>
    %132 = arith.mulf %124, %131 : vector<8x128xf32>
    %133 = arith.addf %130, %132 : vector<8x128xf32>
    %c32_49 = arith.constant 32 : index
    %c0_50 = arith.constant 0 : index
    %134 = vector.load %arg9[%c32_49, %c0_50] : memref<128x128xf32, #tpu.memory_space<vmem>>, vector<8x128xf32>
    tpu.vector_store %arg9[%c32_49, %c0_50], %133 {strides = array<i32>} : memref<128x128xf32, #tpu.memory_space<vmem>>, vector<8x128xf32>,
    %c40 = arith.constant 40 : index
    %c0_51 = arith.constant 0 : index
    %135 = vector.load %arg10[%c40, %c0_51] : memref<128x384xf32, #tpu.memory_space<vmem>>, vector<8x384xf32>
    %cst_52 = arith.constant dense<0.000000e+00> : vector<8x384xf32>
    %136 = tpu.matmul %133, %2, %cst_52 {dimension_numbers = #tpu.dot_dimension_numbers<[1], [0], [0], [1], [0, 0, 1, 1], [], []>} : vector<8x128xf32>, vector<128x384xf32>, vector<8x384xf32> -> vector<8x384xf32>
    %137 = vector.extract_strided_slice %135 {offsets = [0, 0], sizes = [8, 256], strides = [1, 1]} : vector<8x384xf32> to vector<8x256xf32>
    %138 = vector.extract_strided_slice %136 {offsets = [0, 0], sizes = [8, 256], strides = [1, 1]} : vector<8x384xf32> to vector<8x256xf32>
    %139 = arith.addf %137, %138 : vector<8x256xf32>
    %cst_53 = arith.constant 5.000000e-01 : f32
    %140 = vector.broadcast %cst_53 : f32 to vector<8x256xf32>
    %141 = arith.mulf %140, %139 : vector<8x256xf32>
    %142 = math.tanh %141 : vector<8x256xf32>
    %cst_54 = arith.constant 5.000000e-01 : f32
    %143 = vector.broadcast %cst_54 : f32 to vector<8x256xf32>
    %144 = arith.mulf %143, %142 : vector<8x256xf32>
    %cst_55 = arith.constant 5.000000e-01 : f32
    %145 = vector.broadcast %cst_55 : f32 to vector<8x256xf32>
    %146 = arith.addf %144, %145 : vector<8x256xf32>
    %147 = vector.extract_strided_slice %146 {offsets = [0, 0], sizes = [8, 128], strides = [1, 1]} : vector<8x256xf32> to vector<8x128xf32>
    %148 = vector.extract_strided_slice %146 {offsets = [0, 128], sizes = [8, 128], strides = [1, 1]} : vector<8x256xf32> to vector<8x128xf32>
    %149 = vector.extract_strided_slice %135 {offsets = [0, 256], sizes = [8, 128], strides = [1, 1]} : vector<8x384xf32> to vector<8x128xf32>
    %150 = vector.extract_strided_slice %136 {offsets = [0, 256], sizes = [8, 128], strides = [1, 1]} : vector<8x384xf32> to vector<8x128xf32>
    %151 = arith.addf %150, %13 : vector<8x128xf32>
    %152 = arith.mulf %147, %151 : vector<8x128xf32>
    %153 = arith.addf %149, %152 : vector<8x128xf32>
    %154 = math.tanh %153 : vector<8x128xf32>
    %155 = arith.subf %133, %154 : vector<8x128xf32>
    %156 = arith.mulf %148, %155 : vector<8x128xf32>
    %157 = arith.addf %154, %156 : vector<8x128xf32>
    %c40_56 = arith.constant 40 : index
    %c0_57 = arith.constant 0 : index
    %158 = vector.load %arg9[%c40_56, %c0_57] : memref<128x128xf32, #tpu.memory_space<vmem>>, vector<8x128xf32>
    tpu.vector_store %arg9[%c40_56, %c0_57], %157 {strides = array<i32>} : memref<128x128xf32, #tpu.memory_space<vmem>>, vector<8x128xf32>,
    %c48 = arith.constant 48 : index
    %c0_58 = arith.constant 0 : index
    %159 = vector.load %arg10[%c48, %c0_58] : memref<128x384xf32, #tpu.memory_space<vmem>>, vector<8x384xf32>
    %cst_59 = arith.constant dense<0.000000e+00> : vector<8x384xf32>
    %160 = tpu.matmul %157, %2, %cst_59 {dimension_numbers = #tpu.dot_dimension_numbers<[1], [0], [0], [1], [0, 0, 1, 1], [], []>} : vector<8x128xf32>, vector<128x384xf32>, vector<8x384xf32> -> vector<8x384xf32>
    %161 = vector.extract_strided_slice %159 {offsets = [0, 0], sizes = [8, 256], strides = [1, 1]} : vector<8x384xf32> to vector<8x256xf32>
    %162 = vector.extract_strided_slice %160 {offsets = [0, 0], sizes = [8, 256], strides = [1, 1]} : vector<8x384xf32> to vector<8x256xf32>
    %163 = arith.addf %161, %162 : vector<8x256xf32>
    %cst_60 = arith.constant 5.000000e-01 : f32
    %164 = vector.broadcast %cst_60 : f32 to vector<8x256xf32>
    %165 = arith.mulf %164, %163 : vector<8x256xf32>
    %166 = math.tanh %165 : vector<8x256xf32>
    %cst_61 = arith.constant 5.000000e-01 : f32
    %167 = vector.broadcast %cst_61 : f32 to vector<8x256xf32>
    %168 = arith.mulf %167, %166 : vector<8x256xf32>
    %cst_62 = arith.constant 5.000000e-01 : f32
    %169 = vector.broadcast %cst_62 : f32 to vector<8x256xf32>
    %170 = arith.addf %168, %169 : vector<8x256xf32>
    %171 = vector.extract_strided_slice %170 {offsets = [0, 0], sizes = [8, 128], strides = [1, 1]} : vector<8x256xf32> to vector<8x128xf32>
    %172 = vector.extract_strided_slice %170 {offsets = [0, 128], sizes = [8, 128], strides = [1, 1]} : vector<8x256xf32> to vector<8x128xf32>
    %173 = vector.extract_strided_slice %159 {offsets = [0, 256], sizes = [8, 128], strides = [1, 1]} : vector<8x384xf32> to vector<8x128xf32>
    %174 = vector.extract_strided_slice %160 {offsets = [0, 256], sizes = [8, 128], strides = [1, 1]} : vector<8x384xf32> to vector<8x128xf32>
    %175 = arith.addf %174, %13 : vector<8x128xf32>
    %176 = arith.mulf %171, %175 : vector<8x128xf32>
    %177 = arith.addf %173, %176 : vector<8x128xf32>
    %178 = math.tanh %177 : vector<8x128xf32>
    %179 = arith.subf %157, %178 : vector<8x128xf32>
    %180 = arith.mulf %172, %179 : vector<8x128xf32>
    %181 = arith.addf %178, %180 : vector<8x128xf32>
    %c48_63 = arith.constant 48 : index
    %c0_64 = arith.constant 0 : index
    %182 = vector.load %arg9[%c48_63, %c0_64] : memref<128x128xf32, #tpu.memory_space<vmem>>, vector<8x128xf32>
    tpu.vector_store %arg9[%c48_63, %c0_64], %181 {strides = array<i32>} : memref<128x128xf32, #tpu.memory_space<vmem>>, vector<8x128xf32>,
    %c56 = arith.constant 56 : index
    %c0_65 = arith.constant 0 : index
    %183 = vector.load %arg10[%c56, %c0_65] : memref<128x384xf32, #tpu.memory_space<vmem>>, vector<8x384xf32>
    %cst_66 = arith.constant dense<0.000000e+00> : vector<8x384xf32>
    %184 = tpu.matmul %181, %2, %cst_66 {dimension_numbers = #tpu.dot_dimension_numbers<[1], [0], [0], [1], [0, 0, 1, 1], [], []>} : vector<8x128xf32>, vector<128x384xf32>, vector<8x384xf32> -> vector<8x384xf32>
    %185 = vector.extract_strided_slice %183 {offsets = [0, 0], sizes = [8, 256], strides = [1, 1]} : vector<8x384xf32> to vector<8x256xf32>
    %186 = vector.extract_strided_slice %184 {offsets = [0, 0], sizes = [8, 256], strides = [1, 1]} : vector<8x384xf32> to vector<8x256xf32>
    %187 = arith.addf %185, %186 : vector<8x256xf32>
    %cst_67 = arith.constant 5.000000e-01 : f32
    %188 = vector.broadcast %cst_67 : f32 to vector<8x256xf32>
    %189 = arith.mulf %188, %187 : vector<8x256xf32>
    %190 = math.tanh %189 : vector<8x256xf32>
    %cst_68 = arith.constant 5.000000e-01 : f32
    %191 = vector.broadcast %cst_68 : f32 to vector<8x256xf32>
    %192 = arith.mulf %191, %190 : vector<8x256xf32>
    %cst_69 = arith.constant 5.000000e-01 : f32
    %193 = vector.broadcast %cst_69 : f32 to vector<8x256xf32>
    %194 = arith.addf %192, %193 : vector<8x256xf32>
    %195 = vector.extract_strided_slice %194 {offsets = [0, 0], sizes = [8, 128], strides = [1, 1]} : vector<8x256xf32> to vector<8x128xf32>
    %196 = vector.extract_strided_slice %194 {offsets = [0, 128], sizes = [8, 128], strides = [1, 1]} : vector<8x256xf32> to vector<8x128xf32>
    %197 = vector.extract_strided_slice %183 {offsets = [0, 256], sizes = [8, 128], strides = [1, 1]} : vector<8x384xf32> to vector<8x128xf32>
    %198 = vector.extract_strided_slice %184 {offsets = [0, 256], sizes = [8, 128], strides = [1, 1]} : vector<8x384xf32> to vector<8x128xf32>
    %199 = arith.addf %198, %13 : vector<8x128xf32>
    %200 = arith.mulf %195, %199 : vector<8x128xf32>
    %201 = arith.addf %197, %200 : vector<8x128xf32>
    %202 = math.tanh %201 : vector<8x128xf32>
    %203 = arith.subf %181, %202 : vector<8x128xf32>
    %204 = arith.mulf %196, %203 : vector<8x128xf32>
    %205 = arith.addf %202, %204 : vector<8x128xf32>
    %c56_70 = arith.constant 56 : index
    %c0_71 = arith.constant 0 : index
    %206 = vector.load %arg9[%c56_70, %c0_71] : memref<128x128xf32, #tpu.memory_space<vmem>>, vector<8x128xf32>
    tpu.vector_store %arg9[%c56_70, %c0_71], %205 {strides = array<i32>} : memref<128x128xf32, #tpu.memory_space<vmem>>, vector<8x128xf32>,
    %c64 = arith.constant 64 : index
    %c0_72 = arith.constant 0 : index
    %207 = vector.load %arg10[%c64, %c0_72] : memref<128x384xf32, #tpu.memory_space<vmem>>, vector<8x384xf32>
    %cst_73 = arith.constant dense<0.000000e+00> : vector<8x384xf32>
    %208 = tpu.matmul %205, %2, %cst_73 {dimension_numbers = #tpu.dot_dimension_numbers<[1], [0], [0], [1], [0, 0, 1, 1], [], []>} : vector<8x128xf32>, vector<128x384xf32>, vector<8x384xf32> -> vector<8x384xf32>
    %209 = vector.extract_strided_slice %207 {offsets = [0, 0], sizes = [8, 256], strides = [1, 1]} : vector<8x384xf32> to vector<8x256xf32>
    %210 = vector.extract_strided_slice %208 {offsets = [0, 0], sizes = [8, 256], strides = [1, 1]} : vector<8x384xf32> to vector<8x256xf32>
    %211 = arith.addf %209, %210 : vector<8x256xf32>
    %cst_74 = arith.constant 5.000000e-01 : f32
    %212 = vector.broadcast %cst_74 : f32 to vector<8x256xf32>
    %213 = arith.mulf %212, %211 : vector<8x256xf32>
    %214 = math.tanh %213 : vector<8x256xf32>
    %cst_75 = arith.constant 5.000000e-01 : f32
    %215 = vector.broadcast %cst_75 : f32 to vector<8x256xf32>
    %216 = arith.mulf %215, %214 : vector<8x256xf32>
    %cst_76 = arith.constant 5.000000e-01 : f32
    %217 = vector.broadcast %cst_76 : f32 to vector<8x256xf32>
    %218 = arith.addf %216, %217 : vector<8x256xf32>
    %219 = vector.extract_strided_slice %218 {offsets = [0, 0], sizes = [8, 128], strides = [1, 1]} : vector<8x256xf32> to vector<8x128xf32>
    %220 = vector.extract_strided_slice %218 {offsets = [0, 128], sizes = [8, 128], strides = [1, 1]} : vector<8x256xf32> to vector<8x128xf32>
    %221 = vector.extract_strided_slice %207 {offsets = [0, 256], sizes = [8, 128], strides = [1, 1]} : vector<8x384xf32> to vector<8x128xf32>
    %222 = vector.extract_strided_slice %208 {offsets = [0, 256], sizes = [8, 128], strides = [1, 1]} : vector<8x384xf32> to vector<8x128xf32>
    %223 = arith.addf %222, %13 : vector<8x128xf32>
    %224 = arith.mulf %219, %223 : vector<8x128xf32>
    %225 = arith.addf %221, %224 : vector<8x128xf32>
    %226 = math.tanh %225 : vector<8x128xf32>
    %227 = arith.subf %205, %226 : vector<8x128xf32>
    %228 = arith.mulf %220, %227 : vector<8x128xf32>
    %229 = arith.addf %226, %228 : vector<8x128xf32>
    %c64_77 = arith.constant 64 : index
    %c0_78 = arith.constant 0 : index
    %230 = vector.load %arg9[%c64_77, %c0_78] : memref<128x128xf32, #tpu.memory_space<vmem>>, vector<8x128xf32>
    tpu.vector_store %arg9[%c64_77, %c0_78], %229 {strides = array<i32>} : memref<128x128xf32, #tpu.memory_space<vmem>>, vector<8x128xf32>,
    %c72 = arith.constant 72 : index
    %c0_79 = arith.constant 0 : index
    %231 = vector.load %arg10[%c72, %c0_79] : memref<128x384xf32, #tpu.memory_space<vmem>>, vector<8x384xf32>
    %cst_80 = arith.constant dense<0.000000e+00> : vector<8x384xf32>
    %232 = tpu.matmul %229, %2, %cst_80 {dimension_numbers = #tpu.dot_dimension_numbers<[1], [0], [0], [1], [0, 0, 1, 1], [], []>} : vector<8x128xf32>, vector<128x384xf32>, vector<8x384xf32> -> vector<8x384xf32>
    %233 = vector.extract_strided_slice %231 {offsets = [0, 0], sizes = [8, 256], strides = [1, 1]} : vector<8x384xf32> to vector<8x256xf32>
    %234 = vector.extract_strided_slice %232 {offsets = [0, 0], sizes = [8, 256], strides = [1, 1]} : vector<8x384xf32> to vector<8x256xf32>
    %235 = arith.addf %233, %234 : vector<8x256xf32>
    %cst_81 = arith.constant 5.000000e-01 : f32
    %236 = vector.broadcast %cst_81 : f32 to vector<8x256xf32>
    %237 = arith.mulf %236, %235 : vector<8x256xf32>
    %238 = math.tanh %237 : vector<8x256xf32>
    %cst_82 = arith.constant 5.000000e-01 : f32
    %239 = vector.broadcast %cst_82 : f32 to vector<8x256xf32>
    %240 = arith.mulf %239, %238 : vector<8x256xf32>
    %cst_83 = arith.constant 5.000000e-01 : f32
    %241 = vector.broadcast %cst_83 : f32 to vector<8x256xf32>
    %242 = arith.addf %240, %241 : vector<8x256xf32>
    %243 = vector.extract_strided_slice %242 {offsets = [0, 0], sizes = [8, 128], strides = [1, 1]} : vector<8x256xf32> to vector<8x128xf32>
    %244 = vector.extract_strided_slice %242 {offsets = [0, 128], sizes = [8, 128], strides = [1, 1]} : vector<8x256xf32> to vector<8x128xf32>
    %245 = vector.extract_strided_slice %231 {offsets = [0, 256], sizes = [8, 128], strides = [1, 1]} : vector<8x384xf32> to vector<8x128xf32>
    %246 = vector.extract_strided_slice %232 {offsets = [0, 256], sizes = [8, 128], strides = [1, 1]} : vector<8x384xf32> to vector<8x128xf32>
    %247 = arith.addf %246, %13 : vector<8x128xf32>
    %248 = arith.mulf %243, %247 : vector<8x128xf32>
    %249 = arith.addf %245, %248 : vector<8x128xf32>
    %250 = math.tanh %249 : vector<8x128xf32>
    %251 = arith.subf %229, %250 : vector<8x128xf32>
    %252 = arith.mulf %244, %251 : vector<8x128xf32>
    %253 = arith.addf %250, %252 : vector<8x128xf32>
    %c72_84 = arith.constant 72 : index
    %c0_85 = arith.constant 0 : index
    %254 = vector.load %arg9[%c72_84, %c0_85] : memref<128x128xf32, #tpu.memory_space<vmem>>, vector<8x128xf32>
    tpu.vector_store %arg9[%c72_84, %c0_85], %253 {strides = array<i32>} : memref<128x128xf32, #tpu.memory_space<vmem>>, vector<8x128xf32>,
    %c80 = arith.constant 80 : index
    %c0_86 = arith.constant 0 : index
    %255 = vector.load %arg10[%c80, %c0_86] : memref<128x384xf32, #tpu.memory_space<vmem>>, vector<8x384xf32>
    %cst_87 = arith.constant dense<0.000000e+00> : vector<8x384xf32>
    %256 = tpu.matmul %253, %2, %cst_87 {dimension_numbers = #tpu.dot_dimension_numbers<[1], [0], [0], [1], [0, 0, 1, 1], [], []>} : vector<8x128xf32>, vector<128x384xf32>, vector<8x384xf32> -> vector<8x384xf32>
    %257 = vector.extract_strided_slice %255 {offsets = [0, 0], sizes = [8, 256], strides = [1, 1]} : vector<8x384xf32> to vector<8x256xf32>
    %258 = vector.extract_strided_slice %256 {offsets = [0, 0], sizes = [8, 256], strides = [1, 1]} : vector<8x384xf32> to vector<8x256xf32>
    %259 = arith.addf %257, %258 : vector<8x256xf32>
    %cst_88 = arith.constant 5.000000e-01 : f32
    %260 = vector.broadcast %cst_88 : f32 to vector<8x256xf32>
    %261 = arith.mulf %260, %259 : vector<8x256xf32>
    %262 = math.tanh %261 : vector<8x256xf32>
    %cst_89 = arith.constant 5.000000e-01 : f32
    %263 = vector.broadcast %cst_89 : f32 to vector<8x256xf32>
    %264 = arith.mulf %263, %262 : vector<8x256xf32>
    %cst_90 = arith.constant 5.000000e-01 : f32
    %265 = vector.broadcast %cst_90 : f32 to vector<8x256xf32>
    %266 = arith.addf %264, %265 : vector<8x256xf32>
    %267 = vector.extract_strided_slice %266 {offsets = [0, 0], sizes = [8, 128], strides = [1, 1]} : vector<8x256xf32> to vector<8x128xf32>
    %268 = vector.extract_strided_slice %266 {offsets = [0, 128], sizes = [8, 128], strides = [1, 1]} : vector<8x256xf32> to vector<8x128xf32>
    %269 = vector.extract_strided_slice %255 {offsets = [0, 256], sizes = [8, 128], strides = [1, 1]} : vector<8x384xf32> to vector<8x128xf32>
    %270 = vector.extract_strided_slice %256 {offsets = [0, 256], sizes = [8, 128], strides = [1, 1]} : vector<8x384xf32> to vector<8x128xf32>
    %271 = arith.addf %270, %13 : vector<8x128xf32>
    %272 = arith.mulf %267, %271 : vector<8x128xf32>
    %273 = arith.addf %269, %272 : vector<8x128xf32>
    %274 = math.tanh %273 : vector<8x128xf32>
    %275 = arith.subf %253, %274 : vector<8x128xf32>
    %276 = arith.mulf %268, %275 : vector<8x128xf32>
    %277 = arith.addf %274, %276 : vector<8x128xf32>
    %c80_91 = arith.constant 80 : index
    %c0_92 = arith.constant 0 : index
    %278 = vector.load %arg9[%c80_91, %c0_92] : memref<128x128xf32, #tpu.memory_space<vmem>>, vector<8x128xf32>
    tpu.vector_store %arg9[%c80_91, %c0_92], %277 {strides = array<i32>} : memref<128x128xf32, #tpu.memory_space<vmem>>, vector<8x128xf32>,
    %c88 = arith.constant 88 : index
    %c0_93 = arith.constant 0 : index
    %279 = vector.load %arg10[%c88, %c0_93] : memref<128x384xf32, #tpu.memory_space<vmem>>, vector<8x384xf32>
    %cst_94 = arith.constant dense<0.000000e+00> : vector<8x384xf32>
    %280 = tpu.matmul %277, %2, %cst_94 {dimension_numbers = #tpu.dot_dimension_numbers<[1], [0], [0], [1], [0, 0, 1, 1], [], []>} : vector<8x128xf32>, vector<128x384xf32>, vector<8x384xf32> -> vector<8x384xf32>
    %281 = vector.extract_strided_slice %279 {offsets = [0, 0], sizes = [8, 256], strides = [1, 1]} : vector<8x384xf32> to vector<8x256xf32>
    %282 = vector.extract_strided_slice %280 {offsets = [0, 0], sizes = [8, 256], strides = [1, 1]} : vector<8x384xf32> to vector<8x256xf32>
    %283 = arith.addf %281, %282 : vector<8x256xf32>
    %cst_95 = arith.constant 5.000000e-01 : f32
    %284 = vector.broadcast %cst_95 : f32 to vector<8x256xf32>
    %285 = arith.mulf %284, %283 : vector<8x256xf32>
    %286 = math.tanh %285 : vector<8x256xf32>
    %cst_96 = arith.constant 5.000000e-01 : f32
    %287 = vector.broadcast %cst_96 : f32 to vector<8x256xf32>
    %288 = arith.mulf %287, %286 : vector<8x256xf32>
    %cst_97 = arith.constant 5.000000e-01 : f32
    %289 = vector.broadcast %cst_97 : f32 to vector<8x256xf32>
    %290 = arith.addf %288, %289 : vector<8x256xf32>
    %291 = vector.extract_strided_slice %290 {offsets = [0, 0], sizes = [8, 128], strides = [1, 1]} : vector<8x256xf32> to vector<8x128xf32>
    %292 = vector.extract_strided_slice %290 {offsets = [0, 128], sizes = [8, 128], strides = [1, 1]} : vector<8x256xf32> to vector<8x128xf32>
    %293 = vector.extract_strided_slice %279 {offsets = [0, 256], sizes = [8, 128], strides = [1, 1]} : vector<8x384xf32> to vector<8x128xf32>
    %294 = vector.extract_strided_slice %280 {offsets = [0, 256], sizes = [8, 128], strides = [1, 1]} : vector<8x384xf32> to vector<8x128xf32>
    %295 = arith.addf %294, %13 : vector<8x128xf32>
    %296 = arith.mulf %291, %295 : vector<8x128xf32>
    %297 = arith.addf %293, %296 : vector<8x128xf32>
    %298 = math.tanh %297 : vector<8x128xf32>
    %299 = arith.subf %277, %298 : vector<8x128xf32>
    %300 = arith.mulf %292, %299 : vector<8x128xf32>
    %301 = arith.addf %298, %300 : vector<8x128xf32>
    %c88_98 = arith.constant 88 : index
    %c0_99 = arith.constant 0 : index
    %302 = vector.load %arg9[%c88_98, %c0_99] : memref<128x128xf32, #tpu.memory_space<vmem>>, vector<8x128xf32>
    tpu.vector_store %arg9[%c88_98, %c0_99], %301 {strides = array<i32>} : memref<128x128xf32, #tpu.memory_space<vmem>>, vector<8x128xf32>,
    %c96 = arith.constant 96 : index
    %c0_100 = arith.constant 0 : index
    %303 = vector.load %arg10[%c96, %c0_100] : memref<128x384xf32, #tpu.memory_space<vmem>>, vector<8x384xf32>
    %cst_101 = arith.constant dense<0.000000e+00> : vector<8x384xf32>
    %304 = tpu.matmul %301, %2, %cst_101 {dimension_numbers = #tpu.dot_dimension_numbers<[1], [0], [0], [1], [0, 0, 1, 1], [], []>} : vector<8x128xf32>, vector<128x384xf32>, vector<8x384xf32> -> vector<8x384xf32>
    %305 = vector.extract_strided_slice %303 {offsets = [0, 0], sizes = [8, 256], strides = [1, 1]} : vector<8x384xf32> to vector<8x256xf32>
    %306 = vector.extract_strided_slice %304 {offsets = [0, 0], sizes = [8, 256], strides = [1, 1]} : vector<8x384xf32> to vector<8x256xf32>
    %307 = arith.addf %305, %306 : vector<8x256xf32>
    %cst_102 = arith.constant 5.000000e-01 : f32
    %308 = vector.broadcast %cst_102 : f32 to vector<8x256xf32>
    %309 = arith.mulf %308, %307 : vector<8x256xf32>
    %310 = math.tanh %309 : vector<8x256xf32>
    %cst_103 = arith.constant 5.000000e-01 : f32
    %311 = vector.broadcast %cst_103 : f32 to vector<8x256xf32>
    %312 = arith.mulf %311, %310 : vector<8x256xf32>
    %cst_104 = arith.constant 5.000000e-01 : f32
    %313 = vector.broadcast %cst_104 : f32 to vector<8x256xf32>
    %314 = arith.addf %312, %313 : vector<8x256xf32>
    %315 = vector.extract_strided_slice %314 {offsets = [0, 0], sizes = [8, 128], strides = [1, 1]} : vector<8x256xf32> to vector<8x128xf32>
    %316 = vector.extract_strided_slice %314 {offsets = [0, 128], sizes = [8, 128], strides = [1, 1]} : vector<8x256xf32> to vector<8x128xf32>
    %317 = vector.extract_strided_slice %303 {offsets = [0, 256], sizes = [8, 128], strides = [1, 1]} : vector<8x384xf32> to vector<8x128xf32>
    %318 = vector.extract_strided_slice %304 {offsets = [0, 256], sizes = [8, 128], strides = [1, 1]} : vector<8x384xf32> to vector<8x128xf32>
    %319 = arith.addf %318, %13 : vector<8x128xf32>
    %320 = arith.mulf %315, %319 : vector<8x128xf32>
    %321 = arith.addf %317, %320 : vector<8x128xf32>
    %322 = math.tanh %321 : vector<8x128xf32>
    %323 = arith.subf %301, %322 : vector<8x128xf32>
    %324 = arith.mulf %316, %323 : vector<8x128xf32>
    %325 = arith.addf %322, %324 : vector<8x128xf32>
    %c96_105 = arith.constant 96 : index
    %c0_106 = arith.constant 0 : index
    %326 = vector.load %arg9[%c96_105, %c0_106] : memref<128x128xf32, #tpu.memory_space<vmem>>, vector<8x128xf32>
    tpu.vector_store %arg9[%c96_105, %c0_106], %325 {strides = array<i32>} : memref<128x128xf32, #tpu.memory_space<vmem>>, vector<8x128xf32>,
    %c104 = arith.constant 104 : index
    %c0_107 = arith.constant 0 : index
    %327 = vector.load %arg10[%c104, %c0_107] : memref<128x384xf32, #tpu.memory_space<vmem>>, vector<8x384xf32>
    %cst_108 = arith.constant dense<0.000000e+00> : vector<8x384xf32>
    %328 = tpu.matmul %325, %2, %cst_108 {dimension_numbers = #tpu.dot_dimension_numbers<[1], [0], [0], [1], [0, 0, 1, 1], [], []>} : vector<8x128xf32>, vector<128x384xf32>, vector<8x384xf32> -> vector<8x384xf32>
    %329 = vector.extract_strided_slice %327 {offsets = [0, 0], sizes = [8, 256], strides = [1, 1]} : vector<8x384xf32> to vector<8x256xf32>
    %330 = vector.extract_strided_slice %328 {offsets = [0, 0], sizes = [8, 256], strides = [1, 1]} : vector<8x384xf32> to vector<8x256xf32>
    %331 = arith.addf %329, %330 : vector<8x256xf32>
    %cst_109 = arith.constant 5.000000e-01 : f32
    %332 = vector.broadcast %cst_109 : f32 to vector<8x256xf32>
    %333 = arith.mulf %332, %331 : vector<8x256xf32>
    %334 = math.tanh %333 : vector<8x256xf32>
    %cst_110 = arith.constant 5.000000e-01 : f32
    %335 = vector.broadcast %cst_110 : f32 to vector<8x256xf32>
    %336 = arith.mulf %335, %334 : vector<8x256xf32>
    %cst_111 = arith.constant 5.000000e-01 : f32
    %337 = vector.broadcast %cst_111 : f32 to vector<8x256xf32>
    %338 = arith.addf %336, %337 : vector<8x256xf32>
    %339 = vector.extract_strided_slice %338 {offsets = [0, 0], sizes = [8, 128], strides = [1, 1]} : vector<8x256xf32> to vector<8x128xf32>
    %340 = vector.extract_strided_slice %338 {offsets = [0, 128], sizes = [8, 128], strides = [1, 1]} : vector<8x256xf32> to vector<8x128xf32>
    %341 = vector.extract_strided_slice %327 {offsets = [0, 256], sizes = [8, 128], strides = [1, 1]} : vector<8x384xf32> to vector<8x128xf32>
    %342 = vector.extract_strided_slice %328 {offsets = [0, 256], sizes = [8, 128], strides = [1, 1]} : vector<8x384xf32> to vector<8x128xf32>
    %343 = arith.addf %342, %13 : vector<8x128xf32>
    %344 = arith.mulf %339, %343 : vector<8x128xf32>
    %345 = arith.addf %341, %344 : vector<8x128xf32>
    %346 = math.tanh %345 : vector<8x128xf32>
    %347 = arith.subf %325, %346 : vector<8x128xf32>
    %348 = arith.mulf %340, %347 : vector<8x128xf32>
    %349 = arith.addf %346, %348 : vector<8x128xf32>
    %c104_112 = arith.constant 104 : index
    %c0_113 = arith.constant 0 : index
    %350 = vector.load %arg9[%c104_112, %c0_113] : memref<128x128xf32, #tpu.memory_space<vmem>>, vector<8x128xf32>
    tpu.vector_store %arg9[%c104_112, %c0_113], %349 {strides = array<i32>} : memref<128x128xf32, #tpu.memory_space<vmem>>, vector<8x128xf32>,
    %c112 = arith.constant 112 : index
    %c0_114 = arith.constant 0 : index
    %351 = vector.load %arg10[%c112, %c0_114] : memref<128x384xf32, #tpu.memory_space<vmem>>, vector<8x384xf32>
    %cst_115 = arith.constant dense<0.000000e+00> : vector<8x384xf32>
    %352 = tpu.matmul %349, %2, %cst_115 {dimension_numbers = #tpu.dot_dimension_numbers<[1], [0], [0], [1], [0, 0, 1, 1], [], []>} : vector<8x128xf32>, vector<128x384xf32>, vector<8x384xf32> -> vector<8x384xf32>
    %353 = vector.extract_strided_slice %351 {offsets = [0, 0], sizes = [8, 256], strides = [1, 1]} : vector<8x384xf32> to vector<8x256xf32>
    %354 = vector.extract_strided_slice %352 {offsets = [0, 0], sizes = [8, 256], strides = [1, 1]} : vector<8x384xf32> to vector<8x256xf32>
    %355 = arith.addf %353, %354 : vector<8x256xf32>
    %cst_116 = arith.constant 5.000000e-01 : f32
    %356 = vector.broadcast %cst_116 : f32 to vector<8x256xf32>
    %357 = arith.mulf %356, %355 : vector<8x256xf32>
    %358 = math.tanh %357 : vector<8x256xf32>
    %cst_117 = arith.constant 5.000000e-01 : f32
    %359 = vector.broadcast %cst_117 : f32 to vector<8x256xf32>
    %360 = arith.mulf %359, %358 : vector<8x256xf32>
    %cst_118 = arith.constant 5.000000e-01 : f32
    %361 = vector.broadcast %cst_118 : f32 to vector<8x256xf32>
    %362 = arith.addf %360, %361 : vector<8x256xf32>
    %363 = vector.extract_strided_slice %362 {offsets = [0, 0], sizes = [8, 128], strides = [1, 1]} : vector<8x256xf32> to vector<8x128xf32>
    %364 = vector.extract_strided_slice %362 {offsets = [0, 128], sizes = [8, 128], strides = [1, 1]} : vector<8x256xf32> to vector<8x128xf32>
    %365 = vector.extract_strided_slice %351 {offsets = [0, 256], sizes = [8, 128], strides = [1, 1]} : vector<8x384xf32> to vector<8x128xf32>
    %366 = vector.extract_strided_slice %352 {offsets = [0, 256], sizes = [8, 128], strides = [1, 1]} : vector<8x384xf32> to vector<8x128xf32>
    %367 = arith.addf %366, %13 : vector<8x128xf32>
    %368 = arith.mulf %363, %367 : vector<8x128xf32>
    %369 = arith.addf %365, %368 : vector<8x128xf32>
    %370 = math.tanh %369 : vector<8x128xf32>
    %371 = arith.subf %349, %370 : vector<8x128xf32>
    %372 = arith.mulf %364, %371 : vector<8x128xf32>
    %373 = arith.addf %370, %372 : vector<8x128xf32>
    %c112_119 = arith.constant 112 : index
    %c0_120 = arith.constant 0 : index
    %374 = vector.load %arg9[%c112_119, %c0_120] : memref<128x128xf32, #tpu.memory_space<vmem>>, vector<8x128xf32>
    tpu.vector_store %arg9[%c112_119, %c0_120], %373 {strides = array<i32>} : memref<128x128xf32, #tpu.memory_space<vmem>>, vector<8x128xf32>,
    %c120 = arith.constant 120 : index
    %c0_121 = arith.constant 0 : index
    %375 = vector.load %arg10[%c120, %c0_121] : memref<128x384xf32, #tpu.memory_space<vmem>>, vector<8x384xf32>
    %cst_122 = arith.constant dense<0.000000e+00> : vector<8x384xf32>
    %376 = tpu.matmul %373, %2, %cst_122 {dimension_numbers = #tpu.dot_dimension_numbers<[1], [0], [0], [1], [0, 0, 1, 1], [], []>} : vector<8x128xf32>, vector<128x384xf32>, vector<8x384xf32> -> vector<8x384xf32>
    %377 = vector.extract_strided_slice %375 {offsets = [0, 0], sizes = [8, 256], strides = [1, 1]} : vector<8x384xf32> to vector<8x256xf32>
    %378 = vector.extract_strided_slice %376 {offsets = [0, 0], sizes = [8, 256], strides = [1, 1]} : vector<8x384xf32> to vector<8x256xf32>
    %379 = arith.addf %377, %378 : vector<8x256xf32>
    %cst_123 = arith.constant 5.000000e-01 : f32
    %380 = vector.broadcast %cst_123 : f32 to vector<8x256xf32>
    %381 = arith.mulf %380, %379 : vector<8x256xf32>
    %382 = math.tanh %381 : vector<8x256xf32>
    %cst_124 = arith.constant 5.000000e-01 : f32
    %383 = vector.broadcast %cst_124 : f32 to vector<8x256xf32>
    %384 = arith.mulf %383, %382 : vector<8x256xf32>
    %cst_125 = arith.constant 5.000000e-01 : f32
    %385 = vector.broadcast %cst_125 : f32 to vector<8x256xf32>
    %386 = arith.addf %384, %385 : vector<8x256xf32>
    %387 = vector.extract_strided_slice %386 {offsets = [0, 0], sizes = [8, 128], strides = [1, 1]} : vector<8x256xf32> to vector<8x128xf32>
    %388 = vector.extract_strided_slice %386 {offsets = [0, 128], sizes = [8, 128], strides = [1, 1]} : vector<8x256xf32> to vector<8x128xf32>
    %389 = vector.extract_strided_slice %375 {offsets = [0, 256], sizes = [8, 128], strides = [1, 1]} : vector<8x384xf32> to vector<8x128xf32>
    %390 = vector.extract_strided_slice %376 {offsets = [0, 256], sizes = [8, 128], strides = [1, 1]} : vector<8x384xf32> to vector<8x128xf32>
    %391 = arith.addf %390, %13 : vector<8x128xf32>
    %392 = arith.mulf %387, %391 : vector<8x128xf32>
    %393 = arith.addf %389, %392 : vector<8x128xf32>
    %394 = math.tanh %393 : vector<8x128xf32>
    %395 = arith.subf %373, %394 : vector<8x128xf32>
    %396 = arith.mulf %388, %395 : vector<8x128xf32>
    %397 = arith.addf %394, %396 : vector<8x128xf32>
    %c120_126 = arith.constant 120 : index
    %c0_127 = arith.constant 0 : index
    %398 = vector.load %arg9[%c120_126, %c0_127] : memref<128x128xf32, #tpu.memory_space<vmem>>, vector<8x128xf32>
    tpu.vector_store %arg9[%c120_126, %c0_127], %397 {strides = array<i32>} : memref<128x128xf32, #tpu.memory_space<vmem>>, vector<8x128xf32>,
    %c0_128 = arith.constant 0 : index
    %c0_129 = arith.constant 0 : index
    %c0_130 = arith.constant 0 : index
    %399 = vector.load %arg2[%c0_128, %c0_129, %c0_130] : memref<1x128x384xf32, #tpu.memory_space<vmem>>, vector<1x128x384xf32>
    %400 = vector.shape_cast %399 : vector<1x128x384xf32> to vector<128x384xf32>
    %c1 = arith.constant 1 : index
    %c0_131 = arith.constant 0 : index
    %c0_132 = arith.constant 0 : index
    %401 = vector.load %arg3[%c1, %c0_131, %c0_132] : memref<2x128x384xf32, #tpu.memory_space<vmem>>, vector<1x128x384xf32>
    %402 = vector.shape_cast %401 : vector<1x128x384xf32> to vector<128x384xf32>
    %c1_133 = arith.constant 1 : index
    %c0_134 = arith.constant 0 : index
    %c0_135 = arith.constant 0 : index
    %403 = vector.load %arg4[%c1_133, %c0_134, %c0_135] : memref<2x1x384xf32, #tpu.memory_space<vmem>>, vector<1x1x384xf32>
    %404 = vector.shape_cast %403 : vector<1x1x384xf32> to vector<1x384xf32>
    %c1_136 = arith.constant 1 : index
    %c0_137 = arith.constant 0 : index
    %c0_138 = arith.constant 0 : index
    %405 = vector.load %arg5[%c1_136, %c0_137, %c0_138] : memref<2x1x128xf32, #tpu.memory_space<vmem>>, vector<1x1x128xf32>
    %406 = vector.shape_cast %405 : vector<1x1x128xf32> to vector<1x128xf32>
    %c0_139 = arith.constant 0 : index
    %c0_140 = arith.constant 0 : index
    %407 = vector.load %arg9[%c0_139, %c0_140] : memref<128x128xf32, #tpu.memory_space<vmem>>, vector<128x128xf32>
    %cst_141 = arith.constant dense<0.000000e+00> : vector<128x384xf32>
    %408 = tpu.matmul %407, %400, %cst_141 {dimension_numbers = #tpu.dot_dimension_numbers<[1], [0], [0], [1], [0, 0, 1, 1], [], []>} : vector<128x128xf32>, vector<128x384xf32>, vector<128x384xf32> -> vector<128x384xf32>
    %409 = vector.broadcast %404 : vector<1x384xf32> to vector<128x384xf32>
    %410 = arith.addf %408, %409 : vector<128x384xf32>
    %c0_142 = arith.constant 0 : index
    %c0_143 = arith.constant 0 : index
    %411 = vector.load %arg10[%c0_142, %c0_143] : memref<128x384xf32, #tpu.memory_space<vmem>>, vector<128x384xf32>
    tpu.vector_store %arg10[%c0_142, %c0_143], %410 {strides = array<i32>} : memref<128x384xf32, #tpu.memory_space<vmem>>, vector<128x384xf32>,
    %412 = vector.shape_cast %406 : vector<1x128xf32> to vector<1x128xf32>
    %413 = vector.broadcast %412 : vector<1x128xf32> to vector<8x128xf32>
    %cst_144 = arith.constant 0.000000e+00 : f32
    %414 = vector.broadcast %cst_144 : f32 to vector<8x128xf32>
    %c0_145 = arith.constant 0 : index
    %c0_146 = arith.constant 0 : index
    %415 = vector.load %arg10[%c0_145, %c0_146] : memref<128x384xf32, #tpu.memory_space<vmem>>, vector<8x384xf32>
    %cst_147 = arith.constant dense<0.000000e+00> : vector<8x384xf32>
    %416 = tpu.matmul %414, %402, %cst_147 {dimension_numbers = #tpu.dot_dimension_numbers<[1], [0], [0], [1], [0, 0, 1, 1], [], []>} : vector<8x128xf32>, vector<128x384xf32>, vector<8x384xf32> -> vector<8x384xf32>
    %417 = vector.extract_strided_slice %415 {offsets = [0, 0], sizes = [8, 256], strides = [1, 1]} : vector<8x384xf32> to vector<8x256xf32>
    %418 = vector.extract_strided_slice %416 {offsets = [0, 0], sizes = [8, 256], strides = [1, 1]} : vector<8x384xf32> to vector<8x256xf32>
    %419 = arith.addf %417, %418 : vector<8x256xf32>
    %cst_148 = arith.constant 5.000000e-01 : f32
    %420 = vector.broadcast %cst_148 : f32 to vector<8x256xf32>
    %421 = arith.mulf %420, %419 : vector<8x256xf32>
    %422 = math.tanh %421 : vector<8x256xf32>
    %cst_149 = arith.constant 5.000000e-01 : f32
    %423 = vector.broadcast %cst_149 : f32 to vector<8x256xf32>
    %424 = arith.mulf %423, %422 : vector<8x256xf32>
    %cst_150 = arith.constant 5.000000e-01 : f32
    %425 = vector.broadcast %cst_150 : f32 to vector<8x256xf32>
    %426 = arith.addf %424, %425 : vector<8x256xf32>
    %427 = vector.extract_strided_slice %426 {offsets = [0, 0], sizes = [8, 128], strides = [1, 1]} : vector<8x256xf32> to vector<8x128xf32>
    %428 = vector.extract_strided_slice %426 {offsets = [0, 128], sizes = [8, 128], strides = [1, 1]} : vector<8x256xf32> to vector<8x128xf32>
    %429 = vector.extract_strided_slice %415 {offsets = [0, 256], sizes = [8, 128], strides = [1, 1]} : vector<8x384xf32> to vector<8x128xf32>
    %430 = vector.extract_strided_slice %416 {offsets = [0, 256], sizes = [8, 128], strides = [1, 1]} : vector<8x384xf32> to vector<8x128xf32>
    %431 = arith.addf %430, %413 : vector<8x128xf32>
    %432 = arith.mulf %427, %431 : vector<8x128xf32>
    %433 = arith.addf %429, %432 : vector<8x128xf32>
    %434 = math.tanh %433 : vector<8x128xf32>
    %435 = arith.subf %414, %434 : vector<8x128xf32>
    %436 = arith.mulf %428, %435 : vector<8x128xf32>
    %437 = arith.addf %434, %436 : vector<8x128xf32>
    %c0_151 = arith.constant 0 : index
    %c0_152 = arith.constant 0 : index
    %438 = vector.load %arg9[%c0_151, %c0_152] : memref<128x128xf32, #tpu.memory_space<vmem>>, vector<8x128xf32>
    tpu.vector_store %arg9[%c0_151, %c0_152], %437 {strides = array<i32>} : memref<128x128xf32, #tpu.memory_space<vmem>>, vector<8x128xf32>,
    %c8_153 = arith.constant 8 : index
    %c0_154 = arith.constant 0 : index
    %439 = vector.load %arg10[%c8_153, %c0_154] : memref<128x384xf32, #tpu.memory_space<vmem>>, vector<8x384xf32>
    %cst_155 = arith.constant dense<0.000000e+00> : vector<8x384xf32>
    %440 = tpu.matmul %437, %402, %cst_155 {dimension_numbers = #tpu.dot_dimension_numbers<[1], [0], [0], [1], [0, 0, 1, 1], [], []>} : vector<8x128xf32>, vector<128x384xf32>, vector<8x384xf32> -> vector<8x384xf32>
    %441 = vector.extract_strided_slice %439 {offsets = [0, 0], sizes = [8, 256], strides = [1, 1]} : vector<8x384xf32> to vector<8x256xf32>
    %442 = vector.extract_strided_slice %440 {offsets = [0, 0], sizes = [8, 256], strides = [1, 1]} : vector<8x384xf32> to vector<8x256xf32>
    %443 = arith.addf %441, %442 : vector<8x256xf32>
    %cst_156 = arith.constant 5.000000e-01 : f32
    %444 = vector.broadcast %cst_156 : f32 to vector<8x256xf32>
    %445 = arith.mulf %444, %443 : vector<8x256xf32>
    %446 = math.tanh %445 : vector<8x256xf32>
    %cst_157 = arith.constant 5.000000e-01 : f32
    %447 = vector.broadcast %cst_157 : f32 to vector<8x256xf32>
    %448 = arith.mulf %447, %446 : vector<8x256xf32>
    %cst_158 = arith.constant 5.000000e-01 : f32
    %449 = vector.broadcast %cst_158 : f32 to vector<8x256xf32>
    %450 = arith.addf %448, %449 : vector<8x256xf32>
    %451 = vector.extract_strided_slice %450 {offsets = [0, 0], sizes = [8, 128], strides = [1, 1]} : vector<8x256xf32> to vector<8x128xf32>
    %452 = vector.extract_strided_slice %450 {offsets = [0, 128], sizes = [8, 128], strides = [1, 1]} : vector<8x256xf32> to vector<8x128xf32>
    %453 = vector.extract_strided_slice %439 {offsets = [0, 256], sizes = [8, 128], strides = [1, 1]} : vector<8x384xf32> to vector<8x128xf32>
    %454 = vector.extract_strided_slice %440 {offsets = [0, 256], sizes = [8, 128], strides = [1, 1]} : vector<8x384xf32> to vector<8x128xf32>
    %455 = arith.addf %454, %413 : vector<8x128xf32>
    %456 = arith.mulf %451, %455 : vector<8x128xf32>
    %457 = arith.addf %453, %456 : vector<8x128xf32>
    %458 = math.tanh %457 : vector<8x128xf32>
    %459 = arith.subf %437, %458 : vector<8x128xf32>
    %460 = arith.mulf %452, %459 : vector<8x128xf32>
    %461 = arith.addf %458, %460 : vector<8x128xf32>
    %c8_159 = arith.constant 8 : index
    %c0_160 = arith.constant 0 : index
    %462 = vector.load %arg9[%c8_159, %c0_160] : memref<128x128xf32, #tpu.memory_space<vmem>>, vector<8x128xf32>
    tpu.vector_store %arg9[%c8_159, %c0_160], %461 {strides = array<i32>} : memref<128x128xf32, #tpu.memory_space<vmem>>, vector<8x128xf32>,
    %c16_161 = arith.constant 16 : index
    %c0_162 = arith.constant 0 : index
    %463 = vector.load %arg10[%c16_161, %c0_162] : memref<128x384xf32, #tpu.memory_space<vmem>>, vector<8x384xf32>
    %cst_163 = arith.constant dense<0.000000e+00> : vector<8x384xf32>
    %464 = tpu.matmul %461, %402, %cst_163 {dimension_numbers = #tpu.dot_dimension_numbers<[1], [0], [0], [1], [0, 0, 1, 1], [], []>} : vector<8x128xf32>, vector<128x384xf32>, vector<8x384xf32> -> vector<8x384xf32>
    %465 = vector.extract_strided_slice %463 {offsets = [0, 0], sizes = [8, 256], strides = [1, 1]} : vector<8x384xf32> to vector<8x256xf32>
    %466 = vector.extract_strided_slice %464 {offsets = [0, 0], sizes = [8, 256], strides = [1, 1]} : vector<8x384xf32> to vector<8x256xf32>
    %467 = arith.addf %465, %466 : vector<8x256xf32>
    %cst_164 = arith.constant 5.000000e-01 : f32
    %468 = vector.broadcast %cst_164 : f32 to vector<8x256xf32>
    %469 = arith.mulf %468, %467 : vector<8x256xf32>
    %470 = math.tanh %469 : vector<8x256xf32>
    %cst_165 = arith.constant 5.000000e-01 : f32
    %471 = vector.broadcast %cst_165 : f32 to vector<8x256xf32>
    %472 = arith.mulf %471, %470 : vector<8x256xf32>
    %cst_166 = arith.constant 5.000000e-01 : f32
    %473 = vector.broadcast %cst_166 : f32 to vector<8x256xf32>
    %474 = arith.addf %472, %473 : vector<8x256xf32>
    %475 = vector.extract_strided_slice %474 {offsets = [0, 0], sizes = [8, 128], strides = [1, 1]} : vector<8x256xf32> to vector<8x128xf32>
    %476 = vector.extract_strided_slice %474 {offsets = [0, 128], sizes = [8, 128], strides = [1, 1]} : vector<8x256xf32> to vector<8x128xf32>
    %477 = vector.extract_strided_slice %463 {offsets = [0, 256], sizes = [8, 128], strides = [1, 1]} : vector<8x384xf32> to vector<8x128xf32>
    %478 = vector.extract_strided_slice %464 {offsets = [0, 256], sizes = [8, 128], strides = [1, 1]} : vector<8x384xf32> to vector<8x128xf32>
    %479 = arith.addf %478, %413 : vector<8x128xf32>
    %480 = arith.mulf %475, %479 : vector<8x128xf32>
    %481 = arith.addf %477, %480 : vector<8x128xf32>
    %482 = math.tanh %481 : vector<8x128xf32>
    %483 = arith.subf %461, %482 : vector<8x128xf32>
    %484 = arith.mulf %476, %483 : vector<8x128xf32>
    %485 = arith.addf %482, %484 : vector<8x128xf32>
    %c16_167 = arith.constant 16 : index
    %c0_168 = arith.constant 0 : index
    %486 = vector.load %arg9[%c16_167, %c0_168] : memref<128x128xf32, #tpu.memory_space<vmem>>, vector<8x128xf32>
    tpu.vector_store %arg9[%c16_167, %c0_168], %485 {strides = array<i32>} : memref<128x128xf32, #tpu.memory_space<vmem>>, vector<8x128xf32>,
    %c24_169 = arith.constant 24 : index
    %c0_170 = arith.constant 0 : index
    %487 = vector.load %arg10[%c24_169, %c0_170] : memref<128x384xf32, #tpu.memory_space<vmem>>, vector<8x384xf32>
    %cst_171 = arith.constant dense<0.000000e+00> : vector<8x384xf32>
    %488 = tpu.matmul %485, %402, %cst_171 {dimension_numbers = #tpu.dot_dimension_numbers<[1], [0], [0], [1], [0, 0, 1, 1], [], []>} : vector<8x128xf32>, vector<128x384xf32>, vector<8x384xf32> -> vector<8x384xf32>
    %489 = vector.extract_strided_slice %487 {offsets = [0, 0], sizes = [8, 256], strides = [1, 1]} : vector<8x384xf32> to vector<8x256xf32>
    %490 = vector.extract_strided_slice %488 {offsets = [0, 0], sizes = [8, 256], strides = [1, 1]} : vector<8x384xf32> to vector<8x256xf32>
    %491 = arith.addf %489, %490 : vector<8x256xf32>
    %cst_172 = arith.constant 5.000000e-01 : f32
    %492 = vector.broadcast %cst_172 : f32 to vector<8x256xf32>
    %493 = arith.mulf %492, %491 : vector<8x256xf32>
    %494 = math.tanh %493 : vector<8x256xf32>
    %cst_173 = arith.constant 5.000000e-01 : f32
    %495 = vector.broadcast %cst_173 : f32 to vector<8x256xf32>
    %496 = arith.mulf %495, %494 : vector<8x256xf32>
    %cst_174 = arith.constant 5.000000e-01 : f32
    %497 = vector.broadcast %cst_174 : f32 to vector<8x256xf32>
    %498 = arith.addf %496, %497 : vector<8x256xf32>
    %499 = vector.extract_strided_slice %498 {offsets = [0, 0], sizes = [8, 128], strides = [1, 1]} : vector<8x256xf32> to vector<8x128xf32>
    %500 = vector.extract_strided_slice %498 {offsets = [0, 128], sizes = [8, 128], strides = [1, 1]} : vector<8x256xf32> to vector<8x128xf32>
    %501 = vector.extract_strided_slice %487 {offsets = [0, 256], sizes = [8, 128], strides = [1, 1]} : vector<8x384xf32> to vector<8x128xf32>
    %502 = vector.extract_strided_slice %488 {offsets = [0, 256], sizes = [8, 128], strides = [1, 1]} : vector<8x384xf32> to vector<8x128xf32>
    %503 = arith.addf %502, %413 : vector<8x128xf32>
    %504 = arith.mulf %499, %503 : vector<8x128xf32>
    %505 = arith.addf %501, %504 : vector<8x128xf32>
    %506 = math.tanh %505 : vector<8x128xf32>
    %507 = arith.subf %485, %506 : vector<8x128xf32>
    %508 = arith.mulf %500, %507 : vector<8x128xf32>
    %509 = arith.addf %506, %508 : vector<8x128xf32>
    %c24_175 = arith.constant 24 : index
    %c0_176 = arith.constant 0 : index
    %510 = vector.load %arg9[%c24_175, %c0_176] : memref<128x128xf32, #tpu.memory_space<vmem>>, vector<8x128xf32>
    tpu.vector_store %arg9[%c24_175, %c0_176], %509 {strides = array<i32>} : memref<128x128xf32, #tpu.memory_space<vmem>>, vector<8x128xf32>,
    %c32_177 = arith.constant 32 : index
    %c0_178 = arith.constant 0 : index
    %511 = vector.load %arg10[%c32_177, %c0_178] : memref<128x384xf32, #tpu.memory_space<vmem>>, vector<8x384xf32>
    %cst_179 = arith.constant dense<0.000000e+00> : vector<8x384xf32>
    %512 = tpu.matmul %509, %402, %cst_179 {dimension_numbers = #tpu.dot_dimension_numbers<[1], [0], [0], [1], [0, 0, 1, 1], [], []>} : vector<8x128xf32>, vector<128x384xf32>, vector<8x384xf32> -> vector<8x384xf32>
    %513 = vector.extract_strided_slice %511 {offsets = [0, 0], sizes = [8, 256], strides = [1, 1]} : vector<8x384xf32> to vector<8x256xf32>
    %514 = vector.extract_strided_slice %512 {offsets = [0, 0], sizes = [8, 256], strides = [1, 1]} : vector<8x384xf32> to vector<8x256xf32>
    %515 = arith.addf %513, %514 : vector<8x256xf32>
    %cst_180 = arith.constant 5.000000e-01 : f32
    %516 = vector.broadcast %cst_180 : f32 to vector<8x256xf32>
    %517 = arith.mulf %516, %515 : vector<8x256xf32>
    %518 = math.tanh %517 : vector<8x256xf32>
    %cst_181 = arith.constant 5.000000e-01 : f32
    %519 = vector.broadcast %cst_181 : f32 to vector<8x256xf32>
    %520 = arith.mulf %519, %518 : vector<8x256xf32>
    %cst_182 = arith.constant 5.000000e-01 : f32
    %521 = vector.broadcast %cst_182 : f32 to vector<8x256xf32>
    %522 = arith.addf %520, %521 : vector<8x256xf32>
    %523 = vector.extract_strided_slice %522 {offsets = [0, 0], sizes = [8, 128], strides = [1, 1]} : vector<8x256xf32> to vector<8x128xf32>
    %524 = vector.extract_strided_slice %522 {offsets = [0, 128], sizes = [8, 128], strides = [1, 1]} : vector<8x256xf32> to vector<8x128xf32>
    %525 = vector.extract_strided_slice %511 {offsets = [0, 256], sizes = [8, 128], strides = [1, 1]} : vector<8x384xf32> to vector<8x128xf32>
    %526 = vector.extract_strided_slice %512 {offsets = [0, 256], sizes = [8, 128], strides = [1, 1]} : vector<8x384xf32> to vector<8x128xf32>
    %527 = arith.addf %526, %413 : vector<8x128xf32>
    %528 = arith.mulf %523, %527 : vector<8x128xf32>
    %529 = arith.addf %525, %528 : vector<8x128xf32>
    %530 = math.tanh %529 : vector<8x128xf32>
    %531 = arith.subf %509, %530 : vector<8x128xf32>
    %532 = arith.mulf %524, %531 : vector<8x128xf32>
    %533 = arith.addf %530, %532 : vector<8x128xf32>
    %c32_183 = arith.constant 32 : index
    %c0_184 = arith.constant 0 : index
    %534 = vector.load %arg9[%c32_183, %c0_184] : memref<128x128xf32, #tpu.memory_space<vmem>>, vector<8x128xf32>
    tpu.vector_store %arg9[%c32_183, %c0_184], %533 {strides = array<i32>} : memref<128x128xf32, #tpu.memory_space<vmem>>, vector<8x128xf32>,
    %c40_185 = arith.constant 40 : index
    %c0_186 = arith.constant 0 : index
    %535 = vector.load %arg10[%c40_185, %c0_186] : memref<128x384xf32, #tpu.memory_space<vmem>>, vector<8x384xf32>
    %cst_187 = arith.constant dense<0.000000e+00> : vector<8x384xf32>
    %536 = tpu.matmul %533, %402, %cst_187 {dimension_numbers = #tpu.dot_dimension_numbers<[1], [0], [0], [1], [0, 0, 1, 1], [], []>} : vector<8x128xf32>, vector<128x384xf32>, vector<8x384xf32> -> vector<8x384xf32>
    %537 = vector.extract_strided_slice %535 {offsets = [0, 0], sizes = [8, 256], strides = [1, 1]} : vector<8x384xf32> to vector<8x256xf32>
    %538 = vector.extract_strided_slice %536 {offsets = [0, 0], sizes = [8, 256], strides = [1, 1]} : vector<8x384xf32> to vector<8x256xf32>
    %539 = arith.addf %537, %538 : vector<8x256xf32>
    %cst_188 = arith.constant 5.000000e-01 : f32
    %540 = vector.broadcast %cst_188 : f32 to vector<8x256xf32>
    %541 = arith.mulf %540, %539 : vector<8x256xf32>
    %542 = math.tanh %541 : vector<8x256xf32>
    %cst_189 = arith.constant 5.000000e-01 : f32
    %543 = vector.broadcast %cst_189 : f32 to vector<8x256xf32>
    %544 = arith.mulf %543, %542 : vector<8x256xf32>
    %cst_190 = arith.constant 5.000000e-01 : f32
    %545 = vector.broadcast %cst_190 : f32 to vector<8x256xf32>
    %546 = arith.addf %544, %545 : vector<8x256xf32>
    %547 = vector.extract_strided_slice %546 {offsets = [0, 0], sizes = [8, 128], strides = [1, 1]} : vector<8x256xf32> to vector<8x128xf32>
    %548 = vector.extract_strided_slice %546 {offsets = [0, 128], sizes = [8, 128], strides = [1, 1]} : vector<8x256xf32> to vector<8x128xf32>
    %549 = vector.extract_strided_slice %535 {offsets = [0, 256], sizes = [8, 128], strides = [1, 1]} : vector<8x384xf32> to vector<8x128xf32>
    %550 = vector.extract_strided_slice %536 {offsets = [0, 256], sizes = [8, 128], strides = [1, 1]} : vector<8x384xf32> to vector<8x128xf32>
    %551 = arith.addf %550, %413 : vector<8x128xf32>
    %552 = arith.mulf %547, %551 : vector<8x128xf32>
    %553 = arith.addf %549, %552 : vector<8x128xf32>
    %554 = math.tanh %553 : vector<8x128xf32>
    %555 = arith.subf %533, %554 : vector<8x128xf32>
    %556 = arith.mulf %548, %555 : vector<8x128xf32>
    %557 = arith.addf %554, %556 : vector<8x128xf32>
    %c40_191 = arith.constant 40 : index
    %c0_192 = arith.constant 0 : index
    %558 = vector.load %arg9[%c40_191, %c0_192] : memref<128x128xf32, #tpu.memory_space<vmem>>, vector<8x128xf32>
    tpu.vector_store %arg9[%c40_191, %c0_192], %557 {strides = array<i32>} : memref<128x128xf32, #tpu.memory_space<vmem>>, vector<8x128xf32>,
    %c48_193 = arith.constant 48 : index
    %c0_194 = arith.constant 0 : index
    %559 = vector.load %arg10[%c48_193, %c0_194] : memref<128x384xf32, #tpu.memory_space<vmem>>, vector<8x384xf32>
    %cst_195 = arith.constant dense<0.000000e+00> : vector<8x384xf32>
    %560 = tpu.matmul %557, %402, %cst_195 {dimension_numbers = #tpu.dot_dimension_numbers<[1], [0], [0], [1], [0, 0, 1, 1], [], []>} : vector<8x128xf32>, vector<128x384xf32>, vector<8x384xf32> -> vector<8x384xf32>
    %561 = vector.extract_strided_slice %559 {offsets = [0, 0], sizes = [8, 256], strides = [1, 1]} : vector<8x384xf32> to vector<8x256xf32>
    %562 = vector.extract_strided_slice %560 {offsets = [0, 0], sizes = [8, 256], strides = [1, 1]} : vector<8x384xf32> to vector<8x256xf32>
    %563 = arith.addf %561, %562 : vector<8x256xf32>
    %cst_196 = arith.constant 5.000000e-01 : f32
    %564 = vector.broadcast %cst_196 : f32 to vector<8x256xf32>
    %565 = arith.mulf %564, %563 : vector<8x256xf32>
    %566 = math.tanh %565 : vector<8x256xf32>
    %cst_197 = arith.constant 5.000000e-01 : f32
    %567 = vector.broadcast %cst_197 : f32 to vector<8x256xf32>
    %568 = arith.mulf %567, %566 : vector<8x256xf32>
    %cst_198 = arith.constant 5.000000e-01 : f32
    %569 = vector.broadcast %cst_198 : f32 to vector<8x256xf32>
    %570 = arith.addf %568, %569 : vector<8x256xf32>
    %571 = vector.extract_strided_slice %570 {offsets = [0, 0], sizes = [8, 128], strides = [1, 1]} : vector<8x256xf32> to vector<8x128xf32>
    %572 = vector.extract_strided_slice %570 {offsets = [0, 128], sizes = [8, 128], strides = [1, 1]} : vector<8x256xf32> to vector<8x128xf32>
    %573 = vector.extract_strided_slice %559 {offsets = [0, 256], sizes = [8, 128], strides = [1, 1]} : vector<8x384xf32> to vector<8x128xf32>
    %574 = vector.extract_strided_slice %560 {offsets = [0, 256], sizes = [8, 128], strides = [1, 1]} : vector<8x384xf32> to vector<8x128xf32>
    %575 = arith.addf %574, %413 : vector<8x128xf32>
    %576 = arith.mulf %571, %575 : vector<8x128xf32>
    %577 = arith.addf %573, %576 : vector<8x128xf32>
    %578 = math.tanh %577 : vector<8x128xf32>
    %579 = arith.subf %557, %578 : vector<8x128xf32>
    %580 = arith.mulf %572, %579 : vector<8x128xf32>
    %581 = arith.addf %578, %580 : vector<8x128xf32>
    %c48_199 = arith.constant 48 : index
    %c0_200 = arith.constant 0 : index
    %582 = vector.load %arg9[%c48_199, %c0_200] : memref<128x128xf32, #tpu.memory_space<vmem>>, vector<8x128xf32>
    tpu.vector_store %arg9[%c48_199, %c0_200], %581 {strides = array<i32>} : memref<128x128xf32, #tpu.memory_space<vmem>>, vector<8x128xf32>,
    %c56_201 = arith.constant 56 : index
    %c0_202 = arith.constant 0 : index
    %583 = vector.load %arg10[%c56_201, %c0_202] : memref<128x384xf32, #tpu.memory_space<vmem>>, vector<8x384xf32>
    %cst_203 = arith.constant dense<0.000000e+00> : vector<8x384xf32>
    %584 = tpu.matmul %581, %402, %cst_203 {dimension_numbers = #tpu.dot_dimension_numbers<[1], [0], [0], [1], [0, 0, 1, 1], [], []>} : vector<8x128xf32>, vector<128x384xf32>, vector<8x384xf32> -> vector<8x384xf32>
    %585 = vector.extract_strided_slice %583 {offsets = [0, 0], sizes = [8, 256], strides = [1, 1]} : vector<8x384xf32> to vector<8x256xf32>
    %586 = vector.extract_strided_slice %584 {offsets = [0, 0], sizes = [8, 256], strides = [1, 1]} : vector<8x384xf32> to vector<8x256xf32>
    %587 = arith.addf %585, %586 : vector<8x256xf32>
    %cst_204 = arith.constant 5.000000e-01 : f32
    %588 = vector.broadcast %cst_204 : f32 to vector<8x256xf32>
    %589 = arith.mulf %588, %587 : vector<8x256xf32>
    %590 = math.tanh %589 : vector<8x256xf32>
    %cst_205 = arith.constant 5.000000e-01 : f32
    %591 = vector.broadcast %cst_205 : f32 to vector<8x256xf32>
    %592 = arith.mulf %591, %590 : vector<8x256xf32>
    %cst_206 = arith.constant 5.000000e-01 : f32
    %593 = vector.broadcast %cst_206 : f32 to vector<8x256xf32>
    %594 = arith.addf %592, %593 : vector<8x256xf32>
    %595 = vector.extract_strided_slice %594 {offsets = [0, 0], sizes = [8, 128], strides = [1, 1]} : vector<8x256xf32> to vector<8x128xf32>
    %596 = vector.extract_strided_slice %594 {offsets = [0, 128], sizes = [8, 128], strides = [1, 1]} : vector<8x256xf32> to vector<8x128xf32>
    %597 = vector.extract_strided_slice %583 {offsets = [0, 256], sizes = [8, 128], strides = [1, 1]} : vector<8x384xf32> to vector<8x128xf32>
    %598 = vector.extract_strided_slice %584 {offsets = [0, 256], sizes = [8, 128], strides = [1, 1]} : vector<8x384xf32> to vector<8x128xf32>
    %599 = arith.addf %598, %413 : vector<8x128xf32>
    %600 = arith.mulf %595, %599 : vector<8x128xf32>
    %601 = arith.addf %597, %600 : vector<8x128xf32>
    %602 = math.tanh %601 : vector<8x128xf32>
    %603 = arith.subf %581, %602 : vector<8x128xf32>
    %604 = arith.mulf %596, %603 : vector<8x128xf32>
    %605 = arith.addf %602, %604 : vector<8x128xf32>
    %c56_207 = arith.constant 56 : index
    %c0_208 = arith.constant 0 : index
    %606 = vector.load %arg9[%c56_207, %c0_208] : memref<128x128xf32, #tpu.memory_space<vmem>>, vector<8x128xf32>
    tpu.vector_store %arg9[%c56_207, %c0_208], %605 {strides = array<i32>} : memref<128x128xf32, #tpu.memory_space<vmem>>, vector<8x128xf32>,
    %c64_209 = arith.constant 64 : index
    %c0_210 = arith.constant 0 : index
    %607 = vector.load %arg10[%c64_209, %c0_210] : memref<128x384xf32, #tpu.memory_space<vmem>>, vector<8x384xf32>
    %cst_211 = arith.constant dense<0.000000e+00> : vector<8x384xf32>
    %608 = tpu.matmul %605, %402, %cst_211 {dimension_numbers = #tpu.dot_dimension_numbers<[1], [0], [0], [1], [0, 0, 1, 1], [], []>} : vector<8x128xf32>, vector<128x384xf32>, vector<8x384xf32> -> vector<8x384xf32>
    %609 = vector.extract_strided_slice %607 {offsets = [0, 0], sizes = [8, 256], strides = [1, 1]} : vector<8x384xf32> to vector<8x256xf32>
    %610 = vector.extract_strided_slice %608 {offsets = [0, 0], sizes = [8, 256], strides = [1, 1]} : vector<8x384xf32> to vector<8x256xf32>
    %611 = arith.addf %609, %610 : vector<8x256xf32>
    %cst_212 = arith.constant 5.000000e-01 : f32
    %612 = vector.broadcast %cst_212 : f32 to vector<8x256xf32>
    %613 = arith.mulf %612, %611 : vector<8x256xf32>
    %614 = math.tanh %613 : vector<8x256xf32>
    %cst_213 = arith.constant 5.000000e-01 : f32
    %615 = vector.broadcast %cst_213 : f32 to vector<8x256xf32>
    %616 = arith.mulf %615, %614 : vector<8x256xf32>
    %cst_214 = arith.constant 5.000000e-01 : f32
    %617 = vector.broadcast %cst_214 : f32 to vector<8x256xf32>
    %618 = arith.addf %616, %617 : vector<8x256xf32>
    %619 = vector.extract_strided_slice %618 {offsets = [0, 0], sizes = [8, 128], strides = [1, 1]} : vector<8x256xf32> to vector<8x128xf32>
    %620 = vector.extract_strided_slice %618 {offsets = [0, 128], sizes = [8, 128], strides = [1, 1]} : vector<8x256xf32> to vector<8x128xf32>
    %621 = vector.extract_strided_slice %607 {offsets = [0, 256], sizes = [8, 128], strides = [1, 1]} : vector<8x384xf32> to vector<8x128xf32>
    %622 = vector.extract_strided_slice %608 {offsets = [0, 256], sizes = [8, 128], strides = [1, 1]} : vector<8x384xf32> to vector<8x128xf32>
    %623 = arith.addf %622, %413 : vector<8x128xf32>
    %624 = arith.mulf %619, %623 : vector<8x128xf32>
    %625 = arith.addf %621, %624 : vector<8x128xf32>
    %626 = math.tanh %625 : vector<8x128xf32>
    %627 = arith.subf %605, %626 : vector<8x128xf32>
    %628 = arith.mulf %620, %627 : vector<8x128xf32>
    %629 = arith.addf %626, %628 : vector<8x128xf32>
    %c64_215 = arith.constant 64 : index
    %c0_216 = arith.constant 0 : index
    %630 = vector.load %arg9[%c64_215, %c0_216] : memref<128x128xf32, #tpu.memory_space<vmem>>, vector<8x128xf32>
    tpu.vector_store %arg9[%c64_215, %c0_216], %629 {strides = array<i32>} : memref<128x128xf32, #tpu.memory_space<vmem>>, vector<8x128xf32>,
    %c72_217 = arith.constant 72 : index
    %c0_218 = arith.constant 0 : index
    %631 = vector.load %arg10[%c72_217, %c0_218] : memref<128x384xf32, #tpu.memory_space<vmem>>, vector<8x384xf32>
    %cst_219 = arith.constant dense<0.000000e+00> : vector<8x384xf32>
    %632 = tpu.matmul %629, %402, %cst_219 {dimension_numbers = #tpu.dot_dimension_numbers<[1], [0], [0], [1], [0, 0, 1, 1], [], []>} : vector<8x128xf32>, vector<128x384xf32>, vector<8x384xf32> -> vector<8x384xf32>
    %633 = vector.extract_strided_slice %631 {offsets = [0, 0], sizes = [8, 256], strides = [1, 1]} : vector<8x384xf32> to vector<8x256xf32>
    %634 = vector.extract_strided_slice %632 {offsets = [0, 0], sizes = [8, 256], strides = [1, 1]} : vector<8x384xf32> to vector<8x256xf32>
    %635 = arith.addf %633, %634 : vector<8x256xf32>
    %cst_220 = arith.constant 5.000000e-01 : f32
    %636 = vector.broadcast %cst_220 : f32 to vector<8x256xf32>
    %637 = arith.mulf %636, %635 : vector<8x256xf32>
    %638 = math.tanh %637 : vector<8x256xf32>
    %cst_221 = arith.constant 5.000000e-01 : f32
    %639 = vector.broadcast %cst_221 : f32 to vector<8x256xf32>
    %640 = arith.mulf %639, %638 : vector<8x256xf32>
    %cst_222 = arith.constant 5.000000e-01 : f32
    %641 = vector.broadcast %cst_222 : f32 to vector<8x256xf32>
    %642 = arith.addf %640, %641 : vector<8x256xf32>
    %643 = vector.extract_strided_slice %642 {offsets = [0, 0], sizes = [8, 128], strides = [1, 1]} : vector<8x256xf32> to vector<8x128xf32>
    %644 = vector.extract_strided_slice %642 {offsets = [0, 128], sizes = [8, 128], strides = [1, 1]} : vector<8x256xf32> to vector<8x128xf32>
    %645 = vector.extract_strided_slice %631 {offsets = [0, 256], sizes = [8, 128], strides = [1, 1]} : vector<8x384xf32> to vector<8x128xf32>
    %646 = vector.extract_strided_slice %632 {offsets = [0, 256], sizes = [8, 128], strides = [1, 1]} : vector<8x384xf32> to vector<8x128xf32>
    %647 = arith.addf %646, %413 : vector<8x128xf32>
    %648 = arith.mulf %643, %647 : vector<8x128xf32>
    %649 = arith.addf %645, %648 : vector<8x128xf32>
    %650 = math.tanh %649 : vector<8x128xf32>
    %651 = arith.subf %629, %650 : vector<8x128xf32>
    %652 = arith.mulf %644, %651 : vector<8x128xf32>
    %653 = arith.addf %650, %652 : vector<8x128xf32>
    %c72_223 = arith.constant 72 : index
    %c0_224 = arith.constant 0 : index
    %654 = vector.load %arg9[%c72_223, %c0_224] : memref<128x128xf32, #tpu.memory_space<vmem>>, vector<8x128xf32>
    tpu.vector_store %arg9[%c72_223, %c0_224], %653 {strides = array<i32>} : memref<128x128xf32, #tpu.memory_space<vmem>>, vector<8x128xf32>,
    %c80_225 = arith.constant 80 : index
    %c0_226 = arith.constant 0 : index
    %655 = vector.load %arg10[%c80_225, %c0_226] : memref<128x384xf32, #tpu.memory_space<vmem>>, vector<8x384xf32>
    %cst_227 = arith.constant dense<0.000000e+00> : vector<8x384xf32>
    %656 = tpu.matmul %653, %402, %cst_227 {dimension_numbers = #tpu.dot_dimension_numbers<[1], [0], [0], [1], [0, 0, 1, 1], [], []>} : vector<8x128xf32>, vector<128x384xf32>, vector<8x384xf32> -> vector<8x384xf32>
    %657 = vector.extract_strided_slice %655 {offsets = [0, 0], sizes = [8, 256], strides = [1, 1]} : vector<8x384xf32> to vector<8x256xf32>
    %658 = vector.extract_strided_slice %656 {offsets = [0, 0], sizes = [8, 256], strides = [1, 1]} : vector<8x384xf32> to vector<8x256xf32>
    %659 = arith.addf %657, %658 : vector<8x256xf32>
    %cst_228 = arith.constant 5.000000e-01 : f32
    %660 = vector.broadcast %cst_228 : f32 to vector<8x256xf32>
    %661 = arith.mulf %660, %659 : vector<8x256xf32>
    %662 = math.tanh %661 : vector<8x256xf32>
    %cst_229 = arith.constant 5.000000e-01 : f32
    %663 = vector.broadcast %cst_229 : f32 to vector<8x256xf32>
    %664 = arith.mulf %663, %662 : vector<8x256xf32>
    %cst_230 = arith.constant 5.000000e-01 : f32
    %665 = vector.broadcast %cst_230 : f32 to vector<8x256xf32>
    %666 = arith.addf %664, %665 : vector<8x256xf32>
    %667 = vector.extract_strided_slice %666 {offsets = [0, 0], sizes = [8, 128], strides = [1, 1]} : vector<8x256xf32> to vector<8x128xf32>
    %668 = vector.extract_strided_slice %666 {offsets = [0, 128], sizes = [8, 128], strides = [1, 1]} : vector<8x256xf32> to vector<8x128xf32>
    %669 = vector.extract_strided_slice %655 {offsets = [0, 256], sizes = [8, 128], strides = [1, 1]} : vector<8x384xf32> to vector<8x128xf32>
    %670 = vector.extract_strided_slice %656 {offsets = [0, 256], sizes = [8, 128], strides = [1, 1]} : vector<8x384xf32> to vector<8x128xf32>
    %671 = arith.addf %670, %413 : vector<8x128xf32>
    %672 = arith.mulf %667, %671 : vector<8x128xf32>
    %673 = arith.addf %669, %672 : vector<8x128xf32>
    %674 = math.tanh %673 : vector<8x128xf32>
    %675 = arith.subf %653, %674 : vector<8x128xf32>
    %676 = arith.mulf %668, %675 : vector<8x128xf32>
    %677 = arith.addf %674, %676 : vector<8x128xf32>
    %c80_231 = arith.constant 80 : index
    %c0_232 = arith.constant 0 : index
    %678 = vector.load %arg9[%c80_231, %c0_232] : memref<128x128xf32, #tpu.memory_space<vmem>>, vector<8x128xf32>
    tpu.vector_store %arg9[%c80_231, %c0_232], %677 {strides = array<i32>} : memref<128x128xf32, #tpu.memory_space<vmem>>, vector<8x128xf32>,
    %c88_233 = arith.constant 88 : index
    %c0_234 = arith.constant 0 : index
    %679 = vector.load %arg10[%c88_233, %c0_234] : memref<128x384xf32, #tpu.memory_space<vmem>>, vector<8x384xf32>
    %cst_235 = arith.constant dense<0.000000e+00> : vector<8x384xf32>
    %680 = tpu.matmul %677, %402, %cst_235 {dimension_numbers = #tpu.dot_dimension_numbers<[1], [0], [0], [1], [0, 0, 1, 1], [], []>} : vector<8x128xf32>, vector<128x384xf32>, vector<8x384xf32> -> vector<8x384xf32>
    %681 = vector.extract_strided_slice %679 {offsets = [0, 0], sizes = [8, 256], strides = [1, 1]} : vector<8x384xf32> to vector<8x256xf32>
    %682 = vector.extract_strided_slice %680 {offsets = [0, 0], sizes = [8, 256], strides = [1, 1]} : vector<8x384xf32> to vector<8x256xf32>
    %683 = arith.addf %681, %682 : vector<8x256xf32>
    %cst_236 = arith.constant 5.000000e-01 : f32
    %684 = vector.broadcast %cst_236 : f32 to vector<8x256xf32>
    %685 = arith.mulf %684, %683 : vector<8x256xf32>
    %686 = math.tanh %685 : vector<8x256xf32>
    %cst_237 = arith.constant 5.000000e-01 : f32
    %687 = vector.broadcast %cst_237 : f32 to vector<8x256xf32>
    %688 = arith.mulf %687, %686 : vector<8x256xf32>
    %cst_238 = arith.constant 5.000000e-01 : f32
    %689 = vector.broadcast %cst_238 : f32 to vector<8x256xf32>
    %690 = arith.addf %688, %689 : vector<8x256xf32>
    %691 = vector.extract_strided_slice %690 {offsets = [0, 0], sizes = [8, 128], strides = [1, 1]} : vector<8x256xf32> to vector<8x128xf32>
    %692 = vector.extract_strided_slice %690 {offsets = [0, 128], sizes = [8, 128], strides = [1, 1]} : vector<8x256xf32> to vector<8x128xf32>
    %693 = vector.extract_strided_slice %679 {offsets = [0, 256], sizes = [8, 128], strides = [1, 1]} : vector<8x384xf32> to vector<8x128xf32>
    %694 = vector.extract_strided_slice %680 {offsets = [0, 256], sizes = [8, 128], strides = [1, 1]} : vector<8x384xf32> to vector<8x128xf32>
    %695 = arith.addf %694, %413 : vector<8x128xf32>
    %696 = arith.mulf %691, %695 : vector<8x128xf32>
    %697 = arith.addf %693, %696 : vector<8x128xf32>
    %698 = math.tanh %697 : vector<8x128xf32>
    %699 = arith.subf %677, %698 : vector<8x128xf32>
    %700 = arith.mulf %692, %699 : vector<8x128xf32>
    %701 = arith.addf %698, %700 : vector<8x128xf32>
    %c88_239 = arith.constant 88 : index
    %c0_240 = arith.constant 0 : index
    %702 = vector.load %arg9[%c88_239, %c0_240] : memref<128x128xf32, #tpu.memory_space<vmem>>, vector<8x128xf32>
    tpu.vector_store %arg9[%c88_239, %c0_240], %701 {strides = array<i32>} : memref<128x128xf32, #tpu.memory_space<vmem>>, vector<8x128xf32>,
    %c96_241 = arith.constant 96 : index
    %c0_242 = arith.constant 0 : index
    %703 = vector.load %arg10[%c96_241, %c0_242] : memref<128x384xf32, #tpu.memory_space<vmem>>, vector<8x384xf32>
    %cst_243 = arith.constant dense<0.000000e+00> : vector<8x384xf32>
    %704 = tpu.matmul %701, %402, %cst_243 {dimension_numbers = #tpu.dot_dimension_numbers<[1], [0], [0], [1], [0, 0, 1, 1], [], []>} : vector<8x128xf32>, vector<128x384xf32>, vector<8x384xf32> -> vector<8x384xf32>
    %705 = vector.extract_strided_slice %703 {offsets = [0, 0], sizes = [8, 256], strides = [1, 1]} : vector<8x384xf32> to vector<8x256xf32>
    %706 = vector.extract_strided_slice %704 {offsets = [0, 0], sizes = [8, 256], strides = [1, 1]} : vector<8x384xf32> to vector<8x256xf32>
    %707 = arith.addf %705, %706 : vector<8x256xf32>
    %cst_244 = arith.constant 5.000000e-01 : f32
    %708 = vector.broadcast %cst_244 : f32 to vector<8x256xf32>
    %709 = arith.mulf %708, %707 : vector<8x256xf32>
    %710 = math.tanh %709 : vector<8x256xf32>
    %cst_245 = arith.constant 5.000000e-01 : f32
    %711 = vector.broadcast %cst_245 : f32 to vector<8x256xf32>
    %712 = arith.mulf %711, %710 : vector<8x256xf32>
    %cst_246 = arith.constant 5.000000e-01 : f32
    %713 = vector.broadcast %cst_246 : f32 to vector<8x256xf32>
    %714 = arith.addf %712, %713 : vector<8x256xf32>
    %715 = vector.extract_strided_slice %714 {offsets = [0, 0], sizes = [8, 128], strides = [1, 1]} : vector<8x256xf32> to vector<8x128xf32>
    %716 = vector.extract_strided_slice %714 {offsets = [0, 128], sizes = [8, 128], strides = [1, 1]} : vector<8x256xf32> to vector<8x128xf32>
    %717 = vector.extract_strided_slice %703 {offsets = [0, 256], sizes = [8, 128], strides = [1, 1]} : vector<8x384xf32> to vector<8x128xf32>
    %718 = vector.extract_strided_slice %704 {offsets = [0, 256], sizes = [8, 128], strides = [1, 1]} : vector<8x384xf32> to vector<8x128xf32>
    %719 = arith.addf %718, %413 : vector<8x128xf32>
    %720 = arith.mulf %715, %719 : vector<8x128xf32>
    %721 = arith.addf %717, %720 : vector<8x128xf32>
    %722 = math.tanh %721 : vector<8x128xf32>
    %723 = arith.subf %701, %722 : vector<8x128xf32>
    %724 = arith.mulf %716, %723 : vector<8x128xf32>
    %725 = arith.addf %722, %724 : vector<8x128xf32>
    %c96_247 = arith.constant 96 : index
    %c0_248 = arith.constant 0 : index
    %726 = vector.load %arg9[%c96_247, %c0_248] : memref<128x128xf32, #tpu.memory_space<vmem>>, vector<8x128xf32>
    tpu.vector_store %arg9[%c96_247, %c0_248], %725 {strides = array<i32>} : memref<128x128xf32, #tpu.memory_space<vmem>>, vector<8x128xf32>,
    %c104_249 = arith.constant 104 : index
    %c0_250 = arith.constant 0 : index
    %727 = vector.load %arg10[%c104_249, %c0_250] : memref<128x384xf32, #tpu.memory_space<vmem>>, vector<8x384xf32>
    %cst_251 = arith.constant dense<0.000000e+00> : vector<8x384xf32>
    %728 = tpu.matmul %725, %402, %cst_251 {dimension_numbers = #tpu.dot_dimension_numbers<[1], [0], [0], [1], [0, 0, 1, 1], [], []>} : vector<8x128xf32>, vector<128x384xf32>, vector<8x384xf32> -> vector<8x384xf32>
    %729 = vector.extract_strided_slice %727 {offsets = [0, 0], sizes = [8, 256], strides = [1, 1]} : vector<8x384xf32> to vector<8x256xf32>
    %730 = vector.extract_strided_slice %728 {offsets = [0, 0], sizes = [8, 256], strides = [1, 1]} : vector<8x384xf32> to vector<8x256xf32>
    %731 = arith.addf %729, %730 : vector<8x256xf32>
    %cst_252 = arith.constant 5.000000e-01 : f32
    %732 = vector.broadcast %cst_252 : f32 to vector<8x256xf32>
    %733 = arith.mulf %732, %731 : vector<8x256xf32>
    %734 = math.tanh %733 : vector<8x256xf32>
    %cst_253 = arith.constant 5.000000e-01 : f32
    %735 = vector.broadcast %cst_253 : f32 to vector<8x256xf32>
    %736 = arith.mulf %735, %734 : vector<8x256xf32>
    %cst_254 = arith.constant 5.000000e-01 : f32
    %737 = vector.broadcast %cst_254 : f32 to vector<8x256xf32>
    %738 = arith.addf %736, %737 : vector<8x256xf32>
    %739 = vector.extract_strided_slice %738 {offsets = [0, 0], sizes = [8, 128], strides = [1, 1]} : vector<8x256xf32> to vector<8x128xf32>
    %740 = vector.extract_strided_slice %738 {offsets = [0, 128], sizes = [8, 128], strides = [1, 1]} : vector<8x256xf32> to vector<8x128xf32>
    %741 = vector.extract_strided_slice %727 {offsets = [0, 256], sizes = [8, 128], strides = [1, 1]} : vector<8x384xf32> to vector<8x128xf32>
    %742 = vector.extract_strided_slice %728 {offsets = [0, 256], sizes = [8, 128], strides = [1, 1]} : vector<8x384xf32> to vector<8x128xf32>
    %743 = arith.addf %742, %413 : vector<8x128xf32>
    %744 = arith.mulf %739, %743 : vector<8x128xf32>
    %745 = arith.addf %741, %744 : vector<8x128xf32>
    %746 = math.tanh %745 : vector<8x128xf32>
    %747 = arith.subf %725, %746 : vector<8x128xf32>
    %748 = arith.mulf %740, %747 : vector<8x128xf32>
    %749 = arith.addf %746, %748 : vector<8x128xf32>
    %c104_255 = arith.constant 104 : index
    %c0_256 = arith.constant 0 : index
    %750 = vector.load %arg9[%c104_255, %c0_256] : memref<128x128xf32, #tpu.memory_space<vmem>>, vector<8x128xf32>
    tpu.vector_store %arg9[%c104_255, %c0_256], %749 {strides = array<i32>} : memref<128x128xf32, #tpu.memory_space<vmem>>, vector<8x128xf32>,
    %c112_257 = arith.constant 112 : index
    %c0_258 = arith.constant 0 : index
    %751 = vector.load %arg10[%c112_257, %c0_258] : memref<128x384xf32, #tpu.memory_space<vmem>>, vector<8x384xf32>
    %cst_259 = arith.constant dense<0.000000e+00> : vector<8x384xf32>
    %752 = tpu.matmul %749, %402, %cst_259 {dimension_numbers = #tpu.dot_dimension_numbers<[1], [0], [0], [1], [0, 0, 1, 1], [], []>} : vector<8x128xf32>, vector<128x384xf32>, vector<8x384xf32> -> vector<8x384xf32>
    %753 = vector.extract_strided_slice %751 {offsets = [0, 0], sizes = [8, 256], strides = [1, 1]} : vector<8x384xf32> to vector<8x256xf32>
    %754 = vector.extract_strided_slice %752 {offsets = [0, 0], sizes = [8, 256], strides = [1, 1]} : vector<8x384xf32> to vector<8x256xf32>
    %755 = arith.addf %753, %754 : vector<8x256xf32>
    %cst_260 = arith.constant 5.000000e-01 : f32
    %756 = vector.broadcast %cst_260 : f32 to vector<8x256xf32>
    %757 = arith.mulf %756, %755 : vector<8x256xf32>
    %758 = math.tanh %757 : vector<8x256xf32>
    %cst_261 = arith.constant 5.000000e-01 : f32
    %759 = vector.broadcast %cst_261 : f32 to vector<8x256xf32>
    %760 = arith.mulf %759, %758 : vector<8x256xf32>
    %cst_262 = arith.constant 5.000000e-01 : f32
    %761 = vector.broadcast %cst_262 : f32 to vector<8x256xf32>
    %762 = arith.addf %760, %761 : vector<8x256xf32>
    %763 = vector.extract_strided_slice %762 {offsets = [0, 0], sizes = [8, 128], strides = [1, 1]} : vector<8x256xf32> to vector<8x128xf32>
    %764 = vector.extract_strided_slice %762 {offsets = [0, 128], sizes = [8, 128], strides = [1, 1]} : vector<8x256xf32> to vector<8x128xf32>
    %765 = vector.extract_strided_slice %751 {offsets = [0, 256], sizes = [8, 128], strides = [1, 1]} : vector<8x384xf32> to vector<8x128xf32>
    %766 = vector.extract_strided_slice %752 {offsets = [0, 256], sizes = [8, 128], strides = [1, 1]} : vector<8x384xf32> to vector<8x128xf32>
    %767 = arith.addf %766, %413 : vector<8x128xf32>
    %768 = arith.mulf %763, %767 : vector<8x128xf32>
    %769 = arith.addf %765, %768 : vector<8x128xf32>
    %770 = math.tanh %769 : vector<8x128xf32>
    %771 = arith.subf %749, %770 : vector<8x128xf32>
    %772 = arith.mulf %764, %771 : vector<8x128xf32>
    %773 = arith.addf %770, %772 : vector<8x128xf32>
    %c112_263 = arith.constant 112 : index
    %c0_264 = arith.constant 0 : index
    %774 = vector.load %arg9[%c112_263, %c0_264] : memref<128x128xf32, #tpu.memory_space<vmem>>, vector<8x128xf32>
    tpu.vector_store %arg9[%c112_263, %c0_264], %773 {strides = array<i32>} : memref<128x128xf32, #tpu.memory_space<vmem>>, vector<8x128xf32>,
    %c120_265 = arith.constant 120 : index
    %c0_266 = arith.constant 0 : index
    %775 = vector.load %arg10[%c120_265, %c0_266] : memref<128x384xf32, #tpu.memory_space<vmem>>, vector<8x384xf32>
    %cst_267 = arith.constant dense<0.000000e+00> : vector<8x384xf32>
    %776 = tpu.matmul %773, %402, %cst_267 {dimension_numbers = #tpu.dot_dimension_numbers<[1], [0], [0], [1], [0, 0, 1, 1], [], []>} : vector<8x128xf32>, vector<128x384xf32>, vector<8x384xf32> -> vector<8x384xf32>
    %777 = vector.extract_strided_slice %775 {offsets = [0, 0], sizes = [8, 256], strides = [1, 1]} : vector<8x384xf32> to vector<8x256xf32>
    %778 = vector.extract_strided_slice %776 {offsets = [0, 0], sizes = [8, 256], strides = [1, 1]} : vector<8x384xf32> to vector<8x256xf32>
    %779 = arith.addf %777, %778 : vector<8x256xf32>
    %cst_268 = arith.constant 5.000000e-01 : f32
    %780 = vector.broadcast %cst_268 : f32 to vector<8x256xf32>
    %781 = arith.mulf %780, %779 : vector<8x256xf32>
    %782 = math.tanh %781 : vector<8x256xf32>
    %cst_269 = arith.constant 5.000000e-01 : f32
    %783 = vector.broadcast %cst_269 : f32 to vector<8x256xf32>
    %784 = arith.mulf %783, %782 : vector<8x256xf32>
    %cst_270 = arith.constant 5.000000e-01 : f32
    %785 = vector.broadcast %cst_270 : f32 to vector<8x256xf32>
    %786 = arith.addf %784, %785 : vector<8x256xf32>
    %787 = vector.extract_strided_slice %786 {offsets = [0, 0], sizes = [8, 128], strides = [1, 1]} : vector<8x256xf32> to vector<8x128xf32>
    %788 = vector.extract_strided_slice %786 {offsets = [0, 128], sizes = [8, 128], strides = [1, 1]} : vector<8x256xf32> to vector<8x128xf32>
    %789 = vector.extract_strided_slice %775 {offsets = [0, 256], sizes = [8, 128], strides = [1, 1]} : vector<8x384xf32> to vector<8x128xf32>
    %790 = vector.extract_strided_slice %776 {offsets = [0, 256], sizes = [8, 128], strides = [1, 1]} : vector<8x384xf32> to vector<8x128xf32>
    %791 = arith.addf %790, %413 : vector<8x128xf32>
    %792 = arith.mulf %787, %791 : vector<8x128xf32>
    %793 = arith.addf %789, %792 : vector<8x128xf32>
    %794 = math.tanh %793 : vector<8x128xf32>
    %795 = arith.subf %773, %794 : vector<8x128xf32>
    %796 = arith.mulf %788, %795 : vector<8x128xf32>
    %797 = arith.addf %794, %796 : vector<8x128xf32>
    %c120_271 = arith.constant 120 : index
    %c0_272 = arith.constant 0 : index
    %798 = vector.load %arg9[%c120_271, %c0_272] : memref<128x128xf32, #tpu.memory_space<vmem>>, vector<8x128xf32>
    tpu.vector_store %arg9[%c120_271, %c0_272], %797 {strides = array<i32>} : memref<128x128xf32, #tpu.memory_space<vmem>>, vector<8x128xf32>,
    %c0_273 = arith.constant 0 : index
    %c0_274 = arith.constant 0 : index
    %799 = vector.load %arg9[%c0_273, %c0_274] : memref<128x128xf32, #tpu.memory_space<vmem>>, vector<128x128xf32>
    %c0_275 = arith.constant 0 : index
    %c0_276 = arith.constant 0 : index
    %800 = vector.load %arg6[%c0_275, %c0_276] : memref<128x128xf32, #tpu.memory_space<vmem>>, vector<128x128xf32>
    %cst_277 = arith.constant dense<0.000000e+00> : vector<128x128xf32>
    %801 = tpu.matmul %799, %800, %cst_277 {dimension_numbers = #tpu.dot_dimension_numbers<[1], [0], [0], [1], [0, 0, 1, 1], [], []>} : vector<128x128xf32>, vector<128x128xf32>, vector<128x128xf32> -> vector<128x128xf32>
    %c0_278 = arith.constant 0 : index
    %c0_279 = arith.constant 0 : index
    %802 = vector.load %arg7[%c0_278, %c0_279] : memref<1x128xf32, #tpu.memory_space<vmem>>, vector<1x128xf32>
    %803 = vector.broadcast %802 : vector<1x128xf32> to vector<128x128xf32>
    %804 = arith.addf %801, %803 : vector<128x128xf32>
    %c0_280 = arith.constant 0 : index
    %c0_281 = arith.constant 0 : index
    %805 = vector.load %arg8[%c0_280, %c0_281] : memref<128x128xf32, #tpu.memory_space<vmem>>, vector<128x128xf32>
    tpu.vector_store %arg8[%c0_280, %c0_281], %804 {strides = array<i32>} : memref<128x128xf32, #tpu.memory_space<vmem>>, vector<128x128xf32>,
    return
  }
}

</mosaic_0001>

<llo_original>
// kernel: tpu_custom_call.1
$region0: #{tpu_custom_call.1}
  #allocation0 [shape = 'u32[]', space=smem, size = 0x4, offset = 0x4, fixed_abs, tag = 'smem constant byte address 0x4 - core index']
  #allocation1 [shape = 'u32[144,128]{1,0:T(1,128)}', space=vmem, size = 0x12000, scoped, tag = 'internal scratch']
  #allocation2 [shape = 'f32[128,128]{1,0:T(8,128)}', space=vmem, size = 0x10000, scoped, tag = 'scratch operand']
  #allocation3 [shape = 'f32[128,384]{1,0:T(8,128)}', space=vmem, size = 0x30000, scoped, tag = 'scratch operand']
  %s0 = inlined_call_operand.hbm [shape: f32[128,128], index: 0, kind: input, shape index: {}]
  %s1 = inlined_call_operand.hbm [shape: f32[128,384], index: 1, kind: input, shape index: {}]
  %s2 = inlined_call_operand.hbm [shape: f32[1,128,384], index: 2, kind: input, shape index: {}]
  %s3 = inlined_call_operand.hbm [shape: f32[2,128,384], index: 3, kind: input, shape index: {}]
  %s4 = inlined_call_operand.vmem [shape: f32[2,1,384], index: 4, kind: input, shape index: {}]
  %s5 = inlined_call_operand.vmem [shape: f32[2,1,128], index: 5, kind: input, shape index: {}]
  %s6 = inlined_call_operand.hbm [shape: f32[128,128], index: 6, kind: input, shape index: {}]
  %s7 = inlined_call_operand.vmem [shape: f32[1,128], index: 7, kind: input, shape index: {}]
  %s8 = inlined_call_operand.hbm [shape: f32[128,128], index: 8, kind: output, shape index: {}]
  %s9 = sld [smem:[#allocation0]]
  $region62: #{tpu_custom_call.1} parent=0
    _
  %s11 = ssub.s32 1, %s9
  %s12 = scalar_select 0, %s11, %s9
  $region1: #{tpu_custom_call.1} parent=0
    #allocation4 [shape = 'u8[65536]{0}', space=vmem, size = 0x10000, scoped, tag = 'input window, operand 0, single buffered']
    #allocation5 [shape = 's32[1]{0}', space=sflag, size = 0x4, scoped, tag = 'scoped memory for tpu_custom_call.1']
    #allocation6 [shape = 's32[1]{0}', space=sflag, size = 0x4, scoped, tag = 'scoped memory for tpu_custom_call.1']
    #allocation7 [shape = 'u8[196608]{0}', space=vmem, size = 0x30000, scoped, tag = 'input window, operand 1, single buffered']
    #allocation8 [shape = 's32[1]{0}', space=sflag, size = 0x4, scoped, tag = 'scoped memory for tpu_custom_call.1']
    #allocation9 [shape = 'u8[196608]{0}', space=vmem, size = 0x30000, scoped, tag = 'input window, operand 2, single buffered']
    #allocation10 [shape = 'u8[393216]{0}', space=vmem, size = 0x60000, scoped, tag = 'input window, operand 3, single buffered']
    #allocation11 [shape = 's32[1]{0}', space=sflag, size = 0x4, scoped, tag = 'scoped memory for tpu_custom_call.1']
    #allocation12 [shape = 'u8[65536]{0}', space=vmem, size = 0x10000, scoped, tag = 'input window, operand 6, single buffered']
    #allocation13 [shape = 'u8[65536]{0}', space=vmem, size = 0x10000, scoped, tag = 'output window, operand 0, single buffered']
    %13 = vsyncpa [#allocation5], 0
    %14 = vsyncpa [#allocation8], 0
    %15 = vsyncpa [#allocation11], 0
    %16 = vsyncpa [#allocation6], 0
    // Predicated region
    $region2: #{tpu_custom_call.1} parent=1 // pred_check
      _
    $region3: #{tpu_custom_call.1} parent=1 // pred_check_branch
      %18 = sbr.rel (0) target = $region5
    $region4: #{tpu_custom_call.1} parent=1 // pred_region
      %s20 = ssub.s32 2048, 2048
      %21 = vsyncadd [#allocation5], %s20
      %s22 = sshll.u32 [#allocation4], 4
      %s23 = int_to_ptr.vmem [resolvable:$true] %s22
      %28 = dma.hbm_to_vmem [thread:$0]  %s0, 2048, %s23, [#allocation5], 128, 128, 8
    $region5: #{tpu_custom_call.1} parent=1 // pred_fallthru
      _
    // Predicated region
    $region6: #{tpu_custom_call.1} parent=1 // pred_check
      _
    $region7: #{tpu_custom_call.1} parent=1 // pred_check_branch
      %30 = sbr.rel (0) target = $region9
    $region8: #{tpu_custom_call.1} parent=1 // pred_region
      %s32 = ssub.s32 6144, 6144
      %33 = vsyncadd [#allocation8], %s32
      %s34 = sshll.u32 [#allocation7], 4
      %s35 = int_to_ptr.vmem [resolvable:$true] %s34
      %40 = dma.hbm_to_vmem [thread:$0]  %s1, 6144, %s35, [#allocation8], 384, 384, 24
    $region9: #{tpu_custom_call.1} parent=1 // pred_fallthru
      _
    // Predicated region
    $region10: #{tpu_custom_call.1} parent=1 // pred_check
      _
    $region11: #{tpu_custom_call.1} parent=1 // pred_check_branch
      %42 = sbr.rel (0) target = $region13
    $region12: #{tpu_custom_call.1} parent=1 // pred_region
      %s44 = ssub.s32 6144, 6144
      %45 = vsyncadd [#allocation8], %s44
      %s46 = sshll.u32 [#allocation9], 4
      %s47 = int_to_ptr.vmem [resolvable:$true] %s46
      %52 = dma.hbm_to_vmem [thread:$0]  %s2, 6144, %s47, [#allocation8], 384, 384, 24
    $region13: #{tpu_custom_call.1} parent=1 // pred_fallthru
      _
    // Predicated region
    $region14: #{tpu_custom_call.1} parent=1 // pred_check
      _
    $region15: #{tpu_custom_call.1} parent=1 // pred_check_branch
      %54 = sbr.rel (0) target = $region17
    $region16: #{tpu_custom_call.1} parent=1 // pred_region
      %s56 = ssub.s32 12288, 12288
      %57 = vsyncadd [#allocation11], %s56
      %s58 = sshll.u32 [#allocation10], 4
      %s59 = int_to_ptr.vmem [resolvable:$true] %s58
      %64 = dma.hbm_to_vmem [thread:$0]  %s3, 12288, %s59, [#allocation11], 384, 384, 24
    $region17: #{tpu_custom_call.1} parent=1 // pred_fallthru
      _
    // Predicated region
    $region18: #{tpu_custom_call.1} parent=1 // pred_check
      _
    $region19: #{tpu_custom_call.1} parent=1 // pred_check_branch
      %66 = sbr.rel (0) target = $region21
    $region20: #{tpu_custom_call.1} parent=1 // pred_region
      _
    $region21: #{tpu_custom_call.1} parent=1 // pred_fallthru
      _
    // Predicated region
    $region22: #{tpu_custom_call.1} parent=1 // pred_check
      _
    $region23: #{tpu_custom_call.1} parent=1 // pred_check_branch
      %68 = sbr.rel (0) target = $region25
    $region24: #{tpu_custom_call.1} parent=1 // pred_region
      _
    $region25: #{tpu_custom_call.1} parent=1 // pred_fallthru
      _
    // Predicated region
    $region26: #{tpu_custom_call.1} parent=1 // pred_check
      _
    $region27: #{tpu_custom_call.1} parent=1 // pred_check_branch
      %70 = sbr.rel (0) target = $region29
    $region28: #{tpu_custom_call.1} parent=1 // pred_region
      %s72 = ssub.s32 2048, 2048
      %73 = vsyncadd [#allocation11], %s72
      %s74 = sshll.u32 [#allocation12], 4
      %s75 = int_to_ptr.vmem [resolvable:$true] %s74
      %80 = dma.hbm_to_vmem [thread:$0]  %s6, 2048, %s75, [#allocation11], 128, 128, 8
    $region29: #{tpu_custom_call.1} parent=1 // pred_fallthru
      _
    // Predicated region
    $region30: #{tpu_custom_call.1} parent=1 // pred_check
      _
    $region31: #{tpu_custom_call.1} parent=1 // pred_check_branch
      %82 = sbr.rel (0) target = $region33
    $region32: #{tpu_custom_call.1} parent=1 // pred_region
      _
    $region33: #{tpu_custom_call.1} parent=1 // pred_fallthru
      _
    // Predicated region
    $region34: #{tpu_custom_call.1} parent=1 // pred_check
      _
    $region35: #{tpu_custom_call.1} parent=1 // pred_check_branch
      %84 = sbr.rel (0) target = $region37
    $region36: #{tpu_custom_call.1} parent=1 // pred_region
      %85 = dma.done [#allocation5], 2048
    $region37: #{tpu_custom_call.1} parent=1 // pred_fallthru
      _
    // Predicated region
    $region38: #{tpu_custom_call.1} parent=1 // pred_check
      _
    $region39: #{tpu_custom_call.1} parent=1 // pred_check_branch
      %87 = sbr.rel (0) target = $region41
    $region40: #{tpu_custom_call.1} parent=1 // pred_region
      %88 = dma.done [#allocation8], 6144
    $region41: #{tpu_custom_call.1} parent=1 // pred_fallthru
      _
    // Predicated region
    $region42: #{tpu_custom_call.1} parent=1 // pred_check
      _
    $region43: #{tpu_custom_call.1} parent=1 // pred_check_branch
      %90 = sbr.rel (0) target = $region45
    $region44: #{tpu_custom_call.1} parent=1 // pred_region
      %91 = dma.done [#allocation8], 6144
    $region45: #{tpu_custom_call.1} parent=1 // pred_fallthru
      _
    // Predicated region
    $region46: #{tpu_custom_call.1} parent=1 // pred_check
      _
    $region47: #{tpu_custom_call.1} parent=1 // pred_check_branch
      %93 = sbr.rel (0) target = $region49
    $region48: #{tpu_custom_call.1} parent=1 // pred_region
      %94 = dma.done [#allocation11], 12288
    $region49: #{tpu_custom_call.1} parent=1 // pred_fallthru
      _
    // Predicated region
    $region50: #{tpu_custom_call.1} parent=1 // pred_check
      _
    $region51: #{tpu_custom_call.1} parent=1 // pred_check_branch
      %96 = sbr.rel (0) target = $region53
    $region52: #{tpu_custom_call.1} parent=1 // pred_region
      %97 = dma.done [#allocation11], 2048
    $region53: #{tpu_custom_call.1} parent=1 // pred_fallthru
      _
    %v98 = vld [vmem:[#allocation7] sm:$0xff]
    %v99 = vld [vmem:[#allocation7 + $0x8] sm:$0xff]
    %v100 = vld [vmem:[#allocation7 + $0x10] sm:$0xff]
    %v101 = vld [vmem:[#allocation7 + $0x18] sm:$0xff]
    %v102 = vld [vmem:[#allocation7 + $0x20] sm:$0xff]
    %v103 = vld [vmem:[#allocation7 + $0x28] sm:$0xff]
    %v104 = vld [vmem:[#allocation7 + $0x30] sm:$0xff]
    %v105 = vld [vmem:[#allocation7 + $0x38] sm:$0xff]
    %v106 = vld [vmem:[#allocation7 + $0x40] sm:$0xff]
    %v107 = vld [vmem:[#allocation7 + $0x48] sm:$0xff]
    %v108 = vld [vmem:[#allocation7 + $0x50] sm:$0xff]
    %v109 = vld [vmem:[#allocation7 + $0x58] sm:$0xff]
    %v110 = vld [vmem:[#allocation7 + $0x60] sm:$0xff]
    %v111 = vld [vmem:[#allocation7 + $0x68] sm:$0xff]
    %v112 = vld [vmem:[#allocation7 + $0x70] sm:$0xff]
    %v113 = vld [vmem:[#allocation7 + $0x78] sm:$0xff]
    %v114 = vld [vmem:[#allocation7 + $0x80] sm:$0xff]
    %v115 = vld [vmem:[#allocation7 + $0x88] sm:$0xff]
    %v116 = vld [vmem:[#allocation7 + $0x90] sm:$0xff]
    %v117 = vld [vmem:[#allocation7 + $0x98] sm:$0xff]
    %v118 = vld [vmem:[#allocation7 + $0xa0] sm:$0xff]
    %v119 = vld [vmem:[#allocation7 + $0xa8] sm:$0xff]
    %v120 = vld [vmem:[#allocation7 + $0xb0] sm:$0xff]
    %v121 = vld [vmem:[#allocation7 + $0xb8] sm:$0xff]
    %v122 = vld [vmem:[#allocation7 + $0xc0] sm:$0xff]
    %v123 = vld [vmem:[#allocation7 + $0xc8] sm:$0xff]
    %v124 = vld [vmem:[#allocation7 + $0xd0] sm:$0xff]
    %v125 = vld [vmem:[#allocation7 + $0xd8] sm:$0xff]
    %v126 = vld [vmem:[#allocation7 + $0xe0] sm:$0xff]
    %v127 = vld [vmem:[#allocation7 + $0xe8] sm:$0xff]
    %v128 = vld [vmem:[#allocation7 + $0xf0] sm:$0xff]
    %v129 = vld [vmem:[#allocation7 + $0xf8] sm:$0xff]
    %v130 = vld [vmem:[#allocation7 + $0x100] sm:$0xff]
    %v131 = vld [vmem:[#allocation7 + $0x108] sm:$0xff]
    %v132 = vld [vmem:[#allocation7 + $0x110] sm:$0xff]
    %v133 = vld [vmem:[#allocation7 + $0x118] sm:$0xff]
    %v134 = vld [vmem:[#allocation7 + $0x120] sm:$0xff]
    %v135 = vld [vmem:[#allocation7 + $0x128] sm:$0xff]
    %v136 = vld [vmem:[#allocation7 + $0x130] sm:$0xff]
    %v137 = vld [vmem:[#allocation7 + $0x138] sm:$0xff]
    %v138 = vld [vmem:[#allocation7 + $0x140] sm:$0xff]
    %v139 = vld [vmem:[#allocation7 + $0x148] sm:$0xff]
    %v140 = vld [vmem:[#allocation7 + $0x150] sm:$0xff]
    %v141 = vld [vmem:[#allocation7 + $0x158] sm:$0xff]
    %v142 = vld [vmem:[#allocation7 + $0x160] sm:$0xff]
    %v143 = vld [vmem:[#allocation7 + $0x168] sm:$0xff]
    %v144 = vld [vmem:[#allocation7 + $0x170] sm:$0xff]
    %v145 = vld [vmem:[#allocation7 + $0x178] sm:$0xff]
    %v146 = vld [vmem:[#allocation10] sm:$0xff]
    %v147 = vld [vmem:[#allocation10 + $0x8] sm:$0xff]
    %v148 = vld [vmem:[#allocation10 + $0x10] sm:$0xff]
    %v149 = vld [vmem:[#allocation10 + $0x18] sm:$0xff]
    %v150 = vld [vmem:[#allocation10 + $0x20] sm:$0xff]
    %v151 = vld [vmem:[#allocation10 + $0x28] sm:$0xff]
    %v152 = vld [vmem:[#allocation10 + $0x30] sm:$0xff]
    %v153 = vld [vmem:[#allocation10 + $0x38] sm:$0xff]
    %v154 = vld [vmem:[#allocation10 + $0x40] sm:$0xff]
    %v155 = vld [vmem:[#allocation10 + $0x48] sm:$0xff]
    %v156 = vld [vmem:[#allocation10 + $0x50] sm:$0xff]
    %v157 = vld [vmem:[#allocation10 + $0x58] sm:$0xff]
    %v158 = vld [vmem:[#allocation10 + $0x60] sm:$0xff]
    %v159 = vld [vmem:[#allocation10 + $0x68] sm:$0xff]
    %v160 = vld [vmem:[#allocation10 + $0x70] sm:$0xff]
    %v161 = vld [vmem:[#allocation10 + $0x78] sm:$0xff]
    %v162 = vld [vmem:[#allocation10 + $0x80] sm:$0xff]
    %v163 = vld [vmem:[#allocation10 + $0x88] sm:$0xff]
    %v164 = vld [vmem:[#allocation10 + $0x90] sm:$0xff]
    %v165 = vld [vmem:[#allocation10 + $0x98] sm:$0xff]
    %v166 = vld [vmem:[#allocation10 + $0xa0] sm:$0xff]
    %v167 = vld [vmem:[#allocation10 + $0xa8] sm:$0xff]
    %v168 = vld [vmem:[#allocation10 + $0xb0] sm:$0xff]
    %v169 = vld [vmem:[#allocation10 + $0xb8] sm:$0xff]
    %v170 = vld [vmem:[#allocation10 + $0xc0] sm:$0xff]
    %v171 = vld [vmem:[#allocation10 + $0xc8] sm:$0xff]
    %v172 = vld [vmem:[#allocation10 + $0xd0] sm:$0xff]
    %v173 = vld [vmem:[#allocation10 + $0xd8] sm:$0xff]
    %v174 = vld [vmem:[#allocation10 + $0xe0] sm:$0xff]
    %v175 = vld [vmem:[#allocation10 + $0xe8] sm:$0xff]
    %v176 = vld [vmem:[#allocation10 + $0xf0] sm:$0xff]
    %v177 = vld [vmem:[#allocation10 + $0xf8] sm:$0xff]
    %v178 = vld [vmem:[#allocation10 + $0x100] sm:$0xff]
    %v179 = vld [vmem:[#allocation10 + $0x108] sm:$0xff]
    %v180 = vld [vmem:[#allocation10 + $0x110] sm:$0xff]
    %v181 = vld [vmem:[#allocation10 + $0x118] sm:$0xff]
    %v182 = vld [vmem:[#allocation10 + $0x120] sm:$0xff]
    %v183 = vld [vmem:[#allocation10 + $0x128] sm:$0xff]
    %v184 = vld [vmem:[#allocation10 + $0x130] sm:$0xff]
    %v185 = vld [vmem:[#allocation10 + $0x138] sm:$0xff]
    %v186 = vld [vmem:[#allocation10 + $0x140] sm:$0xff]
    %v187 = vld [vmem:[#allocation10 + $0x148] sm:$0xff]
    %v188 = vld [vmem:[#allocation10 + $0x150] sm:$0xff]
    %v189 = vld [vmem:[#allocation10 + $0x158] sm:$0xff]
    %v190 = vld [vmem:[#allocation10 + $0x160] sm:$0xff]
    %v191 = vld [vmem:[#allocation10 + $0x168] sm:$0xff]
    %v192 = vld [vmem:[#allocation10 + $0x170] sm:$0xff]
    %v193 = vld [vmem:[#allocation10 + $0x178] sm:$0xff]
    %v194 = vld [vmem:[%s4] sm:$0x7]
    %v195 = vld [vmem:[%s5] sm:$0x1]
    %v196 = vld [vmem:[#allocation4] sm:$0xff]
    %v197 = vld [vmem:[#allocation4 + $0x8] sm:$0xff]
    %v198 = vld [vmem:[#allocation4 + $0x10] sm:$0xff]
    %v199 = vld [vmem:[#allocation4 + $0x18] sm:$0xff]
    %v200 = vld [vmem:[#allocation4 + $0x20] sm:$0xff]
    %v201 = vld [vmem:[#allocation4 + $0x28] sm:$0xff]
    %v202 = vld [vmem:[#allocation4 + $0x30] sm:$0xff]
    %v203 = vld [vmem:[#allocation4 + $0x38] sm:$0xff]
    %v204 = vld [vmem:[#allocation4 + $0x40] sm:$0xff]
    %v205 = vld [vmem:[#allocation4 + $0x48] sm:$0xff]
    %v206 = vld [vmem:[#allocation4 + $0x50] sm:$0xff]
    %v207 = vld [vmem:[#allocation4 + $0x58] sm:$0xff]
    %v208 = vld [vmem:[#allocation4 + $0x60] sm:$0xff]
    %v209 = vld [vmem:[#allocation4 + $0x68] sm:$0xff]
    %v210 = vld [vmem:[#allocation4 + $0x70] sm:$0xff]
    %v211 = vld [vmem:[#allocation4 + $0x78] sm:$0xff]
    %v213 = vlaneseq
    %v214 = vshrl.u32 %v213, 7
    %v215 = vsub.s32 0, %v214
    %v216 = vrot.slane %v194, %v215
    %v217 = vlaneseq
    %v218 = vshrl.u32 %v217, 7
    %v219 = vsub.s32 1, %v218
    %v220 = vrot.slane %v194, %v219
    %v221 = vlaneseq
    %v222 = vshrl.u32 %v221, 7
    %v223 = vsub.s32 2, %v222
    %v224 = vrot.slane %v194, %v223
    %228 = vmatprep.subr.mxu0 %v99
    %229 = vmatpush1.msra.mxu0 %v98
    %230 = vmatprep.subr.mxu0 %v102
    %231 = vmatpush1.msra.mxu0 %v101
    %232 = vmatprep.subr.mxu0 %v105
    %233 = vmatpush1.msra.mxu0 %v104
    %234 = vmatprep.subr.mxu0 %v108
    %235 = vmatpush1.msra.mxu0 %v107
    %236 = vmatprep.subr.mxu0 %v111
    %237 = vmatpush1.msra.mxu0 %v110
    %238 = vmatprep.subr.mxu0 %v114
    %239 = vmatpush1.msra.mxu0 %v113
    %240 = vmatprep.subr.mxu0 %v117
    %241 = vmatpush1.msra.mxu0 %v116
    %242 = vmatprep.subr.mxu0 %v120
    %243 = vmatpush1.msra.mxu0 %v119
    %244 = vmatprep.subr.mxu0 %v123
    %245 = vmatpush1.msra.mxu0 %v122
    %246 = vmatprep.subr.mxu0 %v126
    %247 = vmatpush1.msra.mxu0 %v125
    %248 = vmatprep.subr.mxu0 %v129
    %249 = vmatpush1.msra.mxu0 %v128
    %250 = vmatprep.subr.mxu0 %v132
    %251 = vmatpush1.msra.mxu0 %v131
    %252 = vmatprep.subr.mxu0 %v135
    %253 = vmatpush1.msra.mxu0 %v134
    %254 = vmatprep.subr.mxu0 %v138
    %255 = vmatpush1.msra.mxu0 %v137
    %256 = vmatprep.subr.mxu0 %v141
    %257 = vmatpush1.msra.mxu0 %v140
    %258 = vmatprep.subr.mxu0 %v144
    %259 = vmatpush1.msra.mxu0 %v143
    %260 = vmatprep.subr.mxu0 0.0
    %261 = vmatpush1.msra.mxu0 0.0
    %262 = vmatprep.subr.mxu0 0.0
    %263 = vmatpush1.msra.mxu0 0.0
    %264 = vmatprep.subr.mxu0 0.0
    %265 = vmatpush1.msra.mxu0 0.0
    %266 = vmatprep.subr.mxu0 0.0
    %267 = vmatpush1.msra.mxu0 0.0
    %268 = vmatprep.subr.mxu0 0.0
    %269 = vmatpush1.msra.mxu0 0.0
    %270 = vmatprep.subr.mxu0 0.0
    %271 = vmatpush1.msra.mxu0 0.0
    %272 = vmatprep.subr.mxu0 0.0
    %273 = vmatpush1.msra.mxu0 0.0
    %274 = vmatprep.subr.mxu0 0.0
    %275 = vmatpush1.msra.mxu0 0.0
    %276 = vmatprep.subr.mxu0 0.0
    %277 = vmatpush1.msra.mxu0 0.0
    %278 = vmatprep.subr.mxu0 0.0
    %279 = vmatpush1.msra.mxu0 0.0
    %280 = vmatprep.subr.mxu0 0.0
    %281 = vmatpush1.msra.mxu0 0.0
    %282 = vmatprep.subr.mxu0 0.0
    %283 = vmatpush1.msra.mxu0 0.0
    %284 = vmatprep.subr.mxu0 0.0
    %285 = vmatpush1.msra.mxu0 0.0
    %286 = vmatprep.subr.mxu0 0.0
    %287 = vmatpush1.msra.mxu0 0.0
    %288 = vmatprep.subr.mxu0 0.0
    %289 = vmatpush1.msra.mxu0 0.0
    %290 = vmatprep.subr.mxu0 0.0
    %291 = vmatpush1.msra.mxu0 0.0
    %292 = vmatprep.mubr.f32.mxu0 0.0
    %293 = vmatmul.mubr.f32.gmra.mrb[0].mxu0 %v196
    %v294 = vpop.f32.mrb[0].mxu0
    %v295 = vadd.f32 %v216, %v294
    %v296 = vpop.f32.mrb[0].mxu0
    %v297 = vadd.f32 %v220, %v296
    %298 = vmatprep.mubr.f32.mxu0 0.0
    %299 = vmatmul.mubr.f32.gmra.mrb[0].mxu0 %v197
    %v300 = vpop.f32.mrb[0].mxu0
    %v301 = vadd.f32 %v216, %v300
    %v302 = vpop.f32.mrb[0].mxu0
    %v303 = vadd.f32 %v220, %v302
    %304 = vmatprep.mubr.f32.mxu0 0.0
    %305 = vmatmul.mubr.f32.gmra.mrb[0].mxu0 %v198
    %v306 = vpop.f32.mrb[0].mxu0
    %v307 = vadd.f32 %v216, %v306
    %v308 = vpop.f32.mrb[0].mxu0
    %v309 = vadd.f32 %v220, %v308
    %310 = vmatprep.mubr.f32.mxu0 0.0
    %311 = vmatmul.mubr.f32.gmra.mrb[0].mxu0 %v199
    %v312 = vpop.f32.mrb[0].mxu0
    %v313 = vadd.f32 %v216, %v312
    %v314 = vpop.f32.mrb[0].mxu0
    %v315 = vadd.f32 %v220, %v314
    %316 = vmatprep.mubr.f32.mxu0 0.0
    %317 = vmatmul.mubr.f32.gmra.mrb[0].mxu0 %v200
    %v318 = vpop.f32.mrb[0].mxu0
    %v319 = vadd.f32 %v216, %v318
    %v320 = vpop.f32.mrb[0].mxu0
    %v321 = vadd.f32 %v220, %v320
    %322 = vmatprep.mubr.f32.mxu0 0.0
    %323 = vmatmul.mubr.f32.gmra.mrb[0].mxu0 %v201
    %v324 = vpop.f32.mrb[0].mxu0
    %v325 = vadd.f32 %v216, %v324
    %v326 = vpop.f32.mrb[0].mxu0
    %v327 = vadd.f32 %v220, %v326
    %328 = vmatprep.mubr.f32.mxu0 0.0
    %329 = vmatmul.mubr.f32.gmra.mrb[0].mxu0 %v202
    %v330 = vpop.f32.mrb[0].mxu0
    %v331 = vadd.f32 %v216, %v330
    %v332 = vpop.f32.mrb[0].mxu0
    %v333 = vadd.f32 %v220, %v332
    %334 = vmatprep.mubr.f32.mxu0 0.0
    %335 = vmatmul.mubr.f32.gmra.mrb[0].mxu0 %v203
    %v336 = vpop.f32.mrb[0].mxu0
    %v337 = vadd.f32 %v216, %v336
    %v338 = vpop.f32.mrb[0].mxu0
    %v339 = vadd.f32 %v220, %v338
    %340 = vmatprep.mubr.f32.mxu0 0.0
    %341 = vmatmul.mubr.f32.gmra.mrb[0].mxu0 %v204
    %v342 = vpop.f32.mrb[0].mxu0
    %v343 = vadd.f32 %v216, %v342
    %v344 = vpop.f32.mrb[0].mxu0
    %v345 = vadd.f32 %v220, %v344
    %346 = vmatprep.mubr.f32.mxu0 0.0
    %347 = vmatmul.mubr.f32.gmra.mrb[0].mxu0 %v205
    %v348 = vpop.f32.mrb[0].mxu0
    %v349 = vadd.f32 %v216, %v348
    %v350 = vpop.f32.mrb[0].mxu0
    %v351 = vadd.f32 %v220, %v350
    %352 = vmatprep.mubr.f32.mxu0 0.0
    %353 = vmatmul.mubr.f32.gmra.mrb[0].mxu0 %v206
    %v354 = vpop.f32.mrb[0].mxu0
    %v355 = vadd.f32 %v216, %v354
    %v356 = vpop.f32.mrb[0].mxu0
    %v357 = vadd.f32 %v220, %v356
    %358 = vmatprep.mubr.f32.mxu0 0.0
    %359 = vmatmul.mubr.f32.gmra.mrb[0].mxu0 %v207
    %v360 = vpop.f32.mrb[0].mxu0
    %v361 = vadd.f32 %v216, %v360
    %v362 = vpop.f32.mrb[0].mxu0
    %v363 = vadd.f32 %v220, %v362
    %364 = vmatprep.mubr.f32.mxu0 0.0
    %365 = vmatmul.mubr.f32.gmra.mrb[0].mxu0 %v208
    %v366 = vpop.f32.mrb[0].mxu0
    %v367 = vadd.f32 %v216, %v366
    %v368 = vpop.f32.mrb[0].mxu0
    %v369 = vadd.f32 %v220, %v368
    %370 = vmatprep.mubr.f32.mxu0 0.0
    %371 = vmatmul.mubr.f32.gmra.mrb[0].mxu0 %v209
    %v372 = vpop.f32.mrb[0].mxu0
    %v373 = vadd.f32 %v216, %v372
    %v374 = vpop.f32.mrb[0].mxu0
    %v375 = vadd.f32 %v220, %v374
    %376 = vmatprep.mubr.f32.mxu0 0.0
    %377 = vmatmul.mubr.f32.gmra.mrb[0].mxu0 %v210
    %v378 = vpop.f32.mrb[0].mxu0
    %v379 = vadd.f32 %v216, %v378
    %v380 = vpop.f32.mrb[0].mxu0
    %v381 = vadd.f32 %v220, %v380
    %382 = vmatprep.mubr.f32.mxu0 0.0
    %383 = vmatmul.mubr.f32.gmra.mrb[0].mxu0 %v211
    %v384 = vpop.f32.mrb[0].mxu0
    %v385 = vadd.f32 %v216, %v384
    %v386 = vpop.f32.mrb[0].mxu0
    %v387 = vadd.f32 %v220, %v386
    %388 = vdwg.mxu0
    %389 = vmatprep.subr.mxu0 0.0
    %390 = vmatpush1.msra.mxu0 %v100
    %391 = vmatprep.subr.mxu0 0.0
    %392 = vmatpush1.msra.mxu0 %v103
    %393 = vmatprep.subr.mxu0 0.0
    %394 = vmatpush1.msra.mxu0 %v106
    %395 = vmatprep.subr.mxu0 0.0
    %396 = vmatpush1.msra.mxu0 %v109
    %397 = vmatprep.subr.mxu0 0.0
    %398 = vmatpush1.msra.mxu0 %v112
    %399 = vmatprep.subr.mxu0 0.0
    %400 = vmatpush1.msra.mxu0 %v115
    %401 = vmatprep.subr.mxu0 0.0
    %402 = vmatpush1.msra.mxu0 %v118
    %403 = vmatprep.subr.mxu0 0.0
    %404 = vmatpush1.msra.mxu0 %v121
    %405 = vmatprep.subr.mxu0 0.0
    %406 = vmatpush1.msra.mxu0 %v124
    %407 = vmatprep.subr.mxu0 0.0
    %408 = vmatpush1.msra.mxu0 %v127
    %409 = vmatprep.subr.mxu0 0.0
    %410 = vmatpush1.msra.mxu0 %v130
    %411 = vmatprep.subr.mxu0 0.0
    %412 = vmatpush1.msra.mxu0 %v133
    %413 = vmatprep.subr.mxu0 0.0
    %414 = vmatpush1.msra.mxu0 %v136
    %415 = vmatprep.subr.mxu0 0.0
    %416 = vmatpush1.msra.mxu0 %v139
    %417 = vmatprep.subr.mxu0 0.0
    %418 = vmatpush1.msra.mxu0 %v142
    %419 = vmatprep.subr.mxu0 0.0
    %420 = vmatpush1.msra.mxu0 %v145
    %421 = vmatprep.subr.mxu0 0.0
    %422 = vmatpush1.msra.mxu0 0.0
    %423 = vmatprep.subr.mxu0 0.0
    %424 = vmatpush1.msra.mxu0 0.0
    %425 = vmatprep.subr.mxu0 0.0
    %426 = vmatpush1.msra.mxu0 0.0
    %427 = vmatprep.subr.mxu0 0.0
    %428 = vmatpush1.msra.mxu0 0.0
    %429 = vmatprep.subr.mxu0 0.0
    %430 = vmatpush1.msra.mxu0 0.0
    %431 = vmatprep.subr.mxu0 0.0
    %432 = vmatpush1.msra.mxu0 0.0
    %433 = vmatprep.subr.mxu0 0.0
    %434 = vmatpush1.msra.mxu0 0.0
    %435 = vmatprep.subr.mxu0 0.0
    %436 = vmatpush1.msra.mxu0 0.0
    %437 = vmatprep.subr.mxu0 0.0
    %438 = vmatpush1.msra.mxu0 0.0
    %439 = vmatprep.subr.mxu0 0.0
    %440 = vmatpush1.msra.mxu0 0.0
    %441 = vmatprep.subr.mxu0 0.0
    %442 = vmatpush1.msra.mxu0 0.0
    %443 = vmatprep.subr.mxu0 0.0
    %444 = vmatpush1.msra.mxu0 0.0
    %445 = vmatprep.subr.mxu0 0.0
    %446 = vmatpush1.msra.mxu0 0.0
    %447 = vmatprep.subr.mxu0 0.0
    %448 = vmatpush1.msra.mxu0 0.0
    %449 = vmatprep.subr.mxu0 0.0
    %450 = vmatpush1.msra.mxu0 0.0
    %451 = vmatprep.subr.mxu0 0.0
    %452 = vmatpush1.msra.mxu0 0.0
    %453 = vmatprep.mubr.f32.mxu0 0.0
    %454 = vmatmul.mubr.f32.gmra.mrb[0].mxu0 %v196
    %v455 = vpop.f32.mrb[0].mxu0
    %v456 = vadd.f32 %v224, %v455
    %v457 = vpop.f32.mrb[0].mxu0
    %458 = vmatprep.mubr.f32.mxu0 0.0
    %459 = vmatmul.mubr.f32.gmra.mrb[0].mxu0 %v197
    %v460 = vpop.f32.mrb[0].mxu0
    %v461 = vadd.f32 %v224, %v460
    %v462 = vpop.f32.mrb[0].mxu0
    %463 = vmatprep.mubr.f32.mxu0 0.0
    %464 = vmatmul.mubr.f32.gmra.mrb[0].mxu0 %v198
    %v465 = vpop.f32.mrb[0].mxu0
    %v466 = vadd.f32 %v224, %v465
    %v467 = vpop.f32.mrb[0].mxu0
    %468 = vmatprep.mubr.f32.mxu0 0.0
    %469 = vmatmul.mubr.f32.gmra.mrb[0].mxu0 %v199
    %v470 = vpop.f32.mrb[0].mxu0
    %v471 = vadd.f32 %v224, %v470
    %v472 = vpop.f32.mrb[0].mxu0
    %473 = vmatprep.mubr.f32.mxu0 0.0
    %474 = vmatmul.mubr.f32.gmra.mrb[0].mxu0 %v200
    %v475 = vpop.f32.mrb[0].mxu0
    %v476 = vadd.f32 %v224, %v475
    %v477 = vpop.f32.mrb[0].mxu0
    %478 = vmatprep.mubr.f32.mxu0 0.0
    %479 = vmatmul.mubr.f32.gmra.mrb[0].mxu0 %v201
    %v480 = vpop.f32.mrb[0].mxu0
    %v481 = vadd.f32 %v224, %v480
    %v482 = vpop.f32.mrb[0].mxu0
    %483 = vmatprep.mubr.f32.mxu0 0.0
    %484 = vmatmul.mubr.f32.gmra.mrb[0].mxu0 %v202
    %v485 = vpop.f32.mrb[0].mxu0
    %v486 = vadd.f32 %v224, %v485
    %v487 = vpop.f32.mrb[0].mxu0
    %488 = vmatprep.mubr.f32.mxu0 0.0
    %489 = vmatmul.mubr.f32.gmra.mrb[0].mxu0 %v203
    %v490 = vpop.f32.mrb[0].mxu0
    %v491 = vadd.f32 %v224, %v490
    %v492 = vpop.f32.mrb[0].mxu0
    %493 = vmatprep.mubr.f32.mxu0 0.0
    %494 = vmatmul.mubr.f32.gmra.mrb[0].mxu0 %v204
    %v495 = vpop.f32.mrb[0].mxu0
    %v496 = vadd.f32 %v224, %v495
    %v497 = vpop.f32.mrb[0].mxu0
    %498 = vmatprep.mubr.f32.mxu0 0.0
    %499 = vmatmul.mubr.f32.gmra.mrb[0].mxu0 %v205
    %v500 = vpop.f32.mrb[0].mxu0
    %v501 = vadd.f32 %v224, %v500
    %v502 = vpop.f32.mrb[0].mxu0
    %503 = vmatprep.mubr.f32.mxu0 0.0
    %504 = vmatmul.mubr.f32.gmra.mrb[0].mxu0 %v206
    %v505 = vpop.f32.mrb[0].mxu0
    %v506 = vadd.f32 %v224, %v505
    %v507 = vpop.f32.mrb[0].mxu0
    %508 = vmatprep.mubr.f32.mxu0 0.0
    %509 = vmatmul.mubr.f32.gmra.mrb[0].mxu0 %v207
    %v510 = vpop.f32.mrb[0].mxu0
    %v511 = vadd.f32 %v224, %v510
    %v512 = vpop.f32.mrb[0].mxu0
    %513 = vmatprep.mubr.f32.mxu0 0.0
    %514 = vmatmul.mubr.f32.gmra.mrb[0].mxu0 %v208
    %v515 = vpop.f32.mrb[0].mxu0
    %v516 = vadd.f32 %v224, %v515
    %v517 = vpop.f32.mrb[0].mxu0
    %518 = vmatprep.mubr.f32.mxu0 0.0
    %519 = vmatmul.mubr.f32.gmra.mrb[0].mxu0 %v209
    %v520 = vpop.f32.mrb[0].mxu0
    %v521 = vadd.f32 %v224, %v520
    %v522 = vpop.f32.mrb[0].mxu0
    %523 = vmatprep.mubr.f32.mxu0 0.0
    %524 = vmatmul.mubr.f32.gmra.mrb[0].mxu0 %v210
    %v525 = vpop.f32.mrb[0].mxu0
    %v526 = vadd.f32 %v224, %v525
    %v527 = vpop.f32.mrb[0].mxu0
    %528 = vmatprep.mubr.f32.mxu0 0.0
    %529 = vmatmul.mubr.f32.gmra.mrb[0].mxu0 %v211
    %v530 = vpop.f32.mrb[0].mxu0
    %v531 = vadd.f32 %v224, %v530
    %v532 = vpop.f32.mrb[0].mxu0
    %533 = vdwg.mxu0
    %534 = vst [vmem:[#allocation3] sm:$0xff] %v295
    %535 = vst [vmem:[#allocation3 + $0x8] sm:$0xff] %v297
    %536 = vst [vmem:[#allocation3 + $0x10] sm:$0xff] %v456
    %537 = vst [vmem:[#allocation3 + $0x18] sm:$0xff] %v301
    %538 = vst [vmem:[#allocation3 + $0x20] sm:$0xff] %v303
    %539 = vst [vmem:[#allocation3 + $0x28] sm:$0xff] %v461
    %540 = vst [vmem:[#allocation3 + $0x30] sm:$0xff] %v307
    %541 = vst [vmem:[#allocation3 + $0x38] sm:$0xff] %v309
    %542 = vst [vmem:[#allocation3 + $0x40] sm:$0xff] %v466
    %543 = vst [vmem:[#allocation3 + $0x48] sm:$0xff] %v313
    %544 = vst [vmem:[#allocation3 + $0x50] sm:$0xff] %v315
    %545 = vst [vmem:[#allocation3 + $0x58] sm:$0xff] %v471
    %546 = vst [vmem:[#allocation3 + $0x60] sm:$0xff] %v319
    %547 = vst [vmem:[#allocation3 + $0x68] sm:$0xff] %v321
    %548 = vst [vmem:[#allocation3 + $0x70] sm:$0xff] %v476
    %549 = vst [vmem:[#allocation3 + $0x78] sm:$0xff] %v325
    %550 = vst [vmem:[#allocation3 + $0x80] sm:$0xff] %v327
    %551 = vst [vmem:[#allocation3 + $0x88] sm:$0xff] %v481
    %552 = vst [vmem:[#allocation3 + $0x90] sm:$0xff] %v331
    %553 = vst [vmem:[#allocation3 + $0x98] sm:$0xff] %v333
    %554 = vst [vmem:[#allocation3 + $0xa0] sm:$0xff] %v486
    %555 = vst [vmem:[#allocation3 + $0xa8] sm:$0xff] %v337
    %556 = vst [vmem:[#allocation3 + $0xb0] sm:$0xff] %v339
    %557 = vst [vmem:[#allocation3 + $0xb8] sm:$0xff] %v491
    %558 = vst [vmem:[#allocation3 + $0xc0] sm:$0xff] %v343
    %559 = vst [vmem:[#allocation3 + $0xc8] sm:$0xff] %v345
    %560 = vst [vmem:[#allocation3 + $0xd0] sm:$0xff] %v496
    %561 = vst [vmem:[#allocation3 + $0xd8] sm:$0xff] %v349
    %562 = vst [vmem:[#allocation3 + $0xe0] sm:$0xff] %v351
    %563 = vst [vmem:[#allocation3 + $0xe8] sm:$0xff] %v501
    %564 = vst [vmem:[#allocation3 + $0xf0] sm:$0xff] %v355
    %565 = vst [vmem:[#allocation3 + $0xf8] sm:$0xff] %v357
    %566 = vst [vmem:[#allocation3 + $0x100] sm:$0xff] %v506
    %567 = vst [vmem:[#allocation3 + $0x108] sm:$0xff] %v361
    %568 = vst [vmem:[#allocation3 + $0x110] sm:$0xff] %v363
    %569 = vst [vmem:[#allocation3 + $0x118] sm:$0xff] %v511
    %570 = vst [vmem:[#allocation3 + $0x120] sm:$0xff] %v367
    %571 = vst [vmem:[#allocation3 + $0x128] sm:$0xff] %v369
    %572 = vst [vmem:[#allocation3 + $0x130] sm:$0xff] %v516
    %573 = vst [vmem:[#allocation3 + $0x138] sm:$0xff] %v373
    %574 = vst [vmem:[#allocation3 + $0x140] sm:$0xff] %v375
    %575 = vst [vmem:[#allocation3 + $0x148] sm:$0xff] %v521
    %576 = vst [vmem:[#allocation3 + $0x150] sm:$0xff] %v379
    %577 = vst [vmem:[#allocation3 + $0x158] sm:$0xff] %v381
    %578 = vst [vmem:[#allocation3 + $0x160] sm:$0xff] %v526
    %579 = vst [vmem:[#allocation3 + $0x168] sm:$0xff] %v385
    %580 = vst [vmem:[#allocation3 + $0x170] sm:$0xff] %v387
    %581 = vst [vmem:[#allocation3 + $0x178] sm:$0xff] %v531
    %v583 = vlaneseq
    %v584 = vshrl.u32 %v583, 7
    %v585 = vsub.s32 0, %v584
    %v586 = vrot.slane %v195, %v585
    %v588 = vld [vmem:[#allocation3] sm:$0xff]
    %v589 = vld [vmem:[#allocation3 + $0x8] sm:$0xff]
    %v590 = vld [vmem:[#allocation3 + $0x10] sm:$0xff]
    %591 = vmatprep.subr.mxu0 %v147
    %592 = vmatpush1.msra.mxu0 %v146
    %593 = vmatprep.subr.mxu0 %v150
    %594 = vmatpush1.msra.mxu0 %v149
    %595 = vmatprep.subr.mxu0 %v153
    %596 = vmatpush1.msra.mxu0 %v152
    %597 = vmatprep.subr.mxu0 %v156
    %598 = vmatpush1.msra.mxu0 %v155
    %599 = vmatprep.subr.mxu0 %v159
    %600 = vmatpush1.msra.mxu0 %v158
    %601 = vmatprep.subr.mxu0 %v162
    %602 = vmatpush1.msra.mxu0 %v161
    %603 = vmatprep.subr.mxu0 %v165
    %604 = vmatpush1.msra.mxu0 %v164
    %605 = vmatprep.subr.mxu0 %v168
    %606 = vmatpush1.msra.mxu0 %v167
    %607 = vmatprep.subr.mxu0 %v171
    %608 = vmatpush1.msra.mxu0 %v170
    %609 = vmatprep.subr.mxu0 %v174
    %610 = vmatpush1.msra.mxu0 %v173
    %611 = vmatprep.subr.mxu0 %v177
    %612 = vmatpush1.msra.mxu0 %v176
    %613 = vmatprep.subr.mxu0 %v180
    %614 = vmatpush1.msra.mxu0 %v179
    %615 = vmatprep.subr.mxu0 %v183
    %616 = vmatpush1.msra.mxu0 %v182
    %617 = vmatprep.subr.mxu0 %v186
    %618 = vmatpush1.msra.mxu0 %v185
    %619 = vmatprep.subr.mxu0 %v189
    %620 = vmatpush1.msra.mxu0 %v188
    %621 = vmatprep.subr.mxu0 %v192
    %622 = vmatpush1.msra.mxu0 %v191
    %623 = vmatprep.subr.mxu0 0.0
    %624 = vmatpush1.msra.mxu0 0.0
    %625 = vmatprep.subr.mxu0 0.0
    %626 = vmatpush1.msra.mxu0 0.0
    %627 = vmatprep.subr.mxu0 0.0
    %628 = vmatpush1.msra.mxu0 0.0
    %629 = vmatprep.subr.mxu0 0.0
    %630 = vmatpush1.msra.mxu0 0.0
    %631 = vmatprep.subr.mxu0 0.0
    %632 = vmatpush1.msra.mxu0 0.0
    %633 = vmatprep.subr.mxu0 0.0
    %634 = vmatpush1.msra.mxu0 0.0
    %635 = vmatprep.subr.mxu0 0.0
    %636 = vmatpush1.msra.mxu0 0.0
    %637 = vmatprep.subr.mxu0 0.0
    %638 = vmatpush1.msra.mxu0 0.0
    %639 = vmatprep.subr.mxu0 0.0
    %640 = vmatpush1.msra.mxu0 0.0
    %641 = vmatprep.subr.mxu0 0.0
    %642 = vmatpush1.msra.mxu0 0.0
    %643 = vmatprep.subr.mxu0 0.0
    %644 = vmatpush1.msra.mxu0 0.0
    %645 = vmatprep.subr.mxu0 0.0
    %646 = vmatpush1.msra.mxu0 0.0
    %647 = vmatprep.subr.mxu0 0.0
    %648 = vmatpush1.msra.mxu0 0.0
    %649 = vmatprep.subr.mxu0 0.0
    %650 = vmatpush1.msra.mxu0 0.0
    %651 = vmatprep.subr.mxu0 0.0
    %652 = vmatpush1.msra.mxu0 0.0
    %653 = vmatprep.subr.mxu0 0.0
    %654 = vmatpush1.msra.mxu0 0.0
    %655 = vmatprep.mubr.f32.mxu0 0.0
    %656 = vmatmul.mubr.f32.gmra.mrb[0].mxu0 0.0
    %v657 = vpop.f32.mrb[0].mxu0
    %v658 = vadd.f32 0.0, %v657
    %v659 = vpop.f32.mrb[0].mxu0
    %v660 = vadd.f32 0.0, %v659
    %661 = vdwg.mxu0
    %662 = vmatprep.subr.mxu0 0.0
    %663 = vmatpush1.msra.mxu0 %v148
    %664 = vmatprep.subr.mxu0 0.0
    %665 = vmatpush1.msra.mxu0 %v151
    %666 = vmatprep.subr.mxu0 0.0
    %667 = vmatpush1.msra.mxu0 %v154
    %668 = vmatprep.subr.mxu0 0.0
    %669 = vmatpush1.msra.mxu0 %v157
    %670 = vmatprep.subr.mxu0 0.0
    %671 = vmatpush1.msra.mxu0 %v160
    %672 = vmatprep.subr.mxu0 0.0
    %673 = vmatpush1.msra.mxu0 %v163
    %674 = vmatprep.subr.mxu0 0.0
    %675 = vmatpush1.msra.mxu0 %v166
    %676 = vmatprep.subr.mxu0 0.0
    %677 = vmatpush1.msra.mxu0 %v169
    %678 = vmatprep.subr.mxu0 0.0
    %679 = vmatpush1.msra.mxu0 %v172
    %680 = vmatprep.subr.mxu0 0.0
    %681 = vmatpush1.msra.mxu0 %v175
    %682 = vmatprep.subr.mxu0 0.0
    %683 = vmatpush1.msra.mxu0 %v178
    %684 = vmatprep.subr.mxu0 0.0
    %685 = vmatpush1.msra.mxu0 %v181
    %686 = vmatprep.subr.mxu0 0.0
    %687 = vmatpush1.msra.mxu0 %v184
    %688 = vmatprep.subr.mxu0 0.0
    %689 = vmatpush1.msra.mxu0 %v187
    %690 = vmatprep.subr.mxu0 0.0
    %691 = vmatpush1.msra.mxu0 %v190
    %692 = vmatprep.subr.mxu0 0.0
    %693 = vmatpush1.msra.mxu0 %v193
    %694 = vmatprep.subr.mxu0 0.0
    %695 = vmatpush1.msra.mxu0 0.0
    %696 = vmatprep.subr.mxu0 0.0
    %697 = vmatpush1.msra.mxu0 0.0
    %698 = vmatprep.subr.mxu0 0.0
    %699 = vmatpush1.msra.mxu0 0.0
    %700 = vmatprep.subr.mxu0 0.0
    %701 = vmatpush1.msra.mxu0 0.0
    %702 = vmatprep.subr.mxu0 0.0
    %703 = vmatpush1.msra.mxu0 0.0
    %704 = vmatprep.subr.mxu0 0.0
    %705 = vmatpush1.msra.mxu0 0.0
    %706 = vmatprep.subr.mxu0 0.0
    %707 = vmatpush1.msra.mxu0 0.0
    %708 = vmatprep.subr.mxu0 0.0
    %709 = vmatpush1.msra.mxu0 0.0
    %710 = vmatprep.subr.mxu0 0.0
    %711 = vmatpush1.msra.mxu0 0.0
    %712 = vmatprep.subr.mxu0 0.0
    %713 = vmatpush1.msra.mxu0 0.0
    %714 = vmatprep.subr.mxu0 0.0
    %715 = vmatpush1.msra.mxu0 0.0
    %716 = vmatprep.subr.mxu0 0.0
    %717 = vmatpush1.msra.mxu0 0.0
    %718 = vmatprep.subr.mxu0 0.0
    %719 = vmatpush1.msra.mxu0 0.0
    %720 = vmatprep.subr.mxu0 0.0
    %721 = vmatpush1.msra.mxu0 0.0
    %722 = vmatprep.subr.mxu0 0.0
    %723 = vmatpush1.msra.mxu0 0.0
    %724 = vmatprep.subr.mxu0 0.0
    %725 = vmatpush1.msra.mxu0 0.0
    %726 = vmatprep.mubr.f32.mxu0 0.0
    %727 = vmatmul.mubr.f32.gmra.mrb[0].mxu0 0.0
    %v728 = vpop.f32.mrb[0].mxu0
    %v729 = vadd.f32 0.0, %v728
    %v730 = vpop.f32.mrb[0].mxu0
    %731 = vdwg.mxu0
    %v732 = vadd.f32 %v588, %v658
    %v733 = vadd.f32 %v589, %v660
    %v734 = vmul.f32 %v732, 0.5
    %v735 = vmul.f32 %v733, 0.5
    %v736 = vtanh.pop %v734
    %v737 = vtanh.pop %v735
    %v738 = vmul.f32 %v736, 0.5
    %v739 = vmul.f32 %v737, 0.5
    %v740 = vadd.f32 %v738, 0.5
    %v741 = vadd.f32 %v739, 0.5
    %v742 = vadd.f32 %v729, %v586
    %v743 = vmul.f32 %v740, %v742
    %v744 = vadd.f32 %v590, %v743
    %v745 = vtanh.pop %v744
    %v746 = vsub.f32 0.0, %v745
    %v747 = vmul.f32 %v741, %v746
    %v748 = vadd.f32 %v745, %v747
    %749 = vst [vmem:[#allocation2] sm:$0xff] %v748
    %v750 = vld [vmem:[#allocation3 + $0x18] sm:$0xff]
    %v751 = vld [vmem:[#allocation3 + $0x20] sm:$0xff]
    %v752 = vld [vmem:[#allocation3 + $0x28] sm:$0xff]
    %753 = vmatprep.subr.mxu0 %v147
    %754 = vmatpush1.msra.mxu0 %v146
    %755 = vmatprep.subr.mxu0 %v150
    %756 = vmatpush1.msra.mxu0 %v149
    %757 = vmatprep.subr.mxu0 %v153
    %758 = vmatpush1.msra.mxu0 %v152
    %759 = vmatprep.subr.mxu0 %v156
    %760 = vmatpush1.msra.mxu0 %v155
    %761 = vmatprep.subr.mxu0 %v159
    %762 = vmatpush1.msra.mxu0 %v158
    %763 = vmatprep.subr.mxu0 %v162
    %764 = vmatpush1.msra.mxu0 %v161
    %765 = vmatprep.subr.mxu0 %v165
    %766 = vmatpush1.msra.mxu0 %v164
    %767 = vmatprep.subr.mxu0 %v168
    %768 = vmatpush1.msra.mxu0 %v167
    %769 = vmatprep.subr.mxu0 %v171
    %770 = vmatpush1.msra.mxu0 %v170
    %771 = vmatprep.subr.mxu0 %v174
    %772 = vmatpush1.msra.mxu0 %v173
    %773 = vmatprep.subr.mxu0 %v177
    %774 = vmatpush1.msra.mxu0 %v176
    %775 = vmatprep.subr.mxu0 %v180
    %776 = vmatpush1.msra.mxu0 %v179
    %777 = vmatprep.subr.mxu0 %v183
    %778 = vmatpush1.msra.mxu0 %v182
    %779 = vmatprep.subr.mxu0 %v186
    %780 = vmatpush1.msra.mxu0 %v185
    %781 = vmatprep.subr.mxu0 %v189
    %782 = vmatpush1.msra.mxu0 %v188
    %783 = vmatprep.subr.mxu0 %v192
    %784 = vmatpush1.msra.mxu0 %v191
    %785 = vmatprep.subr.mxu0 0.0
    %786 = vmatpush1.msra.mxu0 0.0
    %787 = vmatprep.subr.mxu0 0.0
    %788 = vmatpush1.msra.mxu0 0.0
    %789 = vmatprep.subr.mxu0 0.0
    %790 = vmatpush1.msra.mxu0 0.0
    %791 = vmatprep.subr.mxu0 0.0
    %792 = vmatpush1.msra.mxu0 0.0
    %793 = vmatprep.subr.mxu0 0.0
    %794 = vmatpush1.msra.mxu0 0.0
    %795 = vmatprep.subr.mxu0 0.0
    %796 = vmatpush1.msra.mxu0 0.0
    %797 = vmatprep.subr.mxu0 0.0
    %798 = vmatpush1.msra.mxu0 0.0
    %799 = vmatprep.subr.mxu0 0.0
    %800 = vmatpush1.msra.mxu0 0.0
    %801 = vmatprep.subr.mxu0 0.0
    %802 = vmatpush1.msra.mxu0 0.0
    %803 = vmatprep.subr.mxu0 0.0
    %804 = vmatpush1.msra.mxu0 0.0
    %805 = vmatprep.subr.mxu0 0.0
    %806 = vmatpush1.msra.mxu0 0.0
    %807 = vmatprep.subr.mxu0 0.0
    %808 = vmatpush1.msra.mxu0 0.0
    %809 = vmatprep.subr.mxu0 0.0
    %810 = vmatpush1.msra.mxu0 0.0
    %811 = vmatprep.subr.mxu0 0.0
    %812 = vmatpush1.msra.mxu0 0.0
    %813 = vmatprep.subr.mxu0 0.0
    %814 = vmatpush1.msra.mxu0 0.0
    %815 = vmatprep.subr.mxu0 0.0
    %816 = vmatpush1.msra.mxu0 0.0
    %817 = vmatprep.mubr.f32.mxu0 0.0
    %818 = vmatmul.mubr.f32.gmra.mrb[0].mxu0 %v748
    %v819 = vpop.f32.mrb[0].mxu0
    %v820 = vadd.f32 0.0, %v819
    %v821 = vpop.f32.mrb[0].mxu0
    %v822 = vadd.f32 0.0, %v821
    %823 = vdwg.mxu0
    %824 = vmatprep.subr.mxu0 0.0
    %825 = vmatpush1.msra.mxu0 %v148
    %826 = vmatprep.subr.mxu0 0.0
    %827 = vmatpush1.msra.mxu0 %v151
    %828 = vmatprep.subr.mxu0 0.0
    %829 = vmatpush1.msra.mxu0 %v154
    %830 = vmatprep.subr.mxu0 0.0
    %831 = vmatpush1.msra.mxu0 %v157
    %832 = vmatprep.subr.mxu0 0.0
    %833 = vmatpush1.msra.mxu0 %v160
    %834 = vmatprep.subr.mxu0 0.0
    %835 = vmatpush1.msra.mxu0 %v163
    %836 = vmatprep.subr.mxu0 0.0
    %837 = vmatpush1.msra.mxu0 %v166
    %838 = vmatprep.subr.mxu0 0.0
    %839 = vmatpush1.msra.mxu0 %v169
    %840 = vmatprep.subr.mxu0 0.0
    %841 = vmatpush1.msra.mxu0 %v172
    %842 = vmatprep.subr.mxu0 0.0
    %843 = vmatpush1.msra.mxu0 %v175
    %844 = vmatprep.subr.mxu0 0.0
    %845 = vmatpush1.msra.mxu0 %v178
    %846 = vmatprep.subr.mxu0 0.0
    %847 = vmatpush1.msra.mxu0 %v181
    %848 = vmatprep.subr.mxu0 0.0
    %849 = vmatpush1.msra.mxu0 %v184
    %850 = vmatprep.subr.mxu0 0.0
    %851 = vmatpush1.msra.mxu0 %v187
    %852 = vmatprep.subr.mxu0 0.0
    %853 = vmatpush1.msra.mxu0 %v190
    %854 = vmatprep.subr.mxu0 0.0
    %855 = vmatpush1.msra.mxu0 %v193
    %856 = vmatprep.subr.mxu0 0.0
    %857 = vmatpush1.msra.mxu0 0.0
    %858 = vmatprep.subr.mxu0 0.0
    %859 = vmatpush1.msra.mxu0 0.0
    %860 = vmatprep.subr.mxu0 0.0
    %861 = vmatpush1.msra.mxu0 0.0
    %862 = vmatprep.subr.mxu0 0.0
    %863 = vmatpush1.msra.mxu0 0.0
    %864 = vmatprep.subr.mxu0 0.0
    %865 = vmatpush1.msra.mxu0 0.0
    %866 = vmatprep.subr.mxu0 0.0
    %867 = vmatpush1.msra.mxu0 0.0
    %868 = vmatprep.subr.mxu0 0.0
    %869 = vmatpush1.msra.mxu0 0.0
    %870 = vmatprep.subr.mxu0 0.0
    %871 = vmatpush1.msra.mxu0 0.0
    %872 = vmatprep.subr.mxu0 0.0
    %873 = vmatpush1.msra.mxu0 0.0
    %874 = vmatprep.subr.mxu0 0.0
    %875 = vmatpush1.msra.mxu0 0.0
    %876 = vmatprep.subr.mxu0 0.0
    %877 = vmatpush1.msra.mxu0 0.0
    %878 = vmatprep.subr.mxu0 0.0
    %879 = vmatpush1.msra.mxu0 0.0
    %880 = vmatprep.subr.mxu0 0.0
    %881 = vmatpush1.msra.mxu0 0.0
    %882 = vmatprep.subr.mxu0 0.0
    %883 = vmatpush1.msra.mxu0 0.0
    %884 = vmatprep.subr.mxu0 0.0
    %885 = vmatpush1.msra.mxu0 0.0
    %886 = vmatprep.subr.mxu0 0.0
    %887 = vmatpush1.msra.mxu0 0.0
    %888 = vmatprep.mubr.f32.mxu0 0.0
    %889 = vmatmul.mubr.f32.gmra.mrb[0].mxu0 %v748
    %v890 = vpop.f32.mrb[0].mxu0
    %v891 = vadd.f32 0.0, %v890
    %v892 = vpop.f32.mrb[0].mxu0
    %893 = vdwg.mxu0
    %v894 = vadd.f32 %v750, %v820
    %v895 = vadd.f32 %v751, %v822
    %v896 = vmul.f32 %v894, 0.5
    %v897 = vmul.f32 %v895, 0.5
    %v898 = vtanh.pop %v896
    %v899 = vtanh.pop %v897
    %v900 = vmul.f32 %v898, 0.5
    %v901 = vmul.f32 %v899, 0.5
    %v902 = vadd.f32 %v900, 0.5
    %v903 = vadd.f32 %v901, 0.5
    %v904 = vadd.f32 %v891, %v586
    %v905 = vmul.f32 %v902, %v904
    %v906 = vadd.f32 %v752, %v905
    %v907 = vtanh.pop %v906
    %v908 = vsub.f32 %v748, %v907
    %v909 = vmul.f32 %v903, %v908
    %v910 = vadd.f32 %v907, %v909
    %911 = vst [vmem:[#allocation2 + $0x8] sm:$0xff] %v910
    %v912 = vld [vmem:[#allocation3 + $0x30] sm:$0xff]
    %v913 = vld [vmem:[#allocation3 + $0x38] sm:$0xff]
    %v914 = vld [vmem:[#allocation3 + $0x40] sm:$0xff]
    %915 = vmatprep.subr.mxu0 %v147
    %916 = vmatpush1.msra.mxu0 %v146
    %917 = vmatprep.subr.mxu0 %v150
    %918 = vmatpush1.msra.mxu0 %v149
    %919 = vmatprep.subr.mxu0 %v153
    %920 = vmatpush1.msra.mxu0 %v152
    %921 = vmatprep.subr.mxu0 %v156
    %922 = vmatpush1.msra.mxu0 %v155
    %923 = vmatprep.subr.mxu0 %v159
    %924 = vmatpush1.msra.mxu0 %v158
    %925 = vmatprep.subr.mxu0 %v162
    %926 = vmatpush1.msra.mxu0 %v161
    %927 = vmatprep.subr.mxu0 %v165
    %928 = vmatpush1.msra.mxu0 %v164
    %929 = vmatprep.subr.mxu0 %v168
    %930 = vmatpush1.msra.mxu0 %v167
    %931 = vmatprep.subr.mxu0 %v171
    %932 = vmatpush1.msra.mxu0 %v170
    %933 = vmatprep.subr.mxu0 %v174
    %934 = vmatpush1.msra.mxu0 %v173
    %935 = vmatprep.subr.mxu0 %v177
    %936 = vmatpush1.msra.mxu0 %v176
    %937 = vmatprep.subr.mxu0 %v180
    %938 = vmatpush1.msra.mxu0 %v179
    %939 = vmatprep.subr.mxu0 %v183
    %940 = vmatpush1.msra.mxu0 %v182
    %941 = vmatprep.subr.mxu0 %v186
    %942 = vmatpush1.msra.mxu0 %v185
    %943 = vmatprep.subr.mxu0 %v189
    %944 = vmatpush1.msra.mxu0 %v188
    %945 = vmatprep.subr.mxu0 %v192
    %946 = vmatpush1.msra.mxu0 %v191
    %947 = vmatprep.subr.mxu0 0.0
    %948 = vmatpush1.msra.mxu0 0.0
    %949 = vmatprep.subr.mxu0 0.0
    %950 = vmatpush1.msra.mxu0 0.0
    %951 = vmatprep.subr.mxu0 0.0
    %952 = vmatpush1.msra.mxu0 0.0
    %953 = vmatprep.subr.mxu0 0.0
    %954 = vmatpush1.msra.mxu0 0.0
    %955 = vmatprep.subr.mxu0 0.0
    %956 = vmatpush1.msra.mxu0 0.0
    %957 = vmatprep.subr.mxu0 0.0
    %958 = vmatpush1.msra.mxu0 0.0
    %959 = vmatprep.subr.mxu0 0.0
    %960 = vmatpush1.msra.mxu0 0.0
    %961 = vmatprep.subr.mxu0 0.0
    %962 = vmatpush1.msra.mxu0 0.0
    %963 = vmatprep.subr.mxu0 0.0
    %964 = vmatpush1.msra.mxu0 0.0
    %965 = vmatprep.subr.mxu0 0.0
    %966 = vmatpush1.msra.mxu0 0.0
    %967 = vmatprep.subr.mxu0 0.0
    %968 = vmatpush1.msra.mxu0 0.0
    %969 = vmatprep.subr.mxu0 0.0
    %970 = vmatpush1.msra.mxu0 0.0
    %971 = vmatprep.subr.mxu0 0.0
    %972 = vmatpush1.msra.mxu0 0.0
    %973 = vmatprep.subr.mxu0 0.0
    %974 = vmatpush1.msra.mxu0 0.0
    %975 = vmatprep.subr.mxu0 0.0
    %976 = vmatpush1.msra.mxu0 0.0
    %977 = vmatprep.subr.mxu0 0.0
    %978 = vmatpush1.msra.mxu0 0.0
    %979 = vmatprep.mubr.f32.mxu0 0.0
    %980 = vmatmul.mubr.f32.gmra.mrb[0].mxu0 %v910
    %v981 = vpop.f32.mrb[0].mxu0
    %v982 = vadd.f32 0.0, %v981
    %v983 = vpop.f32.mrb[0].mxu0
    %v984 = vadd.f32 0.0, %v983
    %985 = vdwg.mxu0
    %986 = vmatprep.subr.mxu0 0.0
    %987 = vmatpush1.msra.mxu0 %v148
    %988 = vmatprep.subr.mxu0 0.0
    %989 = vmatpush1.msra.mxu0 %v151
    %990 = vmatprep.subr.mxu0 0.0
    %991 = vmatpush1.msra.mxu0 %v154
    %992 = vmatprep.subr.mxu0 0.0
    %993 = vmatpush1.msra.mxu0 %v157
    %994 = vmatprep.subr.mxu0 0.0
    %995 = vmatpush1.msra.mxu0 %v160
    %996 = vmatprep.subr.mxu0 0.0
    %997 = vmatpush1.msra.mxu0 %v163
    %998 = vmatprep.subr.mxu0 0.0
    %999 = vmatpush1.msra.mxu0 %v166
    %1000 = vmatprep.subr.mxu0 0.0
    %1001 = vmatpush1.msra.mxu0 %v169
    %1002 = vmatprep.subr.mxu0 0.0
    %1003 = vmatpush1.msra.mxu0 %v172
    %1004 = vmatprep.subr.mxu0 0.0
    %1005 = vmatpush1.msra.mxu0 %v175
    %1006 = vmatprep.subr.mxu0 0.0
    %1007 = vmatpush1.msra.mxu0 %v178
    %1008 = vmatprep.subr.mxu0 0.0
    %1009 = vmatpush1.msra.mxu0 %v181
    %1010 = vmatprep.subr.mxu0 0.0
    %1011 = vmatpush1.msra.mxu0 %v184
    %1012 = vmatprep.subr.mxu0 0.0
    %1013 = vmatpush1.msra.mxu0 %v187
    %1014 = vmatprep.subr.mxu0 0.0
    %1015 = vmatpush1.msra.mxu0 %v190
    %1016 = vmatprep.subr.mxu0 0.0
    %1017 = vmatpush1.msra.mxu0 %v193
    %1018 = vmatprep.subr.mxu0 0.0
    %1019 = vmatpush1.msra.mxu0 0.0
    %1020 = vmatprep.subr.mxu0 0.0
    %1021 = vmatpush1.msra.mxu0 0.0
    %1022 = vmatprep.subr.mxu0 0.0
    %1023 = vmatpush1.msra.mxu0 0.0
    %1024 = vmatprep.subr.mxu0 0.0
    %1025 = vmatpush1.msra.mxu0 0.0
    %1026 = vmatprep.subr.mxu0 0.0
    %1027 = vmatpush1.msra.mxu0 0.0
    %1028 = vmatprep.subr.mxu0 0.0
    %1029 = vmatpush1.msra.mxu0 0.0
    %1030 = vmatprep.subr.mxu0 0.0
    %1031 = vmatpush1.msra.mxu0 0.0
    %1032 = vmatprep.subr.mxu0 0.0
    %1033 = vmatpush1.msra.mxu0 0.0
    %1034 = vmatprep.subr.mxu0 0.0
    %1035 = vmatpush1.msra.mxu0 0.0
    %1036 = vmatprep.subr.mxu0 0.0
    %1037 = vmatpush1.msra.mxu0 0.0
    %1038 = vmatprep.subr.mxu0 0.0
    %1039 = vmatpush1.msra.mxu0 0.0
    %1040 = vmatprep.subr.mxu0 0.0
    %1041 = vmatpush1.msra.mxu0 0.0
    %1042 = vmatprep.subr.mxu0 0.0
    %1043 = vmatpush1.msra.mxu0 0.0
    %1044 = vmatprep.subr.mxu0 0.0
    %1045 = vmatpush1.msra.mxu0 0.0
    %1046 = vmatprep.subr.mxu0 0.0
    %1047 = vmatpush1.msra.mxu0 0.0
    %1048 = vmatprep.subr.mxu0 0.0
    %1049 = vmatpush1.msra.mxu0 0.0
    %1050 = vmatprep.mubr.f32.mxu0 0.0
    %1051 = vmatmul.mubr.f32.gmra.mrb[0].mxu0 %v910
    %v1052 = vpop.f32.mrb[0].mxu0
    %v1053 = vadd.f32 0.0, %v1052
    %v1054 = vpop.f32.mrb[0].mxu0
    %1055 = vdwg.mxu0
    %v1056 = vadd.f32 %v912, %v982
    %v1057 = vadd.f32 %v913, %v984
    %v1058 = vmul.f32 %v1056, 0.5
    %v1059 = vmul.f32 %v1057, 0.5
    %v1060 = vtanh.pop %v1058
    %v1061 = vtanh.pop %v1059
    %v1062 = vmul.f32 %v1060, 0.5
    %v1063 = vmul.f32 %v1061, 0.5
    %v1064 = vadd.f32 %v1062, 0.5
    %v1065 = vadd.f32 %v1063, 0.5
    %v1066 = vadd.f32 %v1053, %v586
    %v1067 = vmul.f32 %v1064, %v1066
    %v1068 = vadd.f32 %v914, %v1067
    %v1069 = vtanh.pop %v1068
    %v1070 = vsub.f32 %v910, %v1069
    %v1071 = vmul.f32 %v1065, %v1070
    %v1072 = vadd.f32 %v1069, %v1071
    %1073 = vst [vmem:[#allocation2 + $0x10] sm:$0xff] %v1072
    %v1074 = vld [vmem:[#allocation3 + $0x48] sm:$0xff]
    %v1075 = vld [vmem:[#allocation3 + $0x50] sm:$0xff]
    %v1076 = vld [vmem:[#allocation3 + $0x58] sm:$0xff]
    %1077 = vmatprep.subr.mxu0 %v147
    %1078 = vmatpush1.msra.mxu0 %v146
    %1079 = vmatprep.subr.mxu0 %v150
    %1080 = vmatpush1.msra.mxu0 %v149
    %1081 = vmatprep.subr.mxu0 %v153
    %1082 = vmatpush1.msra.mxu0 %v152
    %1083 = vmatprep.subr.mxu0 %v156
    %1084 = vmatpush1.msra.mxu0 %v155
    %1085 = vmatprep.subr.mxu0 %v159
    %1086 = vmatpush1.msra.mxu0 %v158
    %1087 = vmatprep.subr.mxu0 %v162
    %1088 = vmatpush1.msra.mxu0 %v161
    %1089 = vmatprep.subr.mxu0 %v165
    %1090 = vmatpush1.msra.mxu0 %v164
    %1091 = vmatprep.subr.mxu0 %v168
    %1092 = vmatpush1.msra.mxu0 %v167
    %1093 = vmatprep.subr.mxu0 %v171
    %1094 = vmatpush1.msra.mxu0 %v170
    %1095 = vmatprep.subr.mxu0 %v174
    %1096 = vmatpush1.msra.mxu0 %v173
    %1097 = vmatprep.subr.mxu0 %v177
    %1098 = vmatpush1.msra.mxu0 %v176
    %1099 = vmatprep.subr.mxu0 %v180
    %1100 = vmatpush1.msra.mxu0 %v179
    %1101 = vmatprep.subr.mxu0 %v183
    %1102 = vmatpush1.msra.mxu0 %v182
    %1103 = vmatprep.subr.mxu0 %v186
    %1104 = vmatpush1.msra.mxu0 %v185
    %1105 = vmatprep.subr.mxu0 %v189
    %1106 = vmatpush1.msra.mxu0 %v188
    %1107 = vmatprep.subr.mxu0 %v192
    %1108 = vmatpush1.msra.mxu0 %v191
    %1109 = vmatprep.subr.mxu0 0.0
    %1110 = vmatpush1.msra.mxu0 0.0
    %1111 = vmatprep.subr.mxu0 0.0
    %1112 = vmatpush1.msra.mxu0 0.0
    %1113 = vmatprep.subr.mxu0 0.0
    %1114 = vmatpush1.msra.mxu0 0.0
    %1115 = vmatprep.subr.mxu0 0.0
    %1116 = vmatpush1.msra.mxu0 0.0
    %1117 = vmatprep.subr.mxu0 0.0
    %1118 = vmatpush1.msra.mxu0 0.0
    %1119 = vmatprep.subr.mxu0 0.0
    %1120 = vmatpush1.msra.mxu0 0.0
    %1121 = vmatprep.subr.mxu0 0.0
    %1122 = vmatpush1.msra.mxu0 0.0
    %1123 = vmatprep.subr.mxu0 0.0
    %1124 = vmatpush1.msra.mxu0 0.0
    %1125 = vmatprep.subr.mxu0 0.0
    %1126 = vmatpush1.msra.mxu0 0.0
    %1127 = vmatprep.subr.mxu0 0.0
    %1128 = vmatpush1.msra.mxu0 0.0
    %1129 = vmatprep.subr.mxu0 0.0
    %1130 = vmatpush1.msra.mxu0 0.0
    %1131 = vmatprep.subr.mxu0 0.0
    %1132 = vmatpush1.msra.mxu0 0.0
    %1133 = vmatprep.subr.mxu0 0.0
    %1134 = vmatpush1.msra.mxu0 0.0
    %1135 = vmatprep.subr.mxu0 0.0
    %1136 = vmatpush1.msra.mxu0 0.0
    %1137 = vmatprep.subr.mxu0 0.0
    %1138 = vmatpush1.msra.mxu0 0.0
    %1139 = vmatprep.subr.mxu0 0.0
    %1140 = vmatpush1.msra.mxu0 0.0
    %1141 = vmatprep.mubr.f32.mxu0 0.0
    %1142 = vmatmul.mubr.f32.gmra.mrb[0].mxu0 %v1072
    %v1143 = vpop.f32.mrb[0].mxu0
    %v1144 = vadd.f32 0.0, %v1143
    %v1145 = vpop.f32.mrb[0].mxu0
    %v1146 = vadd.f32 0.0, %v1145
    %1147 = vdwg.mxu0
    %1148 = vmatprep.subr.mxu0 0.0
    %1149 = vmatpush1.msra.mxu0 %v148
    %1150 = vmatprep.subr.mxu0 0.0
    %1151 = vmatpush1.msra.mxu0 %v151
    %1152 = vmatprep.subr.mxu0 0.0
    %1153 = vmatpush1.msra.mxu0 %v154
    %1154 = vmatprep.subr.mxu0 0.0
    %1155 = vmatpush1.msra.mxu0 %v157
    %1156 = vmatprep.subr.mxu0 0.0
    %1157 = vmatpush1.msra.mxu0 %v160
    %1158 = vmatprep.subr.mxu0 0.0
    %1159 = vmatpush1.msra.mxu0 %v163
    %1160 = vmatprep.subr.mxu0 0.0
    %1161 = vmatpush1.msra.mxu0 %v166
    %1162 = vmatprep.subr.mxu0 0.0
    %1163 = vmatpush1.msra.mxu0 %v169
    %1164 = vmatprep.subr.mxu0 0.0
    %1165 = vmatpush1.msra.mxu0 %v172
    %1166 = vmatprep.subr.mxu0 0.0
    %1167 = vmatpush1.msra.mxu0 %v175
    %1168 = vmatprep.subr.mxu0 0.0
    %1169 = vmatpush1.msra.mxu0 %v178
    %1170 = vmatprep.subr.mxu0 0.0
    %1171 = vmatpush1.msra.mxu0 %v181
    %1172 = vmatprep.subr.mxu0 0.0
    %1173 = vmatpush1.msra.mxu0 %v184
    %1174 = vmatprep.subr.mxu0 0.0
    %1175 = vmatpush1.msra.mxu0 %v187
    %1176 = vmatprep.subr.mxu0 0.0
    %1177 = vmatpush1.msra.mxu0 %v190
    %1178 = vmatprep.subr.mxu0 0.0
    %1179 = vmatpush1.msra.mxu0 %v193
    %1180 = vmatprep.subr.mxu0 0.0
    %1181 = vmatpush1.msra.mxu0 0.0
    %1182 = vmatprep.subr.mxu0 0.0
    %1183 = vmatpush1.msra.mxu0 0.0
    %1184 = vmatprep.subr.mxu0 0.0
    %1185 = vmatpush1.msra.mxu0 0.0
    %1186 = vmatprep.subr.mxu0 0.0
    %1187 = vmatpush1.msra.mxu0 0.0
    %1188 = vmatprep.subr.mxu0 0.0
    %1189 = vmatpush1.msra.mxu0 0.0
    %1190 = vmatprep.subr.mxu0 0.0
    %1191 = vmatpush1.msra.mxu0 0.0
    %1192 = vmatprep.subr.mxu0 0.0
    %1193 = vmatpush1.msra.mxu0 0.0
    %1194 = vmatprep.subr.mxu0 0.0
    %1195 = vmatpush1.msra.mxu0 0.0
    %1196 = vmatprep.subr.mxu0 0.0
    %1197 = vmatpush1.msra.mxu0 0.0
    %1198 = vmatprep.subr.mxu0 0.0
    %1199 = vmatpush1.msra.mxu0 0.0
    %1200 = vmatprep.subr.mxu0 0.0
    %1201 = vmatpush1.msra.mxu0 0.0
    %1202 = vmatprep.subr.mxu0 0.0
    %1203 = vmatpush1.msra.mxu0 0.0
    %1204 = vmatprep.subr.mxu0 0.0
    %1205 = vmatpush1.msra.mxu0 0.0
    %1206 = vmatprep.subr.mxu0 0.0
    %1207 = vmatpush1.msra.mxu0 0.0
    %1208 = vmatprep.subr.mxu0 0.0
    %1209 = vmatpush1.msra.mxu0 0.0
    %1210 = vmatprep.subr.mxu0 0.0
    %1211 = vmatpush1.msra.mxu0 0.0
    %1212 = vmatprep.mubr.f32.mxu0 0.0
    %1213 = vmatmul.mubr.f32.gmra.mrb[0].mxu0 %v1072
    %v1214 = vpop.f32.mrb[0].mxu0
    %v1215 = vadd.f32 0.0, %v1214
    %v1216 = vpop.f32.mrb[0].mxu0
    %1217 = vdwg.mxu0
    %v1218 = vadd.f32 %v1074, %v1144
    %v1219 = vadd.f32 %v1075, %v1146
    %v1220 = vmul.f32 %v1218, 0.5
    %v1221 = vmul.f32 %v1219, 0.5
    %v1222 = vtanh.pop %v1220
    %v1223 = vtanh.pop %v1221
    %v1224 = vmul.f32 %v1222, 0.5
    %v1225 = vmul.f32 %v1223, 0.5
    %v1226 = vadd.f32 %v1224, 0.5
    %v1227 = vadd.f32 %v1225, 0.5
    %v1228 = vadd.f32 %v1215, %v586
    %v1229 = vmul.f32 %v1226, %v1228
    %v1230 = vadd.f32 %v1076, %v1229
    %v1231 = vtanh.pop %v1230
    %v1232 = vsub.f32 %v1072, %v1231
    %v1233 = vmul.f32 %v1227, %v1232
    %v1234 = vadd.f32 %v1231, %v1233
    %1235 = vst [vmem:[#allocation2 + $0x18] sm:$0xff] %v1234
    %v1236 = vld [vmem:[#allocation3 + $0x60] sm:$0xff]
    %v1237 = vld [vmem:[#allocation3 + $0x68] sm:$0xff]
    %v1238 = vld [vmem:[#allocation3 + $0x70] sm:$0xff]
    %1239 = vmatprep.subr.mxu0 %v147
    %1240 = vmatpush1.msra.mxu0 %v146
    %1241 = vmatprep.subr.mxu0 %v150
    %1242 = vmatpush1.msra.mxu0 %v149
    %1243 = vmatprep.subr.mxu0 %v153
    %1244 = vmatpush1.msra.mxu0 %v152
    %1245 = vmatprep.subr.mxu0 %v156
    %1246 = vmatpush1.msra.mxu0 %v155
    %1247 = vmatprep.subr.mxu0 %v159
    %1248 = vmatpush1.msra.mxu0 %v158
    %1249 = vmatprep.subr.mxu0 %v162
    %1250 = vmatpush1.msra.mxu0 %v161
    %1251 = vmatprep.subr.mxu0 %v165
    %1252 = vmatpush1.msra.mxu0 %v164
    %1253 = vmatprep.subr.mxu0 %v168
    %1254 = vmatpush1.msra.mxu0 %v167
    %1255 = vmatprep.subr.mxu0 %v171
    %1256 = vmatpush1.msra.mxu0 %v170
    %1257 = vmatprep.subr.mxu0 %v174
    %1258 = vmatpush1.msra.mxu0 %v173
    %1259 = vmatprep.subr.mxu0 %v177
    %1260 = vmatpush1.msra.mxu0 %v176
    %1261 = vmatprep.subr.mxu0 %v180
    %1262 = vmatpush1.msra.mxu0 %v179
    %1263 = vmatprep.subr.mxu0 %v183
    %1264 = vmatpush1.msra.mxu0 %v182
    %1265 = vmatprep.subr.mxu0 %v186
    %1266 = vmatpush1.msra.mxu0 %v185
    %1267 = vmatprep.subr.mxu0 %v189
    %1268 = vmatpush1.msra.mxu0 %v188
    %1269 = vmatprep.subr.mxu0 %v192
    %1270 = vmatpush1.msra.mxu0 %v191
    %1271 = vmatprep.subr.mxu0 0.0
    %1272 = vmatpush1.msra.mxu0 0.0
    %1273 = vmatprep.subr.mxu0 0.0
    %1274 = vmatpush1.msra.mxu0 0.0
    %1275 = vmatprep.subr.mxu0 0.0
    %1276 = vmatpush1.msra.mxu0 0.0
    %1277 = vmatprep.subr.mxu0 0.0
    %1278 = vmatpush1.msra.mxu0 0.0
    %1279 = vmatprep.subr.mxu0 0.0
    %1280 = vmatpush1.msra.mxu0 0.0
    %1281 = vmatprep.subr.mxu0 0.0
    %1282 = vmatpush1.msra.mxu0 0.0
    %1283 = vmatprep.subr.mxu0 0.0
    %1284 = vmatpush1.msra.mxu0 0.0
    %1285 = vmatprep.subr.mxu0 0.0
    %1286 = vmatpush1.msra.mxu0 0.0
    %1287 = vmatprep.subr.mxu0 0.0
    %1288 = vmatpush1.msra.mxu0 0.0
    %1289 = vmatprep.subr.mxu0 0.0
    %1290 = vmatpush1.msra.mxu0 0.0
    %1291 = vmatprep.subr.mxu0 0.0
    %1292 = vmatpush1.msra.mxu0 0.0
    %1293 = vmatprep.subr.mxu0 0.0
    %1294 = vmatpush1.msra.mxu0 0.0
    %1295 = vmatprep.subr.mxu0 0.0
    %1296 = vmatpush1.msra.mxu0 0.0
    %1297 = vmatprep.subr.mxu0 0.0
    %1298 = vmatpush1.msra.mxu0 0.0
    %1299 = vmatprep.subr.mxu0 0.0
    %1300 = vmatpush1.msra.mxu0 0.0
    %1301 = vmatprep.subr.mxu0 0.0
    %1302 = vmatpush1.msra.mxu0 0.0
    %1303 = vmatprep.mubr.f32.mxu0 0.0
    %1304 = vmatmul.mubr.f32.gmra.mrb[0].mxu0 %v1234
    %v1305 = vpop.f32.mrb[0].mxu0
    %v1306 = vadd.f32 0.0, %v1305
    %v1307 = vpop.f32.mrb[0].mxu0
    %v1308 = vadd.f32 0.0, %v1307
    %1309 = vdwg.mxu0
    %1310 = vmatprep.subr.mxu0 0.0
    %1311 = vmatpush1.msra.mxu0 %v148
    %1312 = vmatprep.subr.mxu0 0.0
    %1313 = vmatpush1.msra.mxu0 %v151
    %1314 = vmatprep.subr.mxu0 0.0
    %1315 = vmatpush1.msra.mxu0 %v154
    %1316 = vmatprep.subr.mxu0 0.0
    %1317 = vmatpush1.msra.mxu0 %v157
    %1318 = vmatprep.subr.mxu0 0.0
    %1319 = vmatpush1.msra.mxu0 %v160
    %1320 = vmatprep.subr.mxu0 0.0
    %1321 = vmatpush1.msra.mxu0 %v163
    %1322 = vmatprep.subr.mxu0 0.0
    %1323 = vmatpush1.msra.mxu0 %v166
    %1324 = vmatprep.subr.mxu0 0.0
    %1325 = vmatpush1.msra.mxu0 %v169
    %1326 = vmatprep.subr.mxu0 0.0
    %1327 = vmatpush1.msra.mxu0 %v172
    %1328 = vmatprep.subr.mxu0 0.0
    %1329 = vmatpush1.msra.mxu0 %v175
    %1330 = vmatprep.subr.mxu0 0.0
    %1331 = vmatpush1.msra.mxu0 %v178
    %1332 = vmatprep.subr.mxu0 0.0
    %1333 = vmatpush1.msra.mxu0 %v181
    %1334 = vmatprep.subr.mxu0 0.0
    %1335 = vmatpush1.msra.mxu0 %v184
    %1336 = vmatprep.subr.mxu0 0.0
    %1337 = vmatpush1.msra.mxu0 %v187
    %1338 = vmatprep.subr.mxu0 0.0
    %1339 = vmatpush1.msra.mxu0 %v190
    %1340 = vmatprep.subr.mxu0 0.0
    %1341 = vmatpush1.msra.mxu0 %v193
    %1342 = vmatprep.subr.mxu0 0.0
    %1343 = vmatpush1.msra.mxu0 0.0
    %1344 = vmatprep.subr.mxu0 0.0
    %1345 = vmatpush1.msra.mxu0 0.0
    %1346 = vmatprep.subr.mxu0 0.0
    %1347 = vmatpush1.msra.mxu0 0.0
    %1348 = vmatprep.subr.mxu0 0.0
    %1349 = vmatpush1.msra.mxu0 0.0
    %1350 = vmatprep.subr.mxu0 0.0
    %1351 = vmatpush1.msra.mxu0 0.0
    %1352 = vmatprep.subr.mxu0 0.0
    %1353 = vmatpush1.msra.mxu0 0.0
    %1354 = vmatprep.subr.mxu0 0.0
    %1355 = vmatpush1.msra.mxu0 0.0
    %1356 = vmatprep.subr.mxu0 0.0
    %1357 = vmatpush1.msra.mxu0 0.0
    %1358 = vmatprep.subr.mxu0 0.0
    %1359 = vmatpush1.msra.mxu0 0.0
    %1360 = vmatprep.subr.mxu0 0.0
    %1361 = vmatpush1.msra.mxu0 0.0
    %1362 = vmatprep.subr.mxu0 0.0
    %1363 = vmatpush1.msra.mxu0 0.0
    %1364 = vmatprep.subr.mxu0 0.0
    %1365 = vmatpush1.msra.mxu0 0.0
    %1366 = vmatprep.subr.mxu0 0.0
    %1367 = vmatpush1.msra.mxu0 0.0
    %1368 = vmatprep.subr.mxu0 0.0
    %1369 = vmatpush1.msra.mxu0 0.0
    %1370 = vmatprep.subr.mxu0 0.0
    %1371 = vmatpush1.msra.mxu0 0.0
    %1372 = vmatprep.subr.mxu0 0.0
    %1373 = vmatpush1.msra.mxu0 0.0
    %1374 = vmatprep.mubr.f32.mxu0 0.0
    %1375 = vmatmul.mubr.f32.gmra.mrb[0].mxu0 %v1234
    %v1376 = vpop.f32.mrb[0].mxu0
    %v1377 = vadd.f32 0.0, %v1376
    %v1378 = vpop.f32.mrb[0].mxu0
    %1379 = vdwg.mxu0
    %v1380 = vadd.f32 %v1236, %v1306
    %v1381 = vadd.f32 %v1237, %v1308
    %v1382 = vmul.f32 %v1380, 0.5
    %v1383 = vmul.f32 %v1381, 0.5
    %v1384 = vtanh.pop %v1382
    %v1385 = vtanh.pop %v1383
    %v1386 = vmul.f32 %v1384, 0.5
    %v1387 = vmul.f32 %v1385, 0.5
    %v1388 = vadd.f32 %v1386, 0.5
    %v1389 = vadd.f32 %v1387, 0.5
    %v1390 = vadd.f32 %v1377, %v586
    %v1391 = vmul.f32 %v1388, %v1390
    %v1392 = vadd.f32 %v1238, %v1391
    %v1393 = vtanh.pop %v1392
    %v1394 = vsub.f32 %v1234, %v1393
    %v1395 = vmul.f32 %v1389, %v1394
    %v1396 = vadd.f32 %v1393, %v1395
    %1397 = vst [vmem:[#allocation2 + $0x20] sm:$0xff] %v1396
    %v1398 = vld [vmem:[#allocation3 + $0x78] sm:$0xff]
    %v1399 = vld [vmem:[#allocation3 + $0x80] sm:$0xff]
    %v1400 = vld [vmem:[#allocation3 + $0x88] sm:$0xff]
    %1401 = vmatprep.subr.mxu0 %v147
    %1402 = vmatpush1.msra.mxu0 %v146
    %1403 = vmatprep.subr.mxu0 %v150
    %1404 = vmatpush1.msra.mxu0 %v149
    %1405 = vmatprep.subr.mxu0 %v153
    %1406 = vmatpush1.msra.mxu0 %v152
    %1407 = vmatprep.subr.mxu0 %v156
    %1408 = vmatpush1.msra.mxu0 %v155
    %1409 = vmatprep.subr.mxu0 %v159
    %1410 = vmatpush1.msra.mxu0 %v158
    %1411 = vmatprep.subr.mxu0 %v162
    %1412 = vmatpush1.msra.mxu0 %v161
    %1413 = vmatprep.subr.mxu0 %v165
    %1414 = vmatpush1.msra.mxu0 %v164
    %1415 = vmatprep.subr.mxu0 %v168
    %1416 = vmatpush1.msra.mxu0 %v167
    %1417 = vmatprep.subr.mxu0 %v171
    %1418 = vmatpush1.msra.mxu0 %v170
    %1419 = vmatprep.subr.mxu0 %v174
    %1420 = vmatpush1.msra.mxu0 %v173
    %1421 = vmatprep.subr.mxu0 %v177
    %1422 = vmatpush1.msra.mxu0 %v176
    %1423 = vmatprep.subr.mxu0 %v180
    %1424 = vmatpush1.msra.mxu0 %v179
    %1425 = vmatprep.subr.mxu0 %v183
    %1426 = vmatpush1.msra.mxu0 %v182
    %1427 = vmatprep.subr.mxu0 %v186
    %1428 = vmatpush1.msra.mxu0 %v185
    %1429 = vmatprep.subr.mxu0 %v189
    %1430 = vmatpush1.msra.mxu0 %v188
    %1431 = vmatprep.subr.mxu0 %v192
    %1432 = vmatpush1.msra.mxu0 %v191
    %1433 = vmatprep.subr.mxu0 0.0
    %1434 = vmatpush1.msra.mxu0 0.0
    %1435 = vmatprep.subr.mxu0 0.0
    %1436 = vmatpush1.msra.mxu0 0.0
    %1437 = vmatprep.subr.mxu0 0.0
    %1438 = vmatpush1.msra.mxu0 0.0
    %1439 = vmatprep.subr.mxu0 0.0
    %1440 = vmatpush1.msra.mxu0 0.0
    %1441 = vmatprep.subr.mxu0 0.0
    %1442 = vmatpush1.msra.mxu0 0.0
    %1443 = vmatprep.subr.mxu0 0.0
    %1444 = vmatpush1.msra.mxu0 0.0
    %1445 = vmatprep.subr.mxu0 0.0
    %1446 = vmatpush1.msra.mxu0 0.0
    %1447 = vmatprep.subr.mxu0 0.0
    %1448 = vmatpush1.msra.mxu0 0.0
    %1449 = vmatprep.subr.mxu0 0.0
    %1450 = vmatpush1.msra.mxu0 0.0
    %1451 = vmatprep.subr.mxu0 0.0
    %1452 = vmatpush1.msra.mxu0 0.0
    %1453 = vmatprep.subr.mxu0 0.0
    %1454 = vmatpush1.msra.mxu0 0.0
    %1455 = vmatprep.subr.mxu0 0.0
    %1456 = vmatpush1.msra.mxu0 0.0
    %1457 = vmatprep.subr.mxu0 0.0
    %1458 = vmatpush1.msra.mxu0 0.0
    %1459 = vmatprep.subr.mxu0 0.0
    %1460 = vmatpush1.msra.mxu0 0.0
    %1461 = vmatprep.subr.mxu0 0.0
    %1462 = vmatpush1.msra.mxu0 0.0
    %1463 = vmatprep.subr.mxu0 0.0
    %1464 = vmatpush1.msra.mxu0 0.0
    %1465 = vmatprep.mubr.f32.mxu0 0.0
    %1466 = vmatmul.mubr.f32.gmra.mrb[0].mxu0 %v1396
    %v1467 = vpop.f32.mrb[0].mxu0
    %v1468 = vadd.f32 0.0, %v1467
    %v1469 = vpop.f32.mrb[0].mxu0
    %v1470 = vadd.f32 0.0, %v1469
    %1471 = vdwg.mxu0
    %1472 = vmatprep.subr.mxu0 0.0
    %1473 = vmatpush1.msra.mxu0 %v148
    %1474 = vmatprep.subr.mxu0 0.0
    %1475 = vmatpush1.msra.mxu0 %v151
    %1476 = vmatprep.subr.mxu0 0.0
    %1477 = vmatpush1.msra.mxu0 %v154
    %1478 = vmatprep.subr.mxu0 0.0
    %1479 = vmatpush1.msra.mxu0 %v157
    %1480 = vmatprep.subr.mxu0 0.0
    %1481 = vmatpush1.msra.mxu0 %v160
    %1482 = vmatprep.subr.mxu0 0.0
    %1483 = vmatpush1.msra.mxu0 %v163
    %1484 = vmatprep.subr.mxu0 0.0
    %1485 = vmatpush1.msra.mxu0 %v166
    %1486 = vmatprep.subr.mxu0 0.0
    %1487 = vmatpush1.msra.mxu0 %v169
    %1488 = vmatprep.subr.mxu0 0.0
    %1489 = vmatpush1.msra.mxu0 %v172
    %1490 = vmatprep.subr.mxu0 0.0
    %1491 = vmatpush1.msra.mxu0 %v175
    %1492 = vmatprep.subr.mxu0 0.0
    %1493 = vmatpush1.msra.mxu0 %v178
    %1494 = vmatprep.subr.mxu0 0.0
    %1495 = vmatpush1.msra.mxu0 %v181
    %1496 = vmatprep.subr.mxu0 0.0
    %1497 = vmatpush1.msra.mxu0 %v184
    %1498 = vmatprep.subr.mxu0 0.0
    %1499 = vmatpush1.msra.mxu0 %v187
    %1500 = vmatprep.subr.mxu0 0.0
    %1501 = vmatpush1.msra.mxu0 %v190
    %1502 = vmatprep.subr.mxu0 0.0
    %1503 = vmatpush1.msra.mxu0 %v193
    %1504 = vmatprep.subr.mxu0 0.0
    %1505 = vmatpush1.msra.mxu0 0.0
    %1506 = vmatprep.subr.mxu0 0.0
    %1507 = vmatpush1.msra.mxu0 0.0
    %1508 = vmatprep.subr.mxu0 0.0
    %1509 = vmatpush1.msra.mxu0 0.0
    %1510 = vmatprep.subr.mxu0 0.0
    %1511 = vmatpush1.msra.mxu0 0.0
    %1512 = vmatprep.subr.mxu0 0.0
    %1513 = vmatpush1.msra.mxu0 0.0
    %1514 = vmatprep.subr.mxu0 0.0
    %1515 = vmatpush1.msra.mxu0 0.0
    %1516 = vmatprep.subr.mxu0 0.0
    %1517 = vmatpush1.msra.mxu0 0.0
    %1518 = vmatprep.subr.mxu0 0.0
    %1519 = vmatpush1.msra.mxu0 0.0
    %1520 = vmatprep.subr.mxu0 0.0
    %1521 = vmatpush1.msra.mxu0 0.0
    %1522 = vmatprep.subr.mxu0 0.0
    %1523 = vmatpush1.msra.mxu0 0.0
    %1524 = vmatprep.subr.mxu0 0.0
    %1525 = vmatpush1.msra.mxu0 0.0
    %1526 = vmatprep.subr.mxu0 0.0
    %1527 = vmatpush1.msra.mxu0 0.0
    %1528 = vmatprep.subr.mxu0 0.0
    %1529 = vmatpush1.msra.mxu0 0.0
    %1530 = vmatprep.subr.mxu0 0.0
    %1531 = vmatpush1.msra.mxu0 0.0
    %1532 = vmatprep.subr.mxu0 0.0
    %1533 = vmatpush1.msra.mxu0 0.0
    %1534 = vmatprep.subr.mxu0 0.0
    %1535 = vmatpush1.msra.mxu0 0.0
    %1536 = vmatprep.mubr.f32.mxu0 0.0
    %1537 = vmatmul.mubr.f32.gmra.mrb[0].mxu0 %v1396
    %v1538 = vpop.f32.mrb[0].mxu0
    %v1539 = vadd.f32 0.0, %v1538
    %v1540 = vpop.f32.mrb[0].mxu0
    %1541 = vdwg.mxu0
    %v1542 = vadd.f32 %v1398, %v1468
    %v1543 = vadd.f32 %v1399, %v1470
    %v1544 = vmul.f32 %v1542, 0.5
    %v1545 = vmul.f32 %v1543, 0.5
    %v1546 = vtanh.pop %v1544
    %v1547 = vtanh.pop %v1545
    %v1548 = vmul.f32 %v1546, 0.5
    %v1549 = vmul.f32 %v1547, 0.5
    %v1550 = vadd.f32 %v1548, 0.5
    %v1551 = vadd.f32 %v1549, 0.5
    %v1552 = vadd.f32 %v1539, %v586
    %v1553 = vmul.f32 %v1550, %v1552
    %v1554 = vadd.f32 %v1400, %v1553
    %v1555 = vtanh.pop %v1554
    %v1556 = vsub.f32 %v1396, %v1555
    %v1557 = vmul.f32 %v1551, %v1556
    %v1558 = vadd.f32 %v1555, %v1557
    %1559 = vst [vmem:[#allocation2 + $0x28] sm:$0xff] %v1558
    %v1560 = vld [vmem:[#allocation3 + $0x90] sm:$0xff]
    %v1561 = vld [vmem:[#allocation3 + $0x98] sm:$0xff]
    %v1562 = vld [vmem:[#allocation3 + $0xa0] sm:$0xff]
    %1563 = vmatprep.subr.mxu0 %v147
    %1564 = vmatpush1.msra.mxu0 %v146
    %1565 = vmatprep.subr.mxu0 %v150
    %1566 = vmatpush1.msra.mxu0 %v149
    %1567 = vmatprep.subr.mxu0 %v153
    %1568 = vmatpush1.msra.mxu0 %v152
    %1569 = vmatprep.subr.mxu0 %v156
    %1570 = vmatpush1.msra.mxu0 %v155
    %1571 = vmatprep.subr.mxu0 %v159
    %1572 = vmatpush1.msra.mxu0 %v158
    %1573 = vmatprep.subr.mxu0 %v162
    %1574 = vmatpush1.msra.mxu0 %v161
    %1575 = vmatprep.subr.mxu0 %v165
    %1576 = vmatpush1.msra.mxu0 %v164
    %1577 = vmatprep.subr.mxu0 %v168
    %1578 = vmatpush1.msra.mxu0 %v167
    %1579 = vmatprep.subr.mxu0 %v171
    %1580 = vmatpush1.msra.mxu0 %v170
    %1581 = vmatprep.subr.mxu0 %v174
    %1582 = vmatpush1.msra.mxu0 %v173
    %1583 = vmatprep.subr.mxu0 %v177
    %1584 = vmatpush1.msra.mxu0 %v176
    %1585 = vmatprep.subr.mxu0 %v180
    %1586 = vmatpush1.msra.mxu0 %v179
    %1587 = vmatprep.subr.mxu0 %v183
    %1588 = vmatpush1.msra.mxu0 %v182
    %1589 = vmatprep.subr.mxu0 %v186
    %1590 = vmatpush1.msra.mxu0 %v185
    %1591 = vmatprep.subr.mxu0 %v189
    %1592 = vmatpush1.msra.mxu0 %v188
    %1593 = vmatprep.subr.mxu0 %v192
    %1594 = vmatpush1.msra.mxu0 %v191
    %1595 = vmatprep.subr.mxu0 0.0
    %1596 = vmatpush1.msra.mxu0 0.0
    %1597 = vmatprep.subr.mxu0 0.0
    %1598 = vmatpush1.msra.mxu0 0.0
    %1599 = vmatprep.subr.mxu0 0.0
    %1600 = vmatpush1.msra.mxu0 0.0
    %1601 = vmatprep.subr.mxu0 0.0
    %1602 = vmatpush1.msra.mxu0 0.0
    %1603 = vmatprep.subr.mxu0 0.0
    %1604 = vmatpush1.msra.mxu0 0.0
    %1605 = vmatprep.subr.mxu0 0.0
    %1606 = vmatpush1.msra.mxu0 0.0
    %1607 = vmatprep.subr.mxu0 0.0
    %1608 = vmatpush1.msra.mxu0 0.0
    %1609 = vmatprep.subr.mxu0 0.0
    %1610 = vmatpush1.msra.mxu0 0.0
    %1611 = vmatprep.subr.mxu0 0.0
    %1612 = vmatpush1.msra.mxu0 0.0
    %1613 = vmatprep.subr.mxu0 0.0
    %1614 = vmatpush1.msra.mxu0 0.0
    %1615 = vmatprep.subr.mxu0 0.0
    %1616 = vmatpush1.msra.mxu0 0.0
    %1617 = vmatprep.subr.mxu0 0.0
    %1618 = vmatpush1.msra.mxu0 0.0
    %1619 = vmatprep.subr.mxu0 0.0
    %1620 = vmatpush1.msra.mxu0 0.0
    %1621 = vmatprep.subr.mxu0 0.0
    %1622 = vmatpush1.msra.mxu0 0.0
    %1623 = vmatprep.subr.mxu0 0.0
    %1624 = vmatpush1.msra.mxu0 0.0
    %1625 = vmatprep.subr.mxu0 0.0
    %1626 = vmatpush1.msra.mxu0 0.0
    %1627 = vmatprep.mubr.f32.mxu0 0.0
    %1628 = vmatmul.mubr.f32.gmra.mrb[0].mxu0 %v1558
    %v1629 = vpop.f32.mrb[0].mxu0
    %v1630 = vadd.f32 0.0, %v1629
    %v1631 = vpop.f32.mrb[0].mxu0
    %v1632 = vadd.f32 0.0, %v1631
    %1633 = vdwg.mxu0
    %1634 = vmatprep.subr.mxu0 0.0
    %1635 = vmatpush1.msra.mxu0 %v148
    %1636 = vmatprep.subr.mxu0 0.0
    %1637 = vmatpush1.msra.mxu0 %v151
    %1638 = vmatprep.subr.mxu0 0.0
    %1639 = vmatpush1.msra.mxu0 %v154
    %1640 = vmatprep.subr.mxu0 0.0
    %1641 = vmatpush1.msra.mxu0 %v157
    %1642 = vmatprep.subr.mxu0 0.0
    %1643 = vmatpush1.msra.mxu0 %v160
    %1644 = vmatprep.subr.mxu0 0.0
    %1645 = vmatpush1.msra.mxu0 %v163
    %1646 = vmatprep.subr.mxu0 0.0
    %1647 = vmatpush1.msra.mxu0 %v166
    %1648 = vmatprep.subr.mxu0 0.0
    %1649 = vmatpush1.msra.mxu0 %v169
    %1650 = vmatprep.subr.mxu0 0.0
    %1651 = vmatpush1.msra.mxu0 %v172
    %1652 = vmatprep.subr.mxu0 0.0
    %1653 = vmatpush1.msra.mxu0 %v175
    %1654 = vmatprep.subr.mxu0 0.0
    %1655 = vmatpush1.msra.mxu0 %v178
    %1656 = vmatprep.subr.mxu0 0.0
    %1657 = vmatpush1.msra.mxu0 %v181
    %1658 = vmatprep.subr.mxu0 0.0
    %1659 = vmatpush1.msra.mxu0 %v184
    %1660 = vmatprep.subr.mxu0 0.0
    %1661 = vmatpush1.msra.mxu0 %v187
    %1662 = vmatprep.subr.mxu0 0.0
    %1663 = vmatpush1.msra.mxu0 %v190
    %1664 = vmatprep.subr.mxu0 0.0
    %1665 = vmatpush1.msra.mxu0 %v193
    %1666 = vmatprep.subr.mxu0 0.0
    %1667 = vmatpush1.msra.mxu0 0.0
    %1668 = vmatprep.subr.mxu0 0.0
    %1669 = vmatpush1.msra.mxu0 0.0
    %1670 = vmatprep.subr.mxu0 0.0
    %1671 = vmatpush1.msra.mxu0 0.0
    %1672 = vmatprep.subr.mxu0 0.0
    %1673 = vmatpush1.msra.mxu0 0.0
    %1674 = vmatprep.subr.mxu0 0.0
    %1675 = vmatpush1.msra.mxu0 0.0
    %1676 = vmatprep.subr.mxu0 0.0
    %1677 = vmatpush1.msra.mxu0 0.0
    %1678 = vmatprep.subr.mxu0 0.0
    %1679 = vmatpush1.msra.mxu0 0.0
    %1680 = vmatprep.subr.mxu0 0.0
    %1681 = vmatpush1.msra.mxu0 0.0
    %1682 = vmatprep.subr.mxu0 0.0
    %1683 = vmatpush1.msra.mxu0 0.0
    %1684 = vmatprep.subr.mxu0 0.0
    %1685 = vmatpush1.msra.mxu0 0.0
    %1686 = vmatprep.subr.mxu0 0.0
    %1687 = vmatpush1.msra.mxu0 0.0
    %1688 = vmatprep.subr.mxu0 0.0
    %1689 = vmatpush1.msra.mxu0 0.0
    %1690 = vmatprep.subr.mxu0 0.0
    %1691 = vmatpush1.msra.mxu0 0.0
    %1692 = vmatprep.subr.mxu0 0.0
    %1693 = vmatpush1.msra.mxu0 0.0
    %1694 = vmatprep.subr.mxu0 0.0
    %1695 = vmatpush1.msra.mxu0 0.0
    %1696 = vmatprep.subr.mxu0 0.0
    %1697 = vmatpush1.msra.mxu0 0.0
    %1698 = vmatprep.mubr.f32.mxu0 0.0
    %1699 = vmatmul.mubr.f32.gmra.mrb[0].mxu0 %v1558
    %v1700 = vpop.f32.mrb[0].mxu0
    %v1701 = vadd.f32 0.0, %v1700
    %v1702 = vpop.f32.mrb[0].mxu0
    %1703 = vdwg.mxu0
    %v1704 = vadd.f32 %v1560, %v1630
    %v1705 = vadd.f32 %v1561, %v1632
    %v1706 = vmul.f32 %v1704, 0.5
    %v1707 = vmul.f32 %v1705, 0.5
    %v1708 = vtanh.pop %v1706
    %v1709 = vtanh.pop %v1707
    %v1710 = vmul.f32 %v1708, 0.5
    %v1711 = vmul.f32 %v1709, 0.5
    %v1712 = vadd.f32 %v1710, 0.5
    %v1713 = vadd.f32 %v1711, 0.5
    %v1714 = vadd.f32 %v1701, %v586
    %v1715 = vmul.f32 %v1712, %v1714
    %v1716 = vadd.f32 %v1562, %v1715
    %v1717 = vtanh.pop %v1716
    %v1718 = vsub.f32 %v1558, %v1717
    %v1719 = vmul.f32 %v1713, %v1718
    %v1720 = vadd.f32 %v1717, %v1719
    %1721 = vst [vmem:[#allocation2 + $0x30] sm:$0xff] %v1720
    %v1722 = vld [vmem:[#allocation3 + $0xa8] sm:$0xff]
    %v1723 = vld [vmem:[#allocation3 + $0xb0] sm:$0xff]
    %v1724 = vld [vmem:[#allocation3 + $0xb8] sm:$0xff]
    %1725 = vmatprep.subr.mxu0 %v147
    %1726 = vmatpush1.msra.mxu0 %v146
    %1727 = vmatprep.subr.mxu0 %v150
    %1728 = vmatpush1.msra.mxu0 %v149
    %1729 = vmatprep.subr.mxu0 %v153
    %1730 = vmatpush1.msra.mxu0 %v152
    %1731 = vmatprep.subr.mxu0 %v156
    %1732 = vmatpush1.msra.mxu0 %v155
    %1733 = vmatprep.subr.mxu0 %v159
    %1734 = vmatpush1.msra.mxu0 %v158
    %1735 = vmatprep.subr.mxu0 %v162
    %1736 = vmatpush1.msra.mxu0 %v161
    %1737 = vmatprep.subr.mxu0 %v165
    %1738 = vmatpush1.msra.mxu0 %v164
    %1739 = vmatprep.subr.mxu0 %v168
    %1740 = vmatpush1.msra.mxu0 %v167
    %1741 = vmatprep.subr.mxu0 %v171
    %1742 = vmatpush1.msra.mxu0 %v170
    %1743 = vmatprep.subr.mxu0 %v174
    %1744 = vmatpush1.msra.mxu0 %v173
    %1745 = vmatprep.subr.mxu0 %v177
    %1746 = vmatpush1.msra.mxu0 %v176
    %1747 = vmatprep.subr.mxu0 %v180
    %1748 = vmatpush1.msra.mxu0 %v179
    %1749 = vmatprep.subr.mxu0 %v183
    %1750 = vmatpush1.msra.mxu0 %v182
    %1751 = vmatprep.subr.mxu0 %v186
    %1752 = vmatpush1.msra.mxu0 %v185
    %1753 = vmatprep.subr.mxu0 %v189
    %1754 = vmatpush1.msra.mxu0 %v188
    %1755 = vmatprep.subr.mxu0 %v192
    %1756 = vmatpush1.msra.mxu0 %v191
    %1757 = vmatprep.subr.mxu0 0.0
    %1758 = vmatpush1.msra.mxu0 0.0
    %1759 = vmatprep.subr.mxu0 0.0
    %1760 = vmatpush1.msra.mxu0 0.0
    %1761 = vmatprep.subr.mxu0 0.0
    %1762 = vmatpush1.msra.mxu0 0.0
    %1763 = vmatprep.subr.mxu0 0.0
    %1764 = vmatpush1.msra.mxu0 0.0
    %1765 = vmatprep.subr.mxu0 0.0
    %1766 = vmatpush1.msra.mxu0 0.0
    %1767 = vmatprep.subr.mxu0 0.0
    %1768 = vmatpush1.msra.mxu0 0.0
    %1769 = vmatprep.subr.mxu0 0.0
    %1770 = vmatpush1.msra.mxu0 0.0
    %1771 = vmatprep.subr.mxu0 0.0
    %1772 = vmatpush1.msra.mxu0 0.0
    %1773 = vmatprep.subr.mxu0 0.0
    %1774 = vmatpush1.msra.mxu0 0.0
    %1775 = vmatprep.subr.mxu0 0.0
    %1776 = vmatpush1.msra.mxu0 0.0
    %1777 = vmatprep.subr.mxu0 0.0
    %1778 = vmatpush1.msra.mxu0 0.0
    %1779 = vmatprep.subr.mxu0 0.0
    %1780 = vmatpush1.msra.mxu0 0.0
    %1781 = vmatprep.subr.mxu0 0.0
    %1782 = vmatpush1.msra.mxu0 0.0
    %1783 = vmatprep.subr.mxu0 0.0
    %1784 = vmatpush1.msra.mxu0 0.0
    %1785 = vmatprep.subr.mxu0 0.0
    %1786 = vmatpush1.msra.mxu0 0.0
    %1787 = vmatprep.subr.mxu0 0.0
    %1788 = vmatpush1.msra.mxu0 0.0
    %1789 = vmatprep.mubr.f32.mxu0 0.0
    %1790 = vmatmul.mubr.f32.gmra.mrb[0].mxu0 %v1720
    %v1791 = vpop.f32.mrb[0].mxu0
    %v1792 = vadd.f32 0.0, %v1791
    %v1793 = vpop.f32.mrb[0].mxu0
    %v1794 = vadd.f32 0.0, %v1793
    %1795 = vdwg.mxu0
    %1796 = vmatprep.subr.mxu0 0.0
    %1797 = vmatpush1.msra.mxu0 %v148
    %1798 = vmatprep.subr.mxu0 0.0
    %1799 = vmatpush1.msra.mxu0 %v151
    %1800 = vmatprep.subr.mxu0 0.0
    %1801 = vmatpush1.msra.mxu0 %v154
    %1802 = vmatprep.subr.mxu0 0.0
    %1803 = vmatpush1.msra.mxu0 %v157
    %1804 = vmatprep.subr.mxu0 0.0
    %1805 = vmatpush1.msra.mxu0 %v160
    %1806 = vmatprep.subr.mxu0 0.0
    %1807 = vmatpush1.msra.mxu0 %v163
    %1808 = vmatprep.subr.mxu0 0.0
    %1809 = vmatpush1.msra.mxu0 %v166
    %1810 = vmatprep.subr.mxu0 0.0
    %1811 = vmatpush1.msra.mxu0 %v169
    %1812 = vmatprep.subr.mxu0 0.0
    %1813 = vmatpush1.msra.mxu0 %v172
    %1814 = vmatprep.subr.mxu0 0.0
    %1815 = vmatpush1.msra.mxu0 %v175
    %1816 = vmatprep.subr.mxu0 0.0
    %1817 = vmatpush1.msra.mxu0 %v178
    %1818 = vmatprep.subr.mxu0 0.0
    %1819 = vmatpush1.msra.mxu0 %v181
    %1820 = vmatprep.subr.mxu0 0.0
    %1821 = vmatpush1.msra.mxu0 %v184
    %1822 = vmatprep.subr.mxu0 0.0
    %1823 = vmatpush1.msra.mxu0 %v187
    %1824 = vmatprep.subr.mxu0 0.0
    %1825 = vmatpush1.msra.mxu0 %v190
    %1826 = vmatprep.subr.mxu0 0.0
    %1827 = vmatpush1.msra.mxu0 %v193
    %1828 = vmatprep.subr.mxu0 0.0
    %1829 = vmatpush1.msra.mxu0 0.0
    %1830 = vmatprep.subr.mxu0 0.0
    %1831 = vmatpush1.msra.mxu0 0.0
    %1832 = vmatprep.subr.mxu0 0.0
    %1833 = vmatpush1.msra.mxu0 0.0
    %1834 = vmatprep.subr.mxu0 0.0
    %1835 = vmatpush1.msra.mxu0 0.0
    %1836 = vmatprep.subr.mxu0 0.0
    %1837 = vmatpush1.msra.mxu0 0.0
    %1838 = vmatprep.subr.mxu0 0.0
    %1839 = vmatpush1.msra.mxu0 0.0
    %1840 = vmatprep.subr.mxu0 0.0
    %1841 = vmatpush1.msra.mxu0 0.0
    %1842 = vmatprep.subr.mxu0 0.0
    %1843 = vmatpush1.msra.mxu0 0.0
    %1844 = vmatprep.subr.mxu0 0.0
    %1845 = vmatpush1.msra.mxu0 0.0
    %1846 = vmatprep.subr.mxu0 0.0
    %1847 = vmatpush1.msra.mxu0 0.0
    %1848 = vmatprep.subr.mxu0 0.0
    %1849 = vmatpush1.msra.mxu0 0.0
    %1850 = vmatprep.subr.mxu0 0.0
    %1851 = vmatpush1.msra.mxu0 0.0
    %1852 = vmatprep.subr.mxu0 0.0
    %1853 = vmatpush1.msra.mxu0 0.0
    %1854 = vmatprep.subr.mxu0 0.0
    %1855 = vmatpush1.msra.mxu0 0.0
    %1856 = vmatprep.subr.mxu0 0.0
    %1857 = vmatpush1.msra.mxu0 0.0
    %1858 = vmatprep.subr.mxu0 0.0
    %1859 = vmatpush1.msra.mxu0 0.0
    %1860 = vmatprep.mubr.f32.mxu0 0.0
    %1861 = vmatmul.mubr.f32.gmra.mrb[0].mxu0 %v1720
    %v1862 = vpop.f32.mrb[0].mxu0
    %v1863 = vadd.f32 0.0, %v1862
    %v1864 = vpop.f32.mrb[0].mxu0
    %1865 = vdwg.mxu0
    %v1866 = vadd.f32 %v1722, %v1792
    %v1867 = vadd.f32 %v1723, %v1794
    %v1868 = vmul.f32 %v1866, 0.5
    %v1869 = vmul.f32 %v1867, 0.5
    %v1870 = vtanh.pop %v1868
    %v1871 = vtanh.pop %v1869
    %v1872 = vmul.f32 %v1870, 0.5
    %v1873 = vmul.f32 %v1871, 0.5
    %v1874 = vadd.f32 %v1872, 0.5
    %v1875 = vadd.f32 %v1873, 0.5
    %v1876 = vadd.f32 %v1863, %v586
    %v1877 = vmul.f32 %v1874, %v1876
    %v1878 = vadd.f32 %v1724, %v1877
    %v1879 = vtanh.pop %v1878
    %v1880 = vsub.f32 %v1720, %v1879
    %v1881 = vmul.f32 %v1875, %v1880
    %v1882 = vadd.f32 %v1879, %v1881
    %1883 = vst [vmem:[#allocation2 + $0x38] sm:$0xff] %v1882
    %v1884 = vld [vmem:[#allocation3 + $0xc0] sm:$0xff]
    %v1885 = vld [vmem:[#allocation3 + $0xc8] sm:$0xff]
    %v1886 = vld [vmem:[#allocation3 + $0xd0] sm:$0xff]
    %1887 = vmatprep.subr.mxu0 %v147
    %1888 = vmatpush1.msra.mxu0 %v146
    %1889 = vmatprep.subr.mxu0 %v150
    %1890 = vmatpush1.msra.mxu0 %v149
    %1891 = vmatprep.subr.mxu0 %v153
    %1892 = vmatpush1.msra.mxu0 %v152
    %1893 = vmatprep.subr.mxu0 %v156
    %1894 = vmatpush1.msra.mxu0 %v155
    %1895 = vmatprep.subr.mxu0 %v159
    %1896 = vmatpush1.msra.mxu0 %v158
    %1897 = vmatprep.subr.mxu0 %v162
    %1898 = vmatpush1.msra.mxu0 %v161
    %1899 = vmatprep.subr.mxu0 %v165
    %1900 = vmatpush1.msra.mxu0 %v164
    %1901 = vmatprep.subr.mxu0 %v168
    %1902 = vmatpush1.msra.mxu0 %v167
    %1903 = vmatprep.subr.mxu0 %v171
    %1904 = vmatpush1.msra.mxu0 %v170
    %1905 = vmatprep.subr.mxu0 %v174
    %1906 = vmatpush1.msra.mxu0 %v173
    %1907 = vmatprep.subr.mxu0 %v177
    %1908 = vmatpush1.msra.mxu0 %v176
    %1909 = vmatprep.subr.mxu0 %v180
    %1910 = vmatpush1.msra.mxu0 %v179
    %1911 = vmatprep.subr.mxu0 %v183
    %1912 = vmatpush1.msra.mxu0 %v182
    %1913 = vmatprep.subr.mxu0 %v186
    %1914 = vmatpush1.msra.mxu0 %v185
    %1915 = vmatprep.subr.mxu0 %v189
    %1916 = vmatpush1.msra.mxu0 %v188
    %1917 = vmatprep.subr.mxu0 %v192
    %1918 = vmatpush1.msra.mxu0 %v191
    %1919 = vmatprep.subr.mxu0 0.0
    %1920 = vmatpush1.msra.mxu0 0.0
    %1921 = vmatprep.subr.mxu0 0.0
    %1922 = vmatpush1.msra.mxu0 0.0
    %1923 = vmatprep.subr.mxu0 0.0
    %1924 = vmatpush1.msra.mxu0 0.0
    %1925 = vmatprep.subr.mxu0 0.0
    %1926 = vmatpush1.msra.mxu0 0.0
    %1927 = vmatprep.subr.mxu0 0.0
    %1928 = vmatpush1.msra.mxu0 0.0
    %1929 = vmatprep.subr.mxu0 0.0
    %1930 = vmatpush1.msra.mxu0 0.0
    %1931 = vmatprep.subr.mxu0 0.0
    %1932 = vmatpush1.msra.mxu0 0.0
    %1933 = vmatprep.subr.mxu0 0.0
    %1934 = vmatpush1.msra.mxu0 0.0
    %1935 = vmatprep.subr.mxu0 0.0
    %1936 = vmatpush1.msra.mxu0 0.0
    %1937 = vmatprep.subr.mxu0 0.0
    %1938 = vmatpush1.msra.mxu0 0.0
    %1939 = vmatprep.subr.mxu0 0.0
    %1940 = vmatpush1.msra.mxu0 0.0
    %1941 = vmatprep.subr.mxu0 0.0
    %1942 = vmatpush1.msra.mxu0 0.0
    %1943 = vmatprep.subr.mxu0 0.0
    %1944 = vmatpush1.msra.mxu0 0.0
    %1945 = vmatprep.subr.mxu0 0.0
    %1946 = vmatpush1.msra.mxu0 0.0
    %1947 = vmatprep.subr.mxu0 0.0
    %1948 = vmatpush1.msra.mxu0 0.0
    %1949 = vmatprep.subr.mxu0 0.0
    %1950 = vmatpush1.msra.mxu0 0.0
    %1951 = vmatprep.mubr.f32.mxu0 0.0
    %1952 = vmatmul.mubr.f32.gmra.mrb[0].mxu0 %v1882
    %v1953 = vpop.f32.mrb[0].mxu0
    %v1954 = vadd.f32 0.0, %v1953
    %v1955 = vpop.f32.mrb[0].mxu0
    %v1956 = vadd.f32 0.0, %v1955
    %1957 = vdwg.mxu0
    %1958 = vmatprep.subr.mxu0 0.0
    %1959 = vmatpush1.msra.mxu0 %v148
    %1960 = vmatprep.subr.mxu0 0.0
    %1961 = vmatpush1.msra.mxu0 %v151
    %1962 = vmatprep.subr.mxu0 0.0
    %1963 = vmatpush1.msra.mxu0 %v154
    %1964 = vmatprep.subr.mxu0 0.0
    %1965 = vmatpush1.msra.mxu0 %v157
    %1966 = vmatprep.subr.mxu0 0.0
    %1967 = vmatpush1.msra.mxu0 %v160
    %1968 = vmatprep.subr.mxu0 0.0
    %1969 = vmatpush1.msra.mxu0 %v163
    %1970 = vmatprep.subr.mxu0 0.0
    %1971 = vmatpush1.msra.mxu0 %v166
    %1972 = vmatprep.subr.mxu0 0.0
    %1973 = vmatpush1.msra.mxu0 %v169
    %1974 = vmatprep.subr.mxu0 0.0
    %1975 = vmatpush1.msra.mxu0 %v172
    %1976 = vmatprep.subr.mxu0 0.0
    %1977 = vmatpush1.msra.mxu0 %v175
    %1978 = vmatprep.subr.mxu0 0.0
    %1979 = vmatpush1.msra.mxu0 %v178
    %1980 = vmatprep.subr.mxu0 0.0
    %1981 = vmatpush1.msra.mxu0 %v181
    %1982 = vmatprep.subr.mxu0 0.0
    %1983 = vmatpush1.msra.mxu0 %v184
    %1984 = vmatprep.subr.mxu0 0.0
    %1985 = vmatpush1.msra.mxu0 %v187
    %1986 = vmatprep.subr.mxu0 0.0
    %1987 = vmatpush1.msra.mxu0 %v190
    %1988 = vmatprep.subr.mxu0 0.0
    %1989 = vmatpush1.msra.mxu0 %v193
    %1990 = vmatprep.subr.mxu0 0.0
    %1991 = vmatpush1.msra.mxu0 0.0
    %1992 = vmatprep.subr.mxu0 0.0
    %1993 = vmatpush1.msra.mxu0 0.0
    %1994 = vmatprep.subr.mxu0 0.0
    %1995 = vmatpush1.msra.mxu0 0.0
    %1996 = vmatprep.subr.mxu0 0.0
    %1997 = vmatpush1.msra.mxu0 0.0
    %1998 = vmatprep.subr.mxu0 0.0
    %1999 = vmatpush1.msra.mxu0 0.0
    %2000 = vmatprep.subr.mxu0 0.0
    %2001 = vmatpush1.msra.mxu0 0.0
    %2002 = vmatprep.subr.mxu0 0.0
    %2003 = vmatpush1.msra.mxu0 0.0
    %2004 = vmatprep.subr.mxu0 0.0
    %2005 = vmatpush1.msra.mxu0 0.0
    %2006 = vmatprep.subr.mxu0 0.0
    %2007 = vmatpush1.msra.mxu0 0.0
    %2008 = vmatprep.subr.mxu0 0.0
    %2009 = vmatpush1.msra.mxu0 0.0
    %2010 = vmatprep.subr.mxu0 0.0
    %2011 = vmatpush1.msra.mxu0 0.0
    %2012 = vmatprep.subr.mxu0 0.0
    %2013 = vmatpush1.msra.mxu0 0.0
    %2014 = vmatprep.subr.mxu0 0.0
    %2015 = vmatpush1.msra.mxu0 0.0
    %2016 = vmatprep.subr.mxu0 0.0
    %2017 = vmatpush1.msra.mxu0 0.0
    %2018 = vmatprep.subr.mxu0 0.0
    %2019 = vmatpush1.msra.mxu0 0.0
    %2020 = vmatprep.subr.mxu0 0.0
    %2021 = vmatpush1.msra.mxu0 0.0
    %2022 = vmatprep.mubr.f32.mxu0 0.0
    %2023 = vmatmul.mubr.f32.gmra.mrb[0].mxu0 %v1882
    %v2024 = vpop.f32.mrb[0].mxu0
    %v2025 = vadd.f32 0.0, %v2024
    %v2026 = vpop.f32.mrb[0].mxu0
    %2027 = vdwg.mxu0
    %v2028 = vadd.f32 %v1884, %v1954
    %v2029 = vadd.f32 %v1885, %v1956
    %v2030 = vmul.f32 %v2028, 0.5
    %v2031 = vmul.f32 %v2029, 0.5
    %v2032 = vtanh.pop %v2030
    %v2033 = vtanh.pop %v2031
    %v2034 = vmul.f32 %v2032, 0.5
    %v2035 = vmul.f32 %v2033, 0.5
    %v2036 = vadd.f32 %v2034, 0.5
    %v2037 = vadd.f32 %v2035, 0.5
    %v2038 = vadd.f32 %v2025, %v586
    %v2039 = vmul.f32 %v2036, %v2038
    %v2040 = vadd.f32 %v1886, %v2039
    %v2041 = vtanh.pop %v2040
    %v2042 = vsub.f32 %v1882, %v2041
    %v2043 = vmul.f32 %v2037, %v2042
    %v2044 = vadd.f32 %v2041, %v2043
    %2045 = vst [vmem:[#allocation2 + $0x40] sm:$0xff] %v2044
    %v2046 = vld [vmem:[#allocation3 + $0xd8] sm:$0xff]
    %v2047 = vld [vmem:[#allocation3 + $0xe0] sm:$0xff]
    %v2048 = vld [vmem:[#allocation3 + $0xe8] sm:$0xff]
    %2049 = vmatprep.subr.mxu0 %v147
    %2050 = vmatpush1.msra.mxu0 %v146
    %2051 = vmatprep.subr.mxu0 %v150
    %2052 = vmatpush1.msra.mxu0 %v149
    %2053 = vmatprep.subr.mxu0 %v153
    %2054 = vmatpush1.msra.mxu0 %v152
    %2055 = vmatprep.subr.mxu0 %v156
    %2056 = vmatpush1.msra.mxu0 %v155
    %2057 = vmatprep.subr.mxu0 %v159
    %2058 = vmatpush1.msra.mxu0 %v158
    %2059 = vmatprep.subr.mxu0 %v162
    %2060 = vmatpush1.msra.mxu0 %v161
    %2061 = vmatprep.subr.mxu0 %v165
    %2062 = vmatpush1.msra.mxu0 %v164
    %2063 = vmatprep.subr.mxu0 %v168
    %2064 = vmatpush1.msra.mxu0 %v167
    %2065 = vmatprep.subr.mxu0 %v171
    %2066 = vmatpush1.msra.mxu0 %v170
    %2067 = vmatprep.subr.mxu0 %v174
    %2068 = vmatpush1.msra.mxu0 %v173
    %2069 = vmatprep.subr.mxu0 %v177
    %2070 = vmatpush1.msra.mxu0 %v176
    %2071 = vmatprep.subr.mxu0 %v180
    %2072 = vmatpush1.msra.mxu0 %v179
    %2073 = vmatprep.subr.mxu0 %v183
    %2074 = vmatpush1.msra.mxu0 %v182
    %2075 = vmatprep.subr.mxu0 %v186
    %2076 = vmatpush1.msra.mxu0 %v185
    %2077 = vmatprep.subr.mxu0 %v189
    %2078 = vmatpush1.msra.mxu0 %v188
    %2079 = vmatprep.subr.mxu0 %v192
    %2080 = vmatpush1.msra.mxu0 %v191
    %2081 = vmatprep.subr.mxu0 0.0
    %2082 = vmatpush1.msra.mxu0 0.0
    %2083 = vmatprep.subr.mxu0 0.0
    %2084 = vmatpush1.msra.mxu0 0.0
    %2085 = vmatprep.subr.mxu0 0.0
    %2086 = vmatpush1.msra.mxu0 0.0
    %2087 = vmatprep.subr.mxu0 0.0
    %2088 = vmatpush1.msra.mxu0 0.0
    %2089 = vmatprep.subr.mxu0 0.0
    %2090 = vmatpush1.msra.mxu0 0.0
    %2091 = vmatprep.subr.mxu0 0.0
    %2092 = vmatpush1.msra.mxu0 0.0
    %2093 = vmatprep.subr.mxu0 0.0
    %2094 = vmatpush1.msra.mxu0 0.0
    %2095 = vmatprep.subr.mxu0 0.0
    %2096 = vmatpush1.msra.mxu0 0.0
    %2097 = vmatprep.subr.mxu0 0.0
    %2098 = vmatpush1.msra.mxu0 0.0
    %2099 = vmatprep.subr.mxu0 0.0
    %2100 = vmatpush1.msra.mxu0 0.0
    %2101 = vmatprep.subr.mxu0 0.0
    %2102 = vmatpush1.msra.mxu0 0.0
    %2103 = vmatprep.subr.mxu0 0.0
    %2104 = vmatpush1.msra.mxu0 0.0
    %2105 = vmatprep.subr.mxu0 0.0
    %2106 = vmatpush1.msra.mxu0 0.0
    %2107 = vmatprep.subr.mxu0 0.0
    %2108 = vmatpush1.msra.mxu0 0.0
    %2109 = vmatprep.subr.mxu0 0.0
    %2110 = vmatpush1.msra.mxu0 0.0
    %2111 = vmatprep.subr.mxu0 0.0
    %2112 = vmatpush1.msra.mxu0 0.0
    %2113 = vmatprep.mubr.f32.mxu0 0.0
    %2114 = vmatmul.mubr.f32.gmra.mrb[0].mxu0 %v2044
    %v2115 = vpop.f32.mrb[0].mxu0
    %v2116 = vadd.f32 0.0, %v2115
    %v2117 = vpop.f32.mrb[0].mxu0
    %v2118 = vadd.f32 0.0, %v2117
    %2119 = vdwg.mxu0
    %2120 = vmatprep.subr.mxu0 0.0
    %2121 = vmatpush1.msra.mxu0 %v148
    %2122 = vmatprep.subr.mxu0 0.0
    %2123 = vmatpush1.msra.mxu0 %v151
    %2124 = vmatprep.subr.mxu0 0.0
    %2125 = vmatpush1.msra.mxu0 %v154
    %2126 = vmatprep.subr.mxu0 0.0
    %2127 = vmatpush1.msra.mxu0 %v157
    %2128 = vmatprep.subr.mxu0 0.0
    %2129 = vmatpush1.msra.mxu0 %v160
    %2130 = vmatprep.subr.mxu0 0.0
    %2131 = vmatpush1.msra.mxu0 %v163
    %2132 = vmatprep.subr.mxu0 0.0
    %2133 = vmatpush1.msra.mxu0 %v166
    %2134 = vmatprep.subr.mxu0 0.0
    %2135 = vmatpush1.msra.mxu0 %v169
    %2136 = vmatprep.subr.mxu0 0.0
    %2137 = vmatpush1.msra.mxu0 %v172
    %2138 = vmatprep.subr.mxu0 0.0
    %2139 = vmatpush1.msra.mxu0 %v175
    %2140 = vmatprep.subr.mxu0 0.0
    %2141 = vmatpush1.msra.mxu0 %v178
    %2142 = vmatprep.subr.mxu0 0.0
    %2143 = vmatpush1.msra.mxu0 %v181
    %2144 = vmatprep.subr.mxu0 0.0
    %2145 = vmatpush1.msra.mxu0 %v184
    %2146 = vmatprep.subr.mxu0 0.0
    %2147 = vmatpush1.msra.mxu0 %v187
    %2148 = vmatprep.subr.mxu0 0.0
    %2149 = vmatpush1.msra.mxu0 %v190
    %2150 = vmatprep.subr.mxu0 0.0
    %2151 = vmatpush1.msra.mxu0 %v193
    %2152 = vmatprep.subr.mxu0 0.0
    %2153 = vmatpush1.msra.mxu0 0.0
    %2154 = vmatprep.subr.mxu0 0.0
    %2155 = vmatpush1.msra.mxu0 0.0
    %2156 = vmatprep.subr.mxu0 0.0
    %2157 = vmatpush1.msra.mxu0 0.0
    %2158 = vmatprep.subr.mxu0 0.0
    %2159 = vmatpush1.msra.mxu0 0.0
    %2160 = vmatprep.subr.mxu0 0.0
    %2161 = vmatpush1.msra.mxu0 0.0
    %2162 = vmatprep.subr.mxu0 0.0
    %2163 = vmatpush1.msra.mxu0 0.0
    %2164 = vmatprep.subr.mxu0 0.0
    %2165 = vmatpush1.msra.mxu0 0.0
    %2166 = vmatprep.subr.mxu0 0.0
    %2167 = vmatpush1.msra.mxu0 0.0
    %2168 = vmatprep.subr.mxu0 0.0
    %2169 = vmatpush1.msra.mxu0 0.0
    %2170 = vmatprep.subr.mxu0 0.0
    %2171 = vmatpush1.msra.mxu0 0.0
    %2172 = vmatprep.subr.mxu0 0.0
    %2173 = vmatpush1.msra.mxu0 0.0
    %2174 = vmatprep.subr.mxu0 0.0
    %2175 = vmatpush1.msra.mxu0 0.0
    %2176 = vmatprep.subr.mxu0 0.0
    %2177 = vmatpush1.msra.mxu0 0.0
    %2178 = vmatprep.subr.mxu0 0.0
    %2179 = vmatpush1.msra.mxu0 0.0
    %2180 = vmatprep.subr.mxu0 0.0
    %2181 = vmatpush1.msra.mxu0 0.0
    %2182 = vmatprep.subr.mxu0 0.0
    %2183 = vmatpush1.msra.mxu0 0.0
    %2184 = vmatprep.mubr.f32.mxu0 0.0
    %2185 = vmatmul.mubr.f32.gmra.mrb[0].mxu0 %v2044
    %v2186 = vpop.f32.mrb[0].mxu0
    %v2187 = vadd.f32 0.0, %v2186
    %v2188 = vpop.f32.mrb[0].mxu0
    %2189 = vdwg.mxu0
    %v2190 = vadd.f32 %v2046, %v2116
    %v2191 = vadd.f32 %v2047, %v2118
    %v2192 = vmul.f32 %v2190, 0.5
    %v2193 = vmul.f32 %v2191, 0.5
    %v2194 = vtanh.pop %v2192
    %v2195 = vtanh.pop %v2193
    %v2196 = vmul.f32 %v2194, 0.5
    %v2197 = vmul.f32 %v2195, 0.5
    %v2198 = vadd.f32 %v2196, 0.5
    %v2199 = vadd.f32 %v2197, 0.5
    %v2200 = vadd.f32 %v2187, %v586
    %v2201 = vmul.f32 %v2198, %v2200
    %v2202 = vadd.f32 %v2048, %v2201
    %v2203 = vtanh.pop %v2202
    %v2204 = vsub.f32 %v2044, %v2203
    %v2205 = vmul.f32 %v2199, %v2204
    %v2206 = vadd.f32 %v2203, %v2205
    %2207 = vst [vmem:[#allocation2 + $0x48] sm:$0xff] %v2206
    %v2208 = vld [vmem:[#allocation3 + $0xf0] sm:$0xff]
    %v2209 = vld [vmem:[#allocation3 + $0xf8] sm:$0xff]
    %v2210 = vld [vmem:[#allocation3 + $0x100] sm:$0xff]
    %2211 = vmatprep.subr.mxu0 %v147
    %2212 = vmatpush1.msra.mxu0 %v146
    %2213 = vmatprep.subr.mxu0 %v150
    %2214 = vmatpush1.msra.mxu0 %v149
    %2215 = vmatprep.subr.mxu0 %v153
    %2216 = vmatpush1.msra.mxu0 %v152
    %2217 = vmatprep.subr.mxu0 %v156
    %2218 = vmatpush1.msra.mxu0 %v155
    %2219 = vmatprep.subr.mxu0 %v159
    %2220 = vmatpush1.msra.mxu0 %v158
    %2221 = vmatprep.subr.mxu0 %v162
    %2222 = vmatpush1.msra.mxu0 %v161
    %2223 = vmatprep.subr.mxu0 %v165
    %2224 = vmatpush1.msra.mxu0 %v164
    %2225 = vmatprep.subr.mxu0 %v168
    %2226 = vmatpush1.msra.mxu0 %v167
    %2227 = vmatprep.subr.mxu0 %v171
    %2228 = vmatpush1.msra.mxu0 %v170
    %2229 = vmatprep.subr.mxu0 %v174
    %2230 = vmatpush1.msra.mxu0 %v173
    %2231 = vmatprep.subr.mxu0 %v177
    %2232 = vmatpush1.msra.mxu0 %v176
    %2233 = vmatprep.subr.mxu0 %v180
    %2234 = vmatpush1.msra.mxu0 %v179
    %2235 = vmatprep.subr.mxu0 %v183
    %2236 = vmatpush1.msra.mxu0 %v182
    %2237 = vmatprep.subr.mxu0 %v186
    %2238 = vmatpush1.msra.mxu0 %v185
    %2239 = vmatprep.subr.mxu0 %v189
    %2240 = vmatpush1.msra.mxu0 %v188
    %2241 = vmatprep.subr.mxu0 %v192
    %2242 = vmatpush1.msra.mxu0 %v191
    %2243 = vmatprep.subr.mxu0 0.0
    %2244 = vmatpush1.msra.mxu0 0.0
    %2245 = vmatprep.subr.mxu0 0.0
    %2246 = vmatpush1.msra.mxu0 0.0
    %2247 = vmatprep.subr.mxu0 0.0
    %2248 = vmatpush1.msra.mxu0 0.0
    %2249 = vmatprep.subr.mxu0 0.0
    %2250 = vmatpush1.msra.mxu0 0.0
    %2251 = vmatprep.subr.mxu0 0.0
    %2252 = vmatpush1.msra.mxu0 0.0
    %2253 = vmatprep.subr.mxu0 0.0
    %2254 = vmatpush1.msra.mxu0 0.0
    %2255 = vmatprep.subr.mxu0 0.0
    %2256 = vmatpush1.msra.mxu0 0.0
    %2257 = vmatprep.subr.mxu0 0.0
    %2258 = vmatpush1.msra.mxu0 0.0
    %2259 = vmatprep.subr.mxu0 0.0
    %2260 = vmatpush1.msra.mxu0 0.0
    %2261 = vmatprep.subr.mxu0 0.0
    %2262 = vmatpush1.msra.mxu0 0.0
    %2263 = vmatprep.subr.mxu0 0.0
    %2264 = vmatpush1.msra.mxu0 0.0
    %2265 = vmatprep.subr.mxu0 0.0
    %2266 = vmatpush1.msra.mxu0 0.0
    %2267 = vmatprep.subr.mxu0 0.0
    %2268 = vmatpush1.msra.mxu0 0.0
    %2269 = vmatprep.subr.mxu0 0.0
    %2270 = vmatpush1.msra.mxu0 0.0
    %2271 = vmatprep.subr.mxu0 0.0
    %2272 = vmatpush1.msra.mxu0 0.0
    %2273 = vmatprep.subr.mxu0 0.0
    %2274 = vmatpush1.msra.mxu0 0.0
    %2275 = vmatprep.mubr.f32.mxu0 0.0
    %2276 = vmatmul.mubr.f32.gmra.mrb[0].mxu0 %v2206
    %v2277 = vpop.f32.mrb[0].mxu0
    %v2278 = vadd.f32 0.0, %v2277
    %v2279 = vpop.f32.mrb[0].mxu0
    %v2280 = vadd.f32 0.0, %v2279
    %2281 = vdwg.mxu0
    %2282 = vmatprep.subr.mxu0 0.0
    %2283 = vmatpush1.msra.mxu0 %v148
    %2284 = vmatprep.subr.mxu0 0.0
    %2285 = vmatpush1.msra.mxu0 %v151
    %2286 = vmatprep.subr.mxu0 0.0
    %2287 = vmatpush1.msra.mxu0 %v154
    %2288 = vmatprep.subr.mxu0 0.0
    %2289 = vmatpush1.msra.mxu0 %v157
    %2290 = vmatprep.subr.mxu0 0.0
    %2291 = vmatpush1.msra.mxu0 %v160
    %2292 = vmatprep.subr.mxu0 0.0
    %2293 = vmatpush1.msra.mxu0 %v163
    %2294 = vmatprep.subr.mxu0 0.0
    %2295 = vmatpush1.msra.mxu0 %v166
    %2296 = vmatprep.subr.mxu0 0.0
    %2297 = vmatpush1.msra.mxu0 %v169
    %2298 = vmatprep.subr.mxu0 0.0
    %2299 = vmatpush1.msra.mxu0 %v172
    %2300 = vmatprep.subr.mxu0 0.0
    %2301 = vmatpush1.msra.mxu0 %v175
    %2302 = vmatprep.subr.mxu0 0.0
    %2303 = vmatpush1.msra.mxu0 %v178
    %2304 = vmatprep.subr.mxu0 0.0
    %2305 = vmatpush1.msra.mxu0 %v181
    %2306 = vmatprep.subr.mxu0 0.0
    %2307 = vmatpush1.msra.mxu0 %v184
    %2308 = vmatprep.subr.mxu0 0.0
    %2309 = vmatpush1.msra.mxu0 %v187
    %2310 = vmatprep.subr.mxu0 0.0
    %2311 = vmatpush1.msra.mxu0 %v190
    %2312 = vmatprep.subr.mxu0 0.0
    %2313 = vmatpush1.msra.mxu0 %v193
    %2314 = vmatprep.subr.mxu0 0.0
    %2315 = vmatpush1.msra.mxu0 0.0
    %2316 = vmatprep.subr.mxu0 0.0
    %2317 = vmatpush1.msra.mxu0 0.0
    %2318 = vmatprep.subr.mxu0 0.0
    %2319 = vmatpush1.msra.mxu0 0.0
    %2320 = vmatprep.subr.mxu0 0.0
    %2321 = vmatpush1.msra.mxu0 0.0
    %2322 = vmatprep.subr.mxu0 0.0
    %2323 = vmatpush1.msra.mxu0 0.0
    %2324 = vmatprep.subr.mxu0 0.0
    %2325 = vmatpush1.msra.mxu0 0.0
    %2326 = vmatprep.subr.mxu0 0.0
    %2327 = vmatpush1.msra.mxu0 0.0
    %2328 = vmatprep.subr.mxu0 0.0
    %2329 = vmatpush1.msra.mxu0 0.0
    %2330 = vmatprep.subr.mxu0 0.0
    %2331 = vmatpush1.msra.mxu0 0.0
    %2332 = vmatprep.subr.mxu0 0.0
    %2333 = vmatpush1.msra.mxu0 0.0
    %2334 = vmatprep.subr.mxu0 0.0
    %2335 = vmatpush1.msra.mxu0 0.0
    %2336 = vmatprep.subr.mxu0 0.0
    %2337 = vmatpush1.msra.mxu0 0.0
    %2338 = vmatprep.subr.mxu0 0.0
    %2339 = vmatpush1.msra.mxu0 0.0
    %2340 = vmatprep.subr.mxu0 0.0
    %2341 = vmatpush1.msra.mxu0 0.0
    %2342 = vmatprep.subr.mxu0 0.0
    %2343 = vmatpush1.msra.mxu0 0.0
    %2344 = vmatprep.subr.mxu0 0.0
    %2345 = vmatpush1.msra.mxu0 0.0
    %2346 = vmatprep.mubr.f32.mxu0 0.0
    %2347 = vmatmul.mubr.f32.gmra.mrb[0].mxu0 %v2206
    %v2348 = vpop.f32.mrb[0].mxu0
    %v2349 = vadd.f32 0.0, %v2348
    %v2350 = vpop.f32.mrb[0].mxu0
    %2351 = vdwg.mxu0
    %v2352 = vadd.f32 %v2208, %v2278
    %v2353 = vadd.f32 %v2209, %v2280
    %v2354 = vmul.f32 %v2352, 0.5
    %v2355 = vmul.f32 %v2353, 0.5
    %v2356 = vtanh.pop %v2354
    %v2357 = vtanh.pop %v2355
    %v2358 = vmul.f32 %v2356, 0.5
    %v2359 = vmul.f32 %v2357, 0.5
    %v2360 = vadd.f32 %v2358, 0.5
    %v2361 = vadd.f32 %v2359, 0.5
    %v2362 = vadd.f32 %v2349, %v586
    %v2363 = vmul.f32 %v2360, %v2362
    %v2364 = vadd.f32 %v2210, %v2363
    %v2365 = vtanh.pop %v2364
    %v2366 = vsub.f32 %v2206, %v2365
    %v2367 = vmul.f32 %v2361, %v2366
    %v2368 = vadd.f32 %v2365, %v2367
    %2369 = vst [vmem:[#allocation2 + $0x50] sm:$0xff] %v2368
    %v2370 = vld [vmem:[#allocation3 + $0x108] sm:$0xff]
    %v2371 = vld [vmem:[#allocation3 + $0x110] sm:$0xff]
    %v2372 = vld [vmem:[#allocation3 + $0x118] sm:$0xff]
    %2373 = vmatprep.subr.mxu0 %v147
    %2374 = vmatpush1.msra.mxu0 %v146
    %2375 = vmatprep.subr.mxu0 %v150
    %2376 = vmatpush1.msra.mxu0 %v149
    %2377 = vmatprep.subr.mxu0 %v153
    %2378 = vmatpush1.msra.mxu0 %v152
    %2379 = vmatprep.subr.mxu0 %v156
    %2380 = vmatpush1.msra.mxu0 %v155
    %2381 = vmatprep.subr.mxu0 %v159
    %2382 = vmatpush1.msra.mxu0 %v158
    %2383 = vmatprep.subr.mxu0 %v162
    %2384 = vmatpush1.msra.mxu0 %v161
    %2385 = vmatprep.subr.mxu0 %v165
    %2386 = vmatpush1.msra.mxu0 %v164
    %2387 = vmatprep.subr.mxu0 %v168
    %2388 = vmatpush1.msra.mxu0 %v167
    %2389 = vmatprep.subr.mxu0 %v171
    %2390 = vmatpush1.msra.mxu0 %v170
    %2391 = vmatprep.subr.mxu0 %v174
    %2392 = vmatpush1.msra.mxu0 %v173
    %2393 = vmatprep.subr.mxu0 %v177
    %2394 = vmatpush1.msra.mxu0 %v176
    %2395 = vmatprep.subr.mxu0 %v180
    %2396 = vmatpush1.msra.mxu0 %v179
    %2397 = vmatprep.subr.mxu0 %v183
    %2398 = vmatpush1.msra.mxu0 %v182
    %2399 = vmatprep.subr.mxu0 %v186
    %2400 = vmatpush1.msra.mxu0 %v185
    %2401 = vmatprep.subr.mxu0 %v189
    %2402 = vmatpush1.msra.mxu0 %v188
    %2403 = vmatprep.subr.mxu0 %v192
    %2404 = vmatpush1.msra.mxu0 %v191
    %2405 = vmatprep.subr.mxu0 0.0
    %2406 = vmatpush1.msra.mxu0 0.0
    %2407 = vmatprep.subr.mxu0 0.0
    %2408 = vmatpush1.msra.mxu0 0.0
    %2409 = vmatprep.subr.mxu0 0.0
    %2410 = vmatpush1.msra.mxu0 0.0
    %2411 = vmatprep.subr.mxu0 0.0
    %2412 = vmatpush1.msra.mxu0 0.0
    %2413 = vmatprep.subr.mxu0 0.0
    %2414 = vmatpush1.msra.mxu0 0.0
    %2415 = vmatprep.subr.mxu0 0.0
    %2416 = vmatpush1.msra.mxu0 0.0
    %2417 = vmatprep.subr.mxu0 0.0
    %2418 = vmatpush1.msra.mxu0 0.0
    %2419 = vmatprep.subr.mxu0 0.0
    %2420 = vmatpush1.msra.mxu0 0.0
    %2421 = vmatprep.subr.mxu0 0.0
    %2422 = vmatpush1.msra.mxu0 0.0
    %2423 = vmatprep.subr.mxu0 0.0
    %2424 = vmatpush1.msra.mxu0 0.0
    %2425 = vmatprep.subr.mxu0 0.0
    %2426 = vmatpush1.msra.mxu0 0.0
    %2427 = vmatprep.subr.mxu0 0.0
    %2428 = vmatpush1.msra.mxu0 0.0
    %2429 = vmatprep.subr.mxu0 0.0
    %2430 = vmatpush1.msra.mxu0 0.0
    %2431 = vmatprep.subr.mxu0 0.0
    %2432 = vmatpush1.msra.mxu0 0.0
    %2433 = vmatprep.subr.mxu0 0.0
    %2434 = vmatpush1.msra.mxu0 0.0
    %2435 = vmatprep.subr.mxu0 0.0
    %2436 = vmatpush1.msra.mxu0 0.0
    %2437 = vmatprep.mubr.f32.mxu0 0.0
    %2438 = vmatmul.mubr.f32.gmra.mrb[0].mxu0 %v2368
    %v2439 = vpop.f32.mrb[0].mxu0
    %v2440 = vadd.f32 0.0, %v2439
    %v2441 = vpop.f32.mrb[0].mxu0
    %v2442 = vadd.f32 0.0, %v2441
    %2443 = vdwg.mxu0
    %2444 = vmatprep.subr.mxu0 0.0
    %2445 = vmatpush1.msra.mxu0 %v148
    %2446 = vmatprep.subr.mxu0 0.0
    %2447 = vmatpush1.msra.mxu0 %v151
    %2448 = vmatprep.subr.mxu0 0.0
    %2449 = vmatpush1.msra.mxu0 %v154
    %2450 = vmatprep.subr.mxu0 0.0
    %2451 = vmatpush1.msra.mxu0 %v157
    %2452 = vmatprep.subr.mxu0 0.0
    %2453 = vmatpush1.msra.mxu0 %v160
    %2454 = vmatprep.subr.mxu0 0.0
    %2455 = vmatpush1.msra.mxu0 %v163
    %2456 = vmatprep.subr.mxu0 0.0
    %2457 = vmatpush1.msra.mxu0 %v166
    %2458 = vmatprep.subr.mxu0 0.0
    %2459 = vmatpush1.msra.mxu0 %v169
    %2460 = vmatprep.subr.mxu0 0.0
    %2461 = vmatpush1.msra.mxu0 %v172
    %2462 = vmatprep.subr.mxu0 0.0
    %2463 = vmatpush1.msra.mxu0 %v175
    %2464 = vmatprep.subr.mxu0 0.0
    %2465 = vmatpush1.msra.mxu0 %v178
    %2466 = vmatprep.subr.mxu0 0.0
    %2467 = vmatpush1.msra.mxu0 %v181
    %2468 = vmatprep.subr.mxu0 0.0
    %2469 = vmatpush1.msra.mxu0 %v184
    %2470 = vmatprep.subr.mxu0 0.0
    %2471 = vmatpush1.msra.mxu0 %v187
    %2472 = vmatprep.subr.mxu0 0.0
    %2473 = vmatpush1.msra.mxu0 %v190
    %2474 = vmatprep.subr.mxu0 0.0
    %2475 = vmatpush1.msra.mxu0 %v193
    %2476 = vmatprep.subr.mxu0 0.0
    %2477 = vmatpush1.msra.mxu0 0.0
    %2478 = vmatprep.subr.mxu0 0.0
    %2479 = vmatpush1.msra.mxu0 0.0
    %2480 = vmatprep.subr.mxu0 0.0
    %2481 = vmatpush1.msra.mxu0 0.0
    %2482 = vmatprep.subr.mxu0 0.0
    %2483 = vmatpush1.msra.mxu0 0.0
    %2484 = vmatprep.subr.mxu0 0.0
    %2485 = vmatpush1.msra.mxu0 0.0
    %2486 = vmatprep.subr.mxu0 0.0
    %2487 = vmatpush1.msra.mxu0 0.0
    %2488 = vmatprep.subr.mxu0 0.0
    %2489 = vmatpush1.msra.mxu0 0.0
    %2490 = vmatprep.subr.mxu0 0.0
    %2491 = vmatpush1.msra.mxu0 0.0
    %2492 = vmatprep.subr.mxu0 0.0
    %2493 = vmatpush1.msra.mxu0 0.0
    %2494 = vmatprep.subr.mxu0 0.0
    %2495 = vmatpush1.msra.mxu0 0.0
    %2496 = vmatprep.subr.mxu0 0.0
    %2497 = vmatpush1.msra.mxu0 0.0
    %2498 = vmatprep.subr.mxu0 0.0
    %2499 = vmatpush1.msra.mxu0 0.0
    %2500 = vmatprep.subr.mxu0 0.0
    %2501 = vmatpush1.msra.mxu0 0.0
    %2502 = vmatprep.subr.mxu0 0.0
    %2503 = vmatpush1.msra.mxu0 0.0
    %2504 = vmatprep.subr.mxu0 0.0
    %2505 = vmatpush1.msra.mxu0 0.0
    %2506 = vmatprep.subr.mxu0 0.0
    %2507 = vmatpush1.msra.mxu0 0.0
    %2508 = vmatprep.mubr.f32.mxu0 0.0
    %2509 = vmatmul.mubr.f32.gmra.mrb[0].mxu0 %v2368
    %v2510 = vpop.f32.mrb[0].mxu0
    %v2511 = vadd.f32 0.0, %v2510
    %v2512 = vpop.f32.mrb[0].mxu0
    %2513 = vdwg.mxu0
    %v2514 = vadd.f32 %v2370, %v2440
    %v2515 = vadd.f32 %v2371, %v2442
    %v2516 = vmul.f32 %v2514, 0.5
    %v2517 = vmul.f32 %v2515, 0.5
    %v2518 = vtanh.pop %v2516
    %v2519 = vtanh.pop %v2517
    %v2520 = vmul.f32 %v2518, 0.5
    %v2521 = vmul.f32 %v2519, 0.5
    %v2522 = vadd.f32 %v2520, 0.5
    %v2523 = vadd.f32 %v2521, 0.5
    %v2524 = vadd.f32 %v2511, %v586
    %v2525 = vmul.f32 %v2522, %v2524
    %v2526 = vadd.f32 %v2372, %v2525
    %v2527 = vtanh.pop %v2526
    %v2528 = vsub.f32 %v2368, %v2527
    %v2529 = vmul.f32 %v2523, %v2528
    %v2530 = vadd.f32 %v2527, %v2529
    %2531 = vst [vmem:[#allocation2 + $0x58] sm:$0xff] %v2530
    %v2532 = vld [vmem:[#allocation3 + $0x120] sm:$0xff]
    %v2533 = vld [vmem:[#allocation3 + $0x128] sm:$0xff]
    %v2534 = vld [vmem:[#allocation3 + $0x130] sm:$0xff]
    %2535 = vmatprep.subr.mxu0 %v147
    %2536 = vmatpush1.msra.mxu0 %v146
    %2537 = vmatprep.subr.mxu0 %v150
    %2538 = vmatpush1.msra.mxu0 %v149
    %2539 = vmatprep.subr.mxu0 %v153
    %2540 = vmatpush1.msra.mxu0 %v152
    %2541 = vmatprep.subr.mxu0 %v156
    %2542 = vmatpush1.msra.mxu0 %v155
    %2543 = vmatprep.subr.mxu0 %v159
    %2544 = vmatpush1.msra.mxu0 %v158
    %2545 = vmatprep.subr.mxu0 %v162
    %2546 = vmatpush1.msra.mxu0 %v161
    %2547 = vmatprep.subr.mxu0 %v165
    %2548 = vmatpush1.msra.mxu0 %v164
    %2549 = vmatprep.subr.mxu0 %v168
    %2550 = vmatpush1.msra.mxu0 %v167
    %2551 = vmatprep.subr.mxu0 %v171
    %2552 = vmatpush1.msra.mxu0 %v170
    %2553 = vmatprep.subr.mxu0 %v174
    %2554 = vmatpush1.msra.mxu0 %v173
    %2555 = vmatprep.subr.mxu0 %v177
    %2556 = vmatpush1.msra.mxu0 %v176
    %2557 = vmatprep.subr.mxu0 %v180
    %2558 = vmatpush1.msra.mxu0 %v179
    %2559 = vmatprep.subr.mxu0 %v183
    %2560 = vmatpush1.msra.mxu0 %v182
    %2561 = vmatprep.subr.mxu0 %v186
    %2562 = vmatpush1.msra.mxu0 %v185
    %2563 = vmatprep.subr.mxu0 %v189
    %2564 = vmatpush1.msra.mxu0 %v188
    %2565 = vmatprep.subr.mxu0 %v192
    %2566 = vmatpush1.msra.mxu0 %v191
    %2567 = vmatprep.subr.mxu0 0.0
    %2568 = vmatpush1.msra.mxu0 0.0
    %2569 = vmatprep.subr.mxu0 0.0
    %2570 = vmatpush1.msra.mxu0 0.0
    %2571 = vmatprep.subr.mxu0 0.0
    %2572 = vmatpush1.msra.mxu0 0.0
    %2573 = vmatprep.subr.mxu0 0.0
    %2574 = vmatpush1.msra.mxu0 0.0
    %2575 = vmatprep.subr.mxu0 0.0
    %2576 = vmatpush1.msra.mxu0 0.0
    %2577 = vmatprep.subr.mxu0 0.0
    %2578 = vmatpush1.msra.mxu0 0.0
    %2579 = vmatprep.subr.mxu0 0.0
    %2580 = vmatpush1.msra.mxu0 0.0
    %2581 = vmatprep.subr.mxu0 0.0
    %2582 = vmatpush1.msra.mxu0 0.0
    %2583 = vmatprep.subr.mxu0 0.0
    %2584 = vmatpush1.msra.mxu0 0.0
    %2585 = vmatprep.subr.mxu0 0.0
    %2586 = vmatpush1.msra.mxu0 0.0
    %2587 = vmatprep.subr.mxu0 0.0
    %2588 = vmatpush1.msra.mxu0 0.0
    %2589 = vmatprep.subr.mxu0 0.0
    %2590 = vmatpush1.msra.mxu0 0.0
    %2591 = vmatprep.subr.mxu0 0.0
    %2592 = vmatpush1.msra.mxu0 0.0
    %2593 = vmatprep.subr.mxu0 0.0
    %2594 = vmatpush1.msra.mxu0 0.0
    %2595 = vmatprep.subr.mxu0 0.0
    %2596 = vmatpush1.msra.mxu0 0.0
    %2597 = vmatprep.subr.mxu0 0.0
    %2598 = vmatpush1.msra.mxu0 0.0
    %2599 = vmatprep.mubr.f32.mxu0 0.0
    %2600 = vmatmul.mubr.f32.gmra.mrb[0].mxu0 %v2530
    %v2601 = vpop.f32.mrb[0].mxu0
    %v2602 = vadd.f32 0.0, %v2601
    %v2603 = vpop.f32.mrb[0].mxu0
    %v2604 = vadd.f32 0.0, %v2603
    %2605 = vdwg.mxu0
    %2606 = vmatprep.subr.mxu0 0.0
    %2607 = vmatpush1.msra.mxu0 %v148
    %2608 = vmatprep.subr.mxu0 0.0
    %2609 = vmatpush1.msra.mxu0 %v151
    %2610 = vmatprep.subr.mxu0 0.0
    %2611 = vmatpush1.msra.mxu0 %v154
    %2612 = vmatprep.subr.mxu0 0.0
    %2613 = vmatpush1.msra.mxu0 %v157
    %2614 = vmatprep.subr.mxu0 0.0
    %2615 = vmatpush1.msra.mxu0 %v160
    %2616 = vmatprep.subr.mxu0 0.0
    %2617 = vmatpush1.msra.mxu0 %v163
    %2618 = vmatprep.subr.mxu0 0.0
    %2619 = vmatpush1.msra.mxu0 %v166
    %2620 = vmatprep.subr.mxu0 0.0
    %2621 = vmatpush1.msra.mxu0 %v169
    %2622 = vmatprep.subr.mxu0 0.0
    %2623 = vmatpush1.msra.mxu0 %v172
    %2624 = vmatprep.subr.mxu0 0.0
    %2625 = vmatpush1.msra.mxu0 %v175
    %2626 = vmatprep.subr.mxu0 0.0
    %2627 = vmatpush1.msra.mxu0 %v178
    %2628 = vmatprep.subr.mxu0 0.0
    %2629 = vmatpush1.msra.mxu0 %v181
    %2630 = vmatprep.subr.mxu0 0.0
    %2631 = vmatpush1.msra.mxu0 %v184
    %2632 = vmatprep.subr.mxu0 0.0
    %2633 = vmatpush1.msra.mxu0 %v187
    %2634 = vmatprep.subr.mxu0 0.0
    %2635 = vmatpush1.msra.mxu0 %v190
    %2636 = vmatprep.subr.mxu0 0.0
    %2637 = vmatpush1.msra.mxu0 %v193
    %2638 = vmatprep.subr.mxu0 0.0
    %2639 = vmatpush1.msra.mxu0 0.0
    %2640 = vmatprep.subr.mxu0 0.0
    %2641 = vmatpush1.msra.mxu0 0.0
    %2642 = vmatprep.subr.mxu0 0.0
    %2643 = vmatpush1.msra.mxu0 0.0
    %2644 = vmatprep.subr.mxu0 0.0
    %2645 = vmatpush1.msra.mxu0 0.0
    %2646 = vmatprep.subr.mxu0 0.0
    %2647 = vmatpush1.msra.mxu0 0.0
    %2648 = vmatprep.subr.mxu0 0.0
    %2649 = vmatpush1.msra.mxu0 0.0
    %2650 = vmatprep.subr.mxu0 0.0
    %2651 = vmatpush1.msra.mxu0 0.0
    %2652 = vmatprep.subr.mxu0 0.0
    %2653 = vmatpush1.msra.mxu0 0.0
    %2654 = vmatprep.subr.mxu0 0.0
    %2655 = vmatpush1.msra.mxu0 0.0
    %2656 = vmatprep.subr.mxu0 0.0
    %2657 = vmatpush1.msra.mxu0 0.0
    %2658 = vmatprep.subr.mxu0 0.0
    %2659 = vmatpush1.msra.mxu0 0.0
    %2660 = vmatprep.subr.mxu0 0.0
    %2661 = vmatpush1.msra.mxu0 0.0
    %2662 = vmatprep.subr.mxu0 0.0
    %2663 = vmatpush1.msra.mxu0 0.0
    %2664 = vmatprep.subr.mxu0 0.0
    %2665 = vmatpush1.msra.mxu0 0.0
    %2666 = vmatprep.subr.mxu0 0.0
    %2667 = vmatpush1.msra.mxu0 0.0
    %2668 = vmatprep.subr.mxu0 0.0
    %2669 = vmatpush1.msra.mxu0 0.0
    %2670 = vmatprep.mubr.f32.mxu0 0.0
    %2671 = vmatmul.mubr.f32.gmra.mrb[0].mxu0 %v2530
    %v2672 = vpop.f32.mrb[0].mxu0
    %v2673 = vadd.f32 0.0, %v2672
    %v2674 = vpop.f32.mrb[0].mxu0
    %2675 = vdwg.mxu0
    %v2676 = vadd.f32 %v2532, %v2602
    %v2677 = vadd.f32 %v2533, %v2604
    %v2678 = vmul.f32 %v2676, 0.5
    %v2679 = vmul.f32 %v2677, 0.5
    %v2680 = vtanh.pop %v2678
    %v2681 = vtanh.pop %v2679
    %v2682 = vmul.f32 %v2680, 0.5
    %v2683 = vmul.f32 %v2681, 0.5
    %v2684 = vadd.f32 %v2682, 0.5
    %v2685 = vadd.f32 %v2683, 0.5
    %v2686 = vadd.f32 %v2673, %v586
    %v2687 = vmul.f32 %v2684, %v2686
    %v2688 = vadd.f32 %v2534, %v2687
    %v2689 = vtanh.pop %v2688
    %v2690 = vsub.f32 %v2530, %v2689
    %v2691 = vmul.f32 %v2685, %v2690
    %v2692 = vadd.f32 %v2689, %v2691
    %2693 = vst [vmem:[#allocation2 + $0x60] sm:$0xff] %v2692
    %v2694 = vld [vmem:[#allocation3 + $0x138] sm:$0xff]
    %v2695 = vld [vmem:[#allocation3 + $0x140] sm:$0xff]
    %v2696 = vld [vmem:[#allocation3 + $0x148] sm:$0xff]
    %2697 = vmatprep.subr.mxu0 %v147
    %2698 = vmatpush1.msra.mxu0 %v146
    %2699 = vmatprep.subr.mxu0 %v150
    %2700 = vmatpush1.msra.mxu0 %v149
    %2701 = vmatprep.subr.mxu0 %v153
    %2702 = vmatpush1.msra.mxu0 %v152
    %2703 = vmatprep.subr.mxu0 %v156
    %2704 = vmatpush1.msra.mxu0 %v155
    %2705 = vmatprep.subr.mxu0 %v159
    %2706 = vmatpush1.msra.mxu0 %v158
    %2707 = vmatprep.subr.mxu0 %v162
    %2708 = vmatpush1.msra.mxu0 %v161
    %2709 = vmatprep.subr.mxu0 %v165
    %2710 = vmatpush1.msra.mxu0 %v164
    %2711 = vmatprep.subr.mxu0 %v168
    %2712 = vmatpush1.msra.mxu0 %v167
    %2713 = vmatprep.subr.mxu0 %v171
    %2714 = vmatpush1.msra.mxu0 %v170
    %2715 = vmatprep.subr.mxu0 %v174
    %2716 = vmatpush1.msra.mxu0 %v173
    %2717 = vmatprep.subr.mxu0 %v177
    %2718 = vmatpush1.msra.mxu0 %v176
    %2719 = vmatprep.subr.mxu0 %v180
    %2720 = vmatpush1.msra.mxu0 %v179
    %2721 = vmatprep.subr.mxu0 %v183
    %2722 = vmatpush1.msra.mxu0 %v182
    %2723 = vmatprep.subr.mxu0 %v186
    %2724 = vmatpush1.msra.mxu0 %v185
    %2725 = vmatprep.subr.mxu0 %v189
    %2726 = vmatpush1.msra.mxu0 %v188
    %2727 = vmatprep.subr.mxu0 %v192
    %2728 = vmatpush1.msra.mxu0 %v191
    %2729 = vmatprep.subr.mxu0 0.0
    %2730 = vmatpush1.msra.mxu0 0.0
    %2731 = vmatprep.subr.mxu0 0.0
    %2732 = vmatpush1.msra.mxu0 0.0
    %2733 = vmatprep.subr.mxu0 0.0
    %2734 = vmatpush1.msra.mxu0 0.0
    %2735 = vmatprep.subr.mxu0 0.0
    %2736 = vmatpush1.msra.mxu0 0.0
    %2737 = vmatprep.subr.mxu0 0.0
    %2738 = vmatpush1.msra.mxu0 0.0
    %2739 = vmatprep.subr.mxu0 0.0
    %2740 = vmatpush1.msra.mxu0 0.0
    %2741 = vmatprep.subr.mxu0 0.0
    %2742 = vmatpush1.msra.mxu0 0.0
    %2743 = vmatprep.subr.mxu0 0.0
    %2744 = vmatpush1.msra.mxu0 0.0
    %2745 = vmatprep.subr.mxu0 0.0
    %2746 = vmatpush1.msra.mxu0 0.0
    %2747 = vmatprep.subr.mxu0 0.0
    %2748 = vmatpush1.msra.mxu0 0.0
    %2749 = vmatprep.subr.mxu0 0.0
    %2750 = vmatpush1.msra.mxu0 0.0
    %2751 = vmatprep.subr.mxu0 0.0
    %2752 = vmatpush1.msra.mxu0 0.0
    %2753 = vmatprep.subr.mxu0 0.0
    %2754 = vmatpush1.msra.mxu0 0.0
    %2755 = vmatprep.subr.mxu0 0.0
    %2756 = vmatpush1.msra.mxu0 0.0
    %2757 = vmatprep.subr.mxu0 0.0
    %2758 = vmatpush1.msra.mxu0 0.0
    %2759 = vmatprep.subr.mxu0 0.0
    %2760 = vmatpush1.msra.mxu0 0.0
    %2761 = vmatprep.mubr.f32.mxu0 0.0
    %2762 = vmatmul.mubr.f32.gmra.mrb[0].mxu0 %v2692
    %v2763 = vpop.f32.mrb[0].mxu0
    %v2764 = vadd.f32 0.0, %v2763
    %v2765 = vpop.f32.mrb[0].mxu0
    %v2766 = vadd.f32 0.0, %v2765
    %2767 = vdwg.mxu0
    %2768 = vmatprep.subr.mxu0 0.0
    %2769 = vmatpush1.msra.mxu0 %v148
    %2770 = vmatprep.subr.mxu0 0.0
    %2771 = vmatpush1.msra.mxu0 %v151
    %2772 = vmatprep.subr.mxu0 0.0
    %2773 = vmatpush1.msra.mxu0 %v154
    %2774 = vmatprep.subr.mxu0 0.0
    %2775 = vmatpush1.msra.mxu0 %v157
    %2776 = vmatprep.subr.mxu0 0.0
    %2777 = vmatpush1.msra.mxu0 %v160
    %2778 = vmatprep.subr.mxu0 0.0
    %2779 = vmatpush1.msra.mxu0 %v163
    %2780 = vmatprep.subr.mxu0 0.0
    %2781 = vmatpush1.msra.mxu0 %v166
    %2782 = vmatprep.subr.mxu0 0.0
    %2783 = vmatpush1.msra.mxu0 %v169
    %2784 = vmatprep.subr.mxu0 0.0
    %2785 = vmatpush1.msra.mxu0 %v172
    %2786 = vmatprep.subr.mxu0 0.0
    %2787 = vmatpush1.msra.mxu0 %v175
    %2788 = vmatprep.subr.mxu0 0.0
    %2789 = vmatpush1.msra.mxu0 %v178
    %2790 = vmatprep.subr.mxu0 0.0
    %2791 = vmatpush1.msra.mxu0 %v181
    %2792 = vmatprep.subr.mxu0 0.0
    %2793 = vmatpush1.msra.mxu0 %v184
    %2794 = vmatprep.subr.mxu0 0.0
    %2795 = vmatpush1.msra.mxu0 %v187
    %2796 = vmatprep.subr.mxu0 0.0
    %2797 = vmatpush1.msra.mxu0 %v190
    %2798 = vmatprep.subr.mxu0 0.0
    %2799 = vmatpush1.msra.mxu0 %v193
    %2800 = vmatprep.subr.mxu0 0.0
    %2801 = vmatpush1.msra.mxu0 0.0
    %2802 = vmatprep.subr.mxu0 0.0
    %2803 = vmatpush1.msra.mxu0 0.0
    %2804 = vmatprep.subr.mxu0 0.0
    %2805 = vmatpush1.msra.mxu0 0.0
    %2806 = vmatprep.subr.mxu0 0.0
    %2807 = vmatpush1.msra.mxu0 0.0
    %2808 = vmatprep.subr.mxu0 0.0
    %2809 = vmatpush1.msra.mxu0 0.0
    %2810 = vmatprep.subr.mxu0 0.0
    %2811 = vmatpush1.msra.mxu0 0.0
    %2812 = vmatprep.subr.mxu0 0.0
    %2813 = vmatpush1.msra.mxu0 0.0
    %2814 = vmatprep.subr.mxu0 0.0
    %2815 = vmatpush1.msra.mxu0 0.0
    %2816 = vmatprep.subr.mxu0 0.0
    %2817 = vmatpush1.msra.mxu0 0.0
    %2818 = vmatprep.subr.mxu0 0.0
    %2819 = vmatpush1.msra.mxu0 0.0
    %2820 = vmatprep.subr.mxu0 0.0
    %2821 = vmatpush1.msra.mxu0 0.0
    %2822 = vmatprep.subr.mxu0 0.0
    %2823 = vmatpush1.msra.mxu0 0.0
    %2824 = vmatprep.subr.mxu0 0.0
    %2825 = vmatpush1.msra.mxu0 0.0
    %2826 = vmatprep.subr.mxu0 0.0
    %2827 = vmatpush1.msra.mxu0 0.0
    %2828 = vmatprep.subr.mxu0 0.0
    %2829 = vmatpush1.msra.mxu0 0.0
    %2830 = vmatprep.subr.mxu0 0.0
    %2831 = vmatpush1.msra.mxu0 0.0
    %2832 = vmatprep.mubr.f32.mxu0 0.0
    %2833 = vmatmul.mubr.f32.gmra.mrb[0].mxu0 %v2692
    %v2834 = vpop.f32.mrb[0].mxu0
    %v2835 = vadd.f32 0.0, %v2834
    %v2836 = vpop.f32.mrb[0].mxu0
    %2837 = vdwg.mxu0
    %v2838 = vadd.f32 %v2694, %v2764
    %v2839 = vadd.f32 %v2695, %v2766
    %v2840 = vmul.f32 %v2838, 0.5
    %v2841 = vmul.f32 %v2839, 0.5
    %v2842 = vtanh.pop %v2840
    %v2843 = vtanh.pop %v2841
    %v2844 = vmul.f32 %v2842, 0.5
    %v2845 = vmul.f32 %v2843, 0.5
    %v2846 = vadd.f32 %v2844, 0.5
    %v2847 = vadd.f32 %v2845, 0.5
    %v2848 = vadd.f32 %v2835, %v586
    %v2849 = vmul.f32 %v2846, %v2848
    %v2850 = vadd.f32 %v2696, %v2849
    %v2851 = vtanh.pop %v2850
    %v2852 = vsub.f32 %v2692, %v2851
    %v2853 = vmul.f32 %v2847, %v2852
    %v2854 = vadd.f32 %v2851, %v2853
    %2855 = vst [vmem:[#allocation2 + $0x68] sm:$0xff] %v2854
    %v2856 = vld [vmem:[#allocation3 + $0x150] sm:$0xff]
    %v2857 = vld [vmem:[#allocation3 + $0x158] sm:$0xff]
    %v2858 = vld [vmem:[#allocation3 + $0x160] sm:$0xff]
    %2859 = vmatprep.subr.mxu0 %v147
    %2860 = vmatpush1.msra.mxu0 %v146
    %2861 = vmatprep.subr.mxu0 %v150
    %2862 = vmatpush1.msra.mxu0 %v149
    %2863 = vmatprep.subr.mxu0 %v153
    %2864 = vmatpush1.msra.mxu0 %v152
    %2865 = vmatprep.subr.mxu0 %v156
    %2866 = vmatpush1.msra.mxu0 %v155
    %2867 = vmatprep.subr.mxu0 %v159
    %2868 = vmatpush1.msra.mxu0 %v158
    %2869 = vmatprep.subr.mxu0 %v162
    %2870 = vmatpush1.msra.mxu0 %v161
    %2871 = vmatprep.subr.mxu0 %v165
    %2872 = vmatpush1.msra.mxu0 %v164
    %2873 = vmatprep.subr.mxu0 %v168
    %2874 = vmatpush1.msra.mxu0 %v167
    %2875 = vmatprep.subr.mxu0 %v171
    %2876 = vmatpush1.msra.mxu0 %v170
    %2877 = vmatprep.subr.mxu0 %v174
    %2878 = vmatpush1.msra.mxu0 %v173
    %2879 = vmatprep.subr.mxu0 %v177
    %2880 = vmatpush1.msra.mxu0 %v176
    %2881 = vmatprep.subr.mxu0 %v180
    %2882 = vmatpush1.msra.mxu0 %v179
    %2883 = vmatprep.subr.mxu0 %v183
    %2884 = vmatpush1.msra.mxu0 %v182
    %2885 = vmatprep.subr.mxu0 %v186
    %2886 = vmatpush1.msra.mxu0 %v185
    %2887 = vmatprep.subr.mxu0 %v189
    %2888 = vmatpush1.msra.mxu0 %v188
    %2889 = vmatprep.subr.mxu0 %v192
    %2890 = vmatpush1.msra.mxu0 %v191
    %2891 = vmatprep.subr.mxu0 0.0
    %2892 = vmatpush1.msra.mxu0 0.0
    %2893 = vmatprep.subr.mxu0 0.0
    %2894 = vmatpush1.msra.mxu0 0.0
    %2895 = vmatprep.subr.mxu0 0.0
    %2896 = vmatpush1.msra.mxu0 0.0
    %2897 = vmatprep.subr.mxu0 0.0
    %2898 = vmatpush1.msra.mxu0 0.0
    %2899 = vmatprep.subr.mxu0 0.0
    %2900 = vmatpush1.msra.mxu0 0.0
    %2901 = vmatprep.subr.mxu0 0.0
    %2902 = vmatpush1.msra.mxu0 0.0
    %2903 = vmatprep.subr.mxu0 0.0
    %2904 = vmatpush1.msra.mxu0 0.0
    %2905 = vmatprep.subr.mxu0 0.0
    %2906 = vmatpush1.msra.mxu0 0.0
    %2907 = vmatprep.subr.mxu0 0.0
    %2908 = vmatpush1.msra.mxu0 0.0
    %2909 = vmatprep.subr.mxu0 0.0
    %2910 = vmatpush1.msra.mxu0 0.0
    %2911 = vmatprep.subr.mxu0 0.0
    %2912 = vmatpush1.msra.mxu0 0.0
    %2913 = vmatprep.subr.mxu0 0.0
    %2914 = vmatpush1.msra.mxu0 0.0
    %2915 = vmatprep.subr.mxu0 0.0
    %2916 = vmatpush1.msra.mxu0 0.0
    %2917 = vmatprep.subr.mxu0 0.0
    %2918 = vmatpush1.msra.mxu0 0.0
    %2919 = vmatprep.subr.mxu0 0.0
    %2920 = vmatpush1.msra.mxu0 0.0
    %2921 = vmatprep.subr.mxu0 0.0
    %2922 = vmatpush1.msra.mxu0 0.0
    %2923 = vmatprep.mubr.f32.mxu0 0.0
    %2924 = vmatmul.mubr.f32.gmra.mrb[0].mxu0 %v2854
    %v2925 = vpop.f32.mrb[0].mxu0
    %v2926 = vadd.f32 0.0, %v2925
    %v2927 = vpop.f32.mrb[0].mxu0
    %v2928 = vadd.f32 0.0, %v2927
    %2929 = vdwg.mxu0
    %2930 = vmatprep.subr.mxu0 0.0
    %2931 = vmatpush1.msra.mxu0 %v148
    %2932 = vmatprep.subr.mxu0 0.0
    %2933 = vmatpush1.msra.mxu0 %v151
    %2934 = vmatprep.subr.mxu0 0.0
    %2935 = vmatpush1.msra.mxu0 %v154
    %2936 = vmatprep.subr.mxu0 0.0
    %2937 = vmatpush1.msra.mxu0 %v157
    %2938 = vmatprep.subr.mxu0 0.0
    %2939 = vmatpush1.msra.mxu0 %v160
    %2940 = vmatprep.subr.mxu0 0.0
    %2941 = vmatpush1.msra.mxu0 %v163
    %2942 = vmatprep.subr.mxu0 0.0
    %2943 = vmatpush1.msra.mxu0 %v166
    %2944 = vmatprep.subr.mxu0 0.0
    %2945 = vmatpush1.msra.mxu0 %v169
    %2946 = vmatprep.subr.mxu0 0.0
    %2947 = vmatpush1.msra.mxu0 %v172
    %2948 = vmatprep.subr.mxu0 0.0
    %2949 = vmatpush1.msra.mxu0 %v175
    %2950 = vmatprep.subr.mxu0 0.0
    %2951 = vmatpush1.msra.mxu0 %v178
    %2952 = vmatprep.subr.mxu0 0.0
    %2953 = vmatpush1.msra.mxu0 %v181
    %2954 = vmatprep.subr.mxu0 0.0
    %2955 = vmatpush1.msra.mxu0 %v184
    %2956 = vmatprep.subr.mxu0 0.0
    %2957 = vmatpush1.msra.mxu0 %v187
    %2958 = vmatprep.subr.mxu0 0.0
    %2959 = vmatpush1.msra.mxu0 %v190
    %2960 = vmatprep.subr.mxu0 0.0
    %2961 = vmatpush1.msra.mxu0 %v193
    %2962 = vmatprep.subr.mxu0 0.0
    %2963 = vmatpush1.msra.mxu0 0.0
    %2964 = vmatprep.subr.mxu0 0.0
    %2965 = vmatpush1.msra.mxu0 0.0
    %2966 = vmatprep.subr.mxu0 0.0
    %2967 = vmatpush1.msra.mxu0 0.0
    %2968 = vmatprep.subr.mxu0 0.0
    %2969 = vmatpush1.msra.mxu0 0.0
    %2970 = vmatprep.subr.mxu0 0.0
    %2971 = vmatpush1.msra.mxu0 0.0
    %2972 = vmatprep.subr.mxu0 0.0
    %2973 = vmatpush1.msra.mxu0 0.0
    %2974 = vmatprep.subr.mxu0 0.0
    %2975 = vmatpush1.msra.mxu0 0.0
    %2976 = vmatprep.subr.mxu0 0.0
    %2977 = vmatpush1.msra.mxu0 0.0
    %2978 = vmatprep.subr.mxu0 0.0
    %2979 = vmatpush1.msra.mxu0 0.0
    %2980 = vmatprep.subr.mxu0 0.0
    %2981 = vmatpush1.msra.mxu0 0.0
    %2982 = vmatprep.subr.mxu0 0.0
    %2983 = vmatpush1.msra.mxu0 0.0
    %2984 = vmatprep.subr.mxu0 0.0
    %2985 = vmatpush1.msra.mxu0 0.0
    %2986 = vmatprep.subr.mxu0 0.0
    %2987 = vmatpush1.msra.mxu0 0.0
    %2988 = vmatprep.subr.mxu0 0.0
    %2989 = vmatpush1.msra.mxu0 0.0
    %2990 = vmatprep.subr.mxu0 0.0
    %2991 = vmatpush1.msra.mxu0 0.0
    %2992 = vmatprep.subr.mxu0 0.0
    %2993 = vmatpush1.msra.mxu0 0.0
    %2994 = vmatprep.mubr.f32.mxu0 0.0
    %2995 = vmatmul.mubr.f32.gmra.mrb[0].mxu0 %v2854
    %v2996 = vpop.f32.mrb[0].mxu0
    %v2997 = vadd.f32 0.0, %v2996
    %v2998 = vpop.f32.mrb[0].mxu0
    %2999 = vdwg.mxu0
    %v3000 = vadd.f32 %v2856, %v2926
    %v3001 = vadd.f32 %v2857, %v2928
    %v3002 = vmul.f32 %v3000, 0.5
    %v3003 = vmul.f32 %v3001, 0.5
    %v3004 = vtanh.pop %v3002
    %v3005 = vtanh.pop %v3003
    %v3006 = vmul.f32 %v3004, 0.5
    %v3007 = vmul.f32 %v3005, 0.5
    %v3008 = vadd.f32 %v3006, 0.5
    %v3009 = vadd.f32 %v3007, 0.5
    %v3010 = vadd.f32 %v2997, %v586
    %v3011 = vmul.f32 %v3008, %v3010
    %v3012 = vadd.f32 %v2858, %v3011
    %v3013 = vtanh.pop %v3012
    %v3014 = vsub.f32 %v2854, %v3013
    %v3015 = vmul.f32 %v3009, %v3014
    %v3016 = vadd.f32 %v3013, %v3015
    %3017 = vst [vmem:[#allocation2 + $0x70] sm:$0xff] %v3016
    %v3018 = vld [vmem:[#allocation3 + $0x168] sm:$0xff]
    %v3019 = vld [vmem:[#allocation3 + $0x170] sm:$0xff]
    %v3020 = vld [vmem:[#allocation3 + $0x178] sm:$0xff]
    %3021 = vmatprep.subr.mxu0 %v147
    %3022 = vmatpush1.msra.mxu0 %v146
    %3023 = vmatprep.subr.mxu0 %v150
    %3024 = vmatpush1.msra.mxu0 %v149
    %3025 = vmatprep.subr.mxu0 %v153
    %3026 = vmatpush1.msra.mxu0 %v152
    %3027 = vmatprep.subr.mxu0 %v156
    %3028 = vmatpush1.msra.mxu0 %v155
    %3029 = vmatprep.subr.mxu0 %v159
    %3030 = vmatpush1.msra.mxu0 %v158
    %3031 = vmatprep.subr.mxu0 %v162
    %3032 = vmatpush1.msra.mxu0 %v161
    %3033 = vmatprep.subr.mxu0 %v165
    %3034 = vmatpush1.msra.mxu0 %v164
    %3035 = vmatprep.subr.mxu0 %v168
    %3036 = vmatpush1.msra.mxu0 %v167
    %3037 = vmatprep.subr.mxu0 %v171
    %3038 = vmatpush1.msra.mxu0 %v170
    %3039 = vmatprep.subr.mxu0 %v174
    %3040 = vmatpush1.msra.mxu0 %v173
    %3041 = vmatprep.subr.mxu0 %v177
    %3042 = vmatpush1.msra.mxu0 %v176
    %3043 = vmatprep.subr.mxu0 %v180
    %3044 = vmatpush1.msra.mxu0 %v179
    %3045 = vmatprep.subr.mxu0 %v183
    %3046 = vmatpush1.msra.mxu0 %v182
    %3047 = vmatprep.subr.mxu0 %v186
    %3048 = vmatpush1.msra.mxu0 %v185
    %3049 = vmatprep.subr.mxu0 %v189
    %3050 = vmatpush1.msra.mxu0 %v188
    %3051 = vmatprep.subr.mxu0 %v192
    %3052 = vmatpush1.msra.mxu0 %v191
    %3053 = vmatprep.subr.mxu0 0.0
    %3054 = vmatpush1.msra.mxu0 0.0
    %3055 = vmatprep.subr.mxu0 0.0
    %3056 = vmatpush1.msra.mxu0 0.0
    %3057 = vmatprep.subr.mxu0 0.0
    %3058 = vmatpush1.msra.mxu0 0.0
    %3059 = vmatprep.subr.mxu0 0.0
    %3060 = vmatpush1.msra.mxu0 0.0
    %3061 = vmatprep.subr.mxu0 0.0
    %3062 = vmatpush1.msra.mxu0 0.0
    %3063 = vmatprep.subr.mxu0 0.0
    %3064 = vmatpush1.msra.mxu0 0.0
    %3065 = vmatprep.subr.mxu0 0.0
    %3066 = vmatpush1.msra.mxu0 0.0
    %3067 = vmatprep.subr.mxu0 0.0
    %3068 = vmatpush1.msra.mxu0 0.0
    %3069 = vmatprep.subr.mxu0 0.0
    %3070 = vmatpush1.msra.mxu0 0.0
    %3071 = vmatprep.subr.mxu0 0.0
    %3072 = vmatpush1.msra.mxu0 0.0
    %3073 = vmatprep.subr.mxu0 0.0
    %3074 = vmatpush1.msra.mxu0 0.0
    %3075 = vmatprep.subr.mxu0 0.0
    %3076 = vmatpush1.msra.mxu0 0.0
    %3077 = vmatprep.subr.mxu0 0.0
    %3078 = vmatpush1.msra.mxu0 0.0
    %3079 = vmatprep.subr.mxu0 0.0
    %3080 = vmatpush1.msra.mxu0 0.0
    %3081 = vmatprep.subr.mxu0 0.0
    %3082 = vmatpush1.msra.mxu0 0.0
    %3083 = vmatprep.subr.mxu0 0.0
    %3084 = vmatpush1.msra.mxu0 0.0
    %3085 = vmatprep.mubr.f32.mxu0 0.0
    %3086 = vmatmul.mubr.f32.gmra.mrb[0].mxu0 %v3016
    %v3087 = vpop.f32.mrb[0].mxu0
    %v3088 = vadd.f32 0.0, %v3087
    %v3089 = vpop.f32.mrb[0].mxu0
    %v3090 = vadd.f32 0.0, %v3089
    %3091 = vdwg.mxu0
    %3092 = vmatprep.subr.mxu0 0.0
    %3093 = vmatpush1.msra.mxu0 %v148
    %3094 = vmatprep.subr.mxu0 0.0
    %3095 = vmatpush1.msra.mxu0 %v151
    %3096 = vmatprep.subr.mxu0 0.0
    %3097 = vmatpush1.msra.mxu0 %v154
    %3098 = vmatprep.subr.mxu0 0.0
    %3099 = vmatpush1.msra.mxu0 %v157
    %3100 = vmatprep.subr.mxu0 0.0
    %3101 = vmatpush1.msra.mxu0 %v160
    %3102 = vmatprep.subr.mxu0 0.0
    %3103 = vmatpush1.msra.mxu0 %v163
    %3104 = vmatprep.subr.mxu0 0.0
    %3105 = vmatpush1.msra.mxu0 %v166
    %3106 = vmatprep.subr.mxu0 0.0
    %3107 = vmatpush1.msra.mxu0 %v169
    %3108 = vmatprep.subr.mxu0 0.0
    %3109 = vmatpush1.msra.mxu0 %v172
    %3110 = vmatprep.subr.mxu0 0.0
    %3111 = vmatpush1.msra.mxu0 %v175
    %3112 = vmatprep.subr.mxu0 0.0
    %3113 = vmatpush1.msra.mxu0 %v178
    %3114 = vmatprep.subr.mxu0 0.0
    %3115 = vmatpush1.msra.mxu0 %v181
    %3116 = vmatprep.subr.mxu0 0.0
    %3117 = vmatpush1.msra.mxu0 %v184
    %3118 = vmatprep.subr.mxu0 0.0
    %3119 = vmatpush1.msra.mxu0 %v187
    %3120 = vmatprep.subr.mxu0 0.0
    %3121 = vmatpush1.msra.mxu0 %v190
    %3122 = vmatprep.subr.mxu0 0.0
    %3123 = vmatpush1.msra.mxu0 %v193
    %3124 = vmatprep.subr.mxu0 0.0
    %3125 = vmatpush1.msra.mxu0 0.0
    %3126 = vmatprep.subr.mxu0 0.0
    %3127 = vmatpush1.msra.mxu0 0.0
    %3128 = vmatprep.subr.mxu0 0.0
    %3129 = vmatpush1.msra.mxu0 0.0
    %3130 = vmatprep.subr.mxu0 0.0
    %3131 = vmatpush1.msra.mxu0 0.0
    %3132 = vmatprep.subr.mxu0 0.0
    %3133 = vmatpush1.msra.mxu0 0.0
    %3134 = vmatprep.subr.mxu0 0.0
    %3135 = vmatpush1.msra.mxu0 0.0
    %3136 = vmatprep.subr.mxu0 0.0
    %3137 = vmatpush1.msra.mxu0 0.0
    %3138 = vmatprep.subr.mxu0 0.0
    %3139 = vmatpush1.msra.mxu0 0.0
    %3140 = vmatprep.subr.mxu0 0.0
    %3141 = vmatpush1.msra.mxu0 0.0
    %3142 = vmatprep.subr.mxu0 0.0
    %3143 = vmatpush1.msra.mxu0 0.0
    %3144 = vmatprep.subr.mxu0 0.0
    %3145 = vmatpush1.msra.mxu0 0.0
    %3146 = vmatprep.subr.mxu0 0.0
    %3147 = vmatpush1.msra.mxu0 0.0
    %3148 = vmatprep.subr.mxu0 0.0
    %3149 = vmatpush1.msra.mxu0 0.0
    %3150 = vmatprep.subr.mxu0 0.0
    %3151 = vmatpush1.msra.mxu0 0.0
    %3152 = vmatprep.subr.mxu0 0.0
    %3153 = vmatpush1.msra.mxu0 0.0
    %3154 = vmatprep.subr.mxu0 0.0
    %3155 = vmatpush1.msra.mxu0 0.0
    %3156 = vmatprep.mubr.f32.mxu0 0.0
    %3157 = vmatmul.mubr.f32.gmra.mrb[0].mxu0 %v3016
    %v3158 = vpop.f32.mrb[0].mxu0
    %v3159 = vadd.f32 0.0, %v3158
    %v3160 = vpop.f32.mrb[0].mxu0
    %3161 = vdwg.mxu0
    %v3162 = vadd.f32 %v3018, %v3088
    %v3163 = vadd.f32 %v3019, %v3090
    %v3164 = vmul.f32 %v3162, 0.5
    %v3165 = vmul.f32 %v3163, 0.5
    %v3166 = vtanh.pop %v3164
    %v3167 = vtanh.pop %v3165
    %v3168 = vmul.f32 %v3166, 0.5
    %v3169 = vmul.f32 %v3167, 0.5
    %v3170 = vadd.f32 %v3168, 0.5
    %v3171 = vadd.f32 %v3169, 0.5
    %v3172 = vadd.f32 %v3159, %v586
    %v3173 = vmul.f32 %v3170, %v3172
    %v3174 = vadd.f32 %v3020, %v3173
    %v3175 = vtanh.pop %v3174
    %v3176 = vsub.f32 %v3016, %v3175
    %v3177 = vmul.f32 %v3171, %v3176
    %v3178 = vadd.f32 %v3175, %v3177
    %3179 = vst [vmem:[#allocation2 + $0x78] sm:$0xff] %v3178
    %v3180 = vld [vmem:[#allocation9] sm:$0xff]
    %v3181 = vld [vmem:[#allocation9 + $0x8] sm:$0xff]
    %v3182 = vld [vmem:[#allocation9 + $0x10] sm:$0xff]
    %v3183 = vld [vmem:[#allocation9 + $0x18] sm:$0xff]
    %v3184 = vld [vmem:[#allocation9 + $0x20] sm:$0xff]
    %v3185 = vld [vmem:[#allocation9 + $0x28] sm:$0xff]
    %v3186 = vld [vmem:[#allocation9 + $0x30] sm:$0xff]
    %v3187 = vld [vmem:[#allocation9 + $0x38] sm:$0xff]
    %v3188 = vld [vmem:[#allocation9 + $0x40] sm:$0xff]
    %v3189 = vld [vmem:[#allocation9 + $0x48] sm:$0xff]
    %v3190 = vld [vmem:[#allocation9 + $0x50] sm:$0xff]
    %v3191 = vld [vmem:[#allocation9 + $0x58] sm:$0xff]
    %v3192 = vld [vmem:[#allocation9 + $0x60] sm:$0xff]
    %v3193 = vld [vmem:[#allocation9 + $0x68] sm:$0xff]
    %v3194 = vld [vmem:[#allocation9 + $0x70] sm:$0xff]
    %v3195 = vld [vmem:[#allocation9 + $0x78] sm:$0xff]
    %v3196 = vld [vmem:[#allocation9 + $0x80] sm:$0xff]
    %v3197 = vld [vmem:[#allocation9 + $0x88] sm:$0xff]
    %v3198 = vld [vmem:[#allocation9 + $0x90] sm:$0xff]
    %v3199 = vld [vmem:[#allocation9 + $0x98] sm:$0xff]
    %v3200 = vld [vmem:[#allocation9 + $0xa0] sm:$0xff]
    %v3201 = vld [vmem:[#allocation9 + $0xa8] sm:$0xff]
    %v3202 = vld [vmem:[#allocation9 + $0xb0] sm:$0xff]
    %v3203 = vld [vmem:[#allocation9 + $0xb8] sm:$0xff]
    %v3204 = vld [vmem:[#allocation9 + $0xc0] sm:$0xff]
    %v3205 = vld [vmem:[#allocation9 + $0xc8] sm:$0xff]
    %v3206 = vld [vmem:[#allocation9 + $0xd0] sm:$0xff]
    %v3207 = vld [vmem:[#allocation9 + $0xd8] sm:$0xff]
    %v3208 = vld [vmem:[#allocation9 + $0xe0] sm:$0xff]
    %v3209 = vld [vmem:[#allocation9 + $0xe8] sm:$0xff]
    %v3210 = vld [vmem:[#allocation9 + $0xf0] sm:$0xff]
    %v3211 = vld [vmem:[#allocation9 + $0xf8] sm:$0xff]
    %v3212 = vld [vmem:[#allocation9 + $0x100] sm:$0xff]
    %v3213 = vld [vmem:[#allocation9 + $0x108] sm:$0xff]
    %v3214 = vld [vmem:[#allocation9 + $0x110] sm:$0xff]
    %v3215 = vld [vmem:[#allocation9 + $0x118] sm:$0xff]
    %v3216 = vld [vmem:[#allocation9 + $0x120] sm:$0xff]
    %v3217 = vld [vmem:[#allocation9 + $0x128] sm:$0xff]
    %v3218 = vld [vmem:[#allocation9 + $0x130] sm:$0xff]
    %v3219 = vld [vmem:[#allocation9 + $0x138] sm:$0xff]
    %v3220 = vld [vmem:[#allocation9 + $0x140] sm:$0xff]
    %v3221 = vld [vmem:[#allocation9 + $0x148] sm:$0xff]
    %v3222 = vld [vmem:[#allocation9 + $0x150] sm:$0xff]
    %v3223 = vld [vmem:[#allocation9 + $0x158] sm:$0xff]
    %v3224 = vld [vmem:[#allocation9 + $0x160] sm:$0xff]
    %v3225 = vld [vmem:[#allocation9 + $0x168] sm:$0xff]
    %v3226 = vld [vmem:[#allocation9 + $0x170] sm:$0xff]
    %v3227 = vld [vmem:[#allocation9 + $0x178] sm:$0xff]
    %s3228 = scalar_lea.vmem [#allocation10], 384
    %v3229 = vld [vmem:[%s3228] sm:$0xff]
    %v3230 = vld [vmem:[%s3228 + $0x8] sm:$0xff]
    %v3231 = vld [vmem:[%s3228 + $0x10] sm:$0xff]
    %v3232 = vld [vmem:[%s3228 + $0x18] sm:$0xff]
    %v3233 = vld [vmem:[%s3228 + $0x20] sm:$0xff]
    %v3234 = vld [vmem:[%s3228 + $0x28] sm:$0xff]
    %v3235 = vld [vmem:[%s3228 + $0x30] sm:$0xff]
    %v3236 = vld [vmem:[%s3228 + $0x38] sm:$0xff]
    %v3237 = vld [vmem:[%s3228 + $0x40] sm:$0xff]
    %v3238 = vld [vmem:[%s3228 + $0x48] sm:$0xff]
    %v3239 = vld [vmem:[%s3228 + $0x50] sm:$0xff]
    %v3240 = vld [vmem:[%s3228 + $0x58] sm:$0xff]
    %v3241 = vld [vmem:[%s3228 + $0x60] sm:$0xff]
    %v3242 = vld [vmem:[%s3228 + $0x68] sm:$0xff]
    %v3243 = vld [vmem:[%s3228 + $0x70] sm:$0xff]
    %v3244 = vld [vmem:[%s3228 + $0x78] sm:$0xff]
    %v3245 = vld [vmem:[%s3228 + $0x80] sm:$0xff]
    %v3246 = vld [vmem:[%s3228 + $0x88] sm:$0xff]
    %v3247 = vld [vmem:[%s3228 + $0x90] sm:$0xff]
    %v3248 = vld [vmem:[%s3228 + $0x98] sm:$0xff]
    %v3249 = vld [vmem:[%s3228 + $0xa0] sm:$0xff]
    %v3250 = vld [vmem:[%s3228 + $0xa8] sm:$0xff]
    %v3251 = vld [vmem:[%s3228 + $0xb0] sm:$0xff]
    %v3252 = vld [vmem:[%s3228 + $0xb8] sm:$0xff]
    %v3253 = vld [vmem:[%s3228 + $0xc0] sm:$0xff]
    %v3254 = vld [vmem:[%s3228 + $0xc8] sm:$0xff]
    %v3255 = vld [vmem:[%s3228 + $0xd0] sm:$0xff]
    %v3256 = vld [vmem:[%s3228 + $0xd8] sm:$0xff]
    %v3257 = vld [vmem:[%s3228 + $0xe0] sm:$0xff]
    %v3258 = vld [vmem:[%s3228 + $0xe8] sm:$0xff]
    %v3259 = vld [vmem:[%s3228 + $0xf0] sm:$0xff]
    %v3260 = vld [vmem:[%s3228 + $0xf8] sm:$0xff]
    %v3261 = vld [vmem:[%s3228 + $0x100] sm:$0xff]
    %v3262 = vld [vmem:[%s3228 + $0x108] sm:$0xff]
    %v3263 = vld [vmem:[%s3228 + $0x110] sm:$0xff]
    %v3264 = vld [vmem:[%s3228 + $0x118] sm:$0xff]
    %v3265 = vld [vmem:[%s3228 + $0x120] sm:$0xff]
    %v3266 = vld [vmem:[%s3228 + $0x128] sm:$0xff]
    %v3267 = vld [vmem:[%s3228 + $0x130] sm:$0xff]
    %v3268 = vld [vmem:[%s3228 + $0x138] sm:$0xff]
    %v3269 = vld [vmem:[%s3228 + $0x140] sm:$0xff]
    %v3270 = vld [vmem:[%s3228 + $0x148] sm:$0xff]
    %v3271 = vld [vmem:[%s3228 + $0x150] sm:$0xff]
    %v3272 = vld [vmem:[%s3228 + $0x158] sm:$0xff]
    %v3273 = vld [vmem:[%s3228 + $0x160] sm:$0xff]
    %v3274 = vld [vmem:[%s3228 + $0x168] sm:$0xff]
    %v3275 = vld [vmem:[%s3228 + $0x170] sm:$0xff]
    %v3276 = vld [vmem:[%s3228 + $0x178] sm:$0xff]
    %s3277 = scalar_lea.vmem %s4, 3
    %v3278 = vld [vmem:[%s3277] sm:$0x7]
    %s3279 = scalar_lea.vmem %s5, 1
    %v3280 = vld [vmem:[%s3279] sm:$0x1]
    %v3281 = vld [vmem:[#allocation2] sm:$0xff]
    %v3282 = vld [vmem:[#allocation2 + $0x8] sm:$0xff]
    %v3283 = vld [vmem:[#allocation2 + $0x10] sm:$0xff]
    %v3284 = vld [vmem:[#allocation2 + $0x18] sm:$0xff]
    %v3285 = vld [vmem:[#allocation2 + $0x20] sm:$0xff]
    %v3286 = vld [vmem:[#allocation2 + $0x28] sm:$0xff]
    %v3287 = vld [vmem:[#allocation2 + $0x30] sm:$0xff]
    %v3288 = vld [vmem:[#allocation2 + $0x38] sm:$0xff]
    %v3289 = vld [vmem:[#allocation2 + $0x40] sm:$0xff]
    %v3290 = vld [vmem:[#allocation2 + $0x48] sm:$0xff]
    %v3291 = vld [vmem:[#allocation2 + $0x50] sm:$0xff]
    %v3292 = vld [vmem:[#allocation2 + $0x58] sm:$0xff]
    %v3293 = vld [vmem:[#allocation2 + $0x60] sm:$0xff]
    %v3294 = vld [vmem:[#allocation2 + $0x68] sm:$0xff]
    %v3295 = vld [vmem:[#allocation2 + $0x70] sm:$0xff]
    %v3296 = vld [vmem:[#allocation2 + $0x78] sm:$0xff]
    %v3298 = vlaneseq
    %v3299 = vshrl.u32 %v3298, 7
    %v3300 = vsub.s32 0, %v3299
    %v3301 = vrot.slane %v3278, %v3300
    %v3302 = vlaneseq
    %v3303 = vshrl.u32 %v3302, 7
    %v3304 = vsub.s32 1, %v3303
    %v3305 = vrot.slane %v3278, %v3304
    %v3306 = vlaneseq
    %v3307 = vshrl.u32 %v3306, 7
    %v3308 = vsub.s32 2, %v3307
    %v3309 = vrot.slane %v3278, %v3308
    %3313 = vmatprep.subr.mxu0 %v3181
    %3314 = vmatpush1.msra.mxu0 %v3180
    %3315 = vmatprep.subr.mxu0 %v3184
    %3316 = vmatpush1.msra.mxu0 %v3183
    %3317 = vmatprep.subr.mxu0 %v3187
    %3318 = vmatpush1.msra.mxu0 %v3186
    %3319 = vmatprep.subr.mxu0 %v3190
    %3320 = vmatpush1.msra.mxu0 %v3189
    %3321 = vmatprep.subr.mxu0 %v3193
    %3322 = vmatpush1.msra.mxu0 %v3192
    %3323 = vmatprep.subr.mxu0 %v3196
    %3324 = vmatpush1.msra.mxu0 %v3195
    %3325 = vmatprep.subr.mxu0 %v3199
    %3326 = vmatpush1.msra.mxu0 %v3198
    %3327 = vmatprep.subr.mxu0 %v3202
    %3328 = vmatpush1.msra.mxu0 %v3201
    %3329 = vmatprep.subr.mxu0 %v3205
    %3330 = vmatpush1.msra.mxu0 %v3204
    %3331 = vmatprep.subr.mxu0 %v3208
    %3332 = vmatpush1.msra.mxu0 %v3207
    %3333 = vmatprep.subr.mxu0 %v3211
    %3334 = vmatpush1.msra.mxu0 %v3210
    %3335 = vmatprep.subr.mxu0 %v3214
    %3336 = vmatpush1.msra.mxu0 %v3213
    %3337 = vmatprep.subr.mxu0 %v3217
    %3338 = vmatpush1.msra.mxu0 %v3216
    %3339 = vmatprep.subr.mxu0 %v3220
    %3340 = vmatpush1.msra.mxu0 %v3219
    %3341 = vmatprep.subr.mxu0 %v3223
    %3342 = vmatpush1.msra.mxu0 %v3222
    %3343 = vmatprep.subr.mxu0 %v3226
    %3344 = vmatpush1.msra.mxu0 %v3225
    %3345 = vmatprep.subr.mxu0 0.0
    %3346 = vmatpush1.msra.mxu0 0.0
    %3347 = vmatprep.subr.mxu0 0.0
    %3348 = vmatpush1.msra.mxu0 0.0
    %3349 = vmatprep.subr.mxu0 0.0
    %3350 = vmatpush1.msra.mxu0 0.0
    %3351 = vmatprep.subr.mxu0 0.0
    %3352 = vmatpush1.msra.mxu0 0.0
    %3353 = vmatprep.subr.mxu0 0.0
    %3354 = vmatpush1.msra.mxu0 0.0
    %3355 = vmatprep.subr.mxu0 0.0
    %3356 = vmatpush1.msra.mxu0 0.0
    %3357 = vmatprep.subr.mxu0 0.0
    %3358 = vmatpush1.msra.mxu0 0.0
    %3359 = vmatprep.subr.mxu0 0.0
    %3360 = vmatpush1.msra.mxu0 0.0
    %3361 = vmatprep.subr.mxu0 0.0
    %3362 = vmatpush1.msra.mxu0 0.0
    %3363 = vmatprep.subr.mxu0 0.0
    %3364 = vmatpush1.msra.mxu0 0.0
    %3365 = vmatprep.subr.mxu0 0.0
    %3366 = vmatpush1.msra.mxu0 0.0
    %3367 = vmatprep.subr.mxu0 0.0
    %3368 = vmatpush1.msra.mxu0 0.0
    %3369 = vmatprep.subr.mxu0 0.0
    %3370 = vmatpush1.msra.mxu0 0.0
    %3371 = vmatprep.subr.mxu0 0.0
    %3372 = vmatpush1.msra.mxu0 0.0
    %3373 = vmatprep.subr.mxu0 0.0
    %3374 = vmatpush1.msra.mxu0 0.0
    %3375 = vmatprep.subr.mxu0 0.0
    %3376 = vmatpush1.msra.mxu0 0.0
    %3377 = vmatprep.mubr.f32.mxu0 0.0
    %3378 = vmatmul.mubr.f32.gmra.mrb[0].mxu0 %v3281
    %v3379 = vpop.f32.mrb[0].mxu0
    %v3380 = vadd.f32 %v3301, %v3379
    %v3381 = vpop.f32.mrb[0].mxu0
    %v3382 = vadd.f32 %v3305, %v3381
    %3383 = vmatprep.mubr.f32.mxu0 0.0
    %3384 = vmatmul.mubr.f32.gmra.mrb[0].mxu0 %v3282
    %v3385 = vpop.f32.mrb[0].mxu0
    %v3386 = vadd.f32 %v3301, %v3385
    %v3387 = vpop.f32.mrb[0].mxu0
    %v3388 = vadd.f32 %v3305, %v3387
    %3389 = vmatprep.mubr.f32.mxu0 0.0
    %3390 = vmatmul.mubr.f32.gmra.mrb[0].mxu0 %v3283
    %v3391 = vpop.f32.mrb[0].mxu0
    %v3392 = vadd.f32 %v3301, %v3391
    %v3393 = vpop.f32.mrb[0].mxu0
    %v3394 = vadd.f32 %v3305, %v3393
    %3395 = vmatprep.mubr.f32.mxu0 0.0
    %3396 = vmatmul.mubr.f32.gmra.mrb[0].mxu0 %v3284
    %v3397 = vpop.f32.mrb[0].mxu0
    %v3398 = vadd.f32 %v3301, %v3397
    %v3399 = vpop.f32.mrb[0].mxu0
    %v3400 = vadd.f32 %v3305, %v3399
    %3401 = vmatprep.mubr.f32.mxu0 0.0
    %3402 = vmatmul.mubr.f32.gmra.mrb[0].mxu0 %v3285
    %v3403 = vpop.f32.mrb[0].mxu0
    %v3404 = vadd.f32 %v3301, %v3403
    %v3405 = vpop.f32.mrb[0].mxu0
    %v3406 = vadd.f32 %v3305, %v3405
    %3407 = vmatprep.mubr.f32.mxu0 0.0
    %3408 = vmatmul.mubr.f32.gmra.mrb[0].mxu0 %v3286
    %v3409 = vpop.f32.mrb[0].mxu0
    %v3410 = vadd.f32 %v3301, %v3409
    %v3411 = vpop.f32.mrb[0].mxu0
    %v3412 = vadd.f32 %v3305, %v3411
    %3413 = vmatprep.mubr.f32.mxu0 0.0
    %3414 = vmatmul.mubr.f32.gmra.mrb[0].mxu0 %v3287
    %v3415 = vpop.f32.mrb[0].mxu0
    %v3416 = vadd.f32 %v3301, %v3415
    %v3417 = vpop.f32.mrb[0].mxu0
    %v3418 = vadd.f32 %v3305, %v3417
    %3419 = vmatprep.mubr.f32.mxu0 0.0
    %3420 = vmatmul.mubr.f32.gmra.mrb[0].mxu0 %v3288
    %v3421 = vpop.f32.mrb[0].mxu0
    %v3422 = vadd.f32 %v3301, %v3421
    %v3423 = vpop.f32.mrb[0].mxu0
    %v3424 = vadd.f32 %v3305, %v3423
    %3425 = vmatprep.mubr.f32.mxu0 0.0
    %3426 = vmatmul.mubr.f32.gmra.mrb[0].mxu0 %v3289
    %v3427 = vpop.f32.mrb[0].mxu0
    %v3428 = vadd.f32 %v3301, %v3427
    %v3429 = vpop.f32.mrb[0].mxu0
    %v3430 = vadd.f32 %v3305, %v3429
    %3431 = vmatprep.mubr.f32.mxu0 0.0
    %3432 = vmatmul.mubr.f32.gmra.mrb[0].mxu0 %v3290
    %v3433 = vpop.f32.mrb[0].mxu0
    %v3434 = vadd.f32 %v3301, %v3433
    %v3435 = vpop.f32.mrb[0].mxu0
    %v3436 = vadd.f32 %v3305, %v3435
    %3437 = vmatprep.mubr.f32.mxu0 0.0
    %3438 = vmatmul.mubr.f32.gmra.mrb[0].mxu0 %v3291
    %v3439 = vpop.f32.mrb[0].mxu0
    %v3440 = vadd.f32 %v3301, %v3439
    %v3441 = vpop.f32.mrb[0].mxu0
    %v3442 = vadd.f32 %v3305, %v3441
    %3443 = vmatprep.mubr.f32.mxu0 0.0
    %3444 = vmatmul.mubr.f32.gmra.mrb[0].mxu0 %v3292
    %v3445 = vpop.f32.mrb[0].mxu0
    %v3446 = vadd.f32 %v3301, %v3445
    %v3447 = vpop.f32.mrb[0].mxu0
    %v3448 = vadd.f32 %v3305, %v3447
    %3449 = vmatprep.mubr.f32.mxu0 0.0
    %3450 = vmatmul.mubr.f32.gmra.mrb[0].mxu0 %v3293
    %v3451 = vpop.f32.mrb[0].mxu0
    %v3452 = vadd.f32 %v3301, %v3451
    %v3453 = vpop.f32.mrb[0].mxu0
    %v3454 = vadd.f32 %v3305, %v3453
    %3455 = vmatprep.mubr.f32.mxu0 0.0
    %3456 = vmatmul.mubr.f32.gmra.mrb[0].mxu0 %v3294
    %v3457 = vpop.f32.mrb[0].mxu0
    %v3458 = vadd.f32 %v3301, %v3457
    %v3459 = vpop.f32.mrb[0].mxu0
    %v3460 = vadd.f32 %v3305, %v3459
    %3461 = vmatprep.mubr.f32.mxu0 0.0
    %3462 = vmatmul.mubr.f32.gmra.mrb[0].mxu0 %v3295
    %v3463 = vpop.f32.mrb[0].mxu0
    %v3464 = vadd.f32 %v3301, %v3463
    %v3465 = vpop.f32.mrb[0].mxu0
    %v3466 = vadd.f32 %v3305, %v3465
    %3467 = vmatprep.mubr.f32.mxu0 0.0
    %3468 = vmatmul.mubr.f32.gmra.mrb[0].mxu0 %v3296
    %v3469 = vpop.f32.mrb[0].mxu0
    %v3470 = vadd.f32 %v3301, %v3469
    %v3471 = vpop.f32.mrb[0].mxu0
    %v3472 = vadd.f32 %v3305, %v3471
    %3473 = vdwg.mxu0
    %3474 = vmatprep.subr.mxu0 0.0
    %3475 = vmatpush1.msra.mxu0 %v3182
    %3476 = vmatprep.subr.mxu0 0.0
    %3477 = vmatpush1.msra.mxu0 %v3185
    %3478 = vmatprep.subr.mxu0 0.0
    %3479 = vmatpush1.msra.mxu0 %v3188
    %3480 = vmatprep.subr.mxu0 0.0
    %3481 = vmatpush1.msra.mxu0 %v3191
    %3482 = vmatprep.subr.mxu0 0.0
    %3483 = vmatpush1.msra.mxu0 %v3194
    %3484 = vmatprep.subr.mxu0 0.0
    %3485 = vmatpush1.msra.mxu0 %v3197
    %3486 = vmatprep.subr.mxu0 0.0
    %3487 = vmatpush1.msra.mxu0 %v3200
    %3488 = vmatprep.subr.mxu0 0.0
    %3489 = vmatpush1.msra.mxu0 %v3203
    %3490 = vmatprep.subr.mxu0 0.0
    %3491 = vmatpush1.msra.mxu0 %v3206
    %3492 = vmatprep.subr.mxu0 0.0
    %3493 = vmatpush1.msra.mxu0 %v3209
    %3494 = vmatprep.subr.mxu0 0.0
    %3495 = vmatpush1.msra.mxu0 %v3212
    %3496 = vmatprep.subr.mxu0 0.0
    %3497 = vmatpush1.msra.mxu0 %v3215
    %3498 = vmatprep.subr.mxu0 0.0
    %3499 = vmatpush1.msra.mxu0 %v3218
    %3500 = vmatprep.subr.mxu0 0.0
    %3501 = vmatpush1.msra.mxu0 %v3221
    %3502 = vmatprep.subr.mxu0 0.0
    %3503 = vmatpush1.msra.mxu0 %v3224
    %3504 = vmatprep.subr.mxu0 0.0
    %3505 = vmatpush1.msra.mxu0 %v3227
    %3506 = vmatprep.subr.mxu0 0.0
    %3507 = vmatpush1.msra.mxu0 0.0
    %3508 = vmatprep.subr.mxu0 0.0
    %3509 = vmatpush1.msra.mxu0 0.0
    %3510 = vmatprep.subr.mxu0 0.0
    %3511 = vmatpush1.msra.mxu0 0.0
    %3512 = vmatprep.subr.mxu0 0.0
    %3513 = vmatpush1.msra.mxu0 0.0
    %3514 = vmatprep.subr.mxu0 0.0
    %3515 = vmatpush1.msra.mxu0 0.0
    %3516 = vmatprep.subr.mxu0 0.0
    %3517 = vmatpush1.msra.mxu0 0.0
    %3518 = vmatprep.subr.mxu0 0.0
    %3519 = vmatpush1.msra.mxu0 0.0
    %3520 = vmatprep.subr.mxu0 0.0
    %3521 = vmatpush1.msra.mxu0 0.0
    %3522 = vmatprep.subr.mxu0 0.0
    %3523 = vmatpush1.msra.mxu0 0.0
    %3524 = vmatprep.subr.mxu0 0.0
    %3525 = vmatpush1.msra.mxu0 0.0
    %3526 = vmatprep.subr.mxu0 0.0
    %3527 = vmatpush1.msra.mxu0 0.0
    %3528 = vmatprep.subr.mxu0 0.0
    %3529 = vmatpush1.msra.mxu0 0.0
    %3530 = vmatprep.subr.mxu0 0.0
    %3531 = vmatpush1.msra.mxu0 0.0
    %3532 = vmatprep.subr.mxu0 0.0
    %3533 = vmatpush1.msra.mxu0 0.0
    %3534 = vmatprep.subr.mxu0 0.0
    %3535 = vmatpush1.msra.mxu0 0.0
    %3536 = vmatprep.subr.mxu0 0.0
    %3537 = vmatpush1.msra.mxu0 0.0
    %3538 = vmatprep.mubr.f32.mxu0 0.0
    %3539 = vmatmul.mubr.f32.gmra.mrb[0].mxu0 %v3281
    %v3540 = vpop.f32.mrb[0].mxu0
    %v3541 = vadd.f32 %v3309, %v3540
    %v3542 = vpop.f32.mrb[0].mxu0
    %3543 = vmatprep.mubr.f32.mxu0 0.0
    %3544 = vmatmul.mubr.f32.gmra.mrb[0].mxu0 %v3282
    %v3545 = vpop.f32.mrb[0].mxu0
    %v3546 = vadd.f32 %v3309, %v3545
    %v3547 = vpop.f32.mrb[0].mxu0
    %3548 = vmatprep.mubr.f32.mxu0 0.0
    %3549 = vmatmul.mubr.f32.gmra.mrb[0].mxu0 %v3283
    %v3550 = vpop.f32.mrb[0].mxu0
    %v3551 = vadd.f32 %v3309, %v3550
    %v3552 = vpop.f32.mrb[0].mxu0
    %3553 = vmatprep.mubr.f32.mxu0 0.0
    %3554 = vmatmul.mubr.f32.gmra.mrb[0].mxu0 %v3284
    %v3555 = vpop.f32.mrb[0].mxu0
    %v3556 = vadd.f32 %v3309, %v3555
    %v3557 = vpop.f32.mrb[0].mxu0
    %3558 = vmatprep.mubr.f32.mxu0 0.0
    %3559 = vmatmul.mubr.f32.gmra.mrb[0].mxu0 %v3285
    %v3560 = vpop.f32.mrb[0].mxu0
    %v3561 = vadd.f32 %v3309, %v3560
    %v3562 = vpop.f32.mrb[0].mxu0
    %3563 = vmatprep.mubr.f32.mxu0 0.0
    %3564 = vmatmul.mubr.f32.gmra.mrb[0].mxu0 %v3286
    %v3565 = vpop.f32.mrb[0].mxu0
    %v3566 = vadd.f32 %v3309, %v3565
    %v3567 = vpop.f32.mrb[0].mxu0
    %3568 = vmatprep.mubr.f32.mxu0 0.0
    %3569 = vmatmul.mubr.f32.gmra.mrb[0].mxu0 %v3287
    %v3570 = vpop.f32.mrb[0].mxu0
    %v3571 = vadd.f32 %v3309, %v3570
    %v3572 = vpop.f32.mrb[0].mxu0
    %3573 = vmatprep.mubr.f32.mxu0 0.0
    %3574 = vmatmul.mubr.f32.gmra.mrb[0].mxu0 %v3288
    %v3575 = vpop.f32.mrb[0].mxu0
    %v3576 = vadd.f32 %v3309, %v3575
    %v3577 = vpop.f32.mrb[0].mxu0
    %3578 = vmatprep.mubr.f32.mxu0 0.0
    %3579 = vmatmul.mubr.f32.gmra.mrb[0].mxu0 %v3289
    %v3580 = vpop.f32.mrb[0].mxu0
    %v3581 = vadd.f32 %v3309, %v3580
    %v3582 = vpop.f32.mrb[0].mxu0
    %3583 = vmatprep.mubr.f32.mxu0 0.0
    %3584 = vmatmul.mubr.f32.gmra.mrb[0].mxu0 %v3290
    %v3585 = vpop.f32.mrb[0].mxu0
    %v3586 = vadd.f32 %v3309, %v3585
    %v3587 = vpop.f32.mrb[0].mxu0
    %3588 = vmatprep.mubr.f32.mxu0 0.0
    %3589 = vmatmul.mubr.f32.gmra.mrb[0].mxu0 %v3291
    %v3590 = vpop.f32.mrb[0].mxu0
    %v3591 = vadd.f32 %v3309, %v3590
    %v3592 = vpop.f32.mrb[0].mxu0
    %3593 = vmatprep.mubr.f32.mxu0 0.0
    %3594 = vmatmul.mubr.f32.gmra.mrb[0].mxu0 %v3292
    %v3595 = vpop.f32.mrb[0].mxu0
    %v3596 = vadd.f32 %v3309, %v3595
    %v3597 = vpop.f32.mrb[0].mxu0
    %3598 = vmatprep.mubr.f32.mxu0 0.0
    %3599 = vmatmul.mubr.f32.gmra.mrb[0].mxu0 %v3293
    %v3600 = vpop.f32.mrb[0].mxu0
    %v3601 = vadd.f32 %v3309, %v3600
    %v3602 = vpop.f32.mrb[0].mxu0
    %3603 = vmatprep.mubr.f32.mxu0 0.0
    %3604 = vmatmul.mubr.f32.gmra.mrb[0].mxu0 %v3294
    %v3605 = vpop.f32.mrb[0].mxu0
    %v3606 = vadd.f32 %v3309, %v3605
    %v3607 = vpop.f32.mrb[0].mxu0
    %3608 = vmatprep.mubr.f32.mxu0 0.0
    %3609 = vmatmul.mubr.f32.gmra.mrb[0].mxu0 %v3295
    %v3610 = vpop.f32.mrb[0].mxu0
    %v3611 = vadd.f32 %v3309, %v3610
    %v3612 = vpop.f32.mrb[0].mxu0
    %3613 = vmatprep.mubr.f32.mxu0 0.0
    %3614 = vmatmul.mubr.f32.gmra.mrb[0].mxu0 %v3296
    %v3615 = vpop.f32.mrb[0].mxu0
    %v3616 = vadd.f32 %v3309, %v3615
    %v3617 = vpop.f32.mrb[0].mxu0
    %3618 = vdwg.mxu0
    %3619 = vst [vmem:[#allocation3] sm:$0xff] %v3380
    %3620 = vst [vmem:[#allocation3 + $0x8] sm:$0xff] %v3382
    %3621 = vst [vmem:[#allocation3 + $0x10] sm:$0xff] %v3541
    %3622 = vst [vmem:[#allocation3 + $0x18] sm:$0xff] %v3386
    %3623 = vst [vmem:[#allocation3 + $0x20] sm:$0xff] %v3388
    %3624 = vst [vmem:[#allocation3 + $0x28] sm:$0xff] %v3546
    %3625 = vst [vmem:[#allocation3 + $0x30] sm:$0xff] %v3392
    %3626 = vst [vmem:[#allocation3 + $0x38] sm:$0xff] %v3394
    %3627 = vst [vmem:[#allocation3 + $0x40] sm:$0xff] %v3551
    %3628 = vst [vmem:[#allocation3 + $0x48] sm:$0xff] %v3398
    %3629 = vst [vmem:[#allocation3 + $0x50] sm:$0xff] %v3400
    %3630 = vst [vmem:[#allocation3 + $0x58] sm:$0xff] %v3556
    %3631 = vst [vmem:[#allocation3 + $0x60] sm:$0xff] %v3404
    %3632 = vst [vmem:[#allocation3 + $0x68] sm:$0xff] %v3406
    %3633 = vst [vmem:[#allocation3 + $0x70] sm:$0xff] %v3561
    %3634 = vst [vmem:[#allocation3 + $0x78] sm:$0xff] %v3410
    %3635 = vst [vmem:[#allocation3 + $0x80] sm:$0xff] %v3412
    %3636 = vst [vmem:[#allocation3 + $0x88] sm:$0xff] %v3566
    %3637 = vst [vmem:[#allocation3 + $0x90] sm:$0xff] %v3416
    %3638 = vst [vmem:[#allocation3 + $0x98] sm:$0xff] %v3418
    %3639 = vst [vmem:[#allocation3 + $0xa0] sm:$0xff] %v3571
    %3640 = vst [vmem:[#allocation3 + $0xa8] sm:$0xff] %v3422
    %3641 = vst [vmem:[#allocation3 + $0xb0] sm:$0xff] %v3424
    %3642 = vst [vmem:[#allocation3 + $0xb8] sm:$0xff] %v3576
    %3643 = vst [vmem:[#allocation3 + $0xc0] sm:$0xff] %v3428
    %3644 = vst [vmem:[#allocation3 + $0xc8] sm:$0xff] %v3430
    %3645 = vst [vmem:[#allocation3 + $0xd0] sm:$0xff] %v3581
    %3646 = vst [vmem:[#allocation3 + $0xd8] sm:$0xff] %v3434
    %3647 = vst [vmem:[#allocation3 + $0xe0] sm:$0xff] %v3436
    %3648 = vst [vmem:[#allocation3 + $0xe8] sm:$0xff] %v3586
    %3649 = vst [vmem:[#allocation3 + $0xf0] sm:$0xff] %v3440
    %3650 = vst [vmem:[#allocation3 + $0xf8] sm:$0xff] %v3442
    %3651 = vst [vmem:[#allocation3 + $0x100] sm:$0xff] %v3591
    %3652 = vst [vmem:[#allocation3 + $0x108] sm:$0xff] %v3446
    %3653 = vst [vmem:[#allocation3 + $0x110] sm:$0xff] %v3448
    %3654 = vst [vmem:[#allocation3 + $0x118] sm:$0xff] %v3596
    %3655 = vst [vmem:[#allocation3 + $0x120] sm:$0xff] %v3452
    %3656 = vst [vmem:[#allocation3 + $0x128] sm:$0xff] %v3454
    %3657 = vst [vmem:[#allocation3 + $0x130] sm:$0xff] %v3601
    %3658 = vst [vmem:[#allocation3 + $0x138] sm:$0xff] %v3458
    %3659 = vst [vmem:[#allocation3 + $0x140] sm:$0xff] %v3460
    %3660 = vst [vmem:[#allocation3 + $0x148] sm:$0xff] %v3606
    %3661 = vst [vmem:[#allocation3 + $0x150] sm:$0xff] %v3464
    %3662 = vst [vmem:[#allocation3 + $0x158] sm:$0xff] %v3466
    %3663 = vst [vmem:[#allocation3 + $0x160] sm:$0xff] %v3611
    %3664 = vst [vmem:[#allocation3 + $0x168] sm:$0xff] %v3470
    %3665 = vst [vmem:[#allocation3 + $0x170] sm:$0xff] %v3472
    %3666 = vst [vmem:[#allocation3 + $0x178] sm:$0xff] %v3616
    %v3668 = vlaneseq
    %v3669 = vshrl.u32 %v3668, 7
    %v3670 = vsub.s32 0, %v3669
    %v3671 = vrot.slane %v3280, %v3670
    %v3673 = vld [vmem:[#allocation3] sm:$0xff]
    %v3674 = vld [vmem:[#allocation3 + $0x8] sm:$0xff]
    %v3675 = vld [vmem:[#allocation3 + $0x10] sm:$0xff]
    %3676 = vmatprep.subr.mxu0 %v3230
    %3677 = vmatpush1.msra.mxu0 %v3229
    %3678 = vmatprep.subr.mxu0 %v3233
    %3679 = vmatpush1.msra.mxu0 %v3232
    %3680 = vmatprep.subr.mxu0 %v3236
    %3681 = vmatpush1.msra.mxu0 %v3235
    %3682 = vmatprep.subr.mxu0 %v3239
    %3683 = vmatpush1.msra.mxu0 %v3238
    %3684 = vmatprep.subr.mxu0 %v3242
    %3685 = vmatpush1.msra.mxu0 %v3241
    %3686 = vmatprep.subr.mxu0 %v3245
    %3687 = vmatpush1.msra.mxu0 %v3244
    %3688 = vmatprep.subr.mxu0 %v3248
    %3689 = vmatpush1.msra.mxu0 %v3247
    %3690 = vmatprep.subr.mxu0 %v3251
    %3691 = vmatpush1.msra.mxu0 %v3250
    %3692 = vmatprep.subr.mxu0 %v3254
    %3693 = vmatpush1.msra.mxu0 %v3253
    %3694 = vmatprep.subr.mxu0 %v3257
    %3695 = vmatpush1.msra.mxu0 %v3256
    %3696 = vmatprep.subr.mxu0 %v3260
    %3697 = vmatpush1.msra.mxu0 %v3259
    %3698 = vmatprep.subr.mxu0 %v3263
    %3699 = vmatpush1.msra.mxu0 %v3262
    %3700 = vmatprep.subr.mxu0 %v3266
    %3701 = vmatpush1.msra.mxu0 %v3265
    %3702 = vmatprep.subr.mxu0 %v3269
    %3703 = vmatpush1.msra.mxu0 %v3268
    %3704 = vmatprep.subr.mxu0 %v3272
    %3705 = vmatpush1.msra.mxu0 %v3271
    %3706 = vmatprep.subr.mxu0 %v3275
    %3707 = vmatpush1.msra.mxu0 %v3274
    %3708 = vmatprep.subr.mxu0 0.0
    %3709 = vmatpush1.msra.mxu0 0.0
    %3710 = vmatprep.subr.mxu0 0.0
    %3711 = vmatpush1.msra.mxu0 0.0
    %3712 = vmatprep.subr.mxu0 0.0
    %3713 = vmatpush1.msra.mxu0 0.0
    %3714 = vmatprep.subr.mxu0 0.0
    %3715 = vmatpush1.msra.mxu0 0.0
    %3716 = vmatprep.subr.mxu0 0.0
    %3717 = vmatpush1.msra.mxu0 0.0
    %3718 = vmatprep.subr.mxu0 0.0
    %3719 = vmatpush1.msra.mxu0 0.0
    %3720 = vmatprep.subr.mxu0 0.0
    %3721 = vmatpush1.msra.mxu0 0.0
    %3722 = vmatprep.subr.mxu0 0.0
    %3723 = vmatpush1.msra.mxu0 0.0
    %3724 = vmatprep.subr.mxu0 0.0
    %3725 = vmatpush1.msra.mxu0 0.0
    %3726 = vmatprep.subr.mxu0 0.0
    %3727 = vmatpush1.msra.mxu0 0.0
    %3728 = vmatprep.subr.mxu0 0.0
    %3729 = vmatpush1.msra.mxu0 0.0
    %3730 = vmatprep.subr.mxu0 0.0
    %3731 = vmatpush1.msra.mxu0 0.0
    %3732 = vmatprep.subr.mxu0 0.0
    %3733 = vmatpush1.msra.mxu0 0.0
    %3734 = vmatprep.subr.mxu0 0.0
    %3735 = vmatpush1.msra.mxu0 0.0
    %3736 = vmatprep.subr.mxu0 0.0
    %3737 = vmatpush1.msra.mxu0 0.0
    %3738 = vmatprep.subr.mxu0 0.0
    %3739 = vmatpush1.msra.mxu0 0.0
    %3740 = vmatprep.mubr.f32.mxu0 0.0
    %3741 = vmatmul.mubr.f32.gmra.mrb[0].mxu0 0.0
    %v3742 = vpop.f32.mrb[0].mxu0
    %v3743 = vadd.f32 0.0, %v3742
    %v3744 = vpop.f32.mrb[0].mxu0
    %v3745 = vadd.f32 0.0, %v3744
    %3746 = vdwg.mxu0
    %3747 = vmatprep.subr.mxu0 0.0
    %3748 = vmatpush1.msra.mxu0 %v3231
    %3749 = vmatprep.subr.mxu0 0.0
    %3750 = vmatpush1.msra.mxu0 %v3234
    %3751 = vmatprep.subr.mxu0 0.0
    %3752 = vmatpush1.msra.mxu0 %v3237
    %3753 = vmatprep.subr.mxu0 0.0
    %3754 = vmatpush1.msra.mxu0 %v3240
    %3755 = vmatprep.subr.mxu0 0.0
    %3756 = vmatpush1.msra.mxu0 %v3243
    %3757 = vmatprep.subr.mxu0 0.0
    %3758 = vmatpush1.msra.mxu0 %v3246
    %3759 = vmatprep.subr.mxu0 0.0
    %3760 = vmatpush1.msra.mxu0 %v3249
    %3761 = vmatprep.subr.mxu0 0.0
    %3762 = vmatpush1.msra.mxu0 %v3252
    %3763 = vmatprep.subr.mxu0 0.0
    %3764 = vmatpush1.msra.mxu0 %v3255
    %3765 = vmatprep.subr.mxu0 0.0
    %3766 = vmatpush1.msra.mxu0 %v3258
    %3767 = vmatprep.subr.mxu0 0.0
    %3768 = vmatpush1.msra.mxu0 %v3261
    %3769 = vmatprep.subr.mxu0 0.0
    %3770 = vmatpush1.msra.mxu0 %v3264
    %3771 = vmatprep.subr.mxu0 0.0
    %3772 = vmatpush1.msra.mxu0 %v3267
    %3773 = vmatprep.subr.mxu0 0.0
    %3774 = vmatpush1.msra.mxu0 %v3270
    %3775 = vmatprep.subr.mxu0 0.0
    %3776 = vmatpush1.msra.mxu0 %v3273
    %3777 = vmatprep.subr.mxu0 0.0
    %3778 = vmatpush1.msra.mxu0 %v3276
    %3779 = vmatprep.subr.mxu0 0.0
    %3780 = vmatpush1.msra.mxu0 0.0
    %3781 = vmatprep.subr.mxu0 0.0
    %3782 = vmatpush1.msra.mxu0 0.0
    %3783 = vmatprep.subr.mxu0 0.0
    %3784 = vmatpush1.msra.mxu0 0.0
    %3785 = vmatprep.subr.mxu0 0.0
    %3786 = vmatpush1.msra.mxu0 0.0
    %3787 = vmatprep.subr.mxu0 0.0
    %3788 = vmatpush1.msra.mxu0 0.0
    %3789 = vmatprep.subr.mxu0 0.0
    %3790 = vmatpush1.msra.mxu0 0.0
    %3791 = vmatprep.subr.mxu0 0.0
    %3792 = vmatpush1.msra.mxu0 0.0
    %3793 = vmatprep.subr.mxu0 0.0
    %3794 = vmatpush1.msra.mxu0 0.0
    %3795 = vmatprep.subr.mxu0 0.0
    %3796 = vmatpush1.msra.mxu0 0.0
    %3797 = vmatprep.subr.mxu0 0.0
    %3798 = vmatpush1.msra.mxu0 0.0
    %3799 = vmatprep.subr.mxu0 0.0
    %3800 = vmatpush1.msra.mxu0 0.0
    %3801 = vmatprep.subr.mxu0 0.0
    %3802 = vmatpush1.msra.mxu0 0.0
    %3803 = vmatprep.subr.mxu0 0.0
    %3804 = vmatpush1.msra.mxu0 0.0
    %3805 = vmatprep.subr.mxu0 0.0
    %3806 = vmatpush1.msra.mxu0 0.0
    %3807 = vmatprep.subr.mxu0 0.0
    %3808 = vmatpush1.msra.mxu0 0.0
    %3809 = vmatprep.subr.mxu0 0.0
    %3810 = vmatpush1.msra.mxu0 0.0
    %3811 = vmatprep.mubr.f32.mxu0 0.0
    %3812 = vmatmul.mubr.f32.gmra.mrb[0].mxu0 0.0
    %v3813 = vpop.f32.mrb[0].mxu0
    %v3814 = vadd.f32 0.0, %v3813
    %v3815 = vpop.f32.mrb[0].mxu0
    %3816 = vdwg.mxu0
    %v3817 = vadd.f32 %v3673, %v3743
    %v3818 = vadd.f32 %v3674, %v3745
    %v3819 = vmul.f32 %v3817, 0.5
    %v3820 = vmul.f32 %v3818, 0.5
    %v3821 = vtanh.pop %v3819
    %v3822 = vtanh.pop %v3820
    %v3823 = vmul.f32 %v3821, 0.5
    %v3824 = vmul.f32 %v3822, 0.5
    %v3825 = vadd.f32 %v3823, 0.5
    %v3826 = vadd.f32 %v3824, 0.5
    %v3827 = vadd.f32 %v3814, %v3671
    %v3828 = vmul.f32 %v3825, %v3827
    %v3829 = vadd.f32 %v3675, %v3828
    %v3830 = vtanh.pop %v3829
    %v3831 = vsub.f32 0.0, %v3830
    %v3832 = vmul.f32 %v3826, %v3831
    %v3833 = vadd.f32 %v3830, %v3832
    %3834 = vst [vmem:[#allocation2] sm:$0xff] %v3833
    %v3835 = vld [vmem:[#allocation3 + $0x18] sm:$0xff]
    %v3836 = vld [vmem:[#allocation3 + $0x20] sm:$0xff]
    %v3837 = vld [vmem:[#allocation3 + $0x28] sm:$0xff]
    %3838 = vmatprep.subr.mxu0 %v3230
    %3839 = vmatpush1.msra.mxu0 %v3229
    %3840 = vmatprep.subr.mxu0 %v3233
    %3841 = vmatpush1.msra.mxu0 %v3232
    %3842 = vmatprep.subr.mxu0 %v3236
    %3843 = vmatpush1.msra.mxu0 %v3235
    %3844 = vmatprep.subr.mxu0 %v3239
    %3845 = vmatpush1.msra.mxu0 %v3238
    %3846 = vmatprep.subr.mxu0 %v3242
    %3847 = vmatpush1.msra.mxu0 %v3241
    %3848 = vmatprep.subr.mxu0 %v3245
    %3849 = vmatpush1.msra.mxu0 %v3244
    %3850 = vmatprep.subr.mxu0 %v3248
    %3851 = vmatpush1.msra.mxu0 %v3247
    %3852 = vmatprep.subr.mxu0 %v3251
    %3853 = vmatpush1.msra.mxu0 %v3250
    %3854 = vmatprep.subr.mxu0 %v3254
    %3855 = vmatpush1.msra.mxu0 %v3253
    %3856 = vmatprep.subr.mxu0 %v3257
    %3857 = vmatpush1.msra.mxu0 %v3256
    %3858 = vmatprep.subr.mxu0 %v3260
    %3859 = vmatpush1.msra.mxu0 %v3259
    %3860 = vmatprep.subr.mxu0 %v3263
    %3861 = vmatpush1.msra.mxu0 %v3262
    %3862 = vmatprep.subr.mxu0 %v3266
    %3863 = vmatpush1.msra.mxu0 %v3265
    %3864 = vmatprep.subr.mxu0 %v3269
    %3865 = vmatpush1.msra.mxu0 %v3268
    %3866 = vmatprep.subr.mxu0 %v3272
    %3867 = vmatpush1.msra.mxu0 %v3271
    %3868 = vmatprep.subr.mxu0 %v3275
    %3869 = vmatpush1.msra.mxu0 %v3274
    %3870 = vmatprep.subr.mxu0 0.0
    %3871 = vmatpush1.msra.mxu0 0.0
    %3872 = vmatprep.subr.mxu0 0.0
    %3873 = vmatpush1.msra.mxu0 0.0
    %3874 = vmatprep.subr.mxu0 0.0
    %3875 = vmatpush1.msra.mxu0 0.0
    %3876 = vmatprep.subr.mxu0 0.0
    %3877 = vmatpush1.msra.mxu0 0.0
    %3878 = vmatprep.subr.mxu0 0.0
    %3879 = vmatpush1.msra.mxu0 0.0
    %3880 = vmatprep.subr.mxu0 0.0
    %3881 = vmatpush1.msra.mxu0 0.0
    %3882 = vmatprep.subr.mxu0 0.0
    %3883 = vmatpush1.msra.mxu0 0.0
    %3884 = vmatprep.subr.mxu0 0.0
    %3885 = vmatpush1.msra.mxu0 0.0
    %3886 = vmatprep.subr.mxu0 0.0
    %3887 = vmatpush1.msra.mxu0 0.0
    %3888 = vmatprep.subr.mxu0 0.0
    %3889 = vmatpush1.msra.mxu0 0.0
    %3890 = vmatprep.subr.mxu0 0.0
    %3891 = vmatpush1.msra.mxu0 0.0
    %3892 = vmatprep.subr.mxu0 0.0
    %3893 = vmatpush1.msra.mxu0 0.0
    %3894 = vmatprep.subr.mxu0 0.0
    %3895 = vmatpush1.msra.mxu0 0.0
    %3896 = vmatprep.subr.mxu0 0.0
    %3897 = vmatpush1.msra.mxu0 0.0
    %3898 = vmatprep.subr.mxu0 0.0
    %3899 = vmatpush1.msra.mxu0 0.0
    %3900 = vmatprep.subr.mxu0 0.0
    %3901 = vmatpush1.msra.mxu0 0.0
    %3902 = vmatprep.mubr.f32.mxu0 0.0
    %3903 = vmatmul.mubr.f32.gmra.mrb[0].mxu0 %v3833
    %v3904 = vpop.f32.mrb[0].mxu0
    %v3905 = vadd.f32 0.0, %v3904
    %v3906 = vpop.f32.mrb[0].mxu0
    %v3907 = vadd.f32 0.0, %v3906
    %3908 = vdwg.mxu0
    %3909 = vmatprep.subr.mxu0 0.0
    %3910 = vmatpush1.msra.mxu0 %v3231
    %3911 = vmatprep.subr.mxu0 0.0
    %3912 = vmatpush1.msra.mxu0 %v3234
    %3913 = vmatprep.subr.mxu0 0.0
    %3914 = vmatpush1.msra.mxu0 %v3237
    %3915 = vmatprep.subr.mxu0 0.0
    %3916 = vmatpush1.msra.mxu0 %v3240
    %3917 = vmatprep.subr.mxu0 0.0
    %3918 = vmatpush1.msra.mxu0 %v3243
    %3919 = vmatprep.subr.mxu0 0.0
    %3920 = vmatpush1.msra.mxu0 %v3246
    %3921 = vmatprep.subr.mxu0 0.0
    %3922 = vmatpush1.msra.mxu0 %v3249
    %3923 = vmatprep.subr.mxu0 0.0
    %3924 = vmatpush1.msra.mxu0 %v3252
    %3925 = vmatprep.subr.mxu0 0.0
    %3926 = vmatpush1.msra.mxu0 %v3255
    %3927 = vmatprep.subr.mxu0 0.0
    %3928 = vmatpush1.msra.mxu0 %v3258
    %3929 = vmatprep.subr.mxu0 0.0
    %3930 = vmatpush1.msra.mxu0 %v3261
    %3931 = vmatprep.subr.mxu0 0.0
    %3932 = vmatpush1.msra.mxu0 %v3264
    %3933 = vmatprep.subr.mxu0 0.0
    %3934 = vmatpush1.msra.mxu0 %v3267
    %3935 = vmatprep.subr.mxu0 0.0
    %3936 = vmatpush1.msra.mxu0 %v3270
    %3937 = vmatprep.subr.mxu0 0.0
    %3938 = vmatpush1.msra.mxu0 %v3273
    %3939 = vmatprep.subr.mxu0 0.0
    %3940 = vmatpush1.msra.mxu0 %v3276
    %3941 = vmatprep.subr.mxu0 0.0
    %3942 = vmatpush1.msra.mxu0 0.0
    %3943 = vmatprep.subr.mxu0 0.0
    %3944 = vmatpush1.msra.mxu0 0.0
    %3945 = vmatprep.subr.mxu0 0.0
    %3946 = vmatpush1.msra.mxu0 0.0
    %3947 = vmatprep.subr.mxu0 0.0
    %3948 = vmatpush1.msra.mxu0 0.0
    %3949 = vmatprep.subr.mxu0 0.0
    %3950 = vmatpush1.msra.mxu0 0.0
    %3951 = vmatprep.subr.mxu0 0.0
    %3952 = vmatpush1.msra.mxu0 0.0
    %3953 = vmatprep.subr.mxu0 0.0
    %3954 = vmatpush1.msra.mxu0 0.0
    %3955 = vmatprep.subr.mxu0 0.0
    %3956 = vmatpush1.msra.mxu0 0.0
    %3957 = vmatprep.subr.mxu0 0.0
    %3958 = vmatpush1.msra.mxu0 0.0
    %3959 = vmatprep.subr.mxu0 0.0
    %3960 = vmatpush1.msra.mxu0 0.0
    %3961 = vmatprep.subr.mxu0 0.0
    %3962 = vmatpush1.msra.mxu0 0.0
    %3963 = vmatprep.subr.mxu0 0.0
    %3964 = vmatpush1.msra.mxu0 0.0
    %3965 = vmatprep.subr.mxu0 0.0
    %3966 = vmatpush1.msra.mxu0 0.0
    %3967 = vmatprep.subr.mxu0 0.0
    %3968 = vmatpush1.msra.mxu0 0.0
    %3969 = vmatprep.subr.mxu0 0.0
    %3970 = vmatpush1.msra.mxu0 0.0
    %3971 = vmatprep.subr.mxu0 0.0
    %3972 = vmatpush1.msra.mxu0 0.0
    %3973 = vmatprep.mubr.f32.mxu0 0.0
    %3974 = vmatmul.mubr.f32.gmra.mrb[0].mxu0 %v3833
    %v3975 = vpop.f32.mrb[0].mxu0
    %v3976 = vadd.f32 0.0, %v3975
    %v3977 = vpop.f32.mrb[0].mxu0
    %3978 = vdwg.mxu0
    %v3979 = vadd.f32 %v3835, %v3905
    %v3980 = vadd.f32 %v3836, %v3907
    %v3981 = vmul.f32 %v3979, 0.5
    %v3982 = vmul.f32 %v3980, 0.5
    %v3983 = vtanh.pop %v3981
    %v3984 = vtanh.pop %v3982
    %v3985 = vmul.f32 %v3983, 0.5
    %v3986 = vmul.f32 %v3984, 0.5
    %v3987 = vadd.f32 %v3985, 0.5
    %v3988 = vadd.f32 %v3986, 0.5
    %v3989 = vadd.f32 %v3976, %v3671
    %v3990 = vmul.f32 %v3987, %v3989
    %v3991 = vadd.f32 %v3837, %v3990
    %v3992 = vtanh.pop %v3991
    %v3993 = vsub.f32 %v3833, %v3992
    %v3994 = vmul.f32 %v3988, %v3993
    %v3995 = vadd.f32 %v3992, %v3994
    %3996 = vst [vmem:[#allocation2 + $0x8] sm:$0xff] %v3995
    %v3997 = vld [vmem:[#allocation3 + $0x30] sm:$0xff]
    %v3998 = vld [vmem:[#allocation3 + $0x38] sm:$0xff]
    %v3999 = vld [vmem:[#allocation3 + $0x40] sm:$0xff]
    %4000 = vmatprep.subr.mxu0 %v3230
    %4001 = vmatpush1.msra.mxu0 %v3229
    %4002 = vmatprep.subr.mxu0 %v3233
    %4003 = vmatpush1.msra.mxu0 %v3232
    %4004 = vmatprep.subr.mxu0 %v3236
    %4005 = vmatpush1.msra.mxu0 %v3235
    %4006 = vmatprep.subr.mxu0 %v3239
    %4007 = vmatpush1.msra.mxu0 %v3238
    %4008 = vmatprep.subr.mxu0 %v3242
    %4009 = vmatpush1.msra.mxu0 %v3241
    %4010 = vmatprep.subr.mxu0 %v3245
    %4011 = vmatpush1.msra.mxu0 %v3244
    %4012 = vmatprep.subr.mxu0 %v3248
    %4013 = vmatpush1.msra.mxu0 %v3247
    %4014 = vmatprep.subr.mxu0 %v3251
    %4015 = vmatpush1.msra.mxu0 %v3250
    %4016 = vmatprep.subr.mxu0 %v3254
    %4017 = vmatpush1.msra.mxu0 %v3253
    %4018 = vmatprep.subr.mxu0 %v3257
    %4019 = vmatpush1.msra.mxu0 %v3256
    %4020 = vmatprep.subr.mxu0 %v3260
    %4021 = vmatpush1.msra.mxu0 %v3259
    %4022 = vmatprep.subr.mxu0 %v3263
    %4023 = vmatpush1.msra.mxu0 %v3262
    %4024 = vmatprep.subr.mxu0 %v3266
    %4025 = vmatpush1.msra.mxu0 %v3265
    %4026 = vmatprep.subr.mxu0 %v3269
    %4027 = vmatpush1.msra.mxu0 %v3268
    %4028 = vmatprep.subr.mxu0 %v3272
    %4029 = vmatpush1.msra.mxu0 %v3271
    %4030 = vmatprep.subr.mxu0 %v3275
    %4031 = vmatpush1.msra.mxu0 %v3274
    %4032 = vmatprep.subr.mxu0 0.0
    %4033 = vmatpush1.msra.mxu0 0.0
    %4034 = vmatprep.subr.mxu0 0.0
    %4035 = vmatpush1.msra.mxu0 0.0
    %4036 = vmatprep.subr.mxu0 0.0
    %4037 = vmatpush1.msra.mxu0 0.0
    %4038 = vmatprep.subr.mxu0 0.0
    %4039 = vmatpush1.msra.mxu0 0.0
    %4040 = vmatprep.subr.mxu0 0.0
    %4041 = vmatpush1.msra.mxu0 0.0
    %4042 = vmatprep.subr.mxu0 0.0
    %4043 = vmatpush1.msra.mxu0 0.0
    %4044 = vmatprep.subr.mxu0 0.0
    %4045 = vmatpush1.msra.mxu0 0.0
    %4046 = vmatprep.subr.mxu0 0.0
    %4047 = vmatpush1.msra.mxu0 0.0
    %4048 = vmatprep.subr.mxu0 0.0
    %4049 = vmatpush1.msra.mxu0 0.0
    %4050 = vmatprep.subr.mxu0 0.0
    %4051 = vmatpush1.msra.mxu0 0.0
    %4052 = vmatprep.subr.mxu0 0.0
    %4053 = vmatpush1.msra.mxu0 0.0
    %4054 = vmatprep.subr.mxu0 0.0
    %4055 = vmatpush1.msra.mxu0 0.0
    %4056 = vmatprep.subr.mxu0 0.0
    %4057 = vmatpush1.msra.mxu0 0.0
    %4058 = vmatprep.subr.mxu0 0.0
    %4059 = vmatpush1.msra.mxu0 0.0
    %4060 = vmatprep.subr.mxu0 0.0
    %4061 = vmatpush1.msra.mxu0 0.0
    %4062 = vmatprep.subr.mxu0 0.0
    %4063 = vmatpush1.msra.mxu0 0.0
    %4064 = vmatprep.mubr.f32.mxu0 0.0
    %4065 = vmatmul.mubr.f32.gmra.mrb[0].mxu0 %v3995
    %v4066 = vpop.f32.mrb[0].mxu0
    %v4067 = vadd.f32 0.0, %v4066
    %v4068 = vpop.f32.mrb[0].mxu0
    %v4069 = vadd.f32 0.0, %v4068
    %4070 = vdwg.mxu0
    %4071 = vmatprep.subr.mxu0 0.0
    %4072 = vmatpush1.msra.mxu0 %v3231
    %4073 = vmatprep.subr.mxu0 0.0
    %4074 = vmatpush1.msra.mxu0 %v3234
    %4075 = vmatprep.subr.mxu0 0.0
    %4076 = vmatpush1.msra.mxu0 %v3237
    %4077 = vmatprep.subr.mxu0 0.0
    %4078 = vmatpush1.msra.mxu0 %v3240
    %4079 = vmatprep.subr.mxu0 0.0
    %4080 = vmatpush1.msra.mxu0 %v3243
    %4081 = vmatprep.subr.mxu0 0.0
    %4082 = vmatpush1.msra.mxu0 %v3246
    %4083 = vmatprep.subr.mxu0 0.0
    %4084 = vmatpush1.msra.mxu0 %v3249
    %4085 = vmatprep.subr.mxu0 0.0
    %4086 = vmatpush1.msra.mxu0 %v3252
    %4087 = vmatprep.subr.mxu0 0.0
    %4088 = vmatpush1.msra.mxu0 %v3255
    %4089 = vmatprep.subr.mxu0 0.0
    %4090 = vmatpush1.msra.mxu0 %v3258
    %4091 = vmatprep.subr.mxu0 0.0
    %4092 = vmatpush1.msra.mxu0 %v3261
    %4093 = vmatprep.subr.mxu0 0.0
    %4094 = vmatpush1.msra.mxu0 %v3264
    %4095 = vmatprep.subr.mxu0 0.0
    %4096 = vmatpush1.msra.mxu0 %v3267
    %4097 = vmatprep.subr.mxu0 0.0
    %4098 = vmatpush1.msra.mxu0 %v3270
    %4099 = vmatprep.subr.mxu0 0.0
    %4100 = vmatpush1.msra.mxu0 %v3273
    %4101 = vmatprep.subr.mxu0 0.0
    %4102 = vmatpush1.msra.mxu0 %v3276
    %4103 = vmatprep.subr.mxu0 0.0
    %4104 = vmatpush1.msra.mxu0 0.0
    %4105 = vmatprep.subr.mxu0 0.0
    %4106 = vmatpush1.msra.mxu0 0.0
    %4107 = vmatprep.subr.mxu0 0.0
    %4108 = vmatpush1.msra.mxu0 0.0
    %4109 = vmatprep.subr.mxu0 0.0
    %4110 = vmatpush1.msra.mxu0 0.0
    %4111 = vmatprep.subr.mxu0 0.0
    %4112 = vmatpush1.msra.mxu0 0.0
    %4113 = vmatprep.subr.mxu0 0.0
    %4114 = vmatpush1.msra.mxu0 0.0
    %4115 = vmatprep.subr.mxu0 0.0
    %4116 = vmatpush1.msra.mxu0 0.0
    %4117 = vmatprep.subr.mxu0 0.0
    %4118 = vmatpush1.msra.mxu0 0.0
    %4119 = vmatprep.subr.mxu0 0.0
    %4120 = vmatpush1.msra.mxu0 0.0
    %4121 = vmatprep.subr.mxu0 0.0
    %4122 = vmatpush1.msra.mxu0 0.0
    %4123 = vmatprep.subr.mxu0 0.0
    %4124 = vmatpush1.msra.mxu0 0.0
    %4125 = vmatprep.subr.mxu0 0.0
    %4126 = vmatpush1.msra.mxu0 0.0
    %4127 = vmatprep.subr.mxu0 0.0
    %4128 = vmatpush1.msra.mxu0 0.0
    %4129 = vmatprep.subr.mxu0 0.0
    %4130 = vmatpush1.msra.mxu0 0.0
    %4131 = vmatprep.subr.mxu0 0.0
    %4132 = vmatpush1.msra.mxu0 0.0
    %4133 = vmatprep.subr.mxu0 0.0
    %4134 = vmatpush1.msra.mxu0 0.0
    %4135 = vmatprep.mubr.f32.mxu0 0.0
    %4136 = vmatmul.mubr.f32.gmra.mrb[0].mxu0 %v3995
    %v4137 = vpop.f32.mrb[0].mxu0
    %v4138 = vadd.f32 0.0, %v4137
    %v4139 = vpop.f32.mrb[0].mxu0
    %4140 = vdwg.mxu0
    %v4141 = vadd.f32 %v3997, %v4067
    %v4142 = vadd.f32 %v3998, %v4069
    %v4143 = vmul.f32 %v4141, 0.5
    %v4144 = vmul.f32 %v4142, 0.5
    %v4145 = vtanh.pop %v4143
    %v4146 = vtanh.pop %v4144
    %v4147 = vmul.f32 %v4145, 0.5
    %v4148 = vmul.f32 %v4146, 0.5
    %v4149 = vadd.f32 %v4147, 0.5
    %v4150 = vadd.f32 %v4148, 0.5
    %v4151 = vadd.f32 %v4138, %v3671
    %v4152 = vmul.f32 %v4149, %v4151
    %v4153 = vadd.f32 %v3999, %v4152
    %v4154 = vtanh.pop %v4153
    %v4155 = vsub.f32 %v3995, %v4154
    %v4156 = vmul.f32 %v4150, %v4155
    %v4157 = vadd.f32 %v4154, %v4156
    %4158 = vst [vmem:[#allocation2 + $0x10] sm:$0xff] %v4157
    %v4159 = vld [vmem:[#allocation3 + $0x48] sm:$0xff]
    %v4160 = vld [vmem:[#allocation3 + $0x50] sm:$0xff]
    %v4161 = vld [vmem:[#allocation3 + $0x58] sm:$0xff]
    %4162 = vmatprep.subr.mxu0 %v3230
    %4163 = vmatpush1.msra.mxu0 %v3229
    %4164 = vmatprep.subr.mxu0 %v3233
    %4165 = vmatpush1.msra.mxu0 %v3232
    %4166 = vmatprep.subr.mxu0 %v3236
    %4167 = vmatpush1.msra.mxu0 %v3235
    %4168 = vmatprep.subr.mxu0 %v3239
    %4169 = vmatpush1.msra.mxu0 %v3238
    %4170 = vmatprep.subr.mxu0 %v3242
    %4171 = vmatpush1.msra.mxu0 %v3241
    %4172 = vmatprep.subr.mxu0 %v3245
    %4173 = vmatpush1.msra.mxu0 %v3244
    %4174 = vmatprep.subr.mxu0 %v3248
    %4175 = vmatpush1.msra.mxu0 %v3247
    %4176 = vmatprep.subr.mxu0 %v3251
    %4177 = vmatpush1.msra.mxu0 %v3250
    %4178 = vmatprep.subr.mxu0 %v3254
    %4179 = vmatpush1.msra.mxu0 %v3253
    %4180 = vmatprep.subr.mxu0 %v3257
    %4181 = vmatpush1.msra.mxu0 %v3256
    %4182 = vmatprep.subr.mxu0 %v3260
    %4183 = vmatpush1.msra.mxu0 %v3259
    %4184 = vmatprep.subr.mxu0 %v3263
    %4185 = vmatpush1.msra.mxu0 %v3262
    %4186 = vmatprep.subr.mxu0 %v3266
    %4187 = vmatpush1.msra.mxu0 %v3265
    %4188 = vmatprep.subr.mxu0 %v3269
    %4189 = vmatpush1.msra.mxu0 %v3268
    %4190 = vmatprep.subr.mxu0 %v3272
    %4191 = vmatpush1.msra.mxu0 %v3271
    %4192 = vmatprep.subr.mxu0 %v3275
    %4193 = vmatpush1.msra.mxu0 %v3274
    %4194 = vmatprep.subr.mxu0 0.0
    %4195 = vmatpush1.msra.mxu0 0.0
    %4196 = vmatprep.subr.mxu0 0.0
    %4197 = vmatpush1.msra.mxu0 0.0
    %4198 = vmatprep.subr.mxu0 0.0
    %4199 = vmatpush1.msra.mxu0 0.0
    %4200 = vmatprep.subr.mxu0 0.0
    %4201 = vmatpush1.msra.mxu0 0.0
    %4202 = vmatprep.subr.mxu0 0.0
    %4203 = vmatpush1.msra.mxu0 0.0
    %4204 = vmatprep.subr.mxu0 0.0
    %4205 = vmatpush1.msra.mxu0 0.0
    %4206 = vmatprep.subr.mxu0 0.0
    %4207 = vmatpush1.msra.mxu0 0.0
    %4208 = vmatprep.subr.mxu0 0.0
    %4209 = vmatpush1.msra.mxu0 0.0
    %4210 = vmatprep.subr.mxu0 0.0
    %4211 = vmatpush1.msra.mxu0 0.0
    %4212 = vmatprep.subr.mxu0 0.0
    %4213 = vmatpush1.msra.mxu0 0.0
    %4214 = vmatprep.subr.mxu0 0.0
    %4215 = vmatpush1.msra.mxu0 0.0
    %4216 = vmatprep.subr.mxu0 0.0
    %4217 = vmatpush1.msra.mxu0 0.0
    %4218 = vmatprep.subr.mxu0 0.0
    %4219 = vmatpush1.msra.mxu0 0.0
    %4220 = vmatprep.subr.mxu0 0.0
    %4221 = vmatpush1.msra.mxu0 0.0
    %4222 = vmatprep.subr.mxu0 0.0
    %4223 = vmatpush1.msra.mxu0 0.0
    %4224 = vmatprep.subr.mxu0 0.0
    %4225 = vmatpush1.msra.mxu0 0.0
    %4226 = vmatprep.mubr.f32.mxu0 0.0
    %4227 = vmatmul.mubr.f32.gmra.mrb[0].mxu0 %v4157
    %v4228 = vpop.f32.mrb[0].mxu0
    %v4229 = vadd.f32 0.0, %v4228
    %v4230 = vpop.f32.mrb[0].mxu0
    %v4231 = vadd.f32 0.0, %v4230
    %4232 = vdwg.mxu0
    %4233 = vmatprep.subr.mxu0 0.0
    %4234 = vmatpush1.msra.mxu0 %v3231
    %4235 = vmatprep.subr.mxu0 0.0
    %4236 = vmatpush1.msra.mxu0 %v3234
    %4237 = vmatprep.subr.mxu0 0.0
    %4238 = vmatpush1.msra.mxu0 %v3237
    %4239 = vmatprep.subr.mxu0 0.0
    %4240 = vmatpush1.msra.mxu0 %v3240
    %4241 = vmatprep.subr.mxu0 0.0
    %4242 = vmatpush1.msra.mxu0 %v3243
    %4243 = vmatprep.subr.mxu0 0.0
    %4244 = vmatpush1.msra.mxu0 %v3246
    %4245 = vmatprep.subr.mxu0 0.0
    %4246 = vmatpush1.msra.mxu0 %v3249
    %4247 = vmatprep.subr.mxu0 0.0
    %4248 = vmatpush1.msra.mxu0 %v3252
    %4249 = vmatprep.subr.mxu0 0.0
    %4250 = vmatpush1.msra.mxu0 %v3255
    %4251 = vmatprep.subr.mxu0 0.0
    %4252 = vmatpush1.msra.mxu0 %v3258
    %4253 = vmatprep.subr.mxu0 0.0
    %4254 = vmatpush1.msra.mxu0 %v3261
    %4255 = vmatprep.subr.mxu0 0.0
    %4256 = vmatpush1.msra.mxu0 %v3264
    %4257 = vmatprep.subr.mxu0 0.0
    %4258 = vmatpush1.msra.mxu0 %v3267
    %4259 = vmatprep.subr.mxu0 0.0
    %4260 = vmatpush1.msra.mxu0 %v3270
    %4261 = vmatprep.subr.mxu0 0.0
    %4262 = vmatpush1.msra.mxu0 %v3273
    %4263 = vmatprep.subr.mxu0 0.0
    %4264 = vmatpush1.msra.mxu0 %v3276
    %4265 = vmatprep.subr.mxu0 0.0
    %4266 = vmatpush1.msra.mxu0 0.0
    %4267 = vmatprep.subr.mxu0 0.0
    %4268 = vmatpush1.msra.mxu0 0.0
    %4269 = vmatprep.subr.mxu0 0.0
    %4270 = vmatpush1.msra.mxu0 0.0
    %4271 = vmatprep.subr.mxu0 0.0
    %4272 = vmatpush1.msra.mxu0 0.0
    %4273 = vmatprep.subr.mxu0 0.0
    %4274 = vmatpush1.msra.mxu0 0.0
    %4275 = vmatprep.subr.mxu0 0.0
    %4276 = vmatpush1.msra.mxu0 0.0
    %4277 = vmatprep.subr.mxu0 0.0
    %4278 = vmatpush1.msra.mxu0 0.0
    %4279 = vmatprep.subr.mxu0 0.0
    %4280 = vmatpush1.msra.mxu0 0.0
    %4281 = vmatprep.subr.mxu0 0.0
    %4282 = vmatpush1.msra.mxu0 0.0
    %4283 = vmatprep.subr.mxu0 0.0
    %4284 = vmatpush1.msra.mxu0 0.0
    %4285 = vmatprep.subr.mxu0 0.0
    %4286 = vmatpush1.msra.mxu0 0.0
    %4287 = vmatprep.subr.mxu0 0.0
    %4288 = vmatpush1.msra.mxu0 0.0
    %4289 = vmatprep.subr.mxu0 0.0
    %4290 = vmatpush1.msra.mxu0 0.0
    %4291 = vmatprep.subr.mxu0 0.0
    %4292 = vmatpush1.msra.mxu0 0.0
    %4293 = vmatprep.subr.mxu0 0.0
    %4294 = vmatpush1.msra.mxu0 0.0
    %4295 = vmatprep.subr.mxu0 0.0
    %4296 = vmatpush1.msra.mxu0 0.0
    %4297 = vmatprep.mubr.f32.mxu0 0.0
    %4298 = vmatmul.mubr.f32.gmra.mrb[0].mxu0 %v4157
    %v4299 = vpop.f32.mrb[0].mxu0
    %v4300 = vadd.f32 0.0, %v4299
    %v4301 = vpop.f32.mrb[0].mxu0
    %4302 = vdwg.mxu0
    %v4303 = vadd.f32 %v4159, %v4229
    %v4304 = vadd.f32 %v4160, %v4231
    %v4305 = vmul.f32 %v4303, 0.5
    %v4306 = vmul.f32 %v4304, 0.5
    %v4307 = vtanh.pop %v4305
    %v4308 = vtanh.pop %v4306
    %v4309 = vmul.f32 %v4307, 0.5
    %v4310 = vmul.f32 %v4308, 0.5
    %v4311 = vadd.f32 %v4309, 0.5
    %v4312 = vadd.f32 %v4310, 0.5
    %v4313 = vadd.f32 %v4300, %v3671
    %v4314 = vmul.f32 %v4311, %v4313
    %v4315 = vadd.f32 %v4161, %v4314
    %v4316 = vtanh.pop %v4315
    %v4317 = vsub.f32 %v4157, %v4316
    %v4318 = vmul.f32 %v4312, %v4317
    %v4319 = vadd.f32 %v4316, %v4318
    %4320 = vst [vmem:[#allocation2 + $0x18] sm:$0xff] %v4319
    %v4321 = vld [vmem:[#allocation3 + $0x60] sm:$0xff]
    %v4322 = vld [vmem:[#allocation3 + $0x68] sm:$0xff]
    %v4323 = vld [vmem:[#allocation3 + $0x70] sm:$0xff]
    %4324 = vmatprep.subr.mxu0 %v3230
    %4325 = vmatpush1.msra.mxu0 %v3229
    %4326 = vmatprep.subr.mxu0 %v3233
    %4327 = vmatpush1.msra.mxu0 %v3232
    %4328 = vmatprep.subr.mxu0 %v3236
    %4329 = vmatpush1.msra.mxu0 %v3235
    %4330 = vmatprep.subr.mxu0 %v3239
    %4331 = vmatpush1.msra.mxu0 %v3238
    %4332 = vmatprep.subr.mxu0 %v3242
    %4333 = vmatpush1.msra.mxu0 %v3241
    %4334 = vmatprep.subr.mxu0 %v3245
    %4335 = vmatpush1.msra.mxu0 %v3244
    %4336 = vmatprep.subr.mxu0 %v3248
    %4337 = vmatpush1.msra.mxu0 %v3247
    %4338 = vmatprep.subr.mxu0 %v3251
    %4339 = vmatpush1.msra.mxu0 %v3250
    %4340 = vmatprep.subr.mxu0 %v3254
    %4341 = vmatpush1.msra.mxu0 %v3253
    %4342 = vmatprep.subr.mxu0 %v3257
    %4343 = vmatpush1.msra.mxu0 %v3256
    %4344 = vmatprep.subr.mxu0 %v3260
    %4345 = vmatpush1.msra.mxu0 %v3259
    %4346 = vmatprep.subr.mxu0 %v3263
    %4347 = vmatpush1.msra.mxu0 %v3262
    %4348 = vmatprep.subr.mxu0 %v3266
    %4349 = vmatpush1.msra.mxu0 %v3265
    %4350 = vmatprep.subr.mxu0 %v3269
    %4351 = vmatpush1.msra.mxu0 %v3268
    %4352 = vmatprep.subr.mxu0 %v3272
    %4353 = vmatpush1.msra.mxu0 %v3271
    %4354 = vmatprep.subr.mxu0 %v3275
    %4355 = vmatpush1.msra.mxu0 %v3274
    %4356 = vmatprep.subr.mxu0 0.0
    %4357 = vmatpush1.msra.mxu0 0.0
    %4358 = vmatprep.subr.mxu0 0.0
    %4359 = vmatpush1.msra.mxu0 0.0
    %4360 = vmatprep.subr.mxu0 0.0
    %4361 = vmatpush1.msra.mxu0 0.0
    %4362 = vmatprep.subr.mxu0 0.0
    %4363 = vmatpush1.msra.mxu0 0.0
    %4364 = vmatprep.subr.mxu0 0.0
    %4365 = vmatpush1.msra.mxu0 0.0
    %4366 = vmatprep.subr.mxu0 0.0
    %4367 = vmatpush1.msra.mxu0 0.0
    %4368 = vmatprep.subr.mxu0 0.0
    %4369 = vmatpush1.msra.mxu0 0.0
    %4370 = vmatprep.subr.mxu0 0.0
    %4371 = vmatpush1.msra.mxu0 0.0
    %4372 = vmatprep.subr.mxu0 0.0
    %4373 = vmatpush1.msra.mxu0 0.0
    %4374 = vmatprep.subr.mxu0 0.0
    %4375 = vmatpush1.msra.mxu0 0.0
    %4376 = vmatprep.subr.mxu0 0.0
    %4377 = vmatpush1.msra.mxu0 0.0
    %4378 = vmatprep.subr.mxu0 0.0
    %4379 = vmatpush1.msra.mxu0 0.0
    %4380 = vmatprep.subr.mxu0 0.0
    %4381 = vmatpush1.msra.mxu0 0.0
    %4382 = vmatprep.subr.mxu0 0.0
    %4383 = vmatpush1.msra.mxu0 0.0
    %4384 = vmatprep.subr.mxu0 0.0
    %4385 = vmatpush1.msra.mxu0 0.0
    %4386 = vmatprep.subr.mxu0 0.0
    %4387 = vmatpush1.msra.mxu0 0.0
    %4388 = vmatprep.mubr.f32.mxu0 0.0
    %4389 = vmatmul.mubr.f32.gmra.mrb[0].mxu0 %v4319
    %v4390 = vpop.f32.mrb[0].mxu0
    %v4391 = vadd.f32 0.0, %v4390
    %v4392 = vpop.f32.mrb[0].mxu0
    %v4393 = vadd.f32 0.0, %v4392
    %4394 = vdwg.mxu0
    %4395 = vmatprep.subr.mxu0 0.0
    %4396 = vmatpush1.msra.mxu0 %v3231
    %4397 = vmatprep.subr.mxu0 0.0
    %4398 = vmatpush1.msra.mxu0 %v3234
    %4399 = vmatprep.subr.mxu0 0.0
    %4400 = vmatpush1.msra.mxu0 %v3237
    %4401 = vmatprep.subr.mxu0 0.0
    %4402 = vmatpush1.msra.mxu0 %v3240
    %4403 = vmatprep.subr.mxu0 0.0
    %4404 = vmatpush1.msra.mxu0 %v3243
    %4405 = vmatprep.subr.mxu0 0.0
    %4406 = vmatpush1.msra.mxu0 %v3246
    %4407 = vmatprep.subr.mxu0 0.0
    %4408 = vmatpush1.msra.mxu0 %v3249
    %4409 = vmatprep.subr.mxu0 0.0
    %4410 = vmatpush1.msra.mxu0 %v3252
    %4411 = vmatprep.subr.mxu0 0.0
    %4412 = vmatpush1.msra.mxu0 %v3255
    %4413 = vmatprep.subr.mxu0 0.0
    %4414 = vmatpush1.msra.mxu0 %v3258
    %4415 = vmatprep.subr.mxu0 0.0
    %4416 = vmatpush1.msra.mxu0 %v3261
    %4417 = vmatprep.subr.mxu0 0.0
    %4418 = vmatpush1.msra.mxu0 %v3264
    %4419 = vmatprep.subr.mxu0 0.0
    %4420 = vmatpush1.msra.mxu0 %v3267
    %4421 = vmatprep.subr.mxu0 0.0
    %4422 = vmatpush1.msra.mxu0 %v3270
    %4423 = vmatprep.subr.mxu0 0.0
    %4424 = vmatpush1.msra.mxu0 %v3273
    %4425 = vmatprep.subr.mxu0 0.0
    %4426 = vmatpush1.msra.mxu0 %v3276
    %4427 = vmatprep.subr.mxu0 0.0
    %4428 = vmatpush1.msra.mxu0 0.0
    %4429 = vmatprep.subr.mxu0 0.0
    %4430 = vmatpush1.msra.mxu0 0.0
    %4431 = vmatprep.subr.mxu0 0.0
    %4432 = vmatpush1.msra.mxu0 0.0
    %4433 = vmatprep.subr.mxu0 0.0
    %4434 = vmatpush1.msra.mxu0 0.0
    %4435 = vmatprep.subr.mxu0 0.0
    %4436 = vmatpush1.msra.mxu0 0.0
    %4437 = vmatprep.subr.mxu0 0.0
    %4438 = vmatpush1.msra.mxu0 0.0
    %4439 = vmatprep.subr.mxu0 0.0
    %4440 = vmatpush1.msra.mxu0 0.0
    %4441 = vmatprep.subr.mxu0 0.0
    %4442 = vmatpush1.msra.mxu0 0.0
    %4443 = vmatprep.subr.mxu0 0.0
    %4444 = vmatpush1.msra.mxu0 0.0
    %4445 = vmatprep.subr.mxu0 0.0
    %4446 = vmatpush1.msra.mxu0 0.0
    %4447 = vmatprep.subr.mxu0 0.0
    %4448 = vmatpush1.msra.mxu0 0.0
    %4449 = vmatprep.subr.mxu0 0.0
    %4450 = vmatpush1.msra.mxu0 0.0
    %4451 = vmatprep.subr.mxu0 0.0
    %4452 = vmatpush1.msra.mxu0 0.0
    %4453 = vmatprep.subr.mxu0 0.0
    %4454 = vmatpush1.msra.mxu0 0.0
    %4455 = vmatprep.subr.mxu0 0.0
    %4456 = vmatpush1.msra.mxu0 0.0
    %4457 = vmatprep.subr.mxu0 0.0
    %4458 = vmatpush1.msra.mxu0 0.0
    %4459 = vmatprep.mubr.f32.mxu0 0.0
    %4460 = vmatmul.mubr.f32.gmra.mrb[0].mxu0 %v4319
    %v4461 = vpop.f32.mrb[0].mxu0
    %v4462 = vadd.f32 0.0, %v4461
    %v4463 = vpop.f32.mrb[0].mxu0
    %4464 = vdwg.mxu0
    %v4465 = vadd.f32 %v4321, %v4391
    %v4466 = vadd.f32 %v4322, %v4393
    %v4467 = vmul.f32 %v4465, 0.5
    %v4468 = vmul.f32 %v4466, 0.5
    %v4469 = vtanh.pop %v4467
    %v4470 = vtanh.pop %v4468
    %v4471 = vmul.f32 %v4469, 0.5
    %v4472 = vmul.f32 %v4470, 0.5
    %v4473 = vadd.f32 %v4471, 0.5
    %v4474 = vadd.f32 %v4472, 0.5
    %v4475 = vadd.f32 %v4462, %v3671
    %v4476 = vmul.f32 %v4473, %v4475
    %v4477 = vadd.f32 %v4323, %v4476
    %v4478 = vtanh.pop %v4477
    %v4479 = vsub.f32 %v4319, %v4478
    %v4480 = vmul.f32 %v4474, %v4479
    %v4481 = vadd.f32 %v4478, %v4480
    %4482 = vst [vmem:[#allocation2 + $0x20] sm:$0xff] %v4481
    %v4483 = vld [vmem:[#allocation3 + $0x78] sm:$0xff]
    %v4484 = vld [vmem:[#allocation3 + $0x80] sm:$0xff]
    %v4485 = vld [vmem:[#allocation3 + $0x88] sm:$0xff]
    %4486 = vmatprep.subr.mxu0 %v3230
    %4487 = vmatpush1.msra.mxu0 %v3229
    %4488 = vmatprep.subr.mxu0 %v3233
    %4489 = vmatpush1.msra.mxu0 %v3232
    %4490 = vmatprep.subr.mxu0 %v3236
    %4491 = vmatpush1.msra.mxu0 %v3235
    %4492 = vmatprep.subr.mxu0 %v3239
    %4493 = vmatpush1.msra.mxu0 %v3238
    %4494 = vmatprep.subr.mxu0 %v3242
    %4495 = vmatpush1.msra.mxu0 %v3241
    %4496 = vmatprep.subr.mxu0 %v3245
    %4497 = vmatpush1.msra.mxu0 %v3244
    %4498 = vmatprep.subr.mxu0 %v3248
    %4499 = vmatpush1.msra.mxu0 %v3247
    %4500 = vmatprep.subr.mxu0 %v3251
    %4501 = vmatpush1.msra.mxu0 %v3250
    %4502 = vmatprep.subr.mxu0 %v3254
    %4503 = vmatpush1.msra.mxu0 %v3253
    %4504 = vmatprep.subr.mxu0 %v3257
    %4505 = vmatpush1.msra.mxu0 %v3256
    %4506 = vmatprep.subr.mxu0 %v3260
    %4507 = vmatpush1.msra.mxu0 %v3259
    %4508 = vmatprep.subr.mxu0 %v3263
    %4509 = vmatpush1.msra.mxu0 %v3262
    %4510 = vmatprep.subr.mxu0 %v3266
    %4511 = vmatpush1.msra.mxu0 %v3265
    %4512 = vmatprep.subr.mxu0 %v3269
    %4513 = vmatpush1.msra.mxu0 %v3268
    %4514 = vmatprep.subr.mxu0 %v3272
    %4515 = vmatpush1.msra.mxu0 %v3271
    %4516 = vmatprep.subr.mxu0 %v3275
    %4517 = vmatpush1.msra.mxu0 %v3274
    %4518 = vmatprep.subr.mxu0 0.0
    %4519 = vmatpush1.msra.mxu0 0.0
    %4520 = vmatprep.subr.mxu0 0.0
    %4521 = vmatpush1.msra.mxu0 0.0
    %4522 = vmatprep.subr.mxu0 0.0
    %4523 = vmatpush1.msra.mxu0 0.0
    %4524 = vmatprep.subr.mxu0 0.0
    %4525 = vmatpush1.msra.mxu0 0.0
    %4526 = vmatprep.subr.mxu0 0.0
    %4527 = vmatpush1.msra.mxu0 0.0
    %4528 = vmatprep.subr.mxu0 0.0
    %4529 = vmatpush1.msra.mxu0 0.0
    %4530 = vmatprep.subr.mxu0 0.0
    %4531 = vmatpush1.msra.mxu0 0.0
    %4532 = vmatprep.subr.mxu0 0.0
    %4533 = vmatpush1.msra.mxu0 0.0
    %4534 = vmatprep.subr.mxu0 0.0
    %4535 = vmatpush1.msra.mxu0 0.0
    %4536 = vmatprep.subr.mxu0 0.0
    %4537 = vmatpush1.msra.mxu0 0.0
    %4538 = vmatprep.subr.mxu0 0.0
    %4539 = vmatpush1.msra.mxu0 0.0
    %4540 = vmatprep.subr.mxu0 0.0
    %4541 = vmatpush1.msra.mxu0 0.0
    %4542 = vmatprep.subr.mxu0 0.0
    %4543 = vmatpush1.msra.mxu0 0.0
    %4544 = vmatprep.subr.mxu0 0.0
    %4545 = vmatpush1.msra.mxu0 0.0
    %4546 = vmatprep.subr.mxu0 0.0
    %4547 = vmatpush1.msra.mxu0 0.0
    %4548 = vmatprep.subr.mxu0 0.0
    %4549 = vmatpush1.msra.mxu0 0.0
    %4550 = vmatprep.mubr.f32.mxu0 0.0
    %4551 = vmatmul.mubr.f32.gmra.mrb[0].mxu0 %v4481
    %v4552 = vpop.f32.mrb[0].mxu0
    %v4553 = vadd.f32 0.0, %v4552
    %v4554 = vpop.f32.mrb[0].mxu0
    %v4555 = vadd.f32 0.0, %v4554
    %4556 = vdwg.mxu0
    %4557 = vmatprep.subr.mxu0 0.0
    %4558 = vmatpush1.msra.mxu0 %v3231
    %4559 = vmatprep.subr.mxu0 0.0
    %4560 = vmatpush1.msra.mxu0 %v3234
    %4561 = vmatprep.subr.mxu0 0.0
    %4562 = vmatpush1.msra.mxu0 %v3237
    %4563 = vmatprep.subr.mxu0 0.0
    %4564 = vmatpush1.msra.mxu0 %v3240
    %4565 = vmatprep.subr.mxu0 0.0
    %4566 = vmatpush1.msra.mxu0 %v3243
    %4567 = vmatprep.subr.mxu0 0.0
    %4568 = vmatpush1.msra.mxu0 %v3246
    %4569 = vmatprep.subr.mxu0 0.0
    %4570 = vmatpush1.msra.mxu0 %v3249
    %4571 = vmatprep.subr.mxu0 0.0
    %4572 = vmatpush1.msra.mxu0 %v3252
    %4573 = vmatprep.subr.mxu0 0.0
    %4574 = vmatpush1.msra.mxu0 %v3255
    %4575 = vmatprep.subr.mxu0 0.0
    %4576 = vmatpush1.msra.mxu0 %v3258
    %4577 = vmatprep.subr.mxu0 0.0
    %4578 = vmatpush1.msra.mxu0 %v3261
    %4579 = vmatprep.subr.mxu0 0.0
    %4580 = vmatpush1.msra.mxu0 %v3264
    %4581 = vmatprep.subr.mxu0 0.0
    %4582 = vmatpush1.msra.mxu0 %v3267
    %4583 = vmatprep.subr.mxu0 0.0
    %4584 = vmatpush1.msra.mxu0 %v3270
    %4585 = vmatprep.subr.mxu0 0.0
    %4586 = vmatpush1.msra.mxu0 %v3273
    %4587 = vmatprep.subr.mxu0 0.0
    %4588 = vmatpush1.msra.mxu0 %v3276
    %4589 = vmatprep.subr.mxu0 0.0
    %4590 = vmatpush1.msra.mxu0 0.0
    %4591 = vmatprep.subr.mxu0 0.0
    %4592 = vmatpush1.msra.mxu0 0.0
    %4593 = vmatprep.subr.mxu0 0.0
    %4594 = vmatpush1.msra.mxu0 0.0
    %4595 = vmatprep.subr.mxu0 0.0
    %4596 = vmatpush1.msra.mxu0 0.0
    %4597 = vmatprep.subr.mxu0 0.0
    %4598 = vmatpush1.msra.mxu0 0.0
    %4599 = vmatprep.subr.mxu0 0.0
    %4600 = vmatpush1.msra.mxu0 0.0
    %4601 = vmatprep.subr.mxu0 0.0
    %4602 = vmatpush1.msra.mxu0 0.0
    %4603 = vmatprep.subr.mxu0 0.0
    %4604 = vmatpush1.msra.mxu0 0.0
    %4605 = vmatprep.subr.mxu0 0.0
    %4606 = vmatpush1.msra.mxu0 0.0
    %4607 = vmatprep.subr.mxu0 0.0
    %4608 = vmatpush1.msra.mxu0 0.0
    %4609 = vmatprep.subr.mxu0 0.0
    %4610 = vmatpush1.msra.mxu0 0.0
    %4611 = vmatprep.subr.mxu0 0.0
    %4612 = vmatpush1.msra.mxu0 0.0
    %4613 = vmatprep.subr.mxu0 0.0
    %4614 = vmatpush1.msra.mxu0 0.0
    %4615 = vmatprep.subr.mxu0 0.0
    %4616 = vmatpush1.msra.mxu0 0.0
    %4617 = vmatprep.subr.mxu0 0.0
    %4618 = vmatpush1.msra.mxu0 0.0
    %4619 = vmatprep.subr.mxu0 0.0
    %4620 = vmatpush1.msra.mxu0 0.0
    %4621 = vmatprep.mubr.f32.mxu0 0.0
    %4622 = vmatmul.mubr.f32.gmra.mrb[0].mxu0 %v4481
    %v4623 = vpop.f32.mrb[0].mxu0
    %v4624 = vadd.f32 0.0, %v4623
    %v4625 = vpop.f32.mrb[0].mxu0
    %4626 = vdwg.mxu0
    %v4627 = vadd.f32 %v4483, %v4553
    %v4628 = vadd.f32 %v4484, %v4555
    %v4629 = vmul.f32 %v4627, 0.5
    %v4630 = vmul.f32 %v4628, 0.5
    %v4631 = vtanh.pop %v4629
    %v4632 = vtanh.pop %v4630
    %v4633 = vmul.f32 %v4631, 0.5
    %v4634 = vmul.f32 %v4632, 0.5
    %v4635 = vadd.f32 %v4633, 0.5
    %v4636 = vadd.f32 %v4634, 0.5
    %v4637 = vadd.f32 %v4624, %v3671
    %v4638 = vmul.f32 %v4635, %v4637
    %v4639 = vadd.f32 %v4485, %v4638
    %v4640 = vtanh.pop %v4639
    %v4641 = vsub.f32 %v4481, %v4640
    %v4642 = vmul.f32 %v4636, %v4641
    %v4643 = vadd.f32 %v4640, %v4642
    %4644 = vst [vmem:[#allocation2 + $0x28] sm:$0xff] %v4643
    %v4645 = vld [vmem:[#allocation3 + $0x90] sm:$0xff]
    %v4646 = vld [vmem:[#allocation3 + $0x98] sm:$0xff]
    %v4647 = vld [vmem:[#allocation3 + $0xa0] sm:$0xff]
    %4648 = vmatprep.subr.mxu0 %v3230
    %4649 = vmatpush1.msra.mxu0 %v3229
    %4650 = vmatprep.subr.mxu0 %v3233
    %4651 = vmatpush1.msra.mxu0 %v3232
    %4652 = vmatprep.subr.mxu0 %v3236
    %4653 = vmatpush1.msra.mxu0 %v3235
    %4654 = vmatprep.subr.mxu0 %v3239
    %4655 = vmatpush1.msra.mxu0 %v3238
    %4656 = vmatprep.subr.mxu0 %v3242
    %4657 = vmatpush1.msra.mxu0 %v3241
    %4658 = vmatprep.subr.mxu0 %v3245
    %4659 = vmatpush1.msra.mxu0 %v3244
    %4660 = vmatprep.subr.mxu0 %v3248
    %4661 = vmatpush1.msra.mxu0 %v3247
    %4662 = vmatprep.subr.mxu0 %v3251
    %4663 = vmatpush1.msra.mxu0 %v3250
    %4664 = vmatprep.subr.mxu0 %v3254
    %4665 = vmatpush1.msra.mxu0 %v3253
    %4666 = vmatprep.subr.mxu0 %v3257
    %4667 = vmatpush1.msra.mxu0 %v3256
    %4668 = vmatprep.subr.mxu0 %v3260
    %4669 = vmatpush1.msra.mxu0 %v3259
    %4670 = vmatprep.subr.mxu0 %v3263
    %4671 = vmatpush1.msra.mxu0 %v3262
    %4672 = vmatprep.subr.mxu0 %v3266
    %4673 = vmatpush1.msra.mxu0 %v3265
    %4674 = vmatprep.subr.mxu0 %v3269
    %4675 = vmatpush1.msra.mxu0 %v3268
    %4676 = vmatprep.subr.mxu0 %v3272
    %4677 = vmatpush1.msra.mxu0 %v3271
    %4678 = vmatprep.subr.mxu0 %v3275
    %4679 = vmatpush1.msra.mxu0 %v3274
    %4680 = vmatprep.subr.mxu0 0.0
    %4681 = vmatpush1.msra.mxu0 0.0
    %4682 = vmatprep.subr.mxu0 0.0
    %4683 = vmatpush1.msra.mxu0 0.0
    %4684 = vmatprep.subr.mxu0 0.0
    %4685 = vmatpush1.msra.mxu0 0.0
    %4686 = vmatprep.subr.mxu0 0.0
    %4687 = vmatpush1.msra.mxu0 0.0
    %4688 = vmatprep.subr.mxu0 0.0
    %4689 = vmatpush1.msra.mxu0 0.0
    %4690 = vmatprep.subr.mxu0 0.0
    %4691 = vmatpush1.msra.mxu0 0.0
    %4692 = vmatprep.subr.mxu0 0.0
    %4693 = vmatpush1.msra.mxu0 0.0
    %4694 = vmatprep.subr.mxu0 0.0
    %4695 = vmatpush1.msra.mxu0 0.0
    %4696 = vmatprep.subr.mxu0 0.0
    %4697 = vmatpush1.msra.mxu0 0.0
    %4698 = vmatprep.subr.mxu0 0.0
    %4699 = vmatpush1.msra.mxu0 0.0
    %4700 = vmatprep.subr.mxu0 0.0
    %4701 = vmatpush1.msra.mxu0 0.0
    %4702 = vmatprep.subr.mxu0 0.0
    %4703 = vmatpush1.msra.mxu0 0.0
    %4704 = vmatprep.subr.mxu0 0.0
    %4705 = vmatpush1.msra.mxu0 0.0
    %4706 = vmatprep.subr.mxu0 0.0
    %4707 = vmatpush1.msra.mxu0 0.0
    %4708 = vmatprep.subr.mxu0 0.0
    %4709 = vmatpush1.msra.mxu0 0.0
    %4710 = vmatprep.subr.mxu0 0.0
    %4711 = vmatpush1.msra.mxu0 0.0
    %4712 = vmatprep.mubr.f32.mxu0 0.0
    %4713 = vmatmul.mubr.f32.gmra.mrb[0].mxu0 %v4643
    %v4714 = vpop.f32.mrb[0].mxu0
    %v4715 = vadd.f32 0.0, %v4714
    %v4716 = vpop.f32.mrb[0].mxu0
    %v4717 = vadd.f32 0.0, %v4716
    %4718 = vdwg.mxu0
    %4719 = vmatprep.subr.mxu0 0.0
    %4720 = vmatpush1.msra.mxu0 %v3231
    %4721 = vmatprep.subr.mxu0 0.0
    %4722 = vmatpush1.msra.mxu0 %v3234
    %4723 = vmatprep.subr.mxu0 0.0
    %4724 = vmatpush1.msra.mxu0 %v3237
    %4725 = vmatprep.subr.mxu0 0.0
    %4726 = vmatpush1.msra.mxu0 %v3240
    %4727 = vmatprep.subr.mxu0 0.0
    %4728 = vmatpush1.msra.mxu0 %v3243
    %4729 = vmatprep.subr.mxu0 0.0
    %4730 = vmatpush1.msra.mxu0 %v3246
    %4731 = vmatprep.subr.mxu0 0.0
    %4732 = vmatpush1.msra.mxu0 %v3249
    %4733 = vmatprep.subr.mxu0 0.0
    %4734 = vmatpush1.msra.mxu0 %v3252
    %4735 = vmatprep.subr.mxu0 0.0
    %4736 = vmatpush1.msra.mxu0 %v3255
    %4737 = vmatprep.subr.mxu0 0.0
    %4738 = vmatpush1.msra.mxu0 %v3258
    %4739 = vmatprep.subr.mxu0 0.0
    %4740 = vmatpush1.msra.mxu0 %v3261
    %4741 = vmatprep.subr.mxu0 0.0
    %4742 = vmatpush1.msra.mxu0 %v3264
    %4743 = vmatprep.subr.mxu0 0.0
    %4744 = vmatpush1.msra.mxu0 %v3267
    %4745 = vmatprep.subr.mxu0 0.0
    %4746 = vmatpush1.msra.mxu0 %v3270
    %4747 = vmatprep.subr.mxu0 0.0
    %4748 = vmatpush1.msra.mxu0 %v3273
    %4749 = vmatprep.subr.mxu0 0.0
    %4750 = vmatpush1.msra.mxu0 %v3276
    %4751 = vmatprep.subr.mxu0 0.0
    %4752 = vmatpush1.msra.mxu0 0.0
    %4753 = vmatprep.subr.mxu0 0.0
    %4754 = vmatpush1.msra.mxu0 0.0
    %4755 = vmatprep.subr.mxu0 0.0
    %4756 = vmatpush1.msra.mxu0 0.0
    %4757 = vmatprep.subr.mxu0 0.0
    %4758 = vmatpush1.msra.mxu0 0.0
    %4759 = vmatprep.subr.mxu0 0.0
    %4760 = vmatpush1.msra.mxu0 0.0
    %4761 = vmatprep.subr.mxu0 0.0
    %4762 = vmatpush1.msra.mxu0 0.0
    %4763 = vmatprep.subr.mxu0 0.0
    %4764 = vmatpush1.msra.mxu0 0.0
    %4765 = vmatprep.subr.mxu0 0.0
    %4766 = vmatpush1.msra.mxu0 0.0
    %4767 = vmatprep.subr.mxu0 0.0
    %4768 = vmatpush1.msra.mxu0 0.0
    %4769 = vmatprep.subr.mxu0 0.0
    %4770 = vmatpush1.msra.mxu0 0.0
    %4771 = vmatprep.subr.mxu0 0.0
    %4772 = vmatpush1.msra.mxu0 0.0
    %4773 = vmatprep.subr.mxu0 0.0
    %4774 = vmatpush1.msra.mxu0 0.0
    %4775 = vmatprep.subr.mxu0 0.0
    %4776 = vmatpush1.msra.mxu0 0.0
    %4777 = vmatprep.subr.mxu0 0.0
    %4778 = vmatpush1.msra.mxu0 0.0
    %4779 = vmatprep.subr.mxu0 0.0
    %4780 = vmatpush1.msra.mxu0 0.0
    %4781 = vmatprep.subr.mxu0 0.0
    %4782 = vmatpush1.msra.mxu0 0.0
    %4783 = vmatprep.mubr.f32.mxu0 0.0
    %4784 = vmatmul.mubr.f32.gmra.mrb[0].mxu0 %v4643
    %v4785 = vpop.f32.mrb[0].mxu0
    %v4786 = vadd.f32 0.0, %v4785
    %v4787 = vpop.f32.mrb[0].mxu0
    %4788 = vdwg.mxu0
    %v4789 = vadd.f32 %v4645, %v4715
    %v4790 = vadd.f32 %v4646, %v4717
    %v4791 = vmul.f32 %v4789, 0.5
    %v4792 = vmul.f32 %v4790, 0.5
    %v4793 = vtanh.pop %v4791
    %v4794 = vtanh.pop %v4792
    %v4795 = vmul.f32 %v4793, 0.5
    %v4796 = vmul.f32 %v4794, 0.5
    %v4797 = vadd.f32 %v4795, 0.5
    %v4798 = vadd.f32 %v4796, 0.5
    %v4799 = vadd.f32 %v4786, %v3671
    %v4800 = vmul.f32 %v4797, %v4799
    %v4801 = vadd.f32 %v4647, %v4800
    %v4802 = vtanh.pop %v4801
    %v4803 = vsub.f32 %v4643, %v4802
    %v4804 = vmul.f32 %v4798, %v4803
    %v4805 = vadd.f32 %v4802, %v4804
    %4806 = vst [vmem:[#allocation2 + $0x30] sm:$0xff] %v4805
    %v4807 = vld [vmem:[#allocation3 + $0xa8] sm:$0xff]
    %v4808 = vld [vmem:[#allocation3 + $0xb0] sm:$0xff]
    %v4809 = vld [vmem:[#allocation3 + $0xb8] sm:$0xff]
    %4810 = vmatprep.subr.mxu0 %v3230
    %4811 = vmatpush1.msra.mxu0 %v3229
    %4812 = vmatprep.subr.mxu0 %v3233
    %4813 = vmatpush1.msra.mxu0 %v3232
    %4814 = vmatprep.subr.mxu0 %v3236
    %4815 = vmatpush1.msra.mxu0 %v3235
    %4816 = vmatprep.subr.mxu0 %v3239
    %4817 = vmatpush1.msra.mxu0 %v3238
    %4818 = vmatprep.subr.mxu0 %v3242
    %4819 = vmatpush1.msra.mxu0 %v3241
    %4820 = vmatprep.subr.mxu0 %v3245
    %4821 = vmatpush1.msra.mxu0 %v3244
    %4822 = vmatprep.subr.mxu0 %v3248
    %4823 = vmatpush1.msra.mxu0 %v3247
    %4824 = vmatprep.subr.mxu0 %v3251
    %4825 = vmatpush1.msra.mxu0 %v3250
    %4826 = vmatprep.subr.mxu0 %v3254
    %4827 = vmatpush1.msra.mxu0 %v3253
    %4828 = vmatprep.subr.mxu0 %v3257
    %4829 = vmatpush1.msra.mxu0 %v3256
    %4830 = vmatprep.subr.mxu0 %v3260
    %4831 = vmatpush1.msra.mxu0 %v3259
    %4832 = vmatprep.subr.mxu0 %v3263
    %4833 = vmatpush1.msra.mxu0 %v3262
    %4834 = vmatprep.subr.mxu0 %v3266
    %4835 = vmatpush1.msra.mxu0 %v3265
    %4836 = vmatprep.subr.mxu0 %v3269
    %4837 = vmatpush1.msra.mxu0 %v3268
    %4838 = vmatprep.subr.mxu0 %v3272
    %4839 = vmatpush1.msra.mxu0 %v3271
    %4840 = vmatprep.subr.mxu0 %v3275
    %4841 = vmatpush1.msra.mxu0 %v3274
    %4842 = vmatprep.subr.mxu0 0.0
    %4843 = vmatpush1.msra.mxu0 0.0
    %4844 = vmatprep.subr.mxu0 0.0
    %4845 = vmatpush1.msra.mxu0 0.0
    %4846 = vmatprep.subr.mxu0 0.0
    %4847 = vmatpush1.msra.mxu0 0.0
    %4848 = vmatprep.subr.mxu0 0.0
    %4849 = vmatpush1.msra.mxu0 0.0
    %4850 = vmatprep.subr.mxu0 0.0
    %4851 = vmatpush1.msra.mxu0 0.0
    %4852 = vmatprep.subr.mxu0 0.0
    %4853 = vmatpush1.msra.mxu0 0.0
    %4854 = vmatprep.subr.mxu0 0.0
    %4855 = vmatpush1.msra.mxu0 0.0
    %4856 = vmatprep.subr.mxu0 0.0
    %4857 = vmatpush1.msra.mxu0 0.0
    %4858 = vmatprep.subr.mxu0 0.0
    %4859 = vmatpush1.msra.mxu0 0.0
    %4860 = vmatprep.subr.mxu0 0.0
    %4861 = vmatpush1.msra.mxu0 0.0
    %4862 = vmatprep.subr.mxu0 0.0
    %4863 = vmatpush1.msra.mxu0 0.0
    %4864 = vmatprep.subr.mxu0 0.0
    %4865 = vmatpush1.msra.mxu0 0.0
    %4866 = vmatprep.subr.mxu0 0.0
    %4867 = vmatpush1.msra.mxu0 0.0
    %4868 = vmatprep.subr.mxu0 0.0
    %4869 = vmatpush1.msra.mxu0 0.0
    %4870 = vmatprep.subr.mxu0 0.0
    %4871 = vmatpush1.msra.mxu0 0.0
    %4872 = vmatprep.subr.mxu0 0.0
    %4873 = vmatpush1.msra.mxu0 0.0
    %4874 = vmatprep.mubr.f32.mxu0 0.0
    %4875 = vmatmul.mubr.f32.gmra.mrb[0].mxu0 %v4805
    %v4876 = vpop.f32.mrb[0].mxu0
    %v4877 = vadd.f32 0.0, %v4876
    %v4878 = vpop.f32.mrb[0].mxu0
    %v4879 = vadd.f32 0.0, %v4878
    %4880 = vdwg.mxu0
    %4881 = vmatprep.subr.mxu0 0.0
    %4882 = vmatpush1.msra.mxu0 %v3231
    %4883 = vmatprep.subr.mxu0 0.0
    %4884 = vmatpush1.msra.mxu0 %v3234
    %4885 = vmatprep.subr.mxu0 0.0
    %4886 = vmatpush1.msra.mxu0 %v3237
    %4887 = vmatprep.subr.mxu0 0.0
    %4888 = vmatpush1.msra.mxu0 %v3240
    %4889 = vmatprep.subr.mxu0 0.0
    %4890 = vmatpush1.msra.mxu0 %v3243
    %4891 = vmatprep.subr.mxu0 0.0
    %4892 = vmatpush1.msra.mxu0 %v3246
    %4893 = vmatprep.subr.mxu0 0.0
    %4894 = vmatpush1.msra.mxu0 %v3249
    %4895 = vmatprep.subr.mxu0 0.0
    %4896 = vmatpush1.msra.mxu0 %v3252
    %4897 = vmatprep.subr.mxu0 0.0
    %4898 = vmatpush1.msra.mxu0 %v3255
    %4899 = vmatprep.subr.mxu0 0.0
    %4900 = vmatpush1.msra.mxu0 %v3258
    %4901 = vmatprep.subr.mxu0 0.0
    %4902 = vmatpush1.msra.mxu0 %v3261
    %4903 = vmatprep.subr.mxu0 0.0
    %4904 = vmatpush1.msra.mxu0 %v3264
    %4905 = vmatprep.subr.mxu0 0.0
    %4906 = vmatpush1.msra.mxu0 %v3267
    %4907 = vmatprep.subr.mxu0 0.0
    %4908 = vmatpush1.msra.mxu0 %v3270
    %4909 = vmatprep.subr.mxu0 0.0
    %4910 = vmatpush1.msra.mxu0 %v3273
    %4911 = vmatprep.subr.mxu0 0.0
    %4912 = vmatpush1.msra.mxu0 %v3276
    %4913 = vmatprep.subr.mxu0 0.0
    %4914 = vmatpush1.msra.mxu0 0.0
    %4915 = vmatprep.subr.mxu0 0.0
    %4916 = vmatpush1.msra.mxu0 0.0
    %4917 = vmatprep.subr.mxu0 0.0
    %4918 = vmatpush1.msra.mxu0 0.0
    %4919 = vmatprep.subr.mxu0 0.0
    %4920 = vmatpush1.msra.mxu0 0.0
    %4921 = vmatprep.subr.mxu0 0.0
    %4922 = vmatpush1.msra.mxu0 0.0
    %4923 = vmatprep.subr.mxu0 0.0
    %4924 = vmatpush1.msra.mxu0 0.0
    %4925 = vmatprep.subr.mxu0 0.0
    %4926 = vmatpush1.msra.mxu0 0.0
    %4927 = vmatprep.subr.mxu0 0.0
    %4928 = vmatpush1.msra.mxu0 0.0
    %4929 = vmatprep.subr.mxu0 0.0
    %4930 = vmatpush1.msra.mxu0 0.0
    %4931 = vmatprep.subr.mxu0 0.0
    %4932 = vmatpush1.msra.mxu0 0.0
    %4933 = vmatprep.subr.mxu0 0.0
    %4934 = vmatpush1.msra.mxu0 0.0
    %4935 = vmatprep.subr.mxu0 0.0
    %4936 = vmatpush1.msra.mxu0 0.0
    %4937 = vmatprep.subr.mxu0 0.0
    %4938 = vmatpush1.msra.mxu0 0.0
    %4939 = vmatprep.subr.mxu0 0.0
    %4940 = vmatpush1.msra.mxu0 0.0
    %4941 = vmatprep.subr.mxu0 0.0
    %4942 = vmatpush1.msra.mxu0 0.0
    %4943 = vmatprep.subr.mxu0 0.0
    %4944 = vmatpush1.msra.mxu0 0.0
    %4945 = vmatprep.mubr.f32.mxu0 0.0
    %4946 = vmatmul.mubr.f32.gmra.mrb[0].mxu0 %v4805
    %v4947 = vpop.f32.mrb[0].mxu0
    %v4948 = vadd.f32 0.0, %v4947
    %v4949 = vpop.f32.mrb[0].mxu0
    %4950 = vdwg.mxu0
    %v4951 = vadd.f32 %v4807, %v4877
    %v4952 = vadd.f32 %v4808, %v4879
    %v4953 = vmul.f32 %v4951, 0.5
    %v4954 = vmul.f32 %v4952, 0.5
    %v4955 = vtanh.pop %v4953
    %v4956 = vtanh.pop %v4954
    %v4957 = vmul.f32 %v4955, 0.5
    %v4958 = vmul.f32 %v4956, 0.5
    %v4959 = vadd.f32 %v4957, 0.5
    %v4960 = vadd.f32 %v4958, 0.5
    %v4961 = vadd.f32 %v4948, %v3671
    %v4962 = vmul.f32 %v4959, %v4961
    %v4963 = vadd.f32 %v4809, %v4962
    %v4964 = vtanh.pop %v4963
    %v4965 = vsub.f32 %v4805, %v4964
    %v4966 = vmul.f32 %v4960, %v4965
    %v4967 = vadd.f32 %v4964, %v4966
    %4968 = vst [vmem:[#allocation2 + $0x38] sm:$0xff] %v4967
    %v4969 = vld [vmem:[#allocation3 + $0xc0] sm:$0xff]
    %v4970 = vld [vmem:[#allocation3 + $0xc8] sm:$0xff]
    %v4971 = vld [vmem:[#allocation3 + $0xd0] sm:$0xff]
    %4972 = vmatprep.subr.mxu0 %v3230
    %4973 = vmatpush1.msra.mxu0 %v3229
    %4974 = vmatprep.subr.mxu0 %v3233
    %4975 = vmatpush1.msra.mxu0 %v3232
    %4976 = vmatprep.subr.mxu0 %v3236
    %4977 = vmatpush1.msra.mxu0 %v3235
    %4978 = vmatprep.subr.mxu0 %v3239
    %4979 = vmatpush1.msra.mxu0 %v3238
    %4980 = vmatprep.subr.mxu0 %v3242
    %4981 = vmatpush1.msra.mxu0 %v3241
    %4982 = vmatprep.subr.mxu0 %v3245
    %4983 = vmatpush1.msra.mxu0 %v3244
    %4984 = vmatprep.subr.mxu0 %v3248
    %4985 = vmatpush1.msra.mxu0 %v3247
    %4986 = vmatprep.subr.mxu0 %v3251
    %4987 = vmatpush1.msra.mxu0 %v3250
    %4988 = vmatprep.subr.mxu0 %v3254
    %4989 = vmatpush1.msra.mxu0 %v3253
    %4990 = vmatprep.subr.mxu0 %v3257
    %4991 = vmatpush1.msra.mxu0 %v3256
    %4992 = vmatprep.subr.mxu0 %v3260
    %4993 = vmatpush1.msra.mxu0 %v3259
    %4994 = vmatprep.subr.mxu0 %v3263
    %4995 = vmatpush1.msra.mxu0 %v3262
    %4996 = vmatprep.subr.mxu0 %v3266
    %4997 = vmatpush1.msra.mxu0 %v3265
    %4998 = vmatprep.subr.mxu0 %v3269
    %4999 = vmatpush1.msra.mxu0 %v3268
    %5000 = vmatprep.subr.mxu0 %v3272
    %5001 = vmatpush1.msra.mxu0 %v3271
    %5002 = vmatprep.subr.mxu0 %v3275
    %5003 = vmatpush1.msra.mxu0 %v3274
    %5004 = vmatprep.subr.mxu0 0.0
    %5005 = vmatpush1.msra.mxu0 0.0
    %5006 = vmatprep.subr.mxu0 0.0
    %5007 = vmatpush1.msra.mxu0 0.0
    %5008 = vmatprep.subr.mxu0 0.0
    %5009 = vmatpush1.msra.mxu0 0.0
    %5010 = vmatprep.subr.mxu0 0.0
    %5011 = vmatpush1.msra.mxu0 0.0
    %5012 = vmatprep.subr.mxu0 0.0
    %5013 = vmatpush1.msra.mxu0 0.0
    %5014 = vmatprep.subr.mxu0 0.0
    %5015 = vmatpush1.msra.mxu0 0.0
    %5016 = vmatprep.subr.mxu0 0.0
    %5017 = vmatpush1.msra.mxu0 0.0
    %5018 = vmatprep.subr.mxu0 0.0
    %5019 = vmatpush1.msra.mxu0 0.0
    %5020 = vmatprep.subr.mxu0 0.0
    %5021 = vmatpush1.msra.mxu0 0.0
    %5022 = vmatprep.subr.mxu0 0.0
    %5023 = vmatpush1.msra.mxu0 0.0
    %5024 = vmatprep.subr.mxu0 0.0
    %5025 = vmatpush1.msra.mxu0 0.0
    %5026 = vmatprep.subr.mxu0 0.0
    %5027 = vmatpush1.msra.mxu0 0.0
    %5028 = vmatprep.subr.mxu0 0.0
    %5029 = vmatpush1.msra.mxu0 0.0
    %5030 = vmatprep.subr.mxu0 0.0
    %5031 = vmatpush1.msra.mxu0 0.0
    %5032 = vmatprep.subr.mxu0 0.0
    %5033 = vmatpush1.msra.mxu0 0.0
    %5034 = vmatprep.subr.mxu0 0.0
    %5035 = vmatpush1.msra.mxu0 0.0
    %5036 = vmatprep.mubr.f32.mxu0 0.0
    %5037 = vmatmul.mubr.f32.gmra.mrb[0].mxu0 %v4967
    %v5038 = vpop.f32.mrb[0].mxu0
    %v5039 = vadd.f32 0.0, %v5038
    %v5040 = vpop.f32.mrb[0].mxu0
    %v5041 = vadd.f32 0.0, %v5040
    %5042 = vdwg.mxu0
    %5043 = vmatprep.subr.mxu0 0.0
    %5044 = vmatpush1.msra.mxu0 %v3231
    %5045 = vmatprep.subr.mxu0 0.0
    %5046 = vmatpush1.msra.mxu0 %v3234
    %5047 = vmatprep.subr.mxu0 0.0
    %5048 = vmatpush1.msra.mxu0 %v3237
    %5049 = vmatprep.subr.mxu0 0.0
    %5050 = vmatpush1.msra.mxu0 %v3240
    %5051 = vmatprep.subr.mxu0 0.0
    %5052 = vmatpush1.msra.mxu0 %v3243
    %5053 = vmatprep.subr.mxu0 0.0
    %5054 = vmatpush1.msra.mxu0 %v3246
    %5055 = vmatprep.subr.mxu0 0.0
    %5056 = vmatpush1.msra.mxu0 %v3249
    %5057 = vmatprep.subr.mxu0 0.0
    %5058 = vmatpush1.msra.mxu0 %v3252
    %5059 = vmatprep.subr.mxu0 0.0
    %5060 = vmatpush1.msra.mxu0 %v3255
    %5061 = vmatprep.subr.mxu0 0.0
    %5062 = vmatpush1.msra.mxu0 %v3258
    %5063 = vmatprep.subr.mxu0 0.0
    %5064 = vmatpush1.msra.mxu0 %v3261
    %5065 = vmatprep.subr.mxu0 0.0
    %5066 = vmatpush1.msra.mxu0 %v3264
    %5067 = vmatprep.subr.mxu0 0.0
    %5068 = vmatpush1.msra.mxu0 %v3267
    %5069 = vmatprep.subr.mxu0 0.0
    %5070 = vmatpush1.msra.mxu0 %v3270
    %5071 = vmatprep.subr.mxu0 0.0
    %5072 = vmatpush1.msra.mxu0 %v3273
    %5073 = vmatprep.subr.mxu0 0.0
    %5074 = vmatpush1.msra.mxu0 %v3276
    %5075 = vmatprep.subr.mxu0 0.0
    %5076 = vmatpush1.msra.mxu0 0.0
    %5077 = vmatprep.subr.mxu0 0.0
    %5078 = vmatpush1.msra.mxu0 0.0
    %5079 = vmatprep.subr.mxu0 0.0
    %5080 = vmatpush1.msra.mxu0 0.0
    %5081 = vmatprep.subr.mxu0 0.0
    %5082 = vmatpush1.msra.mxu0 0.0
    %5083 = vmatprep.subr.mxu0 0.0
    %5084 = vmatpush1.msra.mxu0 0.0
    %5085 = vmatprep.subr.mxu0 0.0
    %5086 = vmatpush1.msra.mxu0 0.0
    %5087 = vmatprep.subr.mxu0 0.0
    %5088 = vmatpush1.msra.mxu0 0.0
    %5089 = vmatprep.subr.mxu0 0.0
    %5090 = vmatpush1.msra.mxu0 0.0
    %5091 = vmatprep.subr.mxu0 0.0
    %5092 = vmatpush1.msra.mxu0 0.0
    %5093 = vmatprep.subr.mxu0 0.0
    %5094 = vmatpush1.msra.mxu0 0.0
    %5095 = vmatprep.subr.mxu0 0.0
    %5096 = vmatpush1.msra.mxu0 0.0
    %5097 = vmatprep.subr.mxu0 0.0
    %5098 = vmatpush1.msra.mxu0 0.0
    %5099 = vmatprep.subr.mxu0 0.0
    %5100 = vmatpush1.msra.mxu0 0.0
    %5101 = vmatprep.subr.mxu0 0.0
    %5102 = vmatpush1.msra.mxu0 0.0
    %5103 = vmatprep.subr.mxu0 0.0
    %5104 = vmatpush1.msra.mxu0 0.0
    %5105 = vmatprep.subr.mxu0 0.0
    %5106 = vmatpush1.msra.mxu0 0.0
    %5107 = vmatprep.mubr.f32.mxu0 0.0
    %5108 = vmatmul.mubr.f32.gmra.mrb[0].mxu0 %v4967
    %v5109 = vpop.f32.mrb[0].mxu0
    %v5110 = vadd.f32 0.0, %v5109
    %v5111 = vpop.f32.mrb[0].mxu0
    %5112 = vdwg.mxu0
    %v5113 = vadd.f32 %v4969, %v5039
    %v5114 = vadd.f32 %v4970, %v5041
    %v5115 = vmul.f32 %v5113, 0.5
    %v5116 = vmul.f32 %v5114, 0.5
    %v5117 = vtanh.pop %v5115
    %v5118 = vtanh.pop %v5116
    %v5119 = vmul.f32 %v5117, 0.5
    %v5120 = vmul.f32 %v5118, 0.5
    %v5121 = vadd.f32 %v5119, 0.5
    %v5122 = vadd.f32 %v5120, 0.5
    %v5123 = vadd.f32 %v5110, %v3671
    %v5124 = vmul.f32 %v5121, %v5123
    %v5125 = vadd.f32 %v4971, %v5124
    %v5126 = vtanh.pop %v5125
    %v5127 = vsub.f32 %v4967, %v5126
    %v5128 = vmul.f32 %v5122, %v5127
    %v5129 = vadd.f32 %v5126, %v5128
    %5130 = vst [vmem:[#allocation2 + $0x40] sm:$0xff] %v5129
    %v5131 = vld [vmem:[#allocation3 + $0xd8] sm:$0xff]
    %v5132 = vld [vmem:[#allocation3 + $0xe0] sm:$0xff]
    %v5133 = vld [vmem:[#allocation3 + $0xe8] sm:$0xff]
    %5134 = vmatprep.subr.mxu0 %v3230
    %5135 = vmatpush1.msra.mxu0 %v3229
    %5136 = vmatprep.subr.mxu0 %v3233
    %5137 = vmatpush1.msra.mxu0 %v3232
    %5138 = vmatprep.subr.mxu0 %v3236
    %5139 = vmatpush1.msra.mxu0 %v3235
    %5140 = vmatprep.subr.mxu0 %v3239
    %5141 = vmatpush1.msra.mxu0 %v3238
    %5142 = vmatprep.subr.mxu0 %v3242
    %5143 = vmatpush1.msra.mxu0 %v3241
    %5144 = vmatprep.subr.mxu0 %v3245
    %5145 = vmatpush1.msra.mxu0 %v3244
    %5146 = vmatprep.subr.mxu0 %v3248
    %5147 = vmatpush1.msra.mxu0 %v3247
    %5148 = vmatprep.subr.mxu0 %v3251
    %5149 = vmatpush1.msra.mxu0 %v3250
    %5150 = vmatprep.subr.mxu0 %v3254
    %5151 = vmatpush1.msra.mxu0 %v3253
    %5152 = vmatprep.subr.mxu0 %v3257
    %5153 = vmatpush1.msra.mxu0 %v3256
    %5154 = vmatprep.subr.mxu0 %v3260
    %5155 = vmatpush1.msra.mxu0 %v3259
    %5156 = vmatprep.subr.mxu0 %v3263
    %5157 = vmatpush1.msra.mxu0 %v3262
    %5158 = vmatprep.subr.mxu0 %v3266
    %5159 = vmatpush1.msra.mxu0 %v3265
    %5160 = vmatprep.subr.mxu0 %v3269
    %5161 = vmatpush1.msra.mxu0 %v3268
    %5162 = vmatprep.subr.mxu0 %v3272
    %5163 = vmatpush1.msra.mxu0 %v3271
    %5164 = vmatprep.subr.mxu0 %v3275
    %5165 = vmatpush1.msra.mxu0 %v3274
    %5166 = vmatprep.subr.mxu0 0.0
    %5167 = vmatpush1.msra.mxu0 0.0
    %5168 = vmatprep.subr.mxu0 0.0
    %5169 = vmatpush1.msra.mxu0 0.0
    %5170 = vmatprep.subr.mxu0 0.0
    %5171 = vmatpush1.msra.mxu0 0.0
    %5172 = vmatprep.subr.mxu0 0.0
    %5173 = vmatpush1.msra.mxu0 0.0
    %5174 = vmatprep.subr.mxu0 0.0
    %5175 = vmatpush1.msra.mxu0 0.0
    %5176 = vmatprep.subr.mxu0 0.0
    %5177 = vmatpush1.msra.mxu0 0.0
    %5178 = vmatprep.subr.mxu0 0.0
    %5179 = vmatpush1.msra.mxu0 0.0
    %5180 = vmatprep.subr.mxu0 0.0
    %5181 = vmatpush1.msra.mxu0 0.0
    %5182 = vmatprep.subr.mxu0 0.0
    %5183 = vmatpush1.msra.mxu0 0.0
    %5184 = vmatprep.subr.mxu0 0.0
    %5185 = vmatpush1.msra.mxu0 0.0
    %5186 = vmatprep.subr.mxu0 0.0
    %5187 = vmatpush1.msra.mxu0 0.0
    %5188 = vmatprep.subr.mxu0 0.0
    %5189 = vmatpush1.msra.mxu0 0.0
    %5190 = vmatprep.subr.mxu0 0.0
    %5191 = vmatpush1.msra.mxu0 0.0
    %5192 = vmatprep.subr.mxu0 0.0
    %5193 = vmatpush1.msra.mxu0 0.0
    %5194 = vmatprep.subr.mxu0 0.0
    %5195 = vmatpush1.msra.mxu0 0.0
    %5196 = vmatprep.subr.mxu0 0.0
    %5197 = vmatpush1.msra.mxu0 0.0
    %5198 = vmatprep.mubr.f32.mxu0 0.0
    %5199 = vmatmul.mubr.f32.gmra.mrb[0].mxu0 %v5129
    %v5200 = vpop.f32.mrb[0].mxu0
    %v5201 = vadd.f32 0.0, %v5200
    %v5202 = vpop.f32.mrb[0].mxu0
    %v5203 = vadd.f32 0.0, %v5202
    %5204 = vdwg.mxu0
    %5205 = vmatprep.subr.mxu0 0.0
    %5206 = vmatpush1.msra.mxu0 %v3231
    %5207 = vmatprep.subr.mxu0 0.0
    %5208 = vmatpush1.msra.mxu0 %v3234
    %5209 = vmatprep.subr.mxu0 0.0
    %5210 = vmatpush1.msra.mxu0 %v3237
    %5211 = vmatprep.subr.mxu0 0.0
    %5212 = vmatpush1.msra.mxu0 %v3240
    %5213 = vmatprep.subr.mxu0 0.0
    %5214 = vmatpush1.msra.mxu0 %v3243
    %5215 = vmatprep.subr.mxu0 0.0
    %5216 = vmatpush1.msra.mxu0 %v3246
    %5217 = vmatprep.subr.mxu0 0.0
    %5218 = vmatpush1.msra.mxu0 %v3249
    %5219 = vmatprep.subr.mxu0 0.0
    %5220 = vmatpush1.msra.mxu0 %v3252
    %5221 = vmatprep.subr.mxu0 0.0
    %5222 = vmatpush1.msra.mxu0 %v3255
    %5223 = vmatprep.subr.mxu0 0.0
    %5224 = vmatpush1.msra.mxu0 %v3258
    %5225 = vmatprep.subr.mxu0 0.0
    %5226 = vmatpush1.msra.mxu0 %v3261
    %5227 = vmatprep.subr.mxu0 0.0
    %5228 = vmatpush1.msra.mxu0 %v3264
    %5229 = vmatprep.subr.mxu0 0.0
    %5230 = vmatpush1.msra.mxu0 %v3267
    %5231 = vmatprep.subr.mxu0 0.0
    %5232 = vmatpush1.msra.mxu0 %v3270
    %5233 = vmatprep.subr.mxu0 0.0
    %5234 = vmatpush1.msra.mxu0 %v3273
    %5235 = vmatprep.subr.mxu0 0.0
    %5236 = vmatpush1.msra.mxu0 %v3276
    %5237 = vmatprep.subr.mxu0 0.0
    %5238 = vmatpush1.msra.mxu0 0.0
    %5239 = vmatprep.subr.mxu0 0.0
    %5240 = vmatpush1.msra.mxu0 0.0
    %5241 = vmatprep.subr.mxu0 0.0
    %5242 = vmatpush1.msra.mxu0 0.0
    %5243 = vmatprep.subr.mxu0 0.0
    %5244 = vmatpush1.msra.mxu0 0.0
    %5245 = vmatprep.subr.mxu0 0.0
    %5246 = vmatpush1.msra.mxu0 0.0
    %5247 = vmatprep.subr.mxu0 0.0
    %5248 = vmatpush1.msra.mxu0 0.0
    %5249 = vmatprep.subr.mxu0 0.0
    %5250 = vmatpush1.msra.mxu0 0.0
    %5251 = vmatprep.subr.mxu0 0.0
    %5252 = vmatpush1.msra.mxu0 0.0
    %5253 = vmatprep.subr.mxu0 0.0
    %5254 = vmatpush1.msra.mxu0 0.0
    %5255 = vmatprep.subr.mxu0 0.0
    %5256 = vmatpush1.msra.mxu0 0.0
    %5257 = vmatprep.subr.mxu0 0.0
    %5258 = vmatpush1.msra.mxu0 0.0
    %5259 = vmatprep.subr.mxu0 0.0
    %5260 = vmatpush1.msra.mxu0 0.0
    %5261 = vmatprep.subr.mxu0 0.0
    %5262 = vmatpush1.msra.mxu0 0.0
    %5263 = vmatprep.subr.mxu0 0.0
    %5264 = vmatpush1.msra.mxu0 0.0
    %5265 = vmatprep.subr.mxu0 0.0
    %5266 = vmatpush1.msra.mxu0 0.0
    %5267 = vmatprep.subr.mxu0 0.0
    %5268 = vmatpush1.msra.mxu0 0.0
    %5269 = vmatprep.mubr.f32.mxu0 0.0
    %5270 = vmatmul.mubr.f32.gmra.mrb[0].mxu0 %v5129
    %v5271 = vpop.f32.mrb[0].mxu0
    %v5272 = vadd.f32 0.0, %v5271
    %v5273 = vpop.f32.mrb[0].mxu0
    %5274 = vdwg.mxu0
    %v5275 = vadd.f32 %v5131, %v5201
    %v5276 = vadd.f32 %v5132, %v5203
    %v5277 = vmul.f32 %v5275, 0.5
    %v5278 = vmul.f32 %v5276, 0.5
    %v5279 = vtanh.pop %v5277
    %v5280 = vtanh.pop %v5278
    %v5281 = vmul.f32 %v5279, 0.5
    %v5282 = vmul.f32 %v5280, 0.5
    %v5283 = vadd.f32 %v5281, 0.5
    %v5284 = vadd.f32 %v5282, 0.5
    %v5285 = vadd.f32 %v5272, %v3671
    %v5286 = vmul.f32 %v5283, %v5285
    %v5287 = vadd.f32 %v5133, %v5286
    %v5288 = vtanh.pop %v5287
    %v5289 = vsub.f32 %v5129, %v5288
    %v5290 = vmul.f32 %v5284, %v5289
    %v5291 = vadd.f32 %v5288, %v5290
    %5292 = vst [vmem:[#allocation2 + $0x48] sm:$0xff] %v5291
    %v5293 = vld [vmem:[#allocation3 + $0xf0] sm:$0xff]
    %v5294 = vld [vmem:[#allocation3 + $0xf8] sm:$0xff]
    %v5295 = vld [vmem:[#allocation3 + $0x100] sm:$0xff]
    %5296 = vmatprep.subr.mxu0 %v3230
    %5297 = vmatpush1.msra.mxu0 %v3229
    %5298 = vmatprep.subr.mxu0 %v3233
    %5299 = vmatpush1.msra.mxu0 %v3232
    %5300 = vmatprep.subr.mxu0 %v3236
    %5301 = vmatpush1.msra.mxu0 %v3235
    %5302 = vmatprep.subr.mxu0 %v3239
    %5303 = vmatpush1.msra.mxu0 %v3238
    %5304 = vmatprep.subr.mxu0 %v3242
    %5305 = vmatpush1.msra.mxu0 %v3241
    %5306 = vmatprep.subr.mxu0 %v3245
    %5307 = vmatpush1.msra.mxu0 %v3244
    %5308 = vmatprep.subr.mxu0 %v3248
    %5309 = vmatpush1.msra.mxu0 %v3247
    %5310 = vmatprep.subr.mxu0 %v3251
    %5311 = vmatpush1.msra.mxu0 %v3250
    %5312 = vmatprep.subr.mxu0 %v3254
    %5313 = vmatpush1.msra.mxu0 %v3253
    %5314 = vmatprep.subr.mxu0 %v3257
    %5315 = vmatpush1.msra.mxu0 %v3256
    %5316 = vmatprep.subr.mxu0 %v3260
    %5317 = vmatpush1.msra.mxu0 %v3259
    %5318 = vmatprep.subr.mxu0 %v3263
    %5319 = vmatpush1.msra.mxu0 %v3262
    %5320 = vmatprep.subr.mxu0 %v3266
    %5321 = vmatpush1.msra.mxu0 %v3265
    %5322 = vmatprep.subr.mxu0 %v3269
    %5323 = vmatpush1.msra.mxu0 %v3268
    %5324 = vmatprep.subr.mxu0 %v3272
    %5325 = vmatpush1.msra.mxu0 %v3271
    %5326 = vmatprep.subr.mxu0 %v3275
    %5327 = vmatpush1.msra.mxu0 %v3274
    %5328 = vmatprep.subr.mxu0 0.0
    %5329 = vmatpush1.msra.mxu0 0.0
    %5330 = vmatprep.subr.mxu0 0.0
    %5331 = vmatpush1.msra.mxu0 0.0
    %5332 = vmatprep.subr.mxu0 0.0
    %5333 = vmatpush1.msra.mxu0 0.0
    %5334 = vmatprep.subr.mxu0 0.0
    %5335 = vmatpush1.msra.mxu0 0.0
    %5336 = vmatprep.subr.mxu0 0.0
    %5337 = vmatpush1.msra.mxu0 0.0
    %5338 = vmatprep.subr.mxu0 0.0
    %5339 = vmatpush1.msra.mxu0 0.0
    %5340 = vmatprep.subr.mxu0 0.0
    %5341 = vmatpush1.msra.mxu0 0.0
    %5342 = vmatprep.subr.mxu0 0.0
    %5343 = vmatpush1.msra.mxu0 0.0
    %5344 = vmatprep.subr.mxu0 0.0
    %5345 = vmatpush1.msra.mxu0 0.0
    %5346 = vmatprep.subr.mxu0 0.0
    %5347 = vmatpush1.msra.mxu0 0.0
    %5348 = vmatprep.subr.mxu0 0.0
    %5349 = vmatpush1.msra.mxu0 0.0
    %5350 = vmatprep.subr.mxu0 0.0
    %5351 = vmatpush1.msra.mxu0 0.0
    %5352 = vmatprep.subr.mxu0 0.0
    %5353 = vmatpush1.msra.mxu0 0.0
    %5354 = vmatprep.subr.mxu0 0.0
    %5355 = vmatpush1.msra.mxu0 0.0
    %5356 = vmatprep.subr.mxu0 0.0
    %5357 = vmatpush1.msra.mxu0 0.0
    %5358 = vmatprep.subr.mxu0 0.0
    %5359 = vmatpush1.msra.mxu0 0.0
    %5360 = vmatprep.mubr.f32.mxu0 0.0
    %5361 = vmatmul.mubr.f32.gmra.mrb[0].mxu0 %v5291
    %v5362 = vpop.f32.mrb[0].mxu0
    %v5363 = vadd.f32 0.0, %v5362
    %v5364 = vpop.f32.mrb[0].mxu0
    %v5365 = vadd.f32 0.0, %v5364
    %5366 = vdwg.mxu0
    %5367 = vmatprep.subr.mxu0 0.0
    %5368 = vmatpush1.msra.mxu0 %v3231
    %5369 = vmatprep.subr.mxu0 0.0
    %5370 = vmatpush1.msra.mxu0 %v3234
    %5371 = vmatprep.subr.mxu0 0.0
    %5372 = vmatpush1.msra.mxu0 %v3237
    %5373 = vmatprep.subr.mxu0 0.0
    %5374 = vmatpush1.msra.mxu0 %v3240
    %5375 = vmatprep.subr.mxu0 0.0
    %5376 = vmatpush1.msra.mxu0 %v3243
    %5377 = vmatprep.subr.mxu0 0.0
    %5378 = vmatpush1.msra.mxu0 %v3246
    %5379 = vmatprep.subr.mxu0 0.0
    %5380 = vmatpush1.msra.mxu0 %v3249
    %5381 = vmatprep.subr.mxu0 0.0
    %5382 = vmatpush1.msra.mxu0 %v3252
    %5383 = vmatprep.subr.mxu0 0.0
    %5384 = vmatpush1.msra.mxu0 %v3255
    %5385 = vmatprep.subr.mxu0 0.0
    %5386 = vmatpush1.msra.mxu0 %v3258
    %5387 = vmatprep.subr.mxu0 0.0
    %5388 = vmatpush1.msra.mxu0 %v3261
    %5389 = vmatprep.subr.mxu0 0.0
    %5390 = vmatpush1.msra.mxu0 %v3264
    %5391 = vmatprep.subr.mxu0 0.0
    %5392 = vmatpush1.msra.mxu0 %v3267
    %5393 = vmatprep.subr.mxu0 0.0
    %5394 = vmatpush1.msra.mxu0 %v3270
    %5395 = vmatprep.subr.mxu0 0.0
    %5396 = vmatpush1.msra.mxu0 %v3273
    %5397 = vmatprep.subr.mxu0 0.0
    %5398 = vmatpush1.msra.mxu0 %v3276
    %5399 = vmatprep.subr.mxu0 0.0
    %5400 = vmatpush1.msra.mxu0 0.0
    %5401 = vmatprep.subr.mxu0 0.0
    %5402 = vmatpush1.msra.mxu0 0.0
    %5403 = vmatprep.subr.mxu0 0.0
    %5404 = vmatpush1.msra.mxu0 0.0
    %5405 = vmatprep.subr.mxu0 0.0
    %5406 = vmatpush1.msra.mxu0 0.0
    %5407 = vmatprep.subr.mxu0 0.0
    %5408 = vmatpush1.msra.mxu0 0.0
    %5409 = vmatprep.subr.mxu0 0.0
    %5410 = vmatpush1.msra.mxu0 0.0
    %5411 = vmatprep.subr.mxu0 0.0
    %5412 = vmatpush1.msra.mxu0 0.0
    %5413 = vmatprep.subr.mxu0 0.0
    %5414 = vmatpush1.msra.mxu0 0.0
    %5415 = vmatprep.subr.mxu0 0.0
    %5416 = vmatpush1.msra.mxu0 0.0
    %5417 = vmatprep.subr.mxu0 0.0
    %5418 = vmatpush1.msra.mxu0 0.0
    %5419 = vmatprep.subr.mxu0 0.0
    %5420 = vmatpush1.msra.mxu0 0.0
    %5421 = vmatprep.subr.mxu0 0.0
    %5422 = vmatpush1.msra.mxu0 0.0
    %5423 = vmatprep.subr.mxu0 0.0
    %5424 = vmatpush1.msra.mxu0 0.0
    %5425 = vmatprep.subr.mxu0 0.0
    %5426 = vmatpush1.msra.mxu0 0.0
    %5427 = vmatprep.subr.mxu0 0.0
    %5428 = vmatpush1.msra.mxu0 0.0
    %5429 = vmatprep.subr.mxu0 0.0
    %5430 = vmatpush1.msra.mxu0 0.0
    %5431 = vmatprep.mubr.f32.mxu0 0.0
    %5432 = vmatmul.mubr.f32.gmra.mrb[0].mxu0 %v5291
    %v5433 = vpop.f32.mrb[0].mxu0
    %v5434 = vadd.f32 0.0, %v5433
    %v5435 = vpop.f32.mrb[0].mxu0
    %5436 = vdwg.mxu0
    %v5437 = vadd.f32 %v5293, %v5363
    %v5438 = vadd.f32 %v5294, %v5365
    %v5439 = vmul.f32 %v5437, 0.5
    %v5440 = vmul.f32 %v5438, 0.5
    %v5441 = vtanh.pop %v5439
    %v5442 = vtanh.pop %v5440
    %v5443 = vmul.f32 %v5441, 0.5
    %v5444 = vmul.f32 %v5442, 0.5
    %v5445 = vadd.f32 %v5443, 0.5
    %v5446 = vadd.f32 %v5444, 0.5
    %v5447 = vadd.f32 %v5434, %v3671
    %v5448 = vmul.f32 %v5445, %v5447
    %v5449 = vadd.f32 %v5295, %v5448
    %v5450 = vtanh.pop %v5449
    %v5451 = vsub.f32 %v5291, %v5450
    %v5452 = vmul.f32 %v5446, %v5451
    %v5453 = vadd.f32 %v5450, %v5452
    %5454 = vst [vmem:[#allocation2 + $0x50] sm:$0xff] %v5453
    %v5455 = vld [vmem:[#allocation3 + $0x108] sm:$0xff]
    %v5456 = vld [vmem:[#allocation3 + $0x110] sm:$0xff]
    %v5457 = vld [vmem:[#allocation3 + $0x118] sm:$0xff]
    %5458 = vmatprep.subr.mxu0 %v3230
    %5459 = vmatpush1.msra.mxu0 %v3229
    %5460 = vmatprep.subr.mxu0 %v3233
    %5461 = vmatpush1.msra.mxu0 %v3232
    %5462 = vmatprep.subr.mxu0 %v3236
    %5463 = vmatpush1.msra.mxu0 %v3235
    %5464 = vmatprep.subr.mxu0 %v3239
    %5465 = vmatpush1.msra.mxu0 %v3238
    %5466 = vmatprep.subr.mxu0 %v3242
    %5467 = vmatpush1.msra.mxu0 %v3241
    %5468 = vmatprep.subr.mxu0 %v3245
    %5469 = vmatpush1.msra.mxu0 %v3244
    %5470 = vmatprep.subr.mxu0 %v3248
    %5471 = vmatpush1.msra.mxu0 %v3247
    %5472 = vmatprep.subr.mxu0 %v3251
    %5473 = vmatpush1.msra.mxu0 %v3250
    %5474 = vmatprep.subr.mxu0 %v3254
    %5475 = vmatpush1.msra.mxu0 %v3253
    %5476 = vmatprep.subr.mxu0 %v3257
    %5477 = vmatpush1.msra.mxu0 %v3256
    %5478 = vmatprep.subr.mxu0 %v3260
    %5479 = vmatpush1.msra.mxu0 %v3259
    %5480 = vmatprep.subr.mxu0 %v3263
    %5481 = vmatpush1.msra.mxu0 %v3262
    %5482 = vmatprep.subr.mxu0 %v3266
    %5483 = vmatpush1.msra.mxu0 %v3265
    %5484 = vmatprep.subr.mxu0 %v3269
    %5485 = vmatpush1.msra.mxu0 %v3268
    %5486 = vmatprep.subr.mxu0 %v3272
    %5487 = vmatpush1.msra.mxu0 %v3271
    %5488 = vmatprep.subr.mxu0 %v3275
    %5489 = vmatpush1.msra.mxu0 %v3274
    %5490 = vmatprep.subr.mxu0 0.0
    %5491 = vmatpush1.msra.mxu0 0.0
    %5492 = vmatprep.subr.mxu0 0.0
    %5493 = vmatpush1.msra.mxu0 0.0
    %5494 = vmatprep.subr.mxu0 0.0
    %5495 = vmatpush1.msra.mxu0 0.0
    %5496 = vmatprep.subr.mxu0 0.0
    %5497 = vmatpush1.msra.mxu0 0.0
    %5498 = vmatprep.subr.mxu0 0.0
    %5499 = vmatpush1.msra.mxu0 0.0
    %5500 = vmatprep.subr.mxu0 0.0
    %5501 = vmatpush1.msra.mxu0 0.0
    %5502 = vmatprep.subr.mxu0 0.0
    %5503 = vmatpush1.msra.mxu0 0.0
    %5504 = vmatprep.subr.mxu0 0.0
    %5505 = vmatpush1.msra.mxu0 0.0
    %5506 = vmatprep.subr.mxu0 0.0
    %5507 = vmatpush1.msra.mxu0 0.0
    %5508 = vmatprep.subr.mxu0 0.0
    %5509 = vmatpush1.msra.mxu0 0.0
    %5510 = vmatprep.subr.mxu0 0.0
    %5511 = vmatpush1.msra.mxu0 0.0
    %5512 = vmatprep.subr.mxu0 0.0
    %5513 = vmatpush1.msra.mxu0 0.0
    %5514 = vmatprep.subr.mxu0 0.0
    %5515 = vmatpush1.msra.mxu0 0.0
    %5516 = vmatprep.subr.mxu0 0.0
    %5517 = vmatpush1.msra.mxu0 0.0
    %5518 = vmatprep.subr.mxu0 0.0
    %5519 = vmatpush1.msra.mxu0 0.0
    %5520 = vmatprep.subr.mxu0 0.0
    %5521 = vmatpush1.msra.mxu0 0.0
    %5522 = vmatprep.mubr.f32.mxu0 0.0
    %5523 = vmatmul.mubr.f32.gmra.mrb[0].mxu0 %v5453
    %v5524 = vpop.f32.mrb[0].mxu0
    %v5525 = vadd.f32 0.0, %v5524
    %v5526 = vpop.f32.mrb[0].mxu0
    %v5527 = vadd.f32 0.0, %v5526
    %5528 = vdwg.mxu0
    %5529 = vmatprep.subr.mxu0 0.0
    %5530 = vmatpush1.msra.mxu0 %v3231
    %5531 = vmatprep.subr.mxu0 0.0
    %5532 = vmatpush1.msra.mxu0 %v3234
    %5533 = vmatprep.subr.mxu0 0.0
    %5534 = vmatpush1.msra.mxu0 %v3237
    %5535 = vmatprep.subr.mxu0 0.0
    %5536 = vmatpush1.msra.mxu0 %v3240
    %5537 = vmatprep.subr.mxu0 0.0
    %5538 = vmatpush1.msra.mxu0 %v3243
    %5539 = vmatprep.subr.mxu0 0.0
    %5540 = vmatpush1.msra.mxu0 %v3246
    %5541 = vmatprep.subr.mxu0 0.0
    %5542 = vmatpush1.msra.mxu0 %v3249
    %5543 = vmatprep.subr.mxu0 0.0
    %5544 = vmatpush1.msra.mxu0 %v3252
    %5545 = vmatprep.subr.mxu0 0.0
    %5546 = vmatpush1.msra.mxu0 %v3255
    %5547 = vmatprep.subr.mxu0 0.0
    %5548 = vmatpush1.msra.mxu0 %v3258
    %5549 = vmatprep.subr.mxu0 0.0
    %5550 = vmatpush1.msra.mxu0 %v3261
    %5551 = vmatprep.subr.mxu0 0.0
    %5552 = vmatpush1.msra.mxu0 %v3264
    %5553 = vmatprep.subr.mxu0 0.0
    %5554 = vmatpush1.msra.mxu0 %v3267
    %5555 = vmatprep.subr.mxu0 0.0
    %5556 = vmatpush1.msra.mxu0 %v3270
    %5557 = vmatprep.subr.mxu0 0.0
    %5558 = vmatpush1.msra.mxu0 %v3273
    %5559 = vmatprep.subr.mxu0 0.0
    %5560 = vmatpush1.msra.mxu0 %v3276
    %5561 = vmatprep.subr.mxu0 0.0
    %5562 = vmatpush1.msra.mxu0 0.0
    %5563 = vmatprep.subr.mxu0 0.0
    %5564 = vmatpush1.msra.mxu0 0.0
    %5565 = vmatprep.subr.mxu0 0.0
    %5566 = vmatpush1.msra.mxu0 0.0
    %5567 = vmatprep.subr.mxu0 0.0
    %5568 = vmatpush1.msra.mxu0 0.0
    %5569 = vmatprep.subr.mxu0 0.0
    %5570 = vmatpush1.msra.mxu0 0.0
    %5571 = vmatprep.subr.mxu0 0.0
    %5572 = vmatpush1.msra.mxu0 0.0
    %5573 = vmatprep.subr.mxu0 0.0
    %5574 = vmatpush1.msra.mxu0 0.0
    %5575 = vmatprep.subr.mxu0 0.0
    %5576 = vmatpush1.msra.mxu0 0.0
    %5577 = vmatprep.subr.mxu0 0.0
    %5578 = vmatpush1.msra.mxu0 0.0
    %5579 = vmatprep.subr.mxu0 0.0
    %5580 = vmatpush1.msra.mxu0 0.0
    %5581 = vmatprep.subr.mxu0 0.0
    %5582 = vmatpush1.msra.mxu0 0.0
    %5583 = vmatprep.subr.mxu0 0.0
    %5584 = vmatpush1.msra.mxu0 0.0
    %5585 = vmatprep.subr.mxu0 0.0
    %5586 = vmatpush1.msra.mxu0 0.0
    %5587 = vmatprep.subr.mxu0 0.0
    %5588 = vmatpush1.msra.mxu0 0.0
    %5589 = vmatprep.subr.mxu0 0.0
    %5590 = vmatpush1.msra.mxu0 0.0
    %5591 = vmatprep.subr.mxu0 0.0
    %5592 = vmatpush1.msra.mxu0 0.0
    %5593 = vmatprep.mubr.f32.mxu0 0.0
    %5594 = vmatmul.mubr.f32.gmra.mrb[0].mxu0 %v5453
    %v5595 = vpop.f32.mrb[0].mxu0
    %v5596 = vadd.f32 0.0, %v5595
    %v5597 = vpop.f32.mrb[0].mxu0
    %5598 = vdwg.mxu0
    %v5599 = vadd.f32 %v5455, %v5525
    %v5600 = vadd.f32 %v5456, %v5527
    %v5601 = vmul.f32 %v5599, 0.5
    %v5602 = vmul.f32 %v5600, 0.5
    %v5603 = vtanh.pop %v5601
    %v5604 = vtanh.pop %v5602
    %v5605 = vmul.f32 %v5603, 0.5
    %v5606 = vmul.f32 %v5604, 0.5
    %v5607 = vadd.f32 %v5605, 0.5
    %v5608 = vadd.f32 %v5606, 0.5
    %v5609 = vadd.f32 %v5596, %v3671
    %v5610 = vmul.f32 %v5607, %v5609
    %v5611 = vadd.f32 %v5457, %v5610
    %v5612 = vtanh.pop %v5611
    %v5613 = vsub.f32 %v5453, %v5612
    %v5614 = vmul.f32 %v5608, %v5613
    %v5615 = vadd.f32 %v5612, %v5614
    %5616 = vst [vmem:[#allocation2 + $0x58] sm:$0xff] %v5615
    %v5617 = vld [vmem:[#allocation3 + $0x120] sm:$0xff]
    %v5618 = vld [vmem:[#allocation3 + $0x128] sm:$0xff]
    %v5619 = vld [vmem:[#allocation3 + $0x130] sm:$0xff]
    %5620 = vmatprep.subr.mxu0 %v3230
    %5621 = vmatpush1.msra.mxu0 %v3229
    %5622 = vmatprep.subr.mxu0 %v3233
    %5623 = vmatpush1.msra.mxu0 %v3232
    %5624 = vmatprep.subr.mxu0 %v3236
    %5625 = vmatpush1.msra.mxu0 %v3235
    %5626 = vmatprep.subr.mxu0 %v3239
    %5627 = vmatpush1.msra.mxu0 %v3238
    %5628 = vmatprep.subr.mxu0 %v3242
    %5629 = vmatpush1.msra.mxu0 %v3241
    %5630 = vmatprep.subr.mxu0 %v3245
    %5631 = vmatpush1.msra.mxu0 %v3244
    %5632 = vmatprep.subr.mxu0 %v3248
    %5633 = vmatpush1.msra.mxu0 %v3247
    %5634 = vmatprep.subr.mxu0 %v3251
    %5635 = vmatpush1.msra.mxu0 %v3250
    %5636 = vmatprep.subr.mxu0 %v3254
    %5637 = vmatpush1.msra.mxu0 %v3253
    %5638 = vmatprep.subr.mxu0 %v3257
    %5639 = vmatpush1.msra.mxu0 %v3256
    %5640 = vmatprep.subr.mxu0 %v3260
    %5641 = vmatpush1.msra.mxu0 %v3259
    %5642 = vmatprep.subr.mxu0 %v3263
    %5643 = vmatpush1.msra.mxu0 %v3262
    %5644 = vmatprep.subr.mxu0 %v3266
    %5645 = vmatpush1.msra.mxu0 %v3265
    %5646 = vmatprep.subr.mxu0 %v3269
    %5647 = vmatpush1.msra.mxu0 %v3268
    %5648 = vmatprep.subr.mxu0 %v3272
    %5649 = vmatpush1.msra.mxu0 %v3271
    %5650 = vmatprep.subr.mxu0 %v3275
    %5651 = vmatpush1.msra.mxu0 %v3274
    %5652 = vmatprep.subr.mxu0 0.0
    %5653 = vmatpush1.msra.mxu0 0.0
    %5654 = vmatprep.subr.mxu0 0.0
    %5655 = vmatpush1.msra.mxu0 0.0
    %5656 = vmatprep.subr.mxu0 0.0
    %5657 = vmatpush1.msra.mxu0 0.0
    %5658 = vmatprep.subr.mxu0 0.0
    %5659 = vmatpush1.msra.mxu0 0.0
    %5660 = vmatprep.subr.mxu0 0.0
    %5661 = vmatpush1.msra.mxu0 0.0
    %5662 = vmatprep.subr.mxu0 0.0
    %5663 = vmatpush1.msra.mxu0 0.0
    %5664 = vmatprep.subr.mxu0 0.0
    %5665 = vmatpush1.msra.mxu0 0.0
    %5666 = vmatprep.subr.mxu0 0.0
    %5667 = vmatpush1.msra.mxu0 0.0
    %5668 = vmatprep.subr.mxu0 0.0
    %5669 = vmatpush1.msra.mxu0 0.0
    %5670 = vmatprep.subr.mxu0 0.0
    %5671 = vmatpush1.msra.mxu0 0.0
    %5672 = vmatprep.subr.mxu0 0.0
    %5673 = vmatpush1.msra.mxu0 0.0
    %5674 = vmatprep.subr.mxu0 0.0
    %5675 = vmatpush1.msra.mxu0 0.0
    %5676 = vmatprep.subr.mxu0 0.0
    %5677 = vmatpush1.msra.mxu0 0.0
    %5678 = vmatprep.subr.mxu0 0.0
    %5679 = vmatpush1.msra.mxu0 0.0
    %5680 = vmatprep.subr.mxu0 0.0
    %5681 = vmatpush1.msra.mxu0 0.0
    %5682 = vmatprep.subr.mxu0 0.0
    %5683 = vmatpush1.msra.mxu0 0.0
    %5684 = vmatprep.mubr.f32.mxu0 0.0
    %5685 = vmatmul.mubr.f32.gmra.mrb[0].mxu0 %v5615
    %v5686 = vpop.f32.mrb[0].mxu0
    %v5687 = vadd.f32 0.0, %v5686
    %v5688 = vpop.f32.mrb[0].mxu0
    %v5689 = vadd.f32 0.0, %v5688
    %5690 = vdwg.mxu0
    %5691 = vmatprep.subr.mxu0 0.0
    %5692 = vmatpush1.msra.mxu0 %v3231
    %5693 = vmatprep.subr.mxu0 0.0
    %5694 = vmatpush1.msra.mxu0 %v3234
    %5695 = vmatprep.subr.mxu0 0.0
    %5696 = vmatpush1.msra.mxu0 %v3237
    %5697 = vmatprep.subr.mxu0 0.0
    %5698 = vmatpush1.msra.mxu0 %v3240
    %5699 = vmatprep.subr.mxu0 0.0
    %5700 = vmatpush1.msra.mxu0 %v3243
    %5701 = vmatprep.subr.mxu0 0.0
    %5702 = vmatpush1.msra.mxu0 %v3246
    %5703 = vmatprep.subr.mxu0 0.0
    %5704 = vmatpush1.msra.mxu0 %v3249
    %5705 = vmatprep.subr.mxu0 0.0
    %5706 = vmatpush1.msra.mxu0 %v3252
    %5707 = vmatprep.subr.mxu0 0.0
    %5708 = vmatpush1.msra.mxu0 %v3255
    %5709 = vmatprep.subr.mxu0 0.0
    %5710 = vmatpush1.msra.mxu0 %v3258
    %5711 = vmatprep.subr.mxu0 0.0
    %5712 = vmatpush1.msra.mxu0 %v3261
    %5713 = vmatprep.subr.mxu0 0.0
    %5714 = vmatpush1.msra.mxu0 %v3264
    %5715 = vmatprep.subr.mxu0 0.0
    %5716 = vmatpush1.msra.mxu0 %v3267
    %5717 = vmatprep.subr.mxu0 0.0
    %5718 = vmatpush1.msra.mxu0 %v3270
    %5719 = vmatprep.subr.mxu0 0.0
    %5720 = vmatpush1.msra.mxu0 %v3273
    %5721 = vmatprep.subr.mxu0 0.0
    %5722 = vmatpush1.msra.mxu0 %v3276
    %5723 = vmatprep.subr.mxu0 0.0
    %5724 = vmatpush1.msra.mxu0 0.0
    %5725 = vmatprep.subr.mxu0 0.0
    %5726 = vmatpush1.msra.mxu0 0.0
    %5727 = vmatprep.subr.mxu0 0.0
    %5728 = vmatpush1.msra.mxu0 0.0
    %5729 = vmatprep.subr.mxu0 0.0
    %5730 = vmatpush1.msra.mxu0 0.0
    %5731 = vmatprep.subr.mxu0 0.0
    %5732 = vmatpush1.msra.mxu0 0.0
    %5733 = vmatprep.subr.mxu0 0.0
    %5734 = vmatpush1.msra.mxu0 0.0
    %5735 = vmatprep.subr.mxu0 0.0
    %5736 = vmatpush1.msra.mxu0 0.0
    %5737 = vmatprep.subr.mxu0 0.0
    %5738 = vmatpush1.msra.mxu0 0.0
    %5739 = vmatprep.subr.mxu0 0.0
    %5740 = vmatpush1.msra.mxu0 0.0
    %5741 = vmatprep.subr.mxu0 0.0
    %5742 = vmatpush1.msra.mxu0 0.0
    %5743 = vmatprep.subr.mxu0 0.0
    %5744 = vmatpush1.msra.mxu0 0.0
    %5745 = vmatprep.subr.mxu0 0.0
    %5746 = vmatpush1.msra.mxu0 0.0
    %5747 = vmatprep.subr.mxu0 0.0
    %5748 = vmatpush1.msra.mxu0 0.0
    %5749 = vmatprep.subr.mxu0 0.0
    %5750 = vmatpush1.msra.mxu0 0.0
    %5751 = vmatprep.subr.mxu0 0.0
    %5752 = vmatpush1.msra.mxu0 0.0
    %5753 = vmatprep.subr.mxu0 0.0
    %5754 = vmatpush1.msra.mxu0 0.0
    %5755 = vmatprep.mubr.f32.mxu0 0.0
    %5756 = vmatmul.mubr.f32.gmra.mrb[0].mxu0 %v5615
    %v5757 = vpop.f32.mrb[0].mxu0
    %v5758 = vadd.f32 0.0, %v5757
    %v5759 = vpop.f32.mrb[0].mxu0
    %5760 = vdwg.mxu0
    %v5761 = vadd.f32 %v5617, %v5687
    %v5762 = vadd.f32 %v5618, %v5689
    %v5763 = vmul.f32 %v5761, 0.5
    %v5764 = vmul.f32 %v5762, 0.5
    %v5765 = vtanh.pop %v5763
    %v5766 = vtanh.pop %v5764
    %v5767 = vmul.f32 %v5765, 0.5
    %v5768 = vmul.f32 %v5766, 0.5
    %v5769 = vadd.f32 %v5767, 0.5
    %v5770 = vadd.f32 %v5768, 0.5
    %v5771 = vadd.f32 %v5758, %v3671
    %v5772 = vmul.f32 %v5769, %v5771
    %v5773 = vadd.f32 %v5619, %v5772
    %v5774 = vtanh.pop %v5773
    %v5775 = vsub.f32 %v5615, %v5774
    %v5776 = vmul.f32 %v5770, %v5775
    %v5777 = vadd.f32 %v5774, %v5776
    %5778 = vst [vmem:[#allocation2 + $0x60] sm:$0xff] %v5777
    %v5779 = vld [vmem:[#allocation3 + $0x138] sm:$0xff]
    %v5780 = vld [vmem:[#allocation3 + $0x140] sm:$0xff]
    %v5781 = vld [vmem:[#allocation3 + $0x148] sm:$0xff]
    %5782 = vmatprep.subr.mxu0 %v3230
    %5783 = vmatpush1.msra.mxu0 %v3229
    %5784 = vmatprep.subr.mxu0 %v3233
    %5785 = vmatpush1.msra.mxu0 %v3232
    %5786 = vmatprep.subr.mxu0 %v3236
    %5787 = vmatpush1.msra.mxu0 %v3235
    %5788 = vmatprep.subr.mxu0 %v3239
    %5789 = vmatpush1.msra.mxu0 %v3238
    %5790 = vmatprep.subr.mxu0 %v3242
    %5791 = vmatpush1.msra.mxu0 %v3241
    %5792 = vmatprep.subr.mxu0 %v3245
    %5793 = vmatpush1.msra.mxu0 %v3244
    %5794 = vmatprep.subr.mxu0 %v3248
    %5795 = vmatpush1.msra.mxu0 %v3247
    %5796 = vmatprep.subr.mxu0 %v3251
    %5797 = vmatpush1.msra.mxu0 %v3250
    %5798 = vmatprep.subr.mxu0 %v3254
    %5799 = vmatpush1.msra.mxu0 %v3253
    %5800 = vmatprep.subr.mxu0 %v3257
    %5801 = vmatpush1.msra.mxu0 %v3256
    %5802 = vmatprep.subr.mxu0 %v3260
    %5803 = vmatpush1.msra.mxu0 %v3259
    %5804 = vmatprep.subr.mxu0 %v3263
    %5805 = vmatpush1.msra.mxu0 %v3262
    %5806 = vmatprep.subr.mxu0 %v3266
    %5807 = vmatpush1.msra.mxu0 %v3265
    %5808 = vmatprep.subr.mxu0 %v3269
    %5809 = vmatpush1.msra.mxu0 %v3268
    %5810 = vmatprep.subr.mxu0 %v3272
    %5811 = vmatpush1.msra.mxu0 %v3271
    %5812 = vmatprep.subr.mxu0 %v3275
    %5813 = vmatpush1.msra.mxu0 %v3274
    %5814 = vmatprep.subr.mxu0 0.0
    %5815 = vmatpush1.msra.mxu0 0.0
    %5816 = vmatprep.subr.mxu0 0.0
    %5817 = vmatpush1.msra.mxu0 0.0
    %5818 = vmatprep.subr.mxu0 0.0
    %5819 = vmatpush1.msra.mxu0 0.0
    %5820 = vmatprep.subr.mxu0 0.0
    %5821 = vmatpush1.msra.mxu0 0.0
    %5822 = vmatprep.subr.mxu0 0.0
    %5823 = vmatpush1.msra.mxu0 0.0
    %5824 = vmatprep.subr.mxu0 0.0
    %5825 = vmatpush1.msra.mxu0 0.0
    %5826 = vmatprep.subr.mxu0 0.0
    %5827 = vmatpush1.msra.mxu0 0.0
    %5828 = vmatprep.subr.mxu0 0.0
    %5829 = vmatpush1.msra.mxu0 0.0
    %5830 = vmatprep.subr.mxu0 0.0
    %5831 = vmatpush1.msra.mxu0 0.0
    %5832 = vmatprep.subr.mxu0 0.0
    %5833 = vmatpush1.msra.mxu0 0.0
    %5834 = vmatprep.subr.mxu0 0.0
    %5835 = vmatpush1.msra.mxu0 0.0
    %5836 = vmatprep.subr.mxu0 0.0
    %5837 = vmatpush1.msra.mxu0 0.0
    %5838 = vmatprep.subr.mxu0 0.0
    %5839 = vmatpush1.msra.mxu0 0.0
    %5840 = vmatprep.subr.mxu0 0.0
    %5841 = vmatpush1.msra.mxu0 0.0
    %5842 = vmatprep.subr.mxu0 0.0
    %5843 = vmatpush1.msra.mxu0 0.0
    %5844 = vmatprep.subr.mxu0 0.0
    %5845 = vmatpush1.msra.mxu0 0.0
    %5846 = vmatprep.mubr.f32.mxu0 0.0
    %5847 = vmatmul.mubr.f32.gmra.mrb[0].mxu0 %v5777
    %v5848 = vpop.f32.mrb[0].mxu0
    %v5849 = vadd.f32 0.0, %v5848
    %v5850 = vpop.f32.mrb[0].mxu0
    %v5851 = vadd.f32 0.0, %v5850
    %5852 = vdwg.mxu0
    %5853 = vmatprep.subr.mxu0 0.0
    %5854 = vmatpush1.msra.mxu0 %v3231
    %5855 = vmatprep.subr.mxu0 0.0
    %5856 = vmatpush1.msra.mxu0 %v3234
    %5857 = vmatprep.subr.mxu0 0.0
    %5858 = vmatpush1.msra.mxu0 %v3237
    %5859 = vmatprep.subr.mxu0 0.0
    %5860 = vmatpush1.msra.mxu0 %v3240
    %5861 = vmatprep.subr.mxu0 0.0
    %5862 = vmatpush1.msra.mxu0 %v3243
    %5863 = vmatprep.subr.mxu0 0.0
    %5864 = vmatpush1.msra.mxu0 %v3246
    %5865 = vmatprep.subr.mxu0 0.0
    %5866 = vmatpush1.msra.mxu0 %v3249
    %5867 = vmatprep.subr.mxu0 0.0
    %5868 = vmatpush1.msra.mxu0 %v3252
    %5869 = vmatprep.subr.mxu0 0.0
    %5870 = vmatpush1.msra.mxu0 %v3255
    %5871 = vmatprep.subr.mxu0 0.0
    %5872 = vmatpush1.msra.mxu0 %v3258
    %5873 = vmatprep.subr.mxu0 0.0
    %5874 = vmatpush1.msra.mxu0 %v3261
    %5875 = vmatprep.subr.mxu0 0.0
    %5876 = vmatpush1.msra.mxu0 %v3264
    %5877 = vmatprep.subr.mxu0 0.0
    %5878 = vmatpush1.msra.mxu0 %v3267
    %5879 = vmatprep.subr.mxu0 0.0
    %5880 = vmatpush1.msra.mxu0 %v3270
    %5881 = vmatprep.subr.mxu0 0.0
    %5882 = vmatpush1.msra.mxu0 %v3273
    %5883 = vmatprep.subr.mxu0 0.0
    %5884 = vmatpush1.msra.mxu0 %v3276
    %5885 = vmatprep.subr.mxu0 0.0
    %5886 = vmatpush1.msra.mxu0 0.0
    %5887 = vmatprep.subr.mxu0 0.0
    %5888 = vmatpush1.msra.mxu0 0.0
    %5889 = vmatprep.subr.mxu0 0.0
    %5890 = vmatpush1.msra.mxu0 0.0
    %5891 = vmatprep.subr.mxu0 0.0
    %5892 = vmatpush1.msra.mxu0 0.0
    %5893 = vmatprep.subr.mxu0 0.0
    %5894 = vmatpush1.msra.mxu0 0.0
    %5895 = vmatprep.subr.mxu0 0.0
    %5896 = vmatpush1.msra.mxu0 0.0
    %5897 = vmatprep.subr.mxu0 0.0
    %5898 = vmatpush1.msra.mxu0 0.0
    %5899 = vmatprep.subr.mxu0 0.0
    %5900 = vmatpush1.msra.mxu0 0.0
    %5901 = vmatprep.subr.mxu0 0.0
    %5902 = vmatpush1.msra.mxu0 0.0
    %5903 = vmatprep.subr.mxu0 0.0
    %5904 = vmatpush1.msra.mxu0 0.0
    %5905 = vmatprep.subr.mxu0 0.0
    %5906 = vmatpush1.msra.mxu0 0.0
    %5907 = vmatprep.subr.mxu0 0.0
    %5908 = vmatpush1.msra.mxu0 0.0
    %5909 = vmatprep.subr.mxu0 0.0
    %5910 = vmatpush1.msra.mxu0 0.0
    %5911 = vmatprep.subr.mxu0 0.0
    %5912 = vmatpush1.msra.mxu0 0.0
    %5913 = vmatprep.subr.mxu0 0.0
    %5914 = vmatpush1.msra.mxu0 0.0
    %5915 = vmatprep.subr.mxu0 0.0
    %5916 = vmatpush1.msra.mxu0 0.0
    %5917 = vmatprep.mubr.f32.mxu0 0.0
    %5918 = vmatmul.mubr.f32.gmra.mrb[0].mxu0 %v5777
    %v5919 = vpop.f32.mrb[0].mxu0
    %v5920 = vadd.f32 0.0, %v5919
    %v5921 = vpop.f32.mrb[0].mxu0
    %5922 = vdwg.mxu0
    %v5923 = vadd.f32 %v5779, %v5849
    %v5924 = vadd.f32 %v5780, %v5851
    %v5925 = vmul.f32 %v5923, 0.5
    %v5926 = vmul.f32 %v5924, 0.5
    %v5927 = vtanh.pop %v5925
    %v5928 = vtanh.pop %v5926
    %v5929 = vmul.f32 %v5927, 0.5
    %v5930 = vmul.f32 %v5928, 0.5
    %v5931 = vadd.f32 %v5929, 0.5
    %v5932 = vadd.f32 %v5930, 0.5
    %v5933 = vadd.f32 %v5920, %v3671
    %v5934 = vmul.f32 %v5931, %v5933
    %v5935 = vadd.f32 %v5781, %v5934
    %v5936 = vtanh.pop %v5935
    %v5937 = vsub.f32 %v5777, %v5936
    %v5938 = vmul.f32 %v5932, %v5937
    %v5939 = vadd.f32 %v5936, %v5938
    %5940 = vst [vmem:[#allocation2 + $0x68] sm:$0xff] %v5939
    %v5941 = vld [vmem:[#allocation3 + $0x150] sm:$0xff]
    %v5942 = vld [vmem:[#allocation3 + $0x158] sm:$0xff]
    %v5943 = vld [vmem:[#allocation3 + $0x160] sm:$0xff]
    %5944 = vmatprep.subr.mxu0 %v3230
    %5945 = vmatpush1.msra.mxu0 %v3229
    %5946 = vmatprep.subr.mxu0 %v3233
    %5947 = vmatpush1.msra.mxu0 %v3232
    %5948 = vmatprep.subr.mxu0 %v3236
    %5949 = vmatpush1.msra.mxu0 %v3235
    %5950 = vmatprep.subr.mxu0 %v3239
    %5951 = vmatpush1.msra.mxu0 %v3238
    %5952 = vmatprep.subr.mxu0 %v3242
    %5953 = vmatpush1.msra.mxu0 %v3241
    %5954 = vmatprep.subr.mxu0 %v3245
    %5955 = vmatpush1.msra.mxu0 %v3244
    %5956 = vmatprep.subr.mxu0 %v3248
    %5957 = vmatpush1.msra.mxu0 %v3247
    %5958 = vmatprep.subr.mxu0 %v3251
    %5959 = vmatpush1.msra.mxu0 %v3250
    %5960 = vmatprep.subr.mxu0 %v3254
    %5961 = vmatpush1.msra.mxu0 %v3253
    %5962 = vmatprep.subr.mxu0 %v3257
    %5963 = vmatpush1.msra.mxu0 %v3256
    %5964 = vmatprep.subr.mxu0 %v3260
    %5965 = vmatpush1.msra.mxu0 %v3259
    %5966 = vmatprep.subr.mxu0 %v3263
    %5967 = vmatpush1.msra.mxu0 %v3262
    %5968 = vmatprep.subr.mxu0 %v3266
    %5969 = vmatpush1.msra.mxu0 %v3265
    %5970 = vmatprep.subr.mxu0 %v3269
    %5971 = vmatpush1.msra.mxu0 %v3268
    %5972 = vmatprep.subr.mxu0 %v3272
    %5973 = vmatpush1.msra.mxu0 %v3271
    %5974 = vmatprep.subr.mxu0 %v3275
    %5975 = vmatpush1.msra.mxu0 %v3274
    %5976 = vmatprep.subr.mxu0 0.0
    %5977 = vmatpush1.msra.mxu0 0.0
    %5978 = vmatprep.subr.mxu0 0.0
    %5979 = vmatpush1.msra.mxu0 0.0
    %5980 = vmatprep.subr.mxu0 0.0
    %5981 = vmatpush1.msra.mxu0 0.0
    %5982 = vmatprep.subr.mxu0 0.0
    %5983 = vmatpush1.msra.mxu0 0.0
    %5984 = vmatprep.subr.mxu0 0.0
    %5985 = vmatpush1.msra.mxu0 0.0
    %5986 = vmatprep.subr.mxu0 0.0
    %5987 = vmatpush1.msra.mxu0 0.0
    %5988 = vmatprep.subr.mxu0 0.0
    %5989 = vmatpush1.msra.mxu0 0.0
    %5990 = vmatprep.subr.mxu0 0.0
    %5991 = vmatpush1.msra.mxu0 0.0
    %5992 = vmatprep.subr.mxu0 0.0
    %5993 = vmatpush1.msra.mxu0 0.0
    %5994 = vmatprep.subr.mxu0 0.0
    %5995 = vmatpush1.msra.mxu0 0.0
    %5996 = vmatprep.subr.mxu0 0.0
    %5997 = vmatpush1.msra.mxu0 0.0
    %5998 = vmatprep.subr.mxu0 0.0
    %5999 = vmatpush1.msra.mxu0 0.0
    %6000 = vmatprep.subr.mxu0 0.0
    %6001 = vmatpush1.msra.mxu0 0.0
    %6002 = vmatprep.subr.mxu0 0.0
    %6003 = vmatpush1.msra.mxu0 0.0
    %6004 = vmatprep.subr.mxu0 0.0
    %6005 = vmatpush1.msra.mxu0 0.0
    %6006 = vmatprep.subr.mxu0 0.0
    %6007 = vmatpush1.msra.mxu0 0.0
    %6008 = vmatprep.mubr.f32.mxu0 0.0
    %6009 = vmatmul.mubr.f32.gmra.mrb[0].mxu0 %v5939
    %v6010 = vpop.f32.mrb[0].mxu0
    %v6011 = vadd.f32 0.0, %v6010
    %v6012 = vpop.f32.mrb[0].mxu0
    %v6013 = vadd.f32 0.0, %v6012
    %6014 = vdwg.mxu0
    %6015 = vmatprep.subr.mxu0 0.0
    %6016 = vmatpush1.msra.mxu0 %v3231
    %6017 = vmatprep.subr.mxu0 0.0
    %6018 = vmatpush1.msra.mxu0 %v3234
    %6019 = vmatprep.subr.mxu0 0.0
    %6020 = vmatpush1.msra.mxu0 %v3237
    %6021 = vmatprep.subr.mxu0 0.0
    %6022 = vmatpush1.msra.mxu0 %v3240
    %6023 = vmatprep.subr.mxu0 0.0
    %6024 = vmatpush1.msra.mxu0 %v3243
    %6025 = vmatprep.subr.mxu0 0.0
    %6026 = vmatpush1.msra.mxu0 %v3246
    %6027 = vmatprep.subr.mxu0 0.0
    %6028 = vmatpush1.msra.mxu0 %v3249
    %6029 = vmatprep.subr.mxu0 0.0
    %6030 = vmatpush1.msra.mxu0 %v3252
    %6031 = vmatprep.subr.mxu0 0.0
    %6032 = vmatpush1.msra.mxu0 %v3255
    %6033 = vmatprep.subr.mxu0 0.0
    %6034 = vmatpush1.msra.mxu0 %v3258
    %6035 = vmatprep.subr.mxu0 0.0
    %6036 = vmatpush1.msra.mxu0 %v3261
    %6037 = vmatprep.subr.mxu0 0.0
    %6038 = vmatpush1.msra.mxu0 %v3264
    %6039 = vmatprep.subr.mxu0 0.0
    %6040 = vmatpush1.msra.mxu0 %v3267
    %6041 = vmatprep.subr.mxu0 0.0
    %6042 = vmatpush1.msra.mxu0 %v3270
    %6043 = vmatprep.subr.mxu0 0.0
    %6044 = vmatpush1.msra.mxu0 %v3273
    %6045 = vmatprep.subr.mxu0 0.0
    %6046 = vmatpush1.msra.mxu0 %v3276
    %6047 = vmatprep.subr.mxu0 0.0
    %6048 = vmatpush1.msra.mxu0 0.0
    %6049 = vmatprep.subr.mxu0 0.0
    %6050 = vmatpush1.msra.mxu0 0.0
    %6051 = vmatprep.subr.mxu0 0.0
    %6052 = vmatpush1.msra.mxu0 0.0
    %6053 = vmatprep.subr.mxu0 0.0
    %6054 = vmatpush1.msra.mxu0 0.0
    %6055 = vmatprep.subr.mxu0 0.0
    %6056 = vmatpush1.msra.mxu0 0.0
    %6057 = vmatprep.subr.mxu0 0.0
    %6058 = vmatpush1.msra.mxu0 0.0
    %6059 = vmatprep.subr.mxu0 0.0
    %6060 = vmatpush1.msra.mxu0 0.0
    %6061 = vmatprep.subr.mxu0 0.0
    %6062 = vmatpush1.msra.mxu0 0.0
    %6063 = vmatprep.subr.mxu0 0.0
    %6064 = vmatpush1.msra.mxu0 0.0
    %6065 = vmatprep.subr.mxu0 0.0
    %6066 = vmatpush1.msra.mxu0 0.0
    %6067 = vmatprep.subr.mxu0 0.0
    %6068 = vmatpush1.msra.mxu0 0.0
    %6069 = vmatprep.subr.mxu0 0.0
    %6070 = vmatpush1.msra.mxu0 0.0
    %6071 = vmatprep.subr.mxu0 0.0
    %6072 = vmatpush1.msra.mxu0 0.0
    %6073 = vmatprep.subr.mxu0 0.0
    %6074 = vmatpush1.msra.mxu0 0.0
    %6075 = vmatprep.subr.mxu0 0.0
    %6076 = vmatpush1.msra.mxu0 0.0
    %6077 = vmatprep.subr.mxu0 0.0
    %6078 = vmatpush1.msra.mxu0 0.0
    %6079 = vmatprep.mubr.f32.mxu0 0.0
    %6080 = vmatmul.mubr.f32.gmra.mrb[0].mxu0 %v5939
    %v6081 = vpop.f32.mrb[0].mxu0
    %v6082 = vadd.f32 0.0, %v6081
    %v6083 = vpop.f32.mrb[0].mxu0
    %6084 = vdwg.mxu0
    %v6085 = vadd.f32 %v5941, %v6011
    %v6086 = vadd.f32 %v5942, %v6013
    %v6087 = vmul.f32 %v6085, 0.5
    %v6088 = vmul.f32 %v6086, 0.5
    %v6089 = vtanh.pop %v6087
    %v6090 = vtanh.pop %v6088
    %v6091 = vmul.f32 %v6089, 0.5
    %v6092 = vmul.f32 %v6090, 0.5
    %v6093 = vadd.f32 %v6091, 0.5
    %v6094 = vadd.f32 %v6092, 0.5
    %v6095 = vadd.f32 %v6082, %v3671
    %v6096 = vmul.f32 %v6093, %v6095
    %v6097 = vadd.f32 %v5943, %v6096
    %v6098 = vtanh.pop %v6097
    %v6099 = vsub.f32 %v5939, %v6098
    %v6100 = vmul.f32 %v6094, %v6099
    %v6101 = vadd.f32 %v6098, %v6100
    %6102 = vst [vmem:[#allocation2 + $0x70] sm:$0xff] %v6101
    %v6103 = vld [vmem:[#allocation3 + $0x168] sm:$0xff]
    %v6104 = vld [vmem:[#allocation3 + $0x170] sm:$0xff]
    %v6105 = vld [vmem:[#allocation3 + $0x178] sm:$0xff]
    %6106 = vmatprep.subr.mxu0 %v3230
    %6107 = vmatpush1.msra.mxu0 %v3229
    %6108 = vmatprep.subr.mxu0 %v3233
    %6109 = vmatpush1.msra.mxu0 %v3232
    %6110 = vmatprep.subr.mxu0 %v3236
    %6111 = vmatpush1.msra.mxu0 %v3235
    %6112 = vmatprep.subr.mxu0 %v3239
    %6113 = vmatpush1.msra.mxu0 %v3238
    %6114 = vmatprep.subr.mxu0 %v3242
    %6115 = vmatpush1.msra.mxu0 %v3241
    %6116 = vmatprep.subr.mxu0 %v3245
    %6117 = vmatpush1.msra.mxu0 %v3244
    %6118 = vmatprep.subr.mxu0 %v3248
    %6119 = vmatpush1.msra.mxu0 %v3247
    %6120 = vmatprep.subr.mxu0 %v3251
    %6121 = vmatpush1.msra.mxu0 %v3250
    %6122 = vmatprep.subr.mxu0 %v3254
    %6123 = vmatpush1.msra.mxu0 %v3253
    %6124 = vmatprep.subr.mxu0 %v3257
    %6125 = vmatpush1.msra.mxu0 %v3256
    %6126 = vmatprep.subr.mxu0 %v3260
    %6127 = vmatpush1.msra.mxu0 %v3259
    %6128 = vmatprep.subr.mxu0 %v3263
    %6129 = vmatpush1.msra.mxu0 %v3262
    %6130 = vmatprep.subr.mxu0 %v3266
    %6131 = vmatpush1.msra.mxu0 %v3265
    %6132 = vmatprep.subr.mxu0 %v3269
    %6133 = vmatpush1.msra.mxu0 %v3268
    %6134 = vmatprep.subr.mxu0 %v3272
    %6135 = vmatpush1.msra.mxu0 %v3271
    %6136 = vmatprep.subr.mxu0 %v3275
    %6137 = vmatpush1.msra.mxu0 %v3274
    %6138 = vmatprep.subr.mxu0 0.0
    %6139 = vmatpush1.msra.mxu0 0.0
    %6140 = vmatprep.subr.mxu0 0.0
    %6141 = vmatpush1.msra.mxu0 0.0
    %6142 = vmatprep.subr.mxu0 0.0
    %6143 = vmatpush1.msra.mxu0 0.0
    %6144 = vmatprep.subr.mxu0 0.0
    %6145 = vmatpush1.msra.mxu0 0.0
    %6146 = vmatprep.subr.mxu0 0.0
    %6147 = vmatpush1.msra.mxu0 0.0
    %6148 = vmatprep.subr.mxu0 0.0
    %6149 = vmatpush1.msra.mxu0 0.0
    %6150 = vmatprep.subr.mxu0 0.0
    %6151 = vmatpush1.msra.mxu0 0.0
    %6152 = vmatprep.subr.mxu0 0.0
    %6153 = vmatpush1.msra.mxu0 0.0
    %6154 = vmatprep.subr.mxu0 0.0
    %6155 = vmatpush1.msra.mxu0 0.0
    %6156 = vmatprep.subr.mxu0 0.0
    %6157 = vmatpush1.msra.mxu0 0.0
    %6158 = vmatprep.subr.mxu0 0.0
    %6159 = vmatpush1.msra.mxu0 0.0
    %6160 = vmatprep.subr.mxu0 0.0
    %6161 = vmatpush1.msra.mxu0 0.0
    %6162 = vmatprep.subr.mxu0 0.0
    %6163 = vmatpush1.msra.mxu0 0.0
    %6164 = vmatprep.subr.mxu0 0.0
    %6165 = vmatpush1.msra.mxu0 0.0
    %6166 = vmatprep.subr.mxu0 0.0
    %6167 = vmatpush1.msra.mxu0 0.0
    %6168 = vmatprep.subr.mxu0 0.0
    %6169 = vmatpush1.msra.mxu0 0.0
    %6170 = vmatprep.mubr.f32.mxu0 0.0
    %6171 = vmatmul.mubr.f32.gmra.mrb[0].mxu0 %v6101
    %v6172 = vpop.f32.mrb[0].mxu0
    %v6173 = vadd.f32 0.0, %v6172
    %v6174 = vpop.f32.mrb[0].mxu0
    %v6175 = vadd.f32 0.0, %v6174
    %6176 = vdwg.mxu0
    %6177 = vmatprep.subr.mxu0 0.0
    %6178 = vmatpush1.msra.mxu0 %v3231
    %6179 = vmatprep.subr.mxu0 0.0
    %6180 = vmatpush1.msra.mxu0 %v3234
    %6181 = vmatprep.subr.mxu0 0.0
    %6182 = vmatpush1.msra.mxu0 %v3237
    %6183 = vmatprep.subr.mxu0 0.0
    %6184 = vmatpush1.msra.mxu0 %v3240
    %6185 = vmatprep.subr.mxu0 0.0
    %6186 = vmatpush1.msra.mxu0 %v3243
    %6187 = vmatprep.subr.mxu0 0.0
    %6188 = vmatpush1.msra.mxu0 %v3246
    %6189 = vmatprep.subr.mxu0 0.0
    %6190 = vmatpush1.msra.mxu0 %v3249
    %6191 = vmatprep.subr.mxu0 0.0
    %6192 = vmatpush1.msra.mxu0 %v3252
    %6193 = vmatprep.subr.mxu0 0.0
    %6194 = vmatpush1.msra.mxu0 %v3255
    %6195 = vmatprep.subr.mxu0 0.0
    %6196 = vmatpush1.msra.mxu0 %v3258
    %6197 = vmatprep.subr.mxu0 0.0
    %6198 = vmatpush1.msra.mxu0 %v3261
    %6199 = vmatprep.subr.mxu0 0.0
    %6200 = vmatpush1.msra.mxu0 %v3264
    %6201 = vmatprep.subr.mxu0 0.0
    %6202 = vmatpush1.msra.mxu0 %v3267
    %6203 = vmatprep.subr.mxu0 0.0
    %6204 = vmatpush1.msra.mxu0 %v3270
    %6205 = vmatprep.subr.mxu0 0.0
    %6206 = vmatpush1.msra.mxu0 %v3273
    %6207 = vmatprep.subr.mxu0 0.0
    %6208 = vmatpush1.msra.mxu0 %v3276
    %6209 = vmatprep.subr.mxu0 0.0
    %6210 = vmatpush1.msra.mxu0 0.0
    %6211 = vmatprep.subr.mxu0 0.0
    %6212 = vmatpush1.msra.mxu0 0.0
    %6213 = vmatprep.subr.mxu0 0.0
    %6214 = vmatpush1.msra.mxu0 0.0
    %6215 = vmatprep.subr.mxu0 0.0
    %6216 = vmatpush1.msra.mxu0 0.0
    %6217 = vmatprep.subr.mxu0 0.0
    %6218 = vmatpush1.msra.mxu0 0.0
    %6219 = vmatprep.subr.mxu0 0.0
    %6220 = vmatpush1.msra.mxu0 0.0
    %6221 = vmatprep.subr.mxu0 0.0
    %6222 = vmatpush1.msra.mxu0 0.0
    %6223 = vmatprep.subr.mxu0 0.0
    %6224 = vmatpush1.msra.mxu0 0.0
    %6225 = vmatprep.subr.mxu0 0.0
    %6226 = vmatpush1.msra.mxu0 0.0
    %6227 = vmatprep.subr.mxu0 0.0
    %6228 = vmatpush1.msra.mxu0 0.0
    %6229 = vmatprep.subr.mxu0 0.0
    %6230 = vmatpush1.msra.mxu0 0.0
    %6231 = vmatprep.subr.mxu0 0.0
    %6232 = vmatpush1.msra.mxu0 0.0
    %6233 = vmatprep.subr.mxu0 0.0
    %6234 = vmatpush1.msra.mxu0 0.0
    %6235 = vmatprep.subr.mxu0 0.0
    %6236 = vmatpush1.msra.mxu0 0.0
    %6237 = vmatprep.subr.mxu0 0.0
    %6238 = vmatpush1.msra.mxu0 0.0
    %6239 = vmatprep.subr.mxu0 0.0
    %6240 = vmatpush1.msra.mxu0 0.0
    %6241 = vmatprep.mubr.f32.mxu0 0.0
    %6242 = vmatmul.mubr.f32.gmra.mrb[0].mxu0 %v6101
    %v6243 = vpop.f32.mrb[0].mxu0
    %v6244 = vadd.f32 0.0, %v6243
    %v6245 = vpop.f32.mrb[0].mxu0
    %6246 = vdwg.mxu0
    %v6247 = vadd.f32 %v6103, %v6173
    %v6248 = vadd.f32 %v6104, %v6175
    %v6249 = vmul.f32 %v6247, 0.5
    %v6250 = vmul.f32 %v6248, 0.5
    %v6251 = vtanh.pop %v6249
    %v6252 = vtanh.pop %v6250
    %v6253 = vmul.f32 %v6251, 0.5
    %v6254 = vmul.f32 %v6252, 0.5
    %v6255 = vadd.f32 %v6253, 0.5
    %v6256 = vadd.f32 %v6254, 0.5
    %v6257 = vadd.f32 %v6244, %v3671
    %v6258 = vmul.f32 %v6255, %v6257
    %v6259 = vadd.f32 %v6105, %v6258
    %v6260 = vtanh.pop %v6259
    %v6261 = vsub.f32 %v6101, %v6260
    %v6262 = vmul.f32 %v6256, %v6261
    %v6263 = vadd.f32 %v6260, %v6262
    %6264 = vst [vmem:[#allocation2 + $0x78] sm:$0xff] %v6263
    %v6265 = vld [vmem:[#allocation2] sm:$0xff]
    %v6266 = vld [vmem:[#allocation2 + $0x8] sm:$0xff]
    %v6267 = vld [vmem:[#allocation2 + $0x10] sm:$0xff]
    %v6268 = vld [vmem:[#allocation2 + $0x18] sm:$0xff]
    %v6269 = vld [vmem:[#allocation2 + $0x20] sm:$0xff]
    %v6270 = vld [vmem:[#allocation2 + $0x28] sm:$0xff]
    %v6271 = vld [vmem:[#allocation2 + $0x30] sm:$0xff]
    %v6272 = vld [vmem:[#allocation2 + $0x38] sm:$0xff]
    %v6273 = vld [vmem:[#allocation2 + $0x40] sm:$0xff]
    %v6274 = vld [vmem:[#allocation2 + $0x48] sm:$0xff]
    %v6275 = vld [vmem:[#allocation2 + $0x50] sm:$0xff]
    %v6276 = vld [vmem:[#allocation2 + $0x58] sm:$0xff]
    %v6277 = vld [vmem:[#allocation2 + $0x60] sm:$0xff]
    %v6278 = vld [vmem:[#allocation2 + $0x68] sm:$0xff]
    %v6279 = vld [vmem:[#allocation2 + $0x70] sm:$0xff]
    %v6280 = vld [vmem:[#allocation2 + $0x78] sm:$0xff]
    %v6281 = vld [vmem:[#allocation12] sm:$0xff]
    %v6282 = vld [vmem:[#allocation12 + $0x8] sm:$0xff]
    %v6283 = vld [vmem:[#allocation12 + $0x10] sm:$0xff]
    %v6284 = vld [vmem:[#allocation12 + $0x18] sm:$0xff]
    %v6285 = vld [vmem:[#allocation12 + $0x20] sm:$0xff]
    %v6286 = vld [vmem:[#allocation12 + $0x28] sm:$0xff]
    %v6287 = vld [vmem:[#allocation12 + $0x30] sm:$0xff]
    %v6288 = vld [vmem:[#allocation12 + $0x38] sm:$0xff]
    %v6289 = vld [vmem:[#allocation12 + $0x40] sm:$0xff]
    %v6290 = vld [vmem:[#allocation12 + $0x48] sm:$0xff]
    %v6291 = vld [vmem:[#allocation12 + $0x50] sm:$0xff]
    %v6292 = vld [vmem:[#allocation12 + $0x58] sm:$0xff]
    %v6293 = vld [vmem:[#allocation12 + $0x60] sm:$0xff]
    %v6294 = vld [vmem:[#allocation12 + $0x68] sm:$0xff]
    %v6295 = vld [vmem:[#allocation12 + $0x70] sm:$0xff]
    %v6296 = vld [vmem:[#allocation12 + $0x78] sm:$0xff]
    %v6297 = vld [vmem:[%s7] sm:$0x1]
    %v6299 = vlaneseq
    %v6300 = vshrl.u32 %v6299, 7
    %v6301 = vsub.s32 0, %v6300
    %v6302 = vrot.slane %v6297, %v6301
    %6304 = vmatprep.subr.mxu0 0.0
    %6305 = vmatpush1.msra.mxu0 %v6281
    %6306 = vmatprep.subr.mxu0 0.0
    %6307 = vmatpush1.msra.mxu0 %v6282
    %6308 = vmatprep.subr.mxu0 0.0
    %6309 = vmatpush1.msra.mxu0 %v6283
    %6310 = vmatprep.subr.mxu0 0.0
    %6311 = vmatpush1.msra.mxu0 %v6284
    %6312 = vmatprep.subr.mxu0 0.0
    %6313 = vmatpush1.msra.mxu0 %v6285
    %6314 = vmatprep.subr.mxu0 0.0
    %6315 = vmatpush1.msra.mxu0 %v6286
    %6316 = vmatprep.subr.mxu0 0.0
    %6317 = vmatpush1.msra.mxu0 %v6287
    %6318 = vmatprep.subr.mxu0 0.0
    %6319 = vmatpush1.msra.mxu0 %v6288
    %6320 = vmatprep.subr.mxu0 0.0
    %6321 = vmatpush1.msra.mxu0 %v6289
    %6322 = vmatprep.subr.mxu0 0.0
    %6323 = vmatpush1.msra.mxu0 %v6290
    %6324 = vmatprep.subr.mxu0 0.0
    %6325 = vmatpush1.msra.mxu0 %v6291
    %6326 = vmatprep.subr.mxu0 0.0
    %6327 = vmatpush1.msra.mxu0 %v6292
    %6328 = vmatprep.subr.mxu0 0.0
    %6329 = vmatpush1.msra.mxu0 %v6293
    %6330 = vmatprep.subr.mxu0 0.0
    %6331 = vmatpush1.msra.mxu0 %v6294
    %6332 = vmatprep.subr.mxu0 0.0
    %6333 = vmatpush1.msra.mxu0 %v6295
    %6334 = vmatprep.subr.mxu0 0.0
    %6335 = vmatpush1.msra.mxu0 %v6296
    %6336 = vmatprep.subr.mxu0 0.0
    %6337 = vmatpush1.msra.mxu0 0.0
    %6338 = vmatprep.subr.mxu0 0.0
    %6339 = vmatpush1.msra.mxu0 0.0
    %6340 = vmatprep.subr.mxu0 0.0
    %6341 = vmatpush1.msra.mxu0 0.0
    %6342 = vmatprep.subr.mxu0 0.0
    %6343 = vmatpush1.msra.mxu0 0.0
    %6344 = vmatprep.subr.mxu0 0.0
    %6345 = vmatpush1.msra.mxu0 0.0
    %6346 = vmatprep.subr.mxu0 0.0
    %6347 = vmatpush1.msra.mxu0 0.0
    %6348 = vmatprep.subr.mxu0 0.0
    %6349 = vmatpush1.msra.mxu0 0.0
    %6350 = vmatprep.subr.mxu0 0.0
    %6351 = vmatpush1.msra.mxu0 0.0
    %6352 = vmatprep.subr.mxu0 0.0
    %6353 = vmatpush1.msra.mxu0 0.0
    %6354 = vmatprep.subr.mxu0 0.0
    %6355 = vmatpush1.msra.mxu0 0.0
    %6356 = vmatprep.subr.mxu0 0.0
    %6357 = vmatpush1.msra.mxu0 0.0
    %6358 = vmatprep.subr.mxu0 0.0
    %6359 = vmatpush1.msra.mxu0 0.0
    %6360 = vmatprep.subr.mxu0 0.0
    %6361 = vmatpush1.msra.mxu0 0.0
    %6362 = vmatprep.subr.mxu0 0.0
    %6363 = vmatpush1.msra.mxu0 0.0
    %6364 = vmatprep.subr.mxu0 0.0
    %6365 = vmatpush1.msra.mxu0 0.0
    %6366 = vmatprep.subr.mxu0 0.0
    %6367 = vmatpush1.msra.mxu0 0.0
    %6368 = vmatprep.mubr.f32.mxu0 0.0
    %6369 = vmatmul.mubr.f32.gmra.mrb[0].mxu0 %v6265
    %v6370 = vpop.f32.mrb[0].mxu0
    %v6371 = vadd.f32 %v6302, %v6370
    %v6372 = vpop.f32.mrb[0].mxu0
    %6373 = vmatprep.mubr.f32.mxu0 0.0
    %6374 = vmatmul.mubr.f32.gmra.mrb[0].mxu0 %v6266
    %v6375 = vpop.f32.mrb[0].mxu0
    %v6376 = vadd.f32 %v6302, %v6375
    %v6377 = vpop.f32.mrb[0].mxu0
    %6378 = vmatprep.mubr.f32.mxu0 0.0
    %6379 = vmatmul.mubr.f32.gmra.mrb[0].mxu0 %v6267
    %v6380 = vpop.f32.mrb[0].mxu0
    %v6381 = vadd.f32 %v6302, %v6380
    %v6382 = vpop.f32.mrb[0].mxu0
    %6383 = vmatprep.mubr.f32.mxu0 0.0
    %6384 = vmatmul.mubr.f32.gmra.mrb[0].mxu0 %v6268
    %v6385 = vpop.f32.mrb[0].mxu0
    %v6386 = vadd.f32 %v6302, %v6385
    %v6387 = vpop.f32.mrb[0].mxu0
    %6388 = vmatprep.mubr.f32.mxu0 0.0
    %6389 = vmatmul.mubr.f32.gmra.mrb[0].mxu0 %v6269
    %v6390 = vpop.f32.mrb[0].mxu0
    %v6391 = vadd.f32 %v6302, %v6390
    %v6392 = vpop.f32.mrb[0].mxu0
    %6393 = vmatprep.mubr.f32.mxu0 0.0
    %6394 = vmatmul.mubr.f32.gmra.mrb[0].mxu0 %v6270
    %v6395 = vpop.f32.mrb[0].mxu0
    %v6396 = vadd.f32 %v6302, %v6395
    %v6397 = vpop.f32.mrb[0].mxu0
    %6398 = vmatprep.mubr.f32.mxu0 0.0
    %6399 = vmatmul.mubr.f32.gmra.mrb[0].mxu0 %v6271
    %v6400 = vpop.f32.mrb[0].mxu0
    %v6401 = vadd.f32 %v6302, %v6400
    %v6402 = vpop.f32.mrb[0].mxu0
    %6403 = vmatprep.mubr.f32.mxu0 0.0
    %6404 = vmatmul.mubr.f32.gmra.mrb[0].mxu0 %v6272
    %v6405 = vpop.f32.mrb[0].mxu0
    %v6406 = vadd.f32 %v6302, %v6405
    %v6407 = vpop.f32.mrb[0].mxu0
    %6408 = vmatprep.mubr.f32.mxu0 0.0
    %6409 = vmatmul.mubr.f32.gmra.mrb[0].mxu0 %v6273
    %v6410 = vpop.f32.mrb[0].mxu0
    %v6411 = vadd.f32 %v6302, %v6410
    %v6412 = vpop.f32.mrb[0].mxu0
    %6413 = vmatprep.mubr.f32.mxu0 0.0
    %6414 = vmatmul.mubr.f32.gmra.mrb[0].mxu0 %v6274
    %v6415 = vpop.f32.mrb[0].mxu0
    %v6416 = vadd.f32 %v6302, %v6415
    %v6417 = vpop.f32.mrb[0].mxu0
    %6418 = vmatprep.mubr.f32.mxu0 0.0
    %6419 = vmatmul.mubr.f32.gmra.mrb[0].mxu0 %v6275
    %v6420 = vpop.f32.mrb[0].mxu0
    %v6421 = vadd.f32 %v6302, %v6420
    %v6422 = vpop.f32.mrb[0].mxu0
    %6423 = vmatprep.mubr.f32.mxu0 0.0
    %6424 = vmatmul.mubr.f32.gmra.mrb[0].mxu0 %v6276
    %v6425 = vpop.f32.mrb[0].mxu0
    %v6426 = vadd.f32 %v6302, %v6425
    %v6427 = vpop.f32.mrb[0].mxu0
    %6428 = vmatprep.mubr.f32.mxu0 0.0
    %6429 = vmatmul.mubr.f32.gmra.mrb[0].mxu0 %v6277
    %v6430 = vpop.f32.mrb[0].mxu0
    %v6431 = vadd.f32 %v6302, %v6430
    %v6432 = vpop.f32.mrb[0].mxu0
    %6433 = vmatprep.mubr.f32.mxu0 0.0
    %6434 = vmatmul.mubr.f32.gmra.mrb[0].mxu0 %v6278
    %v6435 = vpop.f32.mrb[0].mxu0
    %v6436 = vadd.f32 %v6302, %v6435
    %v6437 = vpop.f32.mrb[0].mxu0
    %6438 = vmatprep.mubr.f32.mxu0 0.0
    %6439 = vmatmul.mubr.f32.gmra.mrb[0].mxu0 %v6279
    %v6440 = vpop.f32.mrb[0].mxu0
    %v6441 = vadd.f32 %v6302, %v6440
    %v6442 = vpop.f32.mrb[0].mxu0
    %6443 = vmatprep.mubr.f32.mxu0 0.0
    %6444 = vmatmul.mubr.f32.gmra.mrb[0].mxu0 %v6280
    %v6445 = vpop.f32.mrb[0].mxu0
    %v6446 = vadd.f32 %v6302, %v6445
    %v6447 = vpop.f32.mrb[0].mxu0
    %6448 = vdwg.mxu0
    %6449 = vst [vmem:[#allocation13] sm:$0xff] %v6371
    %6450 = vst [vmem:[#allocation13 + $0x8] sm:$0xff] %v6376
    %6451 = vst [vmem:[#allocation13 + $0x10] sm:$0xff] %v6381
    %6452 = vst [vmem:[#allocation13 + $0x18] sm:$0xff] %v6386
    %6453 = vst [vmem:[#allocation13 + $0x20] sm:$0xff] %v6391
    %6454 = vst [vmem:[#allocation13 + $0x28] sm:$0xff] %v6396
    %6455 = vst [vmem:[#allocation13 + $0x30] sm:$0xff] %v6401
    %6456 = vst [vmem:[#allocation13 + $0x38] sm:$0xff] %v6406
    %6457 = vst [vmem:[#allocation13 + $0x40] sm:$0xff] %v6411
    %6458 = vst [vmem:[#allocation13 + $0x48] sm:$0xff] %v6416
    %6459 = vst [vmem:[#allocation13 + $0x50] sm:$0xff] %v6421
    %6460 = vst [vmem:[#allocation13 + $0x58] sm:$0xff] %v6426
    %6461 = vst [vmem:[#allocation13 + $0x60] sm:$0xff] %v6431
    %6462 = vst [vmem:[#allocation13 + $0x68] sm:$0xff] %v6436
    %6463 = vst [vmem:[#allocation13 + $0x70] sm:$0xff] %v6441
    %6464 = vst [vmem:[#allocation13 + $0x78] sm:$0xff] %v6446
    // Predicated region
    $region54: #{tpu_custom_call.1} parent=1 // pred_check
      _
    $region55: #{tpu_custom_call.1} parent=1 // pred_check_branch
      %6466 = sbr.rel (0) target = $region57
    $region56: #{tpu_custom_call.1} parent=1 // pred_region
      %s6468 = ssub.s32 2048, 2048
      %6469 = vsyncadd [#allocation6], %s6468
      %s6470 = sshll.u32 [#allocation13], 4
      %s6471 = int_to_ptr.vmem [resolvable:$true] %s6470
      %6476 = dma.vmem_to_hbm [thread:$0]  %s6471, 2048, %s8, [#allocation6], 128, 128, 8
    $region57: #{tpu_custom_call.1} parent=1 // pred_fallthru
      _
    // Predicated region
    $region58: #{tpu_custom_call.1} parent=1 // pred_check
      _
    $region59: #{tpu_custom_call.1} parent=1 // pred_check_branch
      %6478 = sbr.rel (0) target = $region61
    $region60: #{tpu_custom_call.1} parent=1 // pred_region
      %6479 = dma.done [#allocation6], 2048
    $region61: #{tpu_custom_call.1} parent=1 // pred_fallthru
      _
    %6480 = vsyncpa [#allocation5], 1
    %6481 = vsyncpa [#allocation8], 1
    %6482 = vsyncpa [#allocation11], 1
    %6483 = vsyncpa [#allocation6], 1

</llo_original>
